<compile_context>
chip_gen: v7x
topology: tpu7x:2x2x1
jax: 0.10.0
libtpu: 0.0.40
codegen_flags: <defaults>
</compile_context>

<pallas_src>
import jax
import jax.numpy as jnp
import numpy as np
from jax.experimental import pallas as pl
from jax.experimental.pallas import tpu as pltpu

EPS = 1e-5


def _im2col(xpad, N, H, W):
    """xpad: (N, H+2, W+2, C) -> (N*H*W, 9*C) patch matrix, tap order (dy, dx, c)."""
    C = xpad.shape[-1]
    cols = [xpad[:, dy:dy + H, dx:dx + W, :].reshape(N * H * W, C)
            for dy in range(3) for dx in range(3)]
    return jnp.concatenate(cols, axis=-1)


def _bn_affine(y_f32, count, gamma, beta):
    """Full in-kernel training-mode BN reduction -> fused (scale, shift). y: (M, Co) f32."""
    inv = 1.0 / count
    mean = jnp.sum(y_f32, axis=0, keepdims=True) * inv                  # (1, Co)
    ex2 = jnp.sum(y_f32 * y_f32, axis=0, keepdims=True) * inv
    var = jnp.maximum(ex2 - mean * mean, 0.0)                           # single-pass, clamped
    scale = gamma * jax.lax.rsqrt(var + EPS)
    shift = beta - mean * scale
    return scale, shift


def _fused_double_conv_kernel(x_ref, w1_ref, w2_ref, bn_ref, o_ref, xpad_ref, apad_ref):
    """conv1 -> BN1 -> ReLU -> conv2 -> BN2 -> ReLU, whole batch resident in VMEM."""
    N, Hp, Wp, Cin = xpad_ref.shape
    Co = apad_ref.shape[-1]
    H, W = Hp - 2, Wp - 2
    count = float(N * H * W)

    # ---- zero-pad the (bf16) input in VMEM: halo-only zeroing, interior written once ----
    xpad_ref[:, 0:1, :, :] = jnp.zeros((N, 1, Wp, Cin), xpad_ref.dtype)
    xpad_ref[:, Hp - 1:Hp, :, :] = jnp.zeros((N, 1, Wp, Cin), xpad_ref.dtype)
    xpad_ref[:, :, 0:1, :] = jnp.zeros((N, Hp, 1, Cin), xpad_ref.dtype)
    xpad_ref[:, :, Wp - 1:Wp, :] = jnp.zeros((N, Hp, 1, Cin), xpad_ref.dtype)
    xpad_ref[:, 1:H + 1, 1:W + 1, :] = x_ref[...]

    # ---- conv1: one fused im2col matmul over the whole batch (bf16 operands, f32 acc) ----
    p1 = _im2col(xpad_ref[...], N, H, W)                                # (N*H*W, 9*Cin) bf16
    y1 = jnp.dot(p1, w1_ref[...], preferred_element_type=jnp.float32)   # (N*H*W, Co) f32

    # ---- BN1 (full-batch stats, in-kernel) + ReLU, as one multiply-add + max ----
    sc1, sh1 = _bn_affine(y1, count, bn_ref[0:1, :], bn_ref[1:2, :])
    a1 = jnp.maximum(y1 * sc1 + sh1, 0.0).astype(apad_ref.dtype)        # bf16 once, pre-patches

    # ---- zero-pad the activation (halo-only) ----
    apad_ref[:, 0:1, :, :] = jnp.zeros((N, 1, Wp, Co), apad_ref.dtype)
    apad_ref[:, Hp - 1:Hp, :, :] = jnp.zeros((N, 1, Wp, Co), apad_ref.dtype)
    apad_ref[:, :, 0:1, :] = jnp.zeros((N, Hp, 1, Co), apad_ref.dtype)
    apad_ref[:, :, Wp - 1:Wp, :] = jnp.zeros((N, Hp, 1, Co), apad_ref.dtype)
    apad_ref[:, 1:H + 1, 1:W + 1, :] = a1.reshape(N, H, W, Co)

    # ---- conv2: fused im2col matmul ----
    p2 = _im2col(apad_ref[...], N, H, W)                                # (N*H*W, 9*Co) bf16
    y2 = jnp.dot(p2, w2_ref[...], preferred_element_type=jnp.float32)   # (N*H*W, Co) f32

    # ---- BN2 + ReLU ----
    sc2, sh2 = _bn_affine(y2, count, bn_ref[2:3, :], bn_ref[3:4, :])
    o_ref[...] = jnp.maximum(y2 * sc2 + sh2, 0.0).reshape(N, H, W, Co)


def double_conv_block(x_nchw, params):
    """PyTorch-equivalent forward (training-mode BN). (N, Cin, H, W) -> (N, Co, H, W)."""
    N, Cin, H, W = x_nchw.shape
    Co = params["w1"].shape[-1]
    Hp, Wp = H + 2, W + 2

    # Wrapper only repacks NCHW -> NHWC and casts to bf16 once (no HBM padding, no im2col here).
    x_nhwc = jnp.transpose(x_nchw, (0, 2, 3, 1)).astype(jnp.bfloat16)
    # Conv biases dropped: a per-channel bias before training-mode BN cancels exactly.
    w1 = params["w1"].reshape(9 * Cin, Co).astype(jnp.bfloat16)
    w2 = params["w2"].reshape(9 * Co, Co).astype(jnp.bfloat16)
    bn = jnp.concatenate(
        [params["g1"], params["be1"], params["g2"], params["be2"]], axis=0
    ).astype(jnp.float32)                                               # (4, Co)

    out_nhwc = pl.pallas_call(
        _fused_double_conv_kernel,
        grid=(1,),
        in_specs=[pl.BlockSpec((N, H, W, Cin), lambda i: (0, 0, 0, 0)),
                  pl.BlockSpec((9 * Cin, Co), lambda i: (0, 0)),
                  pl.BlockSpec((9 * Co, Co), lambda i: (0, 0)),
                  pl.BlockSpec((4, Co), lambda i: (0, 0))],
        out_specs=pl.BlockSpec((N, H, W, Co), lambda i: (0, 0, 0, 0)),
        out_shape=jax.ShapeDtypeStruct((N, H, W, Co), jnp.float32),
        scratch_shapes=[pltpu.VMEM((N, Hp, Wp, Cin), jnp.bfloat16),
                        pltpu.VMEM((N, Hp, Wp, Co), jnp.bfloat16)],
        compiler_params=pltpu.CompilerParams(
            dimension_semantics=("arbitrary",)),    # single step; default VMEM limits are ample
    )(x_nhwc, w1, w2, bn)

    return jnp.transpose(out_nhwc, (0, 3, 1, 2))


def reference_forward(x_nchw, params):
    """Pure-JAX reference matching the PyTorch module (training-mode BN, with conv biases)."""
    def conv(x, w_hwio, b):
        y = jax.lax.conv_general_dilated(
            x, w_hwio, window_strides=(1, 1), padding=((1, 1), (1, 1)),
            dimension_numbers=("NCHW", "HWIO", "NCHW"))
        return y + b.reshape(1, -1, 1, 1)

    def bn_relu(y, g, be):
        m = jnp.mean(y, axis=(0, 2, 3), keepdims=True)
        v = jnp.mean((y - m) ** 2, axis=(0, 2, 3), keepdims=True)
        yhat = (y - m) * jax.lax.rsqrt(v + EPS)
        return jnp.maximum(yhat * g.reshape(1, -1, 1, 1) + be.reshape(1, -1, 1, 1), 0.0)

    y = bn_relu(conv(x_nchw, params["w1"], params["b1"].reshape(-1)),
                params["g1"].reshape(-1), params["be1"].reshape(-1))
    y = bn_relu(conv(y, params["w2"], params["b2"].reshape(-1)),
                params["g2"].reshape(-1), params["be2"].reshape(-1))
    return y


def init_params(key, in_channels, out_channels):
    k1, k2, k3, k4 = jax.random.split(key, 4)
    return {
        "w1": 0.1 * jax.random.normal(k1, (3, 3, in_channels, out_channels), jnp.float32),
        "b1": 0.1 * jax.random.normal(k2, (1, out_channels), jnp.float32),
        "g1": jnp.ones((1, out_channels), jnp.float32),    # nn.BatchNorm2d default weight
        "be1": jnp.zeros((1, out_channels), jnp.float32),  # nn.BatchNorm2d default bias
        "w2": 0.1 * jax.random.normal(k3, (3, 3, out_channels, out_channels), jnp.float32),
        "b2": 0.1 * jax.random.normal(k4, (1, out_channels), jnp.float32),
        "g2": jnp.ones((1, out_channels), jnp.float32),
        "be2": jnp.zeros((1, out_channels), jnp.float32),
    }


if __name__ == "__main__":
    key = jax.random.PRNGKey(0)
    kx, kp = jax.random.split(key)

    N, Cin, Co, H, W = 2, 4, 8, 16, 16
    x = jax.random.normal(kx, (N, Cin, H, W), jnp.float32)
    params = init_params(kp, Cin, Co)

    fwd = jax.jit(double_conv_block)
    out = jax.block_until_ready(fwd(x, params))

    ref = jax.block_until_ready(reference_forward(x, params))
    # bf16 MXU operands with f32 accumulation / f32 BN math -> a few 1e-3 of drift.
    np.testing.assert_allclose(np.asarray(out), np.asarray(ref), atol=2e-2, rtol=2e-2)

    print("KERNEL_OK")
</pallas_src>

<mosaic_0001>
module attributes {stable_mosaic.version = 11 : i64} {
  func.func @_fused_double_conv_kernel(%arg0: i32, %arg1: memref<2x16x16x4xbf16, #tpu.memory_space<vmem>>, %arg2: memref<36x8xbf16, #tpu.memory_space<vmem>>, %arg3: memref<72x8xbf16, #tpu.memory_space<vmem>>, %arg4: memref<4x8xf32, #tpu.memory_space<vmem>>, %arg5: memref<2x16x16x8xf32, #tpu.memory_space<vmem>>, %arg6: memref<2x18x18x4xbf16, #tpu.memory_space<vmem>>, %arg7: memref<2x18x18x8xbf16, #tpu.memory_space<vmem>>) attributes {dimension_semantics = [#tpu.dimension_semantics<arbitrary>], iteration_bounds = array<i64: 1>, scalar_prefetch = 0 : i64, scratch_operands = 2 : i64, tpu.core_type = #tpu.core_type<tc>, window_params = [{pipeline_mode = #tpu.pipeline_mode<synchronous>, transform_indices = @transform_0, window_bounds = array<i64: 2, 16, 16, 4>}, {pipeline_mode = #tpu.pipeline_mode<synchronous>, transform_indices = @transform_1, window_bounds = array<i64: 36, 8>}, {pipeline_mode = #tpu.pipeline_mode<synchronous>, transform_indices = @transform_2, window_bounds = array<i64: 72, 8>}, {pipeline_mode = #tpu.pipeline_mode<synchronous>, transform_indices = @transform_3, window_bounds = array<i64: 4, 8>}, {pipeline_mode = #tpu.pipeline_mode<synchronous>, transform_indices = @transform_4, window_bounds = array<i64: 2, 16, 16, 8>}]} {
    %cst = arith.constant 0.000000e+00 : bf16
    %0 = vector.broadcast %cst : bf16 to vector<2x1x18x4xbf16>
    %c0 = arith.constant 0 : index
    %c0_0 = arith.constant 0 : index
    %c0_1 = arith.constant 0 : index
    %c0_2 = arith.constant 0 : index
    %1 = vector.load %arg6[%c0, %c0_0, %c0_1, %c0_2] : memref<2x18x18x4xbf16, #tpu.memory_space<vmem>>, vector<2x1x18x4xbf16>
    tpu.vector_store %arg6[%c0, %c0_0, %c0_1, %c0_2], %0 {strides = array<i32>} : memref<2x18x18x4xbf16, #tpu.memory_space<vmem>>, vector<2x1x18x4xbf16>,
    %cst_3 = arith.constant 0.000000e+00 : bf16
    %2 = vector.broadcast %cst_3 : bf16 to vector<2x1x18x4xbf16>
    %c0_4 = arith.constant 0 : index
    %c17 = arith.constant 17 : index
    %c0_5 = arith.constant 0 : index
    %c0_6 = arith.constant 0 : index
    %3 = vector.load %arg6[%c0_4, %c17, %c0_5, %c0_6] : memref<2x18x18x4xbf16, #tpu.memory_space<vmem>>, vector<2x1x18x4xbf16>
    tpu.vector_store %arg6[%c0_4, %c17, %c0_5, %c0_6], %2 {strides = array<i32>} : memref<2x18x18x4xbf16, #tpu.memory_space<vmem>>, vector<2x1x18x4xbf16>,
    %cst_7 = arith.constant 0.000000e+00 : bf16
    %4 = vector.broadcast %cst_7 : bf16 to vector<2x18x1x4xbf16>
    %c0_8 = arith.constant 0 : index
    %c0_9 = arith.constant 0 : index
    %c0_10 = arith.constant 0 : index
    %c0_11 = arith.constant 0 : index
    %5 = vector.load %arg6[%c0_8, %c0_9, %c0_10, %c0_11] : memref<2x18x18x4xbf16, #tpu.memory_space<vmem>>, vector<2x18x1x4xbf16>
    tpu.vector_store %arg6[%c0_8, %c0_9, %c0_10, %c0_11], %4 {strides = array<i32>} : memref<2x18x18x4xbf16, #tpu.memory_space<vmem>>, vector<2x18x1x4xbf16>,
    %cst_12 = arith.constant 0.000000e+00 : bf16
    %6 = vector.broadcast %cst_12 : bf16 to vector<2x18x1x4xbf16>
    %c0_13 = arith.constant 0 : index
    %c0_14 = arith.constant 0 : index
    %c17_15 = arith.constant 17 : index
    %c0_16 = arith.constant 0 : index
    %7 = vector.load %arg6[%c0_13, %c0_14, %c17_15, %c0_16] : memref<2x18x18x4xbf16, #tpu.memory_space<vmem>>, vector<2x18x1x4xbf16>
    tpu.vector_store %arg6[%c0_13, %c0_14, %c17_15, %c0_16], %6 {strides = array<i32>} : memref<2x18x18x4xbf16, #tpu.memory_space<vmem>>, vector<2x18x1x4xbf16>,
    %c0_17 = arith.constant 0 : index
    %c0_18 = arith.constant 0 : index
    %c0_19 = arith.constant 0 : index
    %c0_20 = arith.constant 0 : index
    %8 = vector.load %arg1[%c0_17, %c0_18, %c0_19, %c0_20] : memref<2x16x16x4xbf16, #tpu.memory_space<vmem>>, vector<2x16x16x4xbf16>
    %c0_21 = arith.constant 0 : index
    %c1 = arith.constant 1 : index
    %c1_22 = arith.constant 1 : index
    %c0_23 = arith.constant 0 : index
    %9 = vector.load %arg6[%c0_21, %c1, %c1_22, %c0_23] : memref<2x18x18x4xbf16, #tpu.memory_space<vmem>>, vector<2x16x16x4xbf16>
    tpu.vector_store %arg6[%c0_21, %c1, %c1_22, %c0_23], %8 {strides = array<i32>} : memref<2x18x18x4xbf16, #tpu.memory_space<vmem>>, vector<2x16x16x4xbf16>,
    %c0_24 = arith.constant 0 : index
    %c0_25 = arith.constant 0 : index
    %c0_26 = arith.constant 0 : index
    %c0_27 = arith.constant 0 : index
    %10 = vector.load %arg6[%c0_24, %c0_25, %c0_26, %c0_27] : memref<2x18x18x4xbf16, #tpu.memory_space<vmem>>, vector<2x18x18x4xbf16>
    %11 = vector.extract_strided_slice %10 {offsets = [0, 0, 0, 0], sizes = [2, 16, 16, 4], strides = [1, 1, 1, 1]} : vector<2x18x18x4xbf16> to vector<2x16x16x4xbf16>
    %12 = vector.shape_cast %11 : vector<2x16x16x4xbf16> to vector<512x4xbf16>
    %13 = vector.extract_strided_slice %10 {offsets = [0, 0, 1, 0], sizes = [2, 16, 16, 4], strides = [1, 1, 1, 1]} : vector<2x18x18x4xbf16> to vector<2x16x16x4xbf16>
    %14 = vector.shape_cast %13 : vector<2x16x16x4xbf16> to vector<512x4xbf16>
    %15 = vector.extract_strided_slice %10 {offsets = [0, 0, 2, 0], sizes = [2, 16, 16, 4], strides = [1, 1, 1, 1]} : vector<2x18x18x4xbf16> to vector<2x16x16x4xbf16>
    %16 = vector.shape_cast %15 : vector<2x16x16x4xbf16> to vector<512x4xbf16>
    %17 = vector.extract_strided_slice %10 {offsets = [0, 1, 0, 0], sizes = [2, 16, 16, 4], strides = [1, 1, 1, 1]} : vector<2x18x18x4xbf16> to vector<2x16x16x4xbf16>
    %18 = vector.shape_cast %17 : vector<2x16x16x4xbf16> to vector<512x4xbf16>
    %19 = vector.extract_strided_slice %10 {offsets = [0, 1, 1, 0], sizes = [2, 16, 16, 4], strides = [1, 1, 1, 1]} : vector<2x18x18x4xbf16> to vector<2x16x16x4xbf16>
    %20 = vector.shape_cast %19 : vector<2x16x16x4xbf16> to vector<512x4xbf16>
    %21 = vector.extract_strided_slice %10 {offsets = [0, 1, 2, 0], sizes = [2, 16, 16, 4], strides = [1, 1, 1, 1]} : vector<2x18x18x4xbf16> to vector<2x16x16x4xbf16>
    %22 = vector.shape_cast %21 : vector<2x16x16x4xbf16> to vector<512x4xbf16>
    %23 = vector.extract_strided_slice %10 {offsets = [0, 2, 0, 0], sizes = [2, 16, 16, 4], strides = [1, 1, 1, 1]} : vector<2x18x18x4xbf16> to vector<2x16x16x4xbf16>
    %24 = vector.shape_cast %23 : vector<2x16x16x4xbf16> to vector<512x4xbf16>
    %25 = vector.extract_strided_slice %10 {offsets = [0, 2, 1, 0], sizes = [2, 16, 16, 4], strides = [1, 1, 1, 1]} : vector<2x18x18x4xbf16> to vector<2x16x16x4xbf16>
    %26 = vector.shape_cast %25 : vector<2x16x16x4xbf16> to vector<512x4xbf16>
    %27 = vector.extract_strided_slice %10 {offsets = [0, 2, 2, 0], sizes = [2, 16, 16, 4], strides = [1, 1, 1, 1]} : vector<2x18x18x4xbf16> to vector<2x16x16x4xbf16>
    %28 = vector.shape_cast %27 : vector<2x16x16x4xbf16> to vector<512x4xbf16>
    %29 = tpu.concatenate %12, %14, %16, %18, %20, %22, %24, %26, %28 in 1 : vector<512x4xbf16>, vector<512x4xbf16>, vector<512x4xbf16>, vector<512x4xbf16>, vector<512x4xbf16>, vector<512x4xbf16>, vector<512x4xbf16>, vector<512x4xbf16>, vector<512x4xbf16> -> vector<512x36xbf16>
    %c0_28 = arith.constant 0 : index
    %c0_29 = arith.constant 0 : index
    %30 = vector.load %arg2[%c0_28, %c0_29] : memref<36x8xbf16, #tpu.memory_space<vmem>>, vector<36x8xbf16>
    %cst_30 = arith.constant dense<0.000000e+00> : vector<512x8xf32>
    %31 = tpu.matmul %29, %30, %cst_30 {dimension_numbers = #tpu.dot_dimension_numbers<[1], [0], [0], [1], [0, 0, 1, 1], [], []>} : vector<512x36xbf16>, vector<36x8xbf16>, vector<512x8xf32> -> vector<512x8xf32>
    %c0_31 = arith.constant 0 : index
    %c0_32 = arith.constant 0 : index
    %32 = vector.load %arg4[%c0_31, %c0_32] : memref<4x8xf32, #tpu.memory_space<vmem>>, vector<1x8xf32>
    %c1_33 = arith.constant 1 : index
    %c0_34 = arith.constant 0 : index
    %33 = vector.load %arg4[%c1_33, %c0_34] : memref<4x8xf32, #tpu.memory_space<vmem>>, vector<1x8xf32>
    %cst_35 = arith.constant dense<0.000000e+00> : vector<8xf32>
    %34 = vector.multi_reduction <add>, %31, %cst_35 [0] : vector<512x8xf32> to vector<8xf32>
    %35 = vector.shape_cast %34 : vector<8xf32> to vector<1x8xf32>
    %cst_36 = arith.constant 0.001953125 : f32
    %36 = vector.broadcast %cst_36 : f32 to vector<1x8xf32>
    %37 = arith.mulf %35, %36 : vector<1x8xf32>
    %38 = arith.mulf %31, %31 : vector<512x8xf32>
    %cst_37 = arith.constant dense<0.000000e+00> : vector<8xf32>
    %39 = vector.multi_reduction <add>, %38, %cst_37 [0] : vector<512x8xf32> to vector<8xf32>
    %40 = vector.shape_cast %39 : vector<8xf32> to vector<1x8xf32>
    %cst_38 = arith.constant 0.001953125 : f32
    %41 = vector.broadcast %cst_38 : f32 to vector<1x8xf32>
    %42 = arith.mulf %40, %41 : vector<1x8xf32>
    %43 = arith.mulf %37, %37 : vector<1x8xf32>
    %44 = arith.subf %42, %43 : vector<1x8xf32>
    %cst_39 = arith.constant 0.000000e+00 : f32
    %45 = vector.broadcast %cst_39 : f32 to vector<1x8xf32>
    %46 = arith.maximumf %44, %45 : vector<1x8xf32>
    %cst_40 = arith.constant 9.99999974E-6 : f32
    %47 = vector.broadcast %cst_40 : f32 to vector<1x8xf32>
    %48 = arith.addf %46, %47 : vector<1x8xf32>
    %49 = math.rsqrt %48 : vector<1x8xf32>
    %50 = arith.mulf %32, %49 : vector<1x8xf32>
    %51 = arith.mulf %37, %50 : vector<1x8xf32>
    %52 = arith.subf %33, %51 : vector<1x8xf32>
    %53 = vector.broadcast %50 : vector<1x8xf32> to vector<512x8xf32>
    %54 = arith.mulf %31, %53 : vector<512x8xf32>
    %55 = vector.broadcast %52 : vector<1x8xf32> to vector<512x8xf32>
    %56 = arith.addf %54, %55 : vector<512x8xf32>
    %cst_41 = arith.constant 0.000000e+00 : f32
    %57 = vector.broadcast %cst_41 : f32 to vector<512x8xf32>
    %58 = arith.maximumf %56, %57 : vector<512x8xf32>
    %59 = arith.truncf %58 : vector<512x8xf32> to vector<512x8xbf16>
    %cst_42 = arith.constant 0.000000e+00 : bf16
    %60 = vector.broadcast %cst_42 : bf16 to vector<2x1x18x8xbf16>
    %c0_43 = arith.constant 0 : index
    %c0_44 = arith.constant 0 : index
    %c0_45 = arith.constant 0 : index
    %c0_46 = arith.constant 0 : index
    %61 = vector.load %arg7[%c0_43, %c0_44, %c0_45, %c0_46] : memref<2x18x18x8xbf16, #tpu.memory_space<vmem>>, vector<2x1x18x8xbf16>
    tpu.vector_store %arg7[%c0_43, %c0_44, %c0_45, %c0_46], %60 {strides = array<i32>} : memref<2x18x18x8xbf16, #tpu.memory_space<vmem>>, vector<2x1x18x8xbf16>,
    %cst_47 = arith.constant 0.000000e+00 : bf16
    %62 = vector.broadcast %cst_47 : bf16 to vector<2x1x18x8xbf16>
    %c0_48 = arith.constant 0 : index
    %c17_49 = arith.constant 17 : index
    %c0_50 = arith.constant 0 : index
    %c0_51 = arith.constant 0 : index
    %63 = vector.load %arg7[%c0_48, %c17_49, %c0_50, %c0_51] : memref<2x18x18x8xbf16, #tpu.memory_space<vmem>>, vector<2x1x18x8xbf16>
    tpu.vector_store %arg7[%c0_48, %c17_49, %c0_50, %c0_51], %62 {strides = array<i32>} : memref<2x18x18x8xbf16, #tpu.memory_space<vmem>>, vector<2x1x18x8xbf16>,
    %cst_52 = arith.constant 0.000000e+00 : bf16
    %64 = vector.broadcast %cst_52 : bf16 to vector<2x18x1x8xbf16>
    %c0_53 = arith.constant 0 : index
    %c0_54 = arith.constant 0 : index
    %c0_55 = arith.constant 0 : index
    %c0_56 = arith.constant 0 : index
    %65 = vector.load %arg7[%c0_53, %c0_54, %c0_55, %c0_56] : memref<2x18x18x8xbf16, #tpu.memory_space<vmem>>, vector<2x18x1x8xbf16>
    tpu.vector_store %arg7[%c0_53, %c0_54, %c0_55, %c0_56], %64 {strides = array<i32>} : memref<2x18x18x8xbf16, #tpu.memory_space<vmem>>, vector<2x18x1x8xbf16>,
    %cst_57 = arith.constant 0.000000e+00 : bf16
    %66 = vector.broadcast %cst_57 : bf16 to vector<2x18x1x8xbf16>
    %c0_58 = arith.constant 0 : index
    %c0_59 = arith.constant 0 : index
    %c17_60 = arith.constant 17 : index
    %c0_61 = arith.constant 0 : index
    %67 = vector.load %arg7[%c0_58, %c0_59, %c17_60, %c0_61] : memref<2x18x18x8xbf16, #tpu.memory_space<vmem>>, vector<2x18x1x8xbf16>
    tpu.vector_store %arg7[%c0_58, %c0_59, %c17_60, %c0_61], %66 {strides = array<i32>} : memref<2x18x18x8xbf16, #tpu.memory_space<vmem>>, vector<2x18x1x8xbf16>,
    %68 = vector.shape_cast %59 : vector<512x8xbf16> to vector<2x16x16x8xbf16>
    %c0_62 = arith.constant 0 : index
    %c1_63 = arith.constant 1 : index
    %c1_64 = arith.constant 1 : index
    %c0_65 = arith.constant 0 : index
    %69 = vector.load %arg7[%c0_62, %c1_63, %c1_64, %c0_65] : memref<2x18x18x8xbf16, #tpu.memory_space<vmem>>, vector<2x16x16x8xbf16>
    tpu.vector_store %arg7[%c0_62, %c1_63, %c1_64, %c0_65], %68 {strides = array<i32>} : memref<2x18x18x8xbf16, #tpu.memory_space<vmem>>, vector<2x16x16x8xbf16>,
    %c0_66 = arith.constant 0 : index
    %c0_67 = arith.constant 0 : index
    %c0_68 = arith.constant 0 : index
    %c0_69 = arith.constant 0 : index
    %70 = vector.load %arg7[%c0_66, %c0_67, %c0_68, %c0_69] : memref<2x18x18x8xbf16, #tpu.memory_space<vmem>>, vector<2x18x18x8xbf16>
    %71 = vector.extract_strided_slice %70 {offsets = [0, 0, 0, 0], sizes = [2, 16, 16, 8], strides = [1, 1, 1, 1]} : vector<2x18x18x8xbf16> to vector<2x16x16x8xbf16>
    %72 = vector.shape_cast %71 : vector<2x16x16x8xbf16> to vector<512x8xbf16>
    %73 = vector.extract_strided_slice %70 {offsets = [0, 0, 1, 0], sizes = [2, 16, 16, 8], strides = [1, 1, 1, 1]} : vector<2x18x18x8xbf16> to vector<2x16x16x8xbf16>
    %74 = vector.shape_cast %73 : vector<2x16x16x8xbf16> to vector<512x8xbf16>
    %75 = vector.extract_strided_slice %70 {offsets = [0, 0, 2, 0], sizes = [2, 16, 16, 8], strides = [1, 1, 1, 1]} : vector<2x18x18x8xbf16> to vector<2x16x16x8xbf16>
    %76 = vector.shape_cast %75 : vector<2x16x16x8xbf16> to vector<512x8xbf16>
    %77 = vector.extract_strided_slice %70 {offsets = [0, 1, 0, 0], sizes = [2, 16, 16, 8], strides = [1, 1, 1, 1]} : vector<2x18x18x8xbf16> to vector<2x16x16x8xbf16>
    %78 = vector.shape_cast %77 : vector<2x16x16x8xbf16> to vector<512x8xbf16>
    %79 = vector.extract_strided_slice %70 {offsets = [0, 1, 1, 0], sizes = [2, 16, 16, 8], strides = [1, 1, 1, 1]} : vector<2x18x18x8xbf16> to vector<2x16x16x8xbf16>
    %80 = vector.shape_cast %79 : vector<2x16x16x8xbf16> to vector<512x8xbf16>
    %81 = vector.extract_strided_slice %70 {offsets = [0, 1, 2, 0], sizes = [2, 16, 16, 8], strides = [1, 1, 1, 1]} : vector<2x18x18x8xbf16> to vector<2x16x16x8xbf16>
    %82 = vector.shape_cast %81 : vector<2x16x16x8xbf16> to vector<512x8xbf16>
    %83 = vector.extract_strided_slice %70 {offsets = [0, 2, 0, 0], sizes = [2, 16, 16, 8], strides = [1, 1, 1, 1]} : vector<2x18x18x8xbf16> to vector<2x16x16x8xbf16>
    %84 = vector.shape_cast %83 : vector<2x16x16x8xbf16> to vector<512x8xbf16>
    %85 = vector.extract_strided_slice %70 {offsets = [0, 2, 1, 0], sizes = [2, 16, 16, 8], strides = [1, 1, 1, 1]} : vector<2x18x18x8xbf16> to vector<2x16x16x8xbf16>
    %86 = vector.shape_cast %85 : vector<2x16x16x8xbf16> to vector<512x8xbf16>
    %87 = vector.extract_strided_slice %70 {offsets = [0, 2, 2, 0], sizes = [2, 16, 16, 8], strides = [1, 1, 1, 1]} : vector<2x18x18x8xbf16> to vector<2x16x16x8xbf16>
    %88 = vector.shape_cast %87 : vector<2x16x16x8xbf16> to vector<512x8xbf16>
    %89 = tpu.concatenate %72, %74, %76, %78, %80, %82, %84, %86, %88 in 1 : vector<512x8xbf16>, vector<512x8xbf16>, vector<512x8xbf16>, vector<512x8xbf16>, vector<512x8xbf16>, vector<512x8xbf16>, vector<512x8xbf16>, vector<512x8xbf16>, vector<512x8xbf16> -> vector<512x72xbf16>
    %c0_70 = arith.constant 0 : index
    %c0_71 = arith.constant 0 : index
    %90 = vector.load %arg3[%c0_70, %c0_71] : memref<72x8xbf16, #tpu.memory_space<vmem>>, vector<72x8xbf16>
    %cst_72 = arith.constant dense<0.000000e+00> : vector<512x8xf32>
    %91 = tpu.matmul %89, %90, %cst_72 {dimension_numbers = #tpu.dot_dimension_numbers<[1], [0], [0], [1], [0, 0, 1, 1], [], []>} : vector<512x72xbf16>, vector<72x8xbf16>, vector<512x8xf32> -> vector<512x8xf32>
    %c2 = arith.constant 2 : index
    %c0_73 = arith.constant 0 : index
    %92 = vector.load %arg4[%c2, %c0_73] : memref<4x8xf32, #tpu.memory_space<vmem>>, vector<1x8xf32>
    %c3 = arith.constant 3 : index
    %c0_74 = arith.constant 0 : index
    %93 = vector.load %arg4[%c3, %c0_74] : memref<4x8xf32, #tpu.memory_space<vmem>>, vector<1x8xf32>
    %cst_75 = arith.constant dense<0.000000e+00> : vector<8xf32>
    %94 = vector.multi_reduction <add>, %91, %cst_75 [0] : vector<512x8xf32> to vector<8xf32>
    %95 = vector.shape_cast %94 : vector<8xf32> to vector<1x8xf32>
    %cst_76 = arith.constant 0.001953125 : f32
    %96 = vector.broadcast %cst_76 : f32 to vector<1x8xf32>
    %97 = arith.mulf %95, %96 : vector<1x8xf32>
    %98 = arith.mulf %91, %91 : vector<512x8xf32>
    %cst_77 = arith.constant dense<0.000000e+00> : vector<8xf32>
    %99 = vector.multi_reduction <add>, %98, %cst_77 [0] : vector<512x8xf32> to vector<8xf32>
    %100 = vector.shape_cast %99 : vector<8xf32> to vector<1x8xf32>
    %cst_78 = arith.constant 0.001953125 : f32
    %101 = vector.broadcast %cst_78 : f32 to vector<1x8xf32>
    %102 = arith.mulf %100, %101 : vector<1x8xf32>
    %103 = arith.mulf %97, %97 : vector<1x8xf32>
    %104 = arith.subf %102, %103 : vector<1x8xf32>
    %cst_79 = arith.constant 0.000000e+00 : f32
    %105 = vector.broadcast %cst_79 : f32 to vector<1x8xf32>
    %106 = arith.maximumf %104, %105 : vector<1x8xf32>
    %cst_80 = arith.constant 9.99999974E-6 : f32
    %107 = vector.broadcast %cst_80 : f32 to vector<1x8xf32>
    %108 = arith.addf %106, %107 : vector<1x8xf32>
    %109 = math.rsqrt %108 : vector<1x8xf32>
    %110 = arith.mulf %92, %109 : vector<1x8xf32>
    %111 = arith.mulf %97, %110 : vector<1x8xf32>
    %112 = arith.subf %93, %111 : vector<1x8xf32>
    %113 = vector.broadcast %110 : vector<1x8xf32> to vector<512x8xf32>
    %114 = arith.mulf %91, %113 : vector<512x8xf32>
    %115 = vector.broadcast %112 : vector<1x8xf32> to vector<512x8xf32>
    %116 = arith.addf %114, %115 : vector<512x8xf32>
    %cst_81 = arith.constant 0.000000e+00 : f32
    %117 = vector.broadcast %cst_81 : f32 to vector<512x8xf32>
    %118 = arith.maximumf %116, %117 : vector<512x8xf32>
    %119 = vector.shape_cast %118 : vector<512x8xf32> to vector<2x16x16x8xf32>
    %c0_82 = arith.constant 0 : index
    %c0_83 = arith.constant 0 : index
    %c0_84 = arith.constant 0 : index
    %c0_85 = arith.constant 0 : index
    %120 = vector.load %arg5[%c0_82, %c0_83, %c0_84, %c0_85] : memref<2x16x16x8xf32, #tpu.memory_space<vmem>>, vector<2x16x16x8xf32>
    tpu.vector_store %arg5[%c0_82, %c0_83, %c0_84, %c0_85], %119 {strides = array<i32>} : memref<2x16x16x8xf32, #tpu.memory_space<vmem>>, vector<2x16x16x8xf32>,
    return
  }
  func.func @transform_0(%arg0: i32) -> (i32, i32, i32, i32) {
    %c0_i32 = arith.constant 0 : i32
    %c0_i32_0 = arith.constant 0 : i32
    %c0_i32_1 = arith.constant 0 : i32
    %c0_i32_2 = arith.constant 0 : i32
    %c0_i32_3 = arith.constant 0 : i32
    return %c0_i32, %c0_i32_0, %c0_i32_1, %c0_i32_2 : i32, i32, i32, i32
  }
  func.func @transform_1(%arg0: i32) -> (i32, i32) {
    %c0_i32 = arith.constant 0 : i32
    %c0_i32_0 = arith.constant 0 : i32
    %c0_i32_1 = arith.constant 0 : i32
    return %c0_i32, %c0_i32_0 : i32, i32
  }
  func.func @transform_2(%arg0: i32) -> (i32, i32) {
    %c0_i32 = arith.constant 0 : i32
    %c0_i32_0 = arith.constant 0 : i32
    %c0_i32_1 = arith.constant 0 : i32
    return %c0_i32, %c0_i32_0 : i32, i32
  }
  func.func @transform_3(%arg0: i32) -> (i32, i32) {
    %c0_i32 = arith.constant 0 : i32
    %c0_i32_0 = arith.constant 0 : i32
    %c0_i32_1 = arith.constant 0 : i32
    return %c0_i32, %c0_i32_0 : i32, i32
  }
  func.func @transform_4(%arg0: i32) -> (i32, i32, i32, i32) {
    %c0_i32 = arith.constant 0 : i32
    %c0_i32_0 = arith.constant 0 : i32
    %c0_i32_1 = arith.constant 0 : i32
    %c0_i32_2 = arith.constant 0 : i32
    %c0_i32_3 = arith.constant 0 : i32
    return %c0_i32, %c0_i32_0, %c0_i32_1, %c0_i32_2 : i32, i32, i32, i32
  }
}

</mosaic_0001>

<llo_original>
// kernel: double_conv_block.1
$region0: #{double_conv_block.1}
  #allocation0 [shape = 'u32[]', space=smem, size = 0x4, offset = 0x4, fixed_abs, tag = 'smem constant byte address 0x4 - core index']
  #allocation1 [shape = 'u32[144,128]{1,0:T(1,128)}', space=vmem, size = 0x12000, scoped, tag = 'internal scratch']
  #allocation2 [shape = 'bf16[2,18,18,4]{3,2,1,0:T(8,128)(2,1)}', space=vmem, size = 0x36000, scoped, tag = 'scratch operand']
  #allocation3 [shape = 'bf16[2,18,18,8]{3,2,1,0:T(8,128)(2,1)}', space=vmem, size = 0x36000, scoped, tag = 'scratch operand']
  %s0 = inlined_call_operand.vmem [shape: bf16[2,16,16,4], index: 0, kind: input, shape index: {}]
  %s1 = inlined_call_operand.vmem [shape: bf16[36,8], index: 1, kind: input, shape index: {}]
  %s2 = inlined_call_operand.vmem [shape: bf16[72,8], index: 2, kind: input, shape index: {}]
  %s3 = inlined_call_operand.vmem [shape: f32[4,8], index: 3, kind: input, shape index: {}]
  %s4 = inlined_call_operand.vmem [shape: f32[2,16,16,8], index: 4, kind: output, shape index: {}]
  %s5 = sld [smem:[#allocation0]]
  $region26: #{double_conv_block.1} parent=0
    _
  %s7 = ssub.s32 1, %s5
  %s8 = scalar_select 0, %s7, %s5
  // Predicated region
  $region2: #{double_conv_block.1} parent=0 // pred_check
    _
  $region3: #{double_conv_block.1} parent=0 // pred_check_branch
    %10 = sbr.rel (0) target = $region5
  $region4: #{double_conv_block.1} parent=0 // pred_region
    _
  $region5: #{double_conv_block.1} parent=0 // pred_fallthru
    _
  // Predicated region
  $region6: #{double_conv_block.1} parent=0 // pred_check
    _
  $region7: #{double_conv_block.1} parent=0 // pred_check_branch
    %12 = sbr.rel (0) target = $region9
  $region8: #{double_conv_block.1} parent=0 // pred_region
    _
  $region9: #{double_conv_block.1} parent=0 // pred_fallthru
    _
  // Predicated region
  $region10: #{double_conv_block.1} parent=0 // pred_check
    _
  $region11: #{double_conv_block.1} parent=0 // pred_check_branch
    %14 = sbr.rel (0) target = $region13
  $region12: #{double_conv_block.1} parent=0 // pred_region
    _
  $region13: #{double_conv_block.1} parent=0 // pred_fallthru
    _
  // Predicated region
  $region14: #{double_conv_block.1} parent=0 // pred_check
    _
  $region15: #{double_conv_block.1} parent=0 // pred_check_branch
    %16 = sbr.rel (0) target = $region17
  $region16: #{double_conv_block.1} parent=0 // pred_region
    _
  $region17: #{double_conv_block.1} parent=0 // pred_fallthru
    _
  %vm18 = vcmask 27648
  %19 = vst.msk [vmem:[#allocation2] sm:$0xf] %vm18, 0
  %20 = vst.msk [vmem:[#allocation2 + $0x4] sm:$0xf] %vm18, 0
  %vm21 = vcmask 24576
  %22 = vst.msk [vmem:[#allocation2 + $0x8] sm:$0x1] %vm21, 0
  %23 = vst.msk [vmem:[#allocation2 + $0xd8] sm:$0xf] %vm18, 0
  %24 = vst.msk [vmem:[#allocation2 + $0xdc] sm:$0xf] %vm18, 0
  %25 = vst.msk [vmem:[#allocation2 + $0xe0] sm:$0x1] %vm21, 0
  %s26 = scalar_lea.vmem [#allocation2], 204
  %27 = vst.msk [vmem:[%s26] sm:$0xf] %vm18, 0
  %28 = vst.msk [vmem:[%s26 + $0x4] sm:$0xf] %vm18, 0
  %29 = vst.msk [vmem:[%s26 + $0x8] sm:$0x1] %vm21, 0
  %30 = vst.msk [vmem:[%s26 + $0xd8] sm:$0xf] %vm18, 0
  %31 = vst.msk [vmem:[%s26 + $0xdc] sm:$0xf] %vm18, 0
  %32 = vst.msk [vmem:[%s26 + $0xe0] sm:$0x1] %vm21, 0
  %vm33 = vcmask 24576
  %vm34 = vsmask.f32 256
  %vm35 = vmand %vm33, %vm34
  %v36 = vld [vmem:[#allocation2] sm:$0x1]
  %v37 = vsel %vm35, 0, %v36
  %38 = vst [vmem:[#allocation2] sm:$0x1] %v37
  %v39 = vld [vmem:[#allocation2 + $0xc] sm:$0x1]
  %v40 = vsel %vm35, 0, %v39
  %41 = vst [vmem:[#allocation2 + $0xc] sm:$0x1] %v40
  %v42 = vld [vmem:[#allocation2 + $0x18] sm:$0x1]
  %v43 = vsel %vm35, 0, %v42
  %44 = vst [vmem:[#allocation2 + $0x18] sm:$0x1] %v43
  %v45 = vld [vmem:[#allocation2 + $0x24] sm:$0x1]
  %v46 = vsel %vm35, 0, %v45
  %47 = vst [vmem:[#allocation2 + $0x24] sm:$0x1] %v46
  %v48 = vld [vmem:[#allocation2 + $0x30] sm:$0x1]
  %v49 = vsel %vm35, 0, %v48
  %50 = vst [vmem:[#allocation2 + $0x30] sm:$0x1] %v49
  %v51 = vld [vmem:[#allocation2 + $0x3c] sm:$0x1]
  %v52 = vsel %vm35, 0, %v51
  %53 = vst [vmem:[#allocation2 + $0x3c] sm:$0x1] %v52
  %v54 = vld [vmem:[#allocation2 + $0x48] sm:$0x1]
  %v55 = vsel %vm35, 0, %v54
  %56 = vst [vmem:[#allocation2 + $0x48] sm:$0x1] %v55
  %v57 = vld [vmem:[#allocation2 + $0x54] sm:$0x1]
  %v58 = vsel %vm35, 0, %v57
  %59 = vst [vmem:[#allocation2 + $0x54] sm:$0x1] %v58
  %v60 = vld [vmem:[#allocation2 + $0x60] sm:$0x1]
  %v61 = vsel %vm35, 0, %v60
  %62 = vst [vmem:[#allocation2 + $0x60] sm:$0x1] %v61
  %v63 = vld [vmem:[#allocation2 + $0x6c] sm:$0x1]
  %v64 = vsel %vm35, 0, %v63
  %65 = vst [vmem:[#allocation2 + $0x6c] sm:$0x1] %v64
  %v66 = vld [vmem:[#allocation2 + $0x78] sm:$0x1]
  %v67 = vsel %vm35, 0, %v66
  %68 = vst [vmem:[#allocation2 + $0x78] sm:$0x1] %v67
  %v69 = vld [vmem:[#allocation2 + $0x84] sm:$0x1]
  %v70 = vsel %vm35, 0, %v69
  %71 = vst [vmem:[#allocation2 + $0x84] sm:$0x1] %v70
  %v72 = vld [vmem:[#allocation2 + $0x90] sm:$0x1]
  %v73 = vsel %vm35, 0, %v72
  %74 = vst [vmem:[#allocation2 + $0x90] sm:$0x1] %v73
  %v75 = vld [vmem:[#allocation2 + $0x9c] sm:$0x1]
  %v76 = vsel %vm35, 0, %v75
  %77 = vst [vmem:[#allocation2 + $0x9c] sm:$0x1] %v76
  %v78 = vld [vmem:[#allocation2 + $0xa8] sm:$0x1]
  %v79 = vsel %vm35, 0, %v78
  %80 = vst [vmem:[#allocation2 + $0xa8] sm:$0x1] %v79
  %v81 = vld [vmem:[#allocation2 + $0xb4] sm:$0x1]
  %v82 = vsel %vm35, 0, %v81
  %83 = vst [vmem:[#allocation2 + $0xb4] sm:$0x1] %v82
  %v84 = vld [vmem:[#allocation2 + $0xc0] sm:$0x1]
  %v85 = vsel %vm35, 0, %v84
  %86 = vst [vmem:[#allocation2 + $0xc0] sm:$0x1] %v85
  %v87 = vld [vmem:[#allocation2 + $0xcc] sm:$0x1]
  %v88 = vsel %vm35, 0, %v87
  %89 = vst [vmem:[#allocation2 + $0xcc] sm:$0x1] %v88
  %v90 = vld [vmem:[#allocation2 + $0xd8] sm:$0x1]
  %v91 = vsel %vm35, 0, %v90
  %92 = vst [vmem:[#allocation2 + $0xd8] sm:$0x1] %v91
  %v93 = vld [vmem:[#allocation2 + $0xe4] sm:$0x1]
  %v94 = vsel %vm35, 0, %v93
  %95 = vst [vmem:[#allocation2 + $0xe4] sm:$0x1] %v94
  %v96 = vld [vmem:[#allocation2 + $0xf0] sm:$0x1]
  %v97 = vsel %vm35, 0, %v96
  %98 = vst [vmem:[#allocation2 + $0xf0] sm:$0x1] %v97
  %v99 = vld [vmem:[#allocation2 + $0xfc] sm:$0x1]
  %v100 = vsel %vm35, 0, %v99
  %101 = vst [vmem:[#allocation2 + $0xfc] sm:$0x1] %v100
  %v102 = vld [vmem:[#allocation2 + $0x108] sm:$0x1]
  %v103 = vsel %vm35, 0, %v102
  %104 = vst [vmem:[#allocation2 + $0x108] sm:$0x1] %v103
  %v105 = vld [vmem:[#allocation2 + $0x114] sm:$0x1]
  %v106 = vsel %vm35, 0, %v105
  %107 = vst [vmem:[#allocation2 + $0x114] sm:$0x1] %v106
  %v108 = vld [vmem:[#allocation2 + $0x120] sm:$0x1]
  %v109 = vsel %vm35, 0, %v108
  %110 = vst [vmem:[#allocation2 + $0x120] sm:$0x1] %v109
  %v111 = vld [vmem:[#allocation2 + $0x12c] sm:$0x1]
  %v112 = vsel %vm35, 0, %v111
  %113 = vst [vmem:[#allocation2 + $0x12c] sm:$0x1] %v112
  %v114 = vld [vmem:[#allocation2 + $0x138] sm:$0x1]
  %v115 = vsel %vm35, 0, %v114
  %116 = vst [vmem:[#allocation2 + $0x138] sm:$0x1] %v115
  %v117 = vld [vmem:[#allocation2 + $0x144] sm:$0x1]
  %v118 = vsel %vm35, 0, %v117
  %119 = vst [vmem:[#allocation2 + $0x144] sm:$0x1] %v118
  %v120 = vld [vmem:[#allocation2 + $0x150] sm:$0x1]
  %v121 = vsel %vm35, 0, %v120
  %122 = vst [vmem:[#allocation2 + $0x150] sm:$0x1] %v121
  %v123 = vld [vmem:[#allocation2 + $0x15c] sm:$0x1]
  %v124 = vsel %vm35, 0, %v123
  %125 = vst [vmem:[#allocation2 + $0x15c] sm:$0x1] %v124
  %v126 = vld [vmem:[#allocation2 + $0x168] sm:$0x1]
  %v127 = vsel %vm35, 0, %v126
  %128 = vst [vmem:[#allocation2 + $0x168] sm:$0x1] %v127
  %v129 = vld [vmem:[#allocation2 + $0x174] sm:$0x1]
  %v130 = vsel %vm35, 0, %v129
  %131 = vst [vmem:[#allocation2 + $0x174] sm:$0x1] %v130
  %v132 = vld [vmem:[#allocation2 + $0x180] sm:$0x1]
  %v133 = vsel %vm35, 0, %v132
  %134 = vst [vmem:[#allocation2 + $0x180] sm:$0x1] %v133
  %v135 = vld [vmem:[#allocation2 + $0x18c] sm:$0x1]
  %v136 = vsel %vm35, 0, %v135
  %137 = vst [vmem:[#allocation2 + $0x18c] sm:$0x1] %v136
  %v138 = vld [vmem:[#allocation2 + $0x198] sm:$0x1]
  %v139 = vsel %vm35, 0, %v138
  %140 = vst [vmem:[#allocation2 + $0x198] sm:$0x1] %v139
  %v141 = vld [vmem:[#allocation2 + $0x1a4] sm:$0x1]
  %v142 = vsel %vm35, 0, %v141
  %143 = vst [vmem:[#allocation2 + $0x1a4] sm:$0x1] %v142
  %vm144 = vsmask.f32 7938
  %vm145 = vmand %vm33, %vm144
  %v146 = vld [vmem:[#allocation2 + $0x8] sm:$0x1]
  %v147 = vsel %vm145, 0, %v146
  %148 = vst [vmem:[#allocation2 + $0x8] sm:$0x1] %v147
  %v149 = vld [vmem:[#allocation2 + $0x14] sm:$0x1]
  %v150 = vsel %vm145, 0, %v149
  %151 = vst [vmem:[#allocation2 + $0x14] sm:$0x1] %v150
  %v152 = vld [vmem:[#allocation2 + $0x20] sm:$0x1]
  %v153 = vsel %vm145, 0, %v152
  %154 = vst [vmem:[#allocation2 + $0x20] sm:$0x1] %v153
  %v155 = vld [vmem:[#allocation2 + $0x2c] sm:$0x1]
  %v156 = vsel %vm145, 0, %v155
  %157 = vst [vmem:[#allocation2 + $0x2c] sm:$0x1] %v156
  %v158 = vld [vmem:[#allocation2 + $0x38] sm:$0x1]
  %v159 = vsel %vm145, 0, %v158
  %160 = vst [vmem:[#allocation2 + $0x38] sm:$0x1] %v159
  %v161 = vld [vmem:[#allocation2 + $0x44] sm:$0x1]
  %v162 = vsel %vm145, 0, %v161
  %163 = vst [vmem:[#allocation2 + $0x44] sm:$0x1] %v162
  %v164 = vld [vmem:[#allocation2 + $0x50] sm:$0x1]
  %v165 = vsel %vm145, 0, %v164
  %166 = vst [vmem:[#allocation2 + $0x50] sm:$0x1] %v165
  %v167 = vld [vmem:[#allocation2 + $0x5c] sm:$0x1]
  %v168 = vsel %vm145, 0, %v167
  %169 = vst [vmem:[#allocation2 + $0x5c] sm:$0x1] %v168
  %v170 = vld [vmem:[#allocation2 + $0x68] sm:$0x1]
  %v171 = vsel %vm145, 0, %v170
  %172 = vst [vmem:[#allocation2 + $0x68] sm:$0x1] %v171
  %v173 = vld [vmem:[#allocation2 + $0x74] sm:$0x1]
  %v174 = vsel %vm145, 0, %v173
  %175 = vst [vmem:[#allocation2 + $0x74] sm:$0x1] %v174
  %v176 = vld [vmem:[#allocation2 + $0x80] sm:$0x1]
  %v177 = vsel %vm145, 0, %v176
  %178 = vst [vmem:[#allocation2 + $0x80] sm:$0x1] %v177
  %v179 = vld [vmem:[#allocation2 + $0x8c] sm:$0x1]
  %v180 = vsel %vm145, 0, %v179
  %181 = vst [vmem:[#allocation2 + $0x8c] sm:$0x1] %v180
  %v182 = vld [vmem:[#allocation2 + $0x98] sm:$0x1]
  %v183 = vsel %vm145, 0, %v182
  %184 = vst [vmem:[#allocation2 + $0x98] sm:$0x1] %v183
  %v185 = vld [vmem:[#allocation2 + $0xa4] sm:$0x1]
  %v186 = vsel %vm145, 0, %v185
  %187 = vst [vmem:[#allocation2 + $0xa4] sm:$0x1] %v186
  %v188 = vld [vmem:[#allocation2 + $0xb0] sm:$0x1]
  %v189 = vsel %vm145, 0, %v188
  %190 = vst [vmem:[#allocation2 + $0xb0] sm:$0x1] %v189
  %v191 = vld [vmem:[#allocation2 + $0xbc] sm:$0x1]
  %v192 = vsel %vm145, 0, %v191
  %193 = vst [vmem:[#allocation2 + $0xbc] sm:$0x1] %v192
  %v194 = vld [vmem:[#allocation2 + $0xc8] sm:$0x1]
  %v195 = vsel %vm145, 0, %v194
  %196 = vst [vmem:[#allocation2 + $0xc8] sm:$0x1] %v195
  %v197 = vld [vmem:[#allocation2 + $0xd4] sm:$0x1]
  %v198 = vsel %vm145, 0, %v197
  %199 = vst [vmem:[#allocation2 + $0xd4] sm:$0x1] %v198
  %v200 = vld [vmem:[#allocation2 + $0xe0] sm:$0x1]
  %v201 = vsel %vm145, 0, %v200
  %202 = vst [vmem:[#allocation2 + $0xe0] sm:$0x1] %v201
  %v203 = vld [vmem:[#allocation2 + $0xec] sm:$0x1]
  %v204 = vsel %vm145, 0, %v203
  %205 = vst [vmem:[#allocation2 + $0xec] sm:$0x1] %v204
  %v206 = vld [vmem:[#allocation2 + $0xf8] sm:$0x1]
  %v207 = vsel %vm145, 0, %v206
  %208 = vst [vmem:[#allocation2 + $0xf8] sm:$0x1] %v207
  %v209 = vld [vmem:[#allocation2 + $0x104] sm:$0x1]
  %v210 = vsel %vm145, 0, %v209
  %211 = vst [vmem:[#allocation2 + $0x104] sm:$0x1] %v210
  %v212 = vld [vmem:[#allocation2 + $0x110] sm:$0x1]
  %v213 = vsel %vm145, 0, %v212
  %214 = vst [vmem:[#allocation2 + $0x110] sm:$0x1] %v213
  %v215 = vld [vmem:[#allocation2 + $0x11c] sm:$0x1]
  %v216 = vsel %vm145, 0, %v215
  %217 = vst [vmem:[#allocation2 + $0x11c] sm:$0x1] %v216
  %v218 = vld [vmem:[#allocation2 + $0x128] sm:$0x1]
  %v219 = vsel %vm145, 0, %v218
  %220 = vst [vmem:[#allocation2 + $0x128] sm:$0x1] %v219
  %v221 = vld [vmem:[#allocation2 + $0x134] sm:$0x1]
  %v222 = vsel %vm145, 0, %v221
  %223 = vst [vmem:[#allocation2 + $0x134] sm:$0x1] %v222
  %v224 = vld [vmem:[#allocation2 + $0x140] sm:$0x1]
  %v225 = vsel %vm145, 0, %v224
  %226 = vst [vmem:[#allocation2 + $0x140] sm:$0x1] %v225
  %v227 = vld [vmem:[#allocation2 + $0x14c] sm:$0x1]
  %v228 = vsel %vm145, 0, %v227
  %229 = vst [vmem:[#allocation2 + $0x14c] sm:$0x1] %v228
  %v230 = vld [vmem:[#allocation2 + $0x158] sm:$0x1]
  %v231 = vsel %vm145, 0, %v230
  %232 = vst [vmem:[#allocation2 + $0x158] sm:$0x1] %v231
  %v233 = vld [vmem:[#allocation2 + $0x164] sm:$0x1]
  %v234 = vsel %vm145, 0, %v233
  %235 = vst [vmem:[#allocation2 + $0x164] sm:$0x1] %v234
  %v236 = vld [vmem:[#allocation2 + $0x170] sm:$0x1]
  %v237 = vsel %vm145, 0, %v236
  %238 = vst [vmem:[#allocation2 + $0x170] sm:$0x1] %v237
  %v239 = vld [vmem:[#allocation2 + $0x17c] sm:$0x1]
  %v240 = vsel %vm145, 0, %v239
  %241 = vst [vmem:[#allocation2 + $0x17c] sm:$0x1] %v240
  %v242 = vld [vmem:[#allocation2 + $0x188] sm:$0x1]
  %v243 = vsel %vm145, 0, %v242
  %244 = vst [vmem:[#allocation2 + $0x188] sm:$0x1] %v243
  %v245 = vld [vmem:[#allocation2 + $0x194] sm:$0x1]
  %v246 = vsel %vm145, 0, %v245
  %247 = vst [vmem:[#allocation2 + $0x194] sm:$0x1] %v246
  %v248 = vld [vmem:[#allocation2 + $0x1a0] sm:$0x1]
  %v249 = vsel %vm145, 0, %v248
  %250 = vst [vmem:[#allocation2 + $0x1a0] sm:$0x1] %v249
  %v251 = vld [vmem:[#allocation2 + $0x1ac] sm:$0x1]
  %v252 = vsel %vm145, 0, %v251
  %253 = vst [vmem:[#allocation2 + $0x1ac] sm:$0x1] %v252
  %v254 = vld [vmem:[%s0] sm:$0xf]
  %v255 = vld [vmem:[%s0 + $0x4] sm:$0xf]
  %v256 = vld [vmem:[%s0 + $0x8] sm:$0xf]
  %v257 = vld [vmem:[%s0 + $0xc] sm:$0xf]
  %v258 = vld [vmem:[%s0 + $0x10] sm:$0xf]
  %v259 = vld [vmem:[%s0 + $0x14] sm:$0xf]
  %v260 = vld [vmem:[%s0 + $0x18] sm:$0xf]
  %v261 = vld [vmem:[%s0 + $0x1c] sm:$0xf]
  %v262 = vld [vmem:[%s0 + $0x20] sm:$0xf]
  %v263 = vld [vmem:[%s0 + $0x24] sm:$0xf]
  %v264 = vld [vmem:[%s0 + $0x28] sm:$0xf]
  %v265 = vld [vmem:[%s0 + $0x2c] sm:$0xf]
  %v266 = vld [vmem:[%s0 + $0x30] sm:$0xf]
  %v267 = vld [vmem:[%s0 + $0x34] sm:$0xf]
  %v268 = vld [vmem:[%s0 + $0x38] sm:$0xf]
  %v269 = vld [vmem:[%s0 + $0x3c] sm:$0xf]
  %v270 = vld [vmem:[%s0 + $0x40] sm:$0xf]
  %v271 = vld [vmem:[%s0 + $0x44] sm:$0xf]
  %v272 = vld [vmem:[%s0 + $0x48] sm:$0xf]
  %v273 = vld [vmem:[%s0 + $0x4c] sm:$0xf]
  %v274 = vld [vmem:[%s0 + $0x50] sm:$0xf]
  %v275 = vld [vmem:[%s0 + $0x54] sm:$0xf]
  %v276 = vld [vmem:[%s0 + $0x58] sm:$0xf]
  %v277 = vld [vmem:[%s0 + $0x5c] sm:$0xf]
  %v278 = vld [vmem:[%s0 + $0x60] sm:$0xf]
  %v279 = vld [vmem:[%s0 + $0x64] sm:$0xf]
  %v280 = vld [vmem:[%s0 + $0x68] sm:$0xf]
  %v281 = vld [vmem:[%s0 + $0x6c] sm:$0xf]
  %v282 = vld [vmem:[%s0 + $0x70] sm:$0xf]
  %v283 = vld [vmem:[%s0 + $0x74] sm:$0xf]
  %v284 = vld [vmem:[%s0 + $0x78] sm:$0xf]
  %v285 = vld [vmem:[%s0 + $0x7c] sm:$0xf]
  %v286 = vld [vmem:[%s0 + $0x80] sm:$0xf]
  %v287 = vld [vmem:[%s0 + $0x84] sm:$0xf]
  %v288 = vld [vmem:[%s0 + $0x88] sm:$0xf]
  %v289 = vld [vmem:[%s0 + $0x8c] sm:$0xf]
  %v290 = vld [vmem:[%s0 + $0x90] sm:$0xf]
  %v291 = vld [vmem:[%s0 + $0x94] sm:$0xf]
  %v292 = vld [vmem:[%s0 + $0x98] sm:$0xf]
  %v293 = vld [vmem:[%s0 + $0x9c] sm:$0xf]
  %v294 = vld [vmem:[%s0 + $0xa0] sm:$0xf]
  %v295 = vld [vmem:[%s0 + $0xa4] sm:$0xf]
  %v296 = vld [vmem:[%s0 + $0xa8] sm:$0xf]
  %v297 = vld [vmem:[%s0 + $0xac] sm:$0xf]
  %v298 = vld [vmem:[%s0 + $0xb0] sm:$0xf]
  %v299 = vld [vmem:[%s0 + $0xb4] sm:$0xf]
  %v300 = vld [vmem:[%s0 + $0xb8] sm:$0xf]
  %v301 = vld [vmem:[%s0 + $0xbc] sm:$0xf]
  %v302 = vld [vmem:[%s0 + $0xc0] sm:$0xf]
  %v303 = vld [vmem:[%s0 + $0xc4] sm:$0xf]
  %v304 = vld [vmem:[%s0 + $0xc8] sm:$0xf]
  %v305 = vld [vmem:[%s0 + $0xcc] sm:$0xf]
  %v306 = vld [vmem:[%s0 + $0xd0] sm:$0xf]
  %v307 = vld [vmem:[%s0 + $0xd4] sm:$0xf]
  %v308 = vld [vmem:[%s0 + $0xd8] sm:$0xf]
  %v309 = vld [vmem:[%s0 + $0xdc] sm:$0xf]
  %v310 = vld [vmem:[%s0 + $0xe0] sm:$0xf]
  %v311 = vld [vmem:[%s0 + $0xe4] sm:$0xf]
  %v312 = vld [vmem:[%s0 + $0xe8] sm:$0xf]
  %v313 = vld [vmem:[%s0 + $0xec] sm:$0xf]
  %v314 = vld [vmem:[%s0 + $0xf0] sm:$0xf]
  %v315 = vld [vmem:[%s0 + $0xf4] sm:$0xf]
  %v316 = vld [vmem:[%s0 + $0xf8] sm:$0xf]
  %v317 = vld [vmem:[%s0 + $0xfc] sm:$0xf]
  %vm318 = vsmask.f32 4368
  %vm319 = vmor %vm34, %vm318
  %v321 = vshrl.u32 %v254, 16
  %v323 = vrot.slane %v321, 7
  %v324 = vshll.u32 %v254, 16
  %v326 = vor.u32 %v323, %v324
  %v327 = vrot.slane %v323, 4
  %v329 = vshrl.u32 %v255, 16
  %v331 = vrot.slane %v329, 7
  %v332 = vshll.u32 %v255, 16
  %v334 = vor.u32 %v331, %v332
  %v335 = vsel %vm319, %v327, %v334
  %v336 = vrot.slane %v331, 4
  %v338 = vshrl.u32 %v256, 16
  %v340 = vrot.slane %v338, 7
  %v341 = vshll.u32 %v256, 16
  %v343 = vor.u32 %v340, %v341
  %v344 = vrot.slane %v340, 4
  %v346 = vshrl.u32 %v257, 16
  %v348 = vrot.slane %v346, 7
  %v349 = vshll.u32 %v257, 16
  %v351 = vor.u32 %v348, %v349
  %v352 = vsel %vm319, %v344, %v351
  %v353 = vrot.slane %v348, 4
  %v355 = vshrl.u32 %v258, 16
  %v357 = vrot.slane %v355, 7
  %v358 = vshll.u32 %v258, 16
  %v360 = vor.u32 %v357, %v358
  %v361 = vrot.slane %v357, 4
  %v363 = vshrl.u32 %v259, 16
  %v365 = vrot.slane %v363, 7
  %v366 = vshll.u32 %v259, 16
  %v368 = vor.u32 %v365, %v366
  %v369 = vsel %vm319, %v361, %v368
  %v370 = vrot.slane %v365, 4
  %v372 = vshrl.u32 %v260, 16
  %v374 = vrot.slane %v372, 7
  %v375 = vshll.u32 %v260, 16
  %v377 = vor.u32 %v374, %v375
  %v378 = vrot.slane %v374, 4
  %v380 = vshrl.u32 %v261, 16
  %v382 = vrot.slane %v380, 7
  %v383 = vshll.u32 %v261, 16
  %v385 = vor.u32 %v382, %v383
  %v386 = vsel %vm319, %v378, %v385
  %v387 = vrot.slane %v382, 4
  %v389 = vshrl.u32 %v262, 16
  %v391 = vrot.slane %v389, 7
  %v392 = vshll.u32 %v262, 16
  %v394 = vor.u32 %v391, %v392
  %v395 = vrot.slane %v391, 4
  %v397 = vshrl.u32 %v263, 16
  %v399 = vrot.slane %v397, 7
  %v400 = vshll.u32 %v263, 16
  %v402 = vor.u32 %v399, %v400
  %v403 = vsel %vm319, %v395, %v402
  %v404 = vrot.slane %v399, 4
  %v406 = vshrl.u32 %v264, 16
  %v408 = vrot.slane %v406, 7
  %v409 = vshll.u32 %v264, 16
  %v411 = vor.u32 %v408, %v409
  %v412 = vrot.slane %v408, 4
  %v414 = vshrl.u32 %v265, 16
  %v416 = vrot.slane %v414, 7
  %v417 = vshll.u32 %v265, 16
  %v419 = vor.u32 %v416, %v417
  %v420 = vsel %vm319, %v412, %v419
  %v421 = vrot.slane %v416, 4
  %v423 = vshrl.u32 %v266, 16
  %v425 = vrot.slane %v423, 7
  %v426 = vshll.u32 %v266, 16
  %v428 = vor.u32 %v425, %v426
  %v429 = vrot.slane %v425, 4
  %v431 = vshrl.u32 %v267, 16
  %v433 = vrot.slane %v431, 7
  %v434 = vshll.u32 %v267, 16
  %v436 = vor.u32 %v433, %v434
  %v437 = vsel %vm319, %v429, %v436
  %v438 = vrot.slane %v433, 4
  %v440 = vshrl.u32 %v268, 16
  %v442 = vrot.slane %v440, 7
  %v443 = vshll.u32 %v268, 16
  %v445 = vor.u32 %v442, %v443
  %v446 = vrot.slane %v442, 4
  %v448 = vshrl.u32 %v269, 16
  %v450 = vrot.slane %v448, 7
  %v451 = vshll.u32 %v269, 16
  %v453 = vor.u32 %v450, %v451
  %v454 = vsel %vm319, %v446, %v453
  %v455 = vrot.slane %v450, 4
  %v457 = vshrl.u32 %v270, 16
  %v459 = vrot.slane %v457, 7
  %v460 = vshll.u32 %v270, 16
  %v462 = vor.u32 %v459, %v460
  %v463 = vrot.slane %v459, 4
  %v465 = vshrl.u32 %v271, 16
  %v467 = vrot.slane %v465, 7
  %v468 = vshll.u32 %v271, 16
  %v470 = vor.u32 %v467, %v468
  %v471 = vsel %vm319, %v463, %v470
  %v472 = vrot.slane %v467, 4
  %v474 = vshrl.u32 %v272, 16
  %v476 = vrot.slane %v474, 7
  %v477 = vshll.u32 %v272, 16
  %v479 = vor.u32 %v476, %v477
  %v480 = vrot.slane %v476, 4
  %v482 = vshrl.u32 %v273, 16
  %v484 = vrot.slane %v482, 7
  %v485 = vshll.u32 %v273, 16
  %v487 = vor.u32 %v484, %v485
  %v488 = vsel %vm319, %v480, %v487
  %v489 = vrot.slane %v484, 4
  %v491 = vshrl.u32 %v274, 16
  %v493 = vrot.slane %v491, 7
  %v494 = vshll.u32 %v274, 16
  %v496 = vor.u32 %v493, %v494
  %v497 = vrot.slane %v493, 4
  %v499 = vshrl.u32 %v275, 16
  %v501 = vrot.slane %v499, 7
  %v502 = vshll.u32 %v275, 16
  %v504 = vor.u32 %v501, %v502
  %v505 = vsel %vm319, %v497, %v504
  %v506 = vrot.slane %v501, 4
  %v508 = vshrl.u32 %v276, 16
  %v510 = vrot.slane %v508, 7
  %v511 = vshll.u32 %v276, 16
  %v513 = vor.u32 %v510, %v511
  %v514 = vrot.slane %v510, 4
  %v516 = vshrl.u32 %v277, 16
  %v518 = vrot.slane %v516, 7
  %v519 = vshll.u32 %v277, 16
  %v521 = vor.u32 %v518, %v519
  %v522 = vsel %vm319, %v514, %v521
  %v523 = vrot.slane %v518, 4
  %v525 = vshrl.u32 %v278, 16
  %v527 = vrot.slane %v525, 7
  %v528 = vshll.u32 %v278, 16
  %v530 = vor.u32 %v527, %v528
  %v531 = vrot.slane %v527, 4
  %v533 = vshrl.u32 %v279, 16
  %v535 = vrot.slane %v533, 7
  %v536 = vshll.u32 %v279, 16
  %v538 = vor.u32 %v535, %v536
  %v539 = vsel %vm319, %v531, %v538
  %v540 = vrot.slane %v535, 4
  %v542 = vshrl.u32 %v280, 16
  %v544 = vrot.slane %v542, 7
  %v545 = vshll.u32 %v280, 16
  %v547 = vor.u32 %v544, %v545
  %v548 = vrot.slane %v544, 4
  %v550 = vshrl.u32 %v281, 16
  %v552 = vrot.slane %v550, 7
  %v553 = vshll.u32 %v281, 16
  %v555 = vor.u32 %v552, %v553
  %v556 = vsel %vm319, %v548, %v555
  %v557 = vrot.slane %v552, 4
  %v559 = vshrl.u32 %v282, 16
  %v561 = vrot.slane %v559, 7
  %v562 = vshll.u32 %v282, 16
  %v564 = vor.u32 %v561, %v562
  %v565 = vrot.slane %v561, 4
  %v567 = vshrl.u32 %v283, 16
  %v569 = vrot.slane %v567, 7
  %v570 = vshll.u32 %v283, 16
  %v572 = vor.u32 %v569, %v570
  %v573 = vsel %vm319, %v565, %v572
  %v574 = vrot.slane %v569, 4
  %v576 = vshrl.u32 %v284, 16
  %v578 = vrot.slane %v576, 7
  %v579 = vshll.u32 %v284, 16
  %v581 = vor.u32 %v578, %v579
  %v582 = vrot.slane %v578, 4
  %v584 = vshrl.u32 %v285, 16
  %v586 = vrot.slane %v584, 7
  %v587 = vshll.u32 %v285, 16
  %v589 = vor.u32 %v586, %v587
  %v590 = vsel %vm319, %v582, %v589
  %v591 = vrot.slane %v586, 4
  %v593 = vshrl.u32 %v286, 16
  %v595 = vrot.slane %v593, 7
  %v596 = vshll.u32 %v286, 16
  %v598 = vor.u32 %v595, %v596
  %v599 = vrot.slane %v595, 4
  %v601 = vshrl.u32 %v287, 16
  %v603 = vrot.slane %v601, 7
  %v604 = vshll.u32 %v287, 16
  %v606 = vor.u32 %v603, %v604
  %v607 = vsel %vm319, %v599, %v606
  %v608 = vrot.slane %v603, 4
  %v610 = vshrl.u32 %v288, 16
  %v612 = vrot.slane %v610, 7
  %v613 = vshll.u32 %v288, 16
  %v615 = vor.u32 %v612, %v613
  %v616 = vrot.slane %v612, 4
  %v618 = vshrl.u32 %v289, 16
  %v620 = vrot.slane %v618, 7
  %v621 = vshll.u32 %v289, 16
  %v623 = vor.u32 %v620, %v621
  %v624 = vsel %vm319, %v616, %v623
  %v625 = vrot.slane %v620, 4
  %v627 = vshrl.u32 %v290, 16
  %v629 = vrot.slane %v627, 7
  %v630 = vshll.u32 %v290, 16
  %v632 = vor.u32 %v629, %v630
  %v633 = vrot.slane %v629, 4
  %v635 = vshrl.u32 %v291, 16
  %v637 = vrot.slane %v635, 7
  %v638 = vshll.u32 %v291, 16
  %v640 = vor.u32 %v637, %v638
  %v641 = vsel %vm319, %v633, %v640
  %v642 = vrot.slane %v637, 4
  %v644 = vshrl.u32 %v292, 16
  %v646 = vrot.slane %v644, 7
  %v647 = vshll.u32 %v292, 16
  %v649 = vor.u32 %v646, %v647
  %v650 = vrot.slane %v646, 4
  %v652 = vshrl.u32 %v293, 16
  %v654 = vrot.slane %v652, 7
  %v655 = vshll.u32 %v293, 16
  %v657 = vor.u32 %v654, %v655
  %v658 = vsel %vm319, %v650, %v657
  %v659 = vrot.slane %v654, 4
  %v661 = vshrl.u32 %v294, 16
  %v663 = vrot.slane %v661, 7
  %v664 = vshll.u32 %v294, 16
  %v666 = vor.u32 %v663, %v664
  %v667 = vrot.slane %v663, 4
  %v669 = vshrl.u32 %v295, 16
  %v671 = vrot.slane %v669, 7
  %v672 = vshll.u32 %v295, 16
  %v674 = vor.u32 %v671, %v672
  %v675 = vsel %vm319, %v667, %v674
  %v676 = vrot.slane %v671, 4
  %v678 = vshrl.u32 %v296, 16
  %v680 = vrot.slane %v678, 7
  %v681 = vshll.u32 %v296, 16
  %v683 = vor.u32 %v680, %v681
  %v684 = vrot.slane %v680, 4
  %v686 = vshrl.u32 %v297, 16
  %v688 = vrot.slane %v686, 7
  %v689 = vshll.u32 %v297, 16
  %v691 = vor.u32 %v688, %v689
  %v692 = vsel %vm319, %v684, %v691
  %v693 = vrot.slane %v688, 4
  %v695 = vshrl.u32 %v298, 16
  %v697 = vrot.slane %v695, 7
  %v698 = vshll.u32 %v298, 16
  %v700 = vor.u32 %v697, %v698
  %v701 = vrot.slane %v697, 4
  %v703 = vshrl.u32 %v299, 16
  %v705 = vrot.slane %v703, 7
  %v706 = vshll.u32 %v299, 16
  %v708 = vor.u32 %v705, %v706
  %v709 = vsel %vm319, %v701, %v708
  %v710 = vrot.slane %v705, 4
  %v712 = vshrl.u32 %v300, 16
  %v714 = vrot.slane %v712, 7
  %v715 = vshll.u32 %v300, 16
  %v717 = vor.u32 %v714, %v715
  %v718 = vrot.slane %v714, 4
  %v720 = vshrl.u32 %v301, 16
  %v722 = vrot.slane %v720, 7
  %v723 = vshll.u32 %v301, 16
  %v725 = vor.u32 %v722, %v723
  %v726 = vsel %vm319, %v718, %v725
  %v727 = vrot.slane %v722, 4
  %v729 = vshrl.u32 %v302, 16
  %v731 = vrot.slane %v729, 7
  %v732 = vshll.u32 %v302, 16
  %v734 = vor.u32 %v731, %v732
  %v735 = vrot.slane %v731, 4
  %v737 = vshrl.u32 %v303, 16
  %v739 = vrot.slane %v737, 7
  %v740 = vshll.u32 %v303, 16
  %v742 = vor.u32 %v739, %v740
  %v743 = vsel %vm319, %v735, %v742
  %v744 = vrot.slane %v739, 4
  %v746 = vshrl.u32 %v304, 16
  %v748 = vrot.slane %v746, 7
  %v749 = vshll.u32 %v304, 16
  %v751 = vor.u32 %v748, %v749
  %v752 = vrot.slane %v748, 4
  %v754 = vshrl.u32 %v305, 16
  %v756 = vrot.slane %v754, 7
  %v757 = vshll.u32 %v305, 16
  %v759 = vor.u32 %v756, %v757
  %v760 = vsel %vm319, %v752, %v759
  %v761 = vrot.slane %v756, 4
  %v763 = vshrl.u32 %v306, 16
  %v765 = vrot.slane %v763, 7
  %v766 = vshll.u32 %v306, 16
  %v768 = vor.u32 %v765, %v766
  %v769 = vrot.slane %v765, 4
  %v771 = vshrl.u32 %v307, 16
  %v773 = vrot.slane %v771, 7
  %v774 = vshll.u32 %v307, 16
  %v776 = vor.u32 %v773, %v774
  %v777 = vsel %vm319, %v769, %v776
  %v778 = vrot.slane %v773, 4
  %v780 = vshrl.u32 %v308, 16
  %v782 = vrot.slane %v780, 7
  %v783 = vshll.u32 %v308, 16
  %v785 = vor.u32 %v782, %v783
  %v786 = vrot.slane %v782, 4
  %v788 = vshrl.u32 %v309, 16
  %v790 = vrot.slane %v788, 7
  %v791 = vshll.u32 %v309, 16
  %v793 = vor.u32 %v790, %v791
  %v794 = vsel %vm319, %v786, %v793
  %v795 = vrot.slane %v790, 4
  %v797 = vshrl.u32 %v310, 16
  %v799 = vrot.slane %v797, 7
  %v800 = vshll.u32 %v310, 16
  %v802 = vor.u32 %v799, %v800
  %v803 = vrot.slane %v799, 4
  %v805 = vshrl.u32 %v311, 16
  %v807 = vrot.slane %v805, 7
  %v808 = vshll.u32 %v311, 16
  %v810 = vor.u32 %v807, %v808
  %v811 = vsel %vm319, %v803, %v810
  %v812 = vrot.slane %v807, 4
  %v814 = vshrl.u32 %v312, 16
  %v816 = vrot.slane %v814, 7
  %v817 = vshll.u32 %v312, 16
  %v819 = vor.u32 %v816, %v817
  %v820 = vrot.slane %v816, 4
  %v822 = vshrl.u32 %v313, 16
  %v824 = vrot.slane %v822, 7
  %v825 = vshll.u32 %v313, 16
  %v827 = vor.u32 %v824, %v825
  %v828 = vsel %vm319, %v820, %v827
  %v829 = vrot.slane %v824, 4
  %v831 = vshrl.u32 %v314, 16
  %v833 = vrot.slane %v831, 7
  %v834 = vshll.u32 %v314, 16
  %v836 = vor.u32 %v833, %v834
  %v837 = vrot.slane %v833, 4
  %v839 = vshrl.u32 %v315, 16
  %v841 = vrot.slane %v839, 7
  %v842 = vshll.u32 %v315, 16
  %v844 = vor.u32 %v841, %v842
  %v845 = vsel %vm319, %v837, %v844
  %v846 = vrot.slane %v841, 4
  %v848 = vshrl.u32 %v316, 16
  %v850 = vrot.slane %v848, 7
  %v851 = vshll.u32 %v316, 16
  %v853 = vor.u32 %v850, %v851
  %v854 = vrot.slane %v850, 4
  %v856 = vshrl.u32 %v317, 16
  %v858 = vrot.slane %v856, 7
  %v859 = vshll.u32 %v317, 16
  %v861 = vor.u32 %v858, %v859
  %v862 = vsel %vm319, %v854, %v861
  %v863 = vrot.slane %v858, 4
  %s960 = scalar_lea.vmem [#allocation2], 12
  %vm961 = vcmask 27648
  %vm962 = vmand %vm961, %vm144
  %v963 = vld [vmem:[%s960] sm:$0xf]
  %v964 = vsel %vm962, %v326, %v963
  %965 = vst [vmem:[%s960] sm:$0xf] %v964
  %966 = vst.msk [vmem:[%s960 + $0x4] sm:$0xf] %vm18, %v335
  %v967 = vld [vmem:[%s960 + $0x8] sm:$0x1]
  %v968 = vsel %vm35, %v336, %v967
  %969 = vst [vmem:[%s960 + $0x8] sm:$0x1] %v968
  %v970 = vld [vmem:[%s960 + $0xc] sm:$0xf]
  %v971 = vsel %vm962, %v343, %v970
  %972 = vst [vmem:[%s960 + $0xc] sm:$0xf] %v971
  %973 = vst.msk [vmem:[%s960 + $0x10] sm:$0xf] %vm18, %v352
  %v974 = vld [vmem:[%s960 + $0x14] sm:$0x1]
  %v975 = vsel %vm35, %v353, %v974
  %976 = vst [vmem:[%s960 + $0x14] sm:$0x1] %v975
  %v977 = vld [vmem:[%s960 + $0x18] sm:$0xf]
  %v978 = vsel %vm962, %v360, %v977
  %979 = vst [vmem:[%s960 + $0x18] sm:$0xf] %v978
  %980 = vst.msk [vmem:[%s960 + $0x1c] sm:$0xf] %vm18, %v369
  %v981 = vld [vmem:[%s960 + $0x20] sm:$0x1]
  %v982 = vsel %vm35, %v370, %v981
  %983 = vst [vmem:[%s960 + $0x20] sm:$0x1] %v982
  %v984 = vld [vmem:[%s960 + $0x24] sm:$0xf]
  %v985 = vsel %vm962, %v377, %v984
  %986 = vst [vmem:[%s960 + $0x24] sm:$0xf] %v985
  %987 = vst.msk [vmem:[%s960 + $0x28] sm:$0xf] %vm18, %v386
  %v988 = vld [vmem:[%s960 + $0x2c] sm:$0x1]
  %v989 = vsel %vm35, %v387, %v988
  %990 = vst [vmem:[%s960 + $0x2c] sm:$0x1] %v989
  %v991 = vld [vmem:[%s960 + $0x30] sm:$0xf]
  %v992 = vsel %vm962, %v394, %v991
  %993 = vst [vmem:[%s960 + $0x30] sm:$0xf] %v992
  %994 = vst.msk [vmem:[%s960 + $0x34] sm:$0xf] %vm18, %v403
  %v995 = vld [vmem:[%s960 + $0x38] sm:$0x1]
  %v996 = vsel %vm35, %v404, %v995
  %997 = vst [vmem:[%s960 + $0x38] sm:$0x1] %v996
  %v998 = vld [vmem:[%s960 + $0x3c] sm:$0xf]
  %v999 = vsel %vm962, %v411, %v998
  %1000 = vst [vmem:[%s960 + $0x3c] sm:$0xf] %v999
  %1001 = vst.msk [vmem:[%s960 + $0x40] sm:$0xf] %vm18, %v420
  %v1002 = vld [vmem:[%s960 + $0x44] sm:$0x1]
  %v1003 = vsel %vm35, %v421, %v1002
  %1004 = vst [vmem:[%s960 + $0x44] sm:$0x1] %v1003
  %v1005 = vld [vmem:[%s960 + $0x48] sm:$0xf]
  %v1006 = vsel %vm962, %v428, %v1005
  %1007 = vst [vmem:[%s960 + $0x48] sm:$0xf] %v1006
  %1008 = vst.msk [vmem:[%s960 + $0x4c] sm:$0xf] %vm18, %v437
  %v1009 = vld [vmem:[%s960 + $0x50] sm:$0x1]
  %v1010 = vsel %vm35, %v438, %v1009
  %1011 = vst [vmem:[%s960 + $0x50] sm:$0x1] %v1010
  %v1012 = vld [vmem:[%s960 + $0x54] sm:$0xf]
  %v1013 = vsel %vm962, %v445, %v1012
  %1014 = vst [vmem:[%s960 + $0x54] sm:$0xf] %v1013
  %1015 = vst.msk [vmem:[%s960 + $0x58] sm:$0xf] %vm18, %v454
  %v1016 = vld [vmem:[%s960 + $0x5c] sm:$0x1]
  %v1017 = vsel %vm35, %v455, %v1016
  %1018 = vst [vmem:[%s960 + $0x5c] sm:$0x1] %v1017
  %v1019 = vld [vmem:[%s960 + $0x60] sm:$0xf]
  %v1020 = vsel %vm962, %v462, %v1019
  %1021 = vst [vmem:[%s960 + $0x60] sm:$0xf] %v1020
  %1022 = vst.msk [vmem:[%s960 + $0x64] sm:$0xf] %vm18, %v471
  %v1023 = vld [vmem:[%s960 + $0x68] sm:$0x1]
  %v1024 = vsel %vm35, %v472, %v1023
  %1025 = vst [vmem:[%s960 + $0x68] sm:$0x1] %v1024
  %v1026 = vld [vmem:[%s960 + $0x6c] sm:$0xf]
  %v1027 = vsel %vm962, %v479, %v1026
  %1028 = vst [vmem:[%s960 + $0x6c] sm:$0xf] %v1027
  %1029 = vst.msk [vmem:[%s960 + $0x70] sm:$0xf] %vm18, %v488
  %v1030 = vld [vmem:[%s960 + $0x74] sm:$0x1]
  %v1031 = vsel %vm35, %v489, %v1030
  %1032 = vst [vmem:[%s960 + $0x74] sm:$0x1] %v1031
  %v1033 = vld [vmem:[%s960 + $0x78] sm:$0xf]
  %v1034 = vsel %vm962, %v496, %v1033
  %1035 = vst [vmem:[%s960 + $0x78] sm:$0xf] %v1034
  %1036 = vst.msk [vmem:[%s960 + $0x7c] sm:$0xf] %vm18, %v505
  %v1037 = vld [vmem:[%s960 + $0x80] sm:$0x1]
  %v1038 = vsel %vm35, %v506, %v1037
  %1039 = vst [vmem:[%s960 + $0x80] sm:$0x1] %v1038
  %v1040 = vld [vmem:[%s960 + $0x84] sm:$0xf]
  %v1041 = vsel %vm962, %v513, %v1040
  %1042 = vst [vmem:[%s960 + $0x84] sm:$0xf] %v1041
  %1043 = vst.msk [vmem:[%s960 + $0x88] sm:$0xf] %vm18, %v522
  %v1044 = vld [vmem:[%s960 + $0x8c] sm:$0x1]
  %v1045 = vsel %vm35, %v523, %v1044
  %1046 = vst [vmem:[%s960 + $0x8c] sm:$0x1] %v1045
  %v1047 = vld [vmem:[%s960 + $0x90] sm:$0xf]
  %v1048 = vsel %vm962, %v530, %v1047
  %1049 = vst [vmem:[%s960 + $0x90] sm:$0xf] %v1048
  %1050 = vst.msk [vmem:[%s960 + $0x94] sm:$0xf] %vm18, %v539
  %v1051 = vld [vmem:[%s960 + $0x98] sm:$0x1]
  %v1052 = vsel %vm35, %v540, %v1051
  %1053 = vst [vmem:[%s960 + $0x98] sm:$0x1] %v1052
  %v1054 = vld [vmem:[%s960 + $0x9c] sm:$0xf]
  %v1055 = vsel %vm962, %v547, %v1054
  %1056 = vst [vmem:[%s960 + $0x9c] sm:$0xf] %v1055
  %1057 = vst.msk [vmem:[%s960 + $0xa0] sm:$0xf] %vm18, %v556
  %v1058 = vld [vmem:[%s960 + $0xa4] sm:$0x1]
  %v1059 = vsel %vm35, %v557, %v1058
  %1060 = vst [vmem:[%s960 + $0xa4] sm:$0x1] %v1059
  %v1061 = vld [vmem:[%s960 + $0xa8] sm:$0xf]
  %v1062 = vsel %vm962, %v564, %v1061
  %1063 = vst [vmem:[%s960 + $0xa8] sm:$0xf] %v1062
  %1064 = vst.msk [vmem:[%s960 + $0xac] sm:$0xf] %vm18, %v573
  %v1065 = vld [vmem:[%s960 + $0xb0] sm:$0x1]
  %v1066 = vsel %vm35, %v574, %v1065
  %1067 = vst [vmem:[%s960 + $0xb0] sm:$0x1] %v1066
  %v1068 = vld [vmem:[%s960 + $0xb4] sm:$0xf]
  %v1069 = vsel %vm962, %v581, %v1068
  %1070 = vst [vmem:[%s960 + $0xb4] sm:$0xf] %v1069
  %1071 = vst.msk [vmem:[%s960 + $0xb8] sm:$0xf] %vm18, %v590
  %v1072 = vld [vmem:[%s960 + $0xbc] sm:$0x1]
  %v1073 = vsel %vm35, %v591, %v1072
  %1074 = vst [vmem:[%s960 + $0xbc] sm:$0x1] %v1073
  %v1075 = vld [vmem:[%s960 + $0xd8] sm:$0xf]
  %v1076 = vsel %vm962, %v598, %v1075
  %1077 = vst [vmem:[%s960 + $0xd8] sm:$0xf] %v1076
  %1078 = vst.msk [vmem:[%s960 + $0xdc] sm:$0xf] %vm18, %v607
  %v1079 = vld [vmem:[%s960 + $0xe0] sm:$0x1]
  %v1080 = vsel %vm35, %v608, %v1079
  %1081 = vst [vmem:[%s960 + $0xe0] sm:$0x1] %v1080
  %v1082 = vld [vmem:[%s960 + $0xe4] sm:$0xf]
  %v1083 = vsel %vm962, %v615, %v1082
  %1084 = vst [vmem:[%s960 + $0xe4] sm:$0xf] %v1083
  %1085 = vst.msk [vmem:[%s960 + $0xe8] sm:$0xf] %vm18, %v624
  %v1086 = vld [vmem:[%s960 + $0xec] sm:$0x1]
  %v1087 = vsel %vm35, %v625, %v1086
  %1088 = vst [vmem:[%s960 + $0xec] sm:$0x1] %v1087
  %v1089 = vld [vmem:[%s960 + $0xf0] sm:$0xf]
  %v1090 = vsel %vm962, %v632, %v1089
  %1091 = vst [vmem:[%s960 + $0xf0] sm:$0xf] %v1090
  %1092 = vst.msk [vmem:[%s960 + $0xf4] sm:$0xf] %vm18, %v641
  %v1093 = vld [vmem:[%s960 + $0xf8] sm:$0x1]
  %v1094 = vsel %vm35, %v642, %v1093
  %1095 = vst [vmem:[%s960 + $0xf8] sm:$0x1] %v1094
  %v1096 = vld [vmem:[%s960 + $0xfc] sm:$0xf]
  %v1097 = vsel %vm962, %v649, %v1096
  %1098 = vst [vmem:[%s960 + $0xfc] sm:$0xf] %v1097
  %1099 = vst.msk [vmem:[%s960 + $0x100] sm:$0xf] %vm18, %v658
  %v1100 = vld [vmem:[%s960 + $0x104] sm:$0x1]
  %v1101 = vsel %vm35, %v659, %v1100
  %1102 = vst [vmem:[%s960 + $0x104] sm:$0x1] %v1101
  %v1103 = vld [vmem:[%s960 + $0x108] sm:$0xf]
  %v1104 = vsel %vm962, %v666, %v1103
  %1105 = vst [vmem:[%s960 + $0x108] sm:$0xf] %v1104
  %1106 = vst.msk [vmem:[%s960 + $0x10c] sm:$0xf] %vm18, %v675
  %v1107 = vld [vmem:[%s960 + $0x110] sm:$0x1]
  %v1108 = vsel %vm35, %v676, %v1107
  %1109 = vst [vmem:[%s960 + $0x110] sm:$0x1] %v1108
  %v1110 = vld [vmem:[%s960 + $0x114] sm:$0xf]
  %v1111 = vsel %vm962, %v683, %v1110
  %1112 = vst [vmem:[%s960 + $0x114] sm:$0xf] %v1111
  %1113 = vst.msk [vmem:[%s960 + $0x118] sm:$0xf] %vm18, %v692
  %v1114 = vld [vmem:[%s960 + $0x11c] sm:$0x1]
  %v1115 = vsel %vm35, %v693, %v1114
  %1116 = vst [vmem:[%s960 + $0x11c] sm:$0x1] %v1115
  %v1117 = vld [vmem:[%s960 + $0x120] sm:$0xf]
  %v1118 = vsel %vm962, %v700, %v1117
  %1119 = vst [vmem:[%s960 + $0x120] sm:$0xf] %v1118
  %1120 = vst.msk [vmem:[%s960 + $0x124] sm:$0xf] %vm18, %v709
  %v1121 = vld [vmem:[%s960 + $0x128] sm:$0x1]
  %v1122 = vsel %vm35, %v710, %v1121
  %1123 = vst [vmem:[%s960 + $0x128] sm:$0x1] %v1122
  %v1124 = vld [vmem:[%s960 + $0x12c] sm:$0xf]
  %v1125 = vsel %vm962, %v717, %v1124
  %1126 = vst [vmem:[%s960 + $0x12c] sm:$0xf] %v1125
  %1127 = vst.msk [vmem:[%s960 + $0x130] sm:$0xf] %vm18, %v726
  %v1128 = vld [vmem:[%s960 + $0x134] sm:$0x1]
  %v1129 = vsel %vm35, %v727, %v1128
  %1130 = vst [vmem:[%s960 + $0x134] sm:$0x1] %v1129
  %v1131 = vld [vmem:[%s960 + $0x138] sm:$0xf]
  %v1132 = vsel %vm962, %v734, %v1131
  %1133 = vst [vmem:[%s960 + $0x138] sm:$0xf] %v1132
  %1134 = vst.msk [vmem:[%s960 + $0x13c] sm:$0xf] %vm18, %v743
  %v1135 = vld [vmem:[%s960 + $0x140] sm:$0x1]
  %v1136 = vsel %vm35, %v744, %v1135
  %1137 = vst [vmem:[%s960 + $0x140] sm:$0x1] %v1136
  %v1138 = vld [vmem:[%s960 + $0x144] sm:$0xf]
  %v1139 = vsel %vm962, %v751, %v1138
  %1140 = vst [vmem:[%s960 + $0x144] sm:$0xf] %v1139
  %1141 = vst.msk [vmem:[%s960 + $0x148] sm:$0xf] %vm18, %v760
  %v1142 = vld [vmem:[%s960 + $0x14c] sm:$0x1]
  %v1143 = vsel %vm35, %v761, %v1142
  %1144 = vst [vmem:[%s960 + $0x14c] sm:$0x1] %v1143
  %v1145 = vld [vmem:[%s960 + $0x150] sm:$0xf]
  %v1146 = vsel %vm962, %v768, %v1145
  %1147 = vst [vmem:[%s960 + $0x150] sm:$0xf] %v1146
  %1148 = vst.msk [vmem:[%s960 + $0x154] sm:$0xf] %vm18, %v777
  %v1149 = vld [vmem:[%s960 + $0x158] sm:$0x1]
  %v1150 = vsel %vm35, %v778, %v1149
  %1151 = vst [vmem:[%s960 + $0x158] sm:$0x1] %v1150
  %v1152 = vld [vmem:[%s960 + $0x15c] sm:$0xf]
  %v1153 = vsel %vm962, %v785, %v1152
  %1154 = vst [vmem:[%s960 + $0x15c] sm:$0xf] %v1153
  %1155 = vst.msk [vmem:[%s960 + $0x160] sm:$0xf] %vm18, %v794
  %v1156 = vld [vmem:[%s960 + $0x164] sm:$0x1]
  %v1157 = vsel %vm35, %v795, %v1156
  %1158 = vst [vmem:[%s960 + $0x164] sm:$0x1] %v1157
  %v1159 = vld [vmem:[%s960 + $0x168] sm:$0xf]
  %v1160 = vsel %vm962, %v802, %v1159
  %1161 = vst [vmem:[%s960 + $0x168] sm:$0xf] %v1160
  %1162 = vst.msk [vmem:[%s960 + $0x16c] sm:$0xf] %vm18, %v811
  %v1163 = vld [vmem:[%s960 + $0x170] sm:$0x1]
  %v1164 = vsel %vm35, %v812, %v1163
  %1165 = vst [vmem:[%s960 + $0x170] sm:$0x1] %v1164
  %v1166 = vld [vmem:[%s960 + $0x174] sm:$0xf]
  %v1167 = vsel %vm962, %v819, %v1166
  %1168 = vst [vmem:[%s960 + $0x174] sm:$0xf] %v1167
  %1169 = vst.msk [vmem:[%s960 + $0x178] sm:$0xf] %vm18, %v828
  %v1170 = vld [vmem:[%s960 + $0x17c] sm:$0x1]
  %v1171 = vsel %vm35, %v829, %v1170
  %1172 = vst [vmem:[%s960 + $0x17c] sm:$0x1] %v1171
  %v1173 = vld [vmem:[%s960 + $0x180] sm:$0xf]
  %v1174 = vsel %vm962, %v836, %v1173
  %1175 = vst [vmem:[%s960 + $0x180] sm:$0xf] %v1174
  %1176 = vst.msk [vmem:[%s960 + $0x184] sm:$0xf] %vm18, %v845
  %v1177 = vld [vmem:[%s960 + $0x188] sm:$0x1]
  %v1178 = vsel %vm35, %v846, %v1177
  %1179 = vst [vmem:[%s960 + $0x188] sm:$0x1] %v1178
  %v1180 = vld [vmem:[%s960 + $0x18c] sm:$0xf]
  %v1181 = vsel %vm962, %v853, %v1180
  %1182 = vst [vmem:[%s960 + $0x18c] sm:$0xf] %v1181
  %1183 = vst.msk [vmem:[%s960 + $0x190] sm:$0xf] %vm18, %v862
  %v1184 = vld [vmem:[%s960 + $0x194] sm:$0x1]
  %v1185 = vsel %vm35, %v863, %v1184
  %1186 = vst [vmem:[%s960 + $0x194] sm:$0x1] %v1185
  %v1187 = vld [vmem:[#allocation2] sm:$0xf]
  %v1188 = vld [vmem:[#allocation2 + $0x4] sm:$0xf]
  %v1189 = vld [vmem:[#allocation2 + $0x8] sm:$0x1]
  %v1190 = vld [vmem:[#allocation2 + $0xc] sm:$0xf]
  %v1191 = vld [vmem:[#allocation2 + $0x10] sm:$0xf]
  %v1192 = vld [vmem:[#allocation2 + $0x14] sm:$0x1]
  %v1193 = vld [vmem:[#allocation2 + $0x18] sm:$0xf]
  %v1194 = vld [vmem:[#allocation2 + $0x1c] sm:$0xf]
  %v1195 = vld [vmem:[#allocation2 + $0x20] sm:$0x1]
  %v1196 = vld [vmem:[#allocation2 + $0x24] sm:$0xf]
  %v1197 = vld [vmem:[#allocation2 + $0x28] sm:$0xf]
  %v1198 = vld [vmem:[#allocation2 + $0x2c] sm:$0x1]
  %v1199 = vld [vmem:[#allocation2 + $0x30] sm:$0xf]
  %v1200 = vld [vmem:[#allocation2 + $0x34] sm:$0xf]
  %v1201 = vld [vmem:[#allocation2 + $0x38] sm:$0x1]
  %v1202 = vld [vmem:[#allocation2 + $0x3c] sm:$0xf]
  %v1203 = vld [vmem:[#allocation2 + $0x40] sm:$0xf]
  %v1204 = vld [vmem:[#allocation2 + $0x44] sm:$0x1]
  %v1205 = vld [vmem:[#allocation2 + $0x48] sm:$0xf]
  %v1206 = vld [vmem:[#allocation2 + $0x4c] sm:$0xf]
  %v1207 = vld [vmem:[#allocation2 + $0x50] sm:$0x1]
  %v1208 = vld [vmem:[#allocation2 + $0x54] sm:$0xf]
  %v1209 = vld [vmem:[#allocation2 + $0x58] sm:$0xf]
  %v1210 = vld [vmem:[#allocation2 + $0x5c] sm:$0x1]
  %v1211 = vld [vmem:[#allocation2 + $0x60] sm:$0xf]
  %v1212 = vld [vmem:[#allocation2 + $0x64] sm:$0xf]
  %v1213 = vld [vmem:[#allocation2 + $0x68] sm:$0x1]
  %v1214 = vld [vmem:[#allocation2 + $0x6c] sm:$0xf]
  %v1215 = vld [vmem:[#allocation2 + $0x70] sm:$0xf]
  %v1216 = vld [vmem:[#allocation2 + $0x74] sm:$0x1]
  %v1217 = vld [vmem:[#allocation2 + $0x78] sm:$0xf]
  %v1218 = vld [vmem:[#allocation2 + $0x7c] sm:$0xf]
  %v1219 = vld [vmem:[#allocation2 + $0x80] sm:$0x1]
  %v1220 = vld [vmem:[#allocation2 + $0x84] sm:$0xf]
  %v1221 = vld [vmem:[#allocation2 + $0x88] sm:$0xf]
  %v1222 = vld [vmem:[#allocation2 + $0x8c] sm:$0x1]
  %v1223 = vld [vmem:[#allocation2 + $0x90] sm:$0xf]
  %v1224 = vld [vmem:[#allocation2 + $0x94] sm:$0xf]
  %v1225 = vld [vmem:[#allocation2 + $0x98] sm:$0x1]
  %v1226 = vld [vmem:[#allocation2 + $0x9c] sm:$0xf]
  %v1227 = vld [vmem:[#allocation2 + $0xa0] sm:$0xf]
  %v1228 = vld [vmem:[#allocation2 + $0xa4] sm:$0x1]
  %v1229 = vld [vmem:[#allocation2 + $0xa8] sm:$0xf]
  %v1230 = vld [vmem:[#allocation2 + $0xac] sm:$0xf]
  %v1231 = vld [vmem:[#allocation2 + $0xb0] sm:$0x1]
  %v1232 = vld [vmem:[#allocation2 + $0xb4] sm:$0xf]
  %v1233 = vld [vmem:[#allocation2 + $0xb8] sm:$0xf]
  %v1234 = vld [vmem:[#allocation2 + $0xbc] sm:$0x1]
  %v1235 = vld [vmem:[#allocation2 + $0xc0] sm:$0xf]
  %v1236 = vld [vmem:[#allocation2 + $0xc4] sm:$0xf]
  %v1237 = vld [vmem:[#allocation2 + $0xc8] sm:$0x1]
  %v1238 = vld [vmem:[#allocation2 + $0xcc] sm:$0xf]
  %v1239 = vld [vmem:[#allocation2 + $0xd0] sm:$0xf]
  %v1240 = vld [vmem:[#allocation2 + $0xd4] sm:$0x1]
  %v1241 = vld [vmem:[#allocation2 + $0xd8] sm:$0xf]
  %v1242 = vld [vmem:[#allocation2 + $0xdc] sm:$0xf]
  %v1243 = vld [vmem:[#allocation2 + $0xe0] sm:$0x1]
  %v1244 = vld [vmem:[#allocation2 + $0xe4] sm:$0xf]
  %v1245 = vld [vmem:[#allocation2 + $0xe8] sm:$0xf]
  %v1246 = vld [vmem:[#allocation2 + $0xec] sm:$0x1]
  %v1247 = vld [vmem:[#allocation2 + $0xf0] sm:$0xf]
  %v1248 = vld [vmem:[#allocation2 + $0xf4] sm:$0xf]
  %v1249 = vld [vmem:[#allocation2 + $0xf8] sm:$0x1]
  %v1250 = vld [vmem:[#allocation2 + $0xfc] sm:$0xf]
  %v1251 = vld [vmem:[#allocation2 + $0x100] sm:$0xf]
  %v1252 = vld [vmem:[#allocation2 + $0x104] sm:$0x1]
  %v1253 = vld [vmem:[#allocation2 + $0x108] sm:$0xf]
  %v1254 = vld [vmem:[#allocation2 + $0x10c] sm:$0xf]
  %v1255 = vld [vmem:[#allocation2 + $0x110] sm:$0x1]
  %v1256 = vld [vmem:[#allocation2 + $0x114] sm:$0xf]
  %v1257 = vld [vmem:[#allocation2 + $0x118] sm:$0xf]
  %v1258 = vld [vmem:[#allocation2 + $0x11c] sm:$0x1]
  %v1259 = vld [vmem:[#allocation2 + $0x120] sm:$0xf]
  %v1260 = vld [vmem:[#allocation2 + $0x124] sm:$0xf]
  %v1261 = vld [vmem:[#allocation2 + $0x128] sm:$0x1]
  %v1262 = vld [vmem:[#allocation2 + $0x12c] sm:$0xf]
  %v1263 = vld [vmem:[#allocation2 + $0x130] sm:$0xf]
  %v1264 = vld [vmem:[#allocation2 + $0x134] sm:$0x1]
  %v1265 = vld [vmem:[#allocation2 + $0x138] sm:$0xf]
  %v1266 = vld [vmem:[#allocation2 + $0x13c] sm:$0xf]
  %v1267 = vld [vmem:[#allocation2 + $0x140] sm:$0x1]
  %v1268 = vld [vmem:[#allocation2 + $0x144] sm:$0xf]
  %v1269 = vld [vmem:[#allocation2 + $0x148] sm:$0xf]
  %v1270 = vld [vmem:[#allocation2 + $0x14c] sm:$0x1]
  %v1271 = vld [vmem:[#allocation2 + $0x150] sm:$0xf]
  %v1272 = vld [vmem:[#allocation2 + $0x154] sm:$0xf]
  %v1273 = vld [vmem:[#allocation2 + $0x158] sm:$0x1]
  %v1274 = vld [vmem:[#allocation2 + $0x15c] sm:$0xf]
  %v1275 = vld [vmem:[#allocation2 + $0x160] sm:$0xf]
  %v1276 = vld [vmem:[#allocation2 + $0x164] sm:$0x1]
  %v1277 = vld [vmem:[#allocation2 + $0x168] sm:$0xf]
  %v1278 = vld [vmem:[#allocation2 + $0x16c] sm:$0xf]
  %v1279 = vld [vmem:[#allocation2 + $0x170] sm:$0x1]
  %v1280 = vld [vmem:[#allocation2 + $0x174] sm:$0xf]
  %v1281 = vld [vmem:[#allocation2 + $0x178] sm:$0xf]
  %v1282 = vld [vmem:[#allocation2 + $0x17c] sm:$0x1]
  %v1283 = vld [vmem:[#allocation2 + $0x180] sm:$0xf]
  %v1284 = vld [vmem:[#allocation2 + $0x184] sm:$0xf]
  %v1285 = vld [vmem:[#allocation2 + $0x188] sm:$0x1]
  %v1286 = vld [vmem:[#allocation2 + $0x18c] sm:$0xf]
  %v1287 = vld [vmem:[#allocation2 + $0x190] sm:$0xf]
  %v1288 = vld [vmem:[#allocation2 + $0x194] sm:$0x1]
  %v1289 = vld [vmem:[#allocation2 + $0x198] sm:$0xf]
  %v1290 = vld [vmem:[#allocation2 + $0x19c] sm:$0xf]
  %v1291 = vld [vmem:[#allocation2 + $0x1a0] sm:$0x1]
  %v1292 = vld [vmem:[#allocation2 + $0x1a4] sm:$0xf]
  %v1293 = vld [vmem:[#allocation2 + $0x1a8] sm:$0xf]
  %v1294 = vld [vmem:[#allocation2 + $0x1ac] sm:$0x1]
  %vm1295 = vsmask.f32 3328
  %vm1296 = vsmask.f32 7440
  %vm1297 = vmor %vm1295, %vm1296
  %v1299 = vshrl.u32 %v1187, 16
  %v1301 = vrot.slane %v1299, 4
  %v1302 = vshll.u32 %v1187, 16
  %v1304 = vrot.slane %v1302, 5
  %v1305 = vor.u32 %v1301, %v1304
  %v1306 = vrot.slane %v1305, 4
  %v1308 = vshll.u32 %v1188, 16
  %v1310 = vrot.slane %v1308, 5
  %v1311 = vsel %vm1297, %v1306, %v1310
  %v1312 = vshrl.u32 %v1188, 16
  %v1314 = vrot.slane %v1312, 4
  %v1315 = vor.u32 %v1314, %v1310
  %v1316 = vrot.slane %v1315, 4
  %v1318 = vshll.u32 %v1189, 16
  %v1320 = vrot.slane %v1318, 5
  %v1321 = vsel %vm1297, %v1316, %v1320
  %v1323 = vshrl.u32 %v1190, 16
  %v1325 = vrot.slane %v1323, 4
  %v1326 = vshll.u32 %v1190, 16
  %v1328 = vrot.slane %v1326, 5
  %v1329 = vor.u32 %v1325, %v1328
  %v1330 = vrot.slane %v1329, 4
  %v1332 = vshll.u32 %v1191, 16
  %v1334 = vrot.slane %v1332, 5
  %v1335 = vsel %vm1297, %v1330, %v1334
  %v1336 = vshrl.u32 %v1191, 16
  %v1338 = vrot.slane %v1336, 4
  %v1339 = vor.u32 %v1338, %v1334
  %v1340 = vrot.slane %v1339, 4
  %v1342 = vshll.u32 %v1192, 16
  %v1344 = vrot.slane %v1342, 5
  %v1345 = vsel %vm1297, %v1340, %v1344
  %v1347 = vshrl.u32 %v1193, 16
  %v1349 = vrot.slane %v1347, 4
  %v1350 = vshll.u32 %v1193, 16
  %v1352 = vrot.slane %v1350, 5
  %v1353 = vor.u32 %v1349, %v1352
  %v1354 = vrot.slane %v1353, 4
  %v1356 = vshll.u32 %v1194, 16
  %v1358 = vrot.slane %v1356, 5
  %v1359 = vsel %vm1297, %v1354, %v1358
  %v1360 = vshrl.u32 %v1194, 16
  %v1362 = vrot.slane %v1360, 4
  %v1363 = vor.u32 %v1362, %v1358
  %v1364 = vrot.slane %v1363, 4
  %v1366 = vshll.u32 %v1195, 16
  %v1368 = vrot.slane %v1366, 5
  %v1369 = vsel %vm1297, %v1364, %v1368
  %v1371 = vshrl.u32 %v1196, 16
  %v1373 = vrot.slane %v1371, 4
  %v1374 = vshll.u32 %v1196, 16
  %v1376 = vrot.slane %v1374, 5
  %v1377 = vor.u32 %v1373, %v1376
  %v1378 = vrot.slane %v1377, 4
  %v1380 = vshll.u32 %v1197, 16
  %v1382 = vrot.slane %v1380, 5
  %v1383 = vsel %vm1297, %v1378, %v1382
  %v1384 = vshrl.u32 %v1197, 16
  %v1386 = vrot.slane %v1384, 4
  %v1387 = vor.u32 %v1386, %v1382
  %v1388 = vrot.slane %v1387, 4
  %v1390 = vshll.u32 %v1198, 16
  %v1392 = vrot.slane %v1390, 5
  %v1393 = vsel %vm1297, %v1388, %v1392
  %v1395 = vshrl.u32 %v1199, 16
  %v1397 = vrot.slane %v1395, 4
  %v1398 = vshll.u32 %v1199, 16
  %v1400 = vrot.slane %v1398, 5
  %v1401 = vor.u32 %v1397, %v1400
  %v1402 = vrot.slane %v1401, 4
  %v1404 = vshll.u32 %v1200, 16
  %v1406 = vrot.slane %v1404, 5
  %v1407 = vsel %vm1297, %v1402, %v1406
  %v1408 = vshrl.u32 %v1200, 16
  %v1410 = vrot.slane %v1408, 4
  %v1411 = vor.u32 %v1410, %v1406
  %v1412 = vrot.slane %v1411, 4
  %v1414 = vshll.u32 %v1201, 16
  %v1416 = vrot.slane %v1414, 5
  %v1417 = vsel %vm1297, %v1412, %v1416
  %v1419 = vshrl.u32 %v1202, 16
  %v1421 = vrot.slane %v1419, 4
  %v1422 = vshll.u32 %v1202, 16
  %v1424 = vrot.slane %v1422, 5
  %v1425 = vor.u32 %v1421, %v1424
  %v1426 = vrot.slane %v1425, 4
  %v1428 = vshll.u32 %v1203, 16
  %v1430 = vrot.slane %v1428, 5
  %v1431 = vsel %vm1297, %v1426, %v1430
  %v1432 = vshrl.u32 %v1203, 16
  %v1434 = vrot.slane %v1432, 4
  %v1435 = vor.u32 %v1434, %v1430
  %v1436 = vrot.slane %v1435, 4
  %v1438 = vshll.u32 %v1204, 16
  %v1440 = vrot.slane %v1438, 5
  %v1441 = vsel %vm1297, %v1436, %v1440
  %v1443 = vshrl.u32 %v1205, 16
  %v1445 = vrot.slane %v1443, 4
  %v1446 = vshll.u32 %v1205, 16
  %v1448 = vrot.slane %v1446, 5
  %v1449 = vor.u32 %v1445, %v1448
  %v1450 = vrot.slane %v1449, 4
  %v1452 = vshll.u32 %v1206, 16
  %v1454 = vrot.slane %v1452, 5
  %v1455 = vsel %vm1297, %v1450, %v1454
  %v1456 = vshrl.u32 %v1206, 16
  %v1458 = vrot.slane %v1456, 4
  %v1459 = vor.u32 %v1458, %v1454
  %v1460 = vrot.slane %v1459, 4
  %v1462 = vshll.u32 %v1207, 16
  %v1464 = vrot.slane %v1462, 5
  %v1465 = vsel %vm1297, %v1460, %v1464
  %v1467 = vshrl.u32 %v1208, 16
  %v1469 = vrot.slane %v1467, 4
  %v1470 = vshll.u32 %v1208, 16
  %v1472 = vrot.slane %v1470, 5
  %v1473 = vor.u32 %v1469, %v1472
  %v1474 = vrot.slane %v1473, 4
  %v1476 = vshll.u32 %v1209, 16
  %v1478 = vrot.slane %v1476, 5
  %v1479 = vsel %vm1297, %v1474, %v1478
  %v1480 = vshrl.u32 %v1209, 16
  %v1482 = vrot.slane %v1480, 4
  %v1483 = vor.u32 %v1482, %v1478
  %v1484 = vrot.slane %v1483, 4
  %v1486 = vshll.u32 %v1210, 16
  %v1488 = vrot.slane %v1486, 5
  %v1489 = vsel %vm1297, %v1484, %v1488
  %v1491 = vshrl.u32 %v1211, 16
  %v1493 = vrot.slane %v1491, 4
  %v1494 = vshll.u32 %v1211, 16
  %v1496 = vrot.slane %v1494, 5
  %v1497 = vor.u32 %v1493, %v1496
  %v1498 = vrot.slane %v1497, 4
  %v1500 = vshll.u32 %v1212, 16
  %v1502 = vrot.slane %v1500, 5
  %v1503 = vsel %vm1297, %v1498, %v1502
  %v1504 = vshrl.u32 %v1212, 16
  %v1506 = vrot.slane %v1504, 4
  %v1507 = vor.u32 %v1506, %v1502
  %v1508 = vrot.slane %v1507, 4
  %v1510 = vshll.u32 %v1213, 16
  %v1512 = vrot.slane %v1510, 5
  %v1513 = vsel %vm1297, %v1508, %v1512
  %v1515 = vshrl.u32 %v1214, 16
  %v1517 = vrot.slane %v1515, 4
  %v1518 = vshll.u32 %v1214, 16
  %v1520 = vrot.slane %v1518, 5
  %v1521 = vor.u32 %v1517, %v1520
  %v1522 = vrot.slane %v1521, 4
  %v1524 = vshll.u32 %v1215, 16
  %v1526 = vrot.slane %v1524, 5
  %v1527 = vsel %vm1297, %v1522, %v1526
  %v1528 = vshrl.u32 %v1215, 16
  %v1530 = vrot.slane %v1528, 4
  %v1531 = vor.u32 %v1530, %v1526
  %v1532 = vrot.slane %v1531, 4
  %v1534 = vshll.u32 %v1216, 16
  %v1536 = vrot.slane %v1534, 5
  %v1537 = vsel %vm1297, %v1532, %v1536
  %v1539 = vshrl.u32 %v1217, 16
  %v1541 = vrot.slane %v1539, 4
  %v1542 = vshll.u32 %v1217, 16
  %v1544 = vrot.slane %v1542, 5
  %v1545 = vor.u32 %v1541, %v1544
  %v1546 = vrot.slane %v1545, 4
  %v1548 = vshll.u32 %v1218, 16
  %v1550 = vrot.slane %v1548, 5
  %v1551 = vsel %vm1297, %v1546, %v1550
  %v1552 = vshrl.u32 %v1218, 16
  %v1554 = vrot.slane %v1552, 4
  %v1555 = vor.u32 %v1554, %v1550
  %v1556 = vrot.slane %v1555, 4
  %v1558 = vshll.u32 %v1219, 16
  %v1560 = vrot.slane %v1558, 5
  %v1561 = vsel %vm1297, %v1556, %v1560
  %v1563 = vshrl.u32 %v1220, 16
  %v1565 = vrot.slane %v1563, 4
  %v1566 = vshll.u32 %v1220, 16
  %v1568 = vrot.slane %v1566, 5
  %v1569 = vor.u32 %v1565, %v1568
  %v1570 = vrot.slane %v1569, 4
  %v1572 = vshll.u32 %v1221, 16
  %v1574 = vrot.slane %v1572, 5
  %v1575 = vsel %vm1297, %v1570, %v1574
  %v1576 = vshrl.u32 %v1221, 16
  %v1578 = vrot.slane %v1576, 4
  %v1579 = vor.u32 %v1578, %v1574
  %v1580 = vrot.slane %v1579, 4
  %v1582 = vshll.u32 %v1222, 16
  %v1584 = vrot.slane %v1582, 5
  %v1585 = vsel %vm1297, %v1580, %v1584
  %v1587 = vshrl.u32 %v1223, 16
  %v1589 = vrot.slane %v1587, 4
  %v1590 = vshll.u32 %v1223, 16
  %v1592 = vrot.slane %v1590, 5
  %v1593 = vor.u32 %v1589, %v1592
  %v1594 = vrot.slane %v1593, 4
  %v1596 = vshll.u32 %v1224, 16
  %v1598 = vrot.slane %v1596, 5
  %v1599 = vsel %vm1297, %v1594, %v1598
  %v1600 = vshrl.u32 %v1224, 16
  %v1602 = vrot.slane %v1600, 4
  %v1603 = vor.u32 %v1602, %v1598
  %v1604 = vrot.slane %v1603, 4
  %v1606 = vshll.u32 %v1225, 16
  %v1608 = vrot.slane %v1606, 5
  %v1609 = vsel %vm1297, %v1604, %v1608
  %v1611 = vshrl.u32 %v1226, 16
  %v1613 = vrot.slane %v1611, 4
  %v1614 = vshll.u32 %v1226, 16
  %v1616 = vrot.slane %v1614, 5
  %v1617 = vor.u32 %v1613, %v1616
  %v1618 = vrot.slane %v1617, 4
  %v1620 = vshll.u32 %v1227, 16
  %v1622 = vrot.slane %v1620, 5
  %v1623 = vsel %vm1297, %v1618, %v1622
  %v1624 = vshrl.u32 %v1227, 16
  %v1626 = vrot.slane %v1624, 4
  %v1627 = vor.u32 %v1626, %v1622
  %v1628 = vrot.slane %v1627, 4
  %v1630 = vshll.u32 %v1228, 16
  %v1632 = vrot.slane %v1630, 5
  %v1633 = vsel %vm1297, %v1628, %v1632
  %v1635 = vshrl.u32 %v1229, 16
  %v1637 = vrot.slane %v1635, 4
  %v1638 = vshll.u32 %v1229, 16
  %v1640 = vrot.slane %v1638, 5
  %v1641 = vor.u32 %v1637, %v1640
  %v1642 = vrot.slane %v1641, 4
  %v1644 = vshll.u32 %v1230, 16
  %v1646 = vrot.slane %v1644, 5
  %v1647 = vsel %vm1297, %v1642, %v1646
  %v1648 = vshrl.u32 %v1230, 16
  %v1650 = vrot.slane %v1648, 4
  %v1651 = vor.u32 %v1650, %v1646
  %v1652 = vrot.slane %v1651, 4
  %v1654 = vshll.u32 %v1231, 16
  %v1656 = vrot.slane %v1654, 5
  %v1657 = vsel %vm1297, %v1652, %v1656
  %v1659 = vshrl.u32 %v1232, 16
  %v1661 = vrot.slane %v1659, 4
  %v1662 = vshll.u32 %v1232, 16
  %v1664 = vrot.slane %v1662, 5
  %v1665 = vor.u32 %v1661, %v1664
  %v1666 = vrot.slane %v1665, 4
  %v1668 = vshll.u32 %v1233, 16
  %v1670 = vrot.slane %v1668, 5
  %v1671 = vsel %vm1297, %v1666, %v1670
  %v1672 = vshrl.u32 %v1233, 16
  %v1674 = vrot.slane %v1672, 4
  %v1675 = vor.u32 %v1674, %v1670
  %v1676 = vrot.slane %v1675, 4
  %v1678 = vshll.u32 %v1234, 16
  %v1680 = vrot.slane %v1678, 5
  %v1681 = vsel %vm1297, %v1676, %v1680
  %v1683 = vshrl.u32 %v1241, 16
  %v1685 = vrot.slane %v1683, 4
  %v1686 = vshll.u32 %v1241, 16
  %v1688 = vrot.slane %v1686, 5
  %v1689 = vor.u32 %v1685, %v1688
  %v1690 = vrot.slane %v1689, 4
  %v1692 = vshll.u32 %v1242, 16
  %v1694 = vrot.slane %v1692, 5
  %v1695 = vsel %vm1297, %v1690, %v1694
  %v1696 = vshrl.u32 %v1242, 16
  %v1698 = vrot.slane %v1696, 4
  %v1699 = vor.u32 %v1698, %v1694
  %v1700 = vrot.slane %v1699, 4
  %v1702 = vshll.u32 %v1243, 16
  %v1704 = vrot.slane %v1702, 5
  %v1705 = vsel %vm1297, %v1700, %v1704
  %v1707 = vshrl.u32 %v1244, 16
  %v1709 = vrot.slane %v1707, 4
  %v1710 = vshll.u32 %v1244, 16
  %v1712 = vrot.slane %v1710, 5
  %v1713 = vor.u32 %v1709, %v1712
  %v1714 = vrot.slane %v1713, 4
  %v1716 = vshll.u32 %v1245, 16
  %v1718 = vrot.slane %v1716, 5
  %v1719 = vsel %vm1297, %v1714, %v1718
  %v1720 = vshrl.u32 %v1245, 16
  %v1722 = vrot.slane %v1720, 4
  %v1723 = vor.u32 %v1722, %v1718
  %v1724 = vrot.slane %v1723, 4
  %v1726 = vshll.u32 %v1246, 16
  %v1728 = vrot.slane %v1726, 5
  %v1729 = vsel %vm1297, %v1724, %v1728
  %v1731 = vshrl.u32 %v1247, 16
  %v1733 = vrot.slane %v1731, 4
  %v1734 = vshll.u32 %v1247, 16
  %v1736 = vrot.slane %v1734, 5
  %v1737 = vor.u32 %v1733, %v1736
  %v1738 = vrot.slane %v1737, 4
  %v1740 = vshll.u32 %v1248, 16
  %v1742 = vrot.slane %v1740, 5
  %v1743 = vsel %vm1297, %v1738, %v1742
  %v1744 = vshrl.u32 %v1248, 16
  %v1746 = vrot.slane %v1744, 4
  %v1747 = vor.u32 %v1746, %v1742
  %v1748 = vrot.slane %v1747, 4
  %v1750 = vshll.u32 %v1249, 16
  %v1752 = vrot.slane %v1750, 5
  %v1753 = vsel %vm1297, %v1748, %v1752
  %v1755 = vshrl.u32 %v1250, 16
  %v1757 = vrot.slane %v1755, 4
  %v1758 = vshll.u32 %v1250, 16
  %v1760 = vrot.slane %v1758, 5
  %v1761 = vor.u32 %v1757, %v1760
  %v1762 = vrot.slane %v1761, 4
  %v1764 = vshll.u32 %v1251, 16
  %v1766 = vrot.slane %v1764, 5
  %v1767 = vsel %vm1297, %v1762, %v1766
  %v1768 = vshrl.u32 %v1251, 16
  %v1770 = vrot.slane %v1768, 4
  %v1771 = vor.u32 %v1770, %v1766
  %v1772 = vrot.slane %v1771, 4
  %v1774 = vshll.u32 %v1252, 16
  %v1776 = vrot.slane %v1774, 5
  %v1777 = vsel %vm1297, %v1772, %v1776
  %v1779 = vshrl.u32 %v1253, 16
  %v1781 = vrot.slane %v1779, 4
  %v1782 = vshll.u32 %v1253, 16
  %v1784 = vrot.slane %v1782, 5
  %v1785 = vor.u32 %v1781, %v1784
  %v1786 = vrot.slane %v1785, 4
  %v1788 = vshll.u32 %v1254, 16
  %v1790 = vrot.slane %v1788, 5
  %v1791 = vsel %vm1297, %v1786, %v1790
  %v1792 = vshrl.u32 %v1254, 16
  %v1794 = vrot.slane %v1792, 4
  %v1795 = vor.u32 %v1794, %v1790
  %v1796 = vrot.slane %v1795, 4
  %v1798 = vshll.u32 %v1255, 16
  %v1800 = vrot.slane %v1798, 5
  %v1801 = vsel %vm1297, %v1796, %v1800
  %v1803 = vshrl.u32 %v1256, 16
  %v1805 = vrot.slane %v1803, 4
  %v1806 = vshll.u32 %v1256, 16
  %v1808 = vrot.slane %v1806, 5
  %v1809 = vor.u32 %v1805, %v1808
  %v1810 = vrot.slane %v1809, 4
  %v1812 = vshll.u32 %v1257, 16
  %v1814 = vrot.slane %v1812, 5
  %v1815 = vsel %vm1297, %v1810, %v1814
  %v1816 = vshrl.u32 %v1257, 16
  %v1818 = vrot.slane %v1816, 4
  %v1819 = vor.u32 %v1818, %v1814
  %v1820 = vrot.slane %v1819, 4
  %v1822 = vshll.u32 %v1258, 16
  %v1824 = vrot.slane %v1822, 5
  %v1825 = vsel %vm1297, %v1820, %v1824
  %v1827 = vshrl.u32 %v1259, 16
  %v1829 = vrot.slane %v1827, 4
  %v1830 = vshll.u32 %v1259, 16
  %v1832 = vrot.slane %v1830, 5
  %v1833 = vor.u32 %v1829, %v1832
  %v1834 = vrot.slane %v1833, 4
  %v1836 = vshll.u32 %v1260, 16
  %v1838 = vrot.slane %v1836, 5
  %v1839 = vsel %vm1297, %v1834, %v1838
  %v1840 = vshrl.u32 %v1260, 16
  %v1842 = vrot.slane %v1840, 4
  %v1843 = vor.u32 %v1842, %v1838
  %v1844 = vrot.slane %v1843, 4
  %v1846 = vshll.u32 %v1261, 16
  %v1848 = vrot.slane %v1846, 5
  %v1849 = vsel %vm1297, %v1844, %v1848
  %v1851 = vshrl.u32 %v1262, 16
  %v1853 = vrot.slane %v1851, 4
  %v1854 = vshll.u32 %v1262, 16
  %v1856 = vrot.slane %v1854, 5
  %v1857 = vor.u32 %v1853, %v1856
  %v1858 = vrot.slane %v1857, 4
  %v1860 = vshll.u32 %v1263, 16
  %v1862 = vrot.slane %v1860, 5
  %v1863 = vsel %vm1297, %v1858, %v1862
  %v1864 = vshrl.u32 %v1263, 16
  %v1866 = vrot.slane %v1864, 4
  %v1867 = vor.u32 %v1866, %v1862
  %v1868 = vrot.slane %v1867, 4
  %v1870 = vshll.u32 %v1264, 16
  %v1872 = vrot.slane %v1870, 5
  %v1873 = vsel %vm1297, %v1868, %v1872
  %v1875 = vshrl.u32 %v1265, 16
  %v1877 = vrot.slane %v1875, 4
  %v1878 = vshll.u32 %v1265, 16
  %v1880 = vrot.slane %v1878, 5
  %v1881 = vor.u32 %v1877, %v1880
  %v1882 = vrot.slane %v1881, 4
  %v1884 = vshll.u32 %v1266, 16
  %v1886 = vrot.slane %v1884, 5
  %v1887 = vsel %vm1297, %v1882, %v1886
  %v1888 = vshrl.u32 %v1266, 16
  %v1890 = vrot.slane %v1888, 4
  %v1891 = vor.u32 %v1890, %v1886
  %v1892 = vrot.slane %v1891, 4
  %v1894 = vshll.u32 %v1267, 16
  %v1896 = vrot.slane %v1894, 5
  %v1897 = vsel %vm1297, %v1892, %v1896
  %v1899 = vshrl.u32 %v1268, 16
  %v1901 = vrot.slane %v1899, 4
  %v1902 = vshll.u32 %v1268, 16
  %v1904 = vrot.slane %v1902, 5
  %v1905 = vor.u32 %v1901, %v1904
  %v1906 = vrot.slane %v1905, 4
  %v1908 = vshll.u32 %v1269, 16
  %v1910 = vrot.slane %v1908, 5
  %v1911 = vsel %vm1297, %v1906, %v1910
  %v1912 = vshrl.u32 %v1269, 16
  %v1914 = vrot.slane %v1912, 4
  %v1915 = vor.u32 %v1914, %v1910
  %v1916 = vrot.slane %v1915, 4
  %v1918 = vshll.u32 %v1270, 16
  %v1920 = vrot.slane %v1918, 5
  %v1921 = vsel %vm1297, %v1916, %v1920
  %v1923 = vshrl.u32 %v1271, 16
  %v1925 = vrot.slane %v1923, 4
  %v1926 = vshll.u32 %v1271, 16
  %v1928 = vrot.slane %v1926, 5
  %v1929 = vor.u32 %v1925, %v1928
  %v1930 = vrot.slane %v1929, 4
  %v1932 = vshll.u32 %v1272, 16
  %v1934 = vrot.slane %v1932, 5
  %v1935 = vsel %vm1297, %v1930, %v1934
  %v1936 = vshrl.u32 %v1272, 16
  %v1938 = vrot.slane %v1936, 4
  %v1939 = vor.u32 %v1938, %v1934
  %v1940 = vrot.slane %v1939, 4
  %v1942 = vshll.u32 %v1273, 16
  %v1944 = vrot.slane %v1942, 5
  %v1945 = vsel %vm1297, %v1940, %v1944
  %v1947 = vshrl.u32 %v1274, 16
  %v1949 = vrot.slane %v1947, 4
  %v1950 = vshll.u32 %v1274, 16
  %v1952 = vrot.slane %v1950, 5
  %v1953 = vor.u32 %v1949, %v1952
  %v1954 = vrot.slane %v1953, 4
  %v1956 = vshll.u32 %v1275, 16
  %v1958 = vrot.slane %v1956, 5
  %v1959 = vsel %vm1297, %v1954, %v1958
  %v1960 = vshrl.u32 %v1275, 16
  %v1962 = vrot.slane %v1960, 4
  %v1963 = vor.u32 %v1962, %v1958
  %v1964 = vrot.slane %v1963, 4
  %v1966 = vshll.u32 %v1276, 16
  %v1968 = vrot.slane %v1966, 5
  %v1969 = vsel %vm1297, %v1964, %v1968
  %v1971 = vshrl.u32 %v1277, 16
  %v1973 = vrot.slane %v1971, 4
  %v1974 = vshll.u32 %v1277, 16
  %v1976 = vrot.slane %v1974, 5
  %v1977 = vor.u32 %v1973, %v1976
  %v1978 = vrot.slane %v1977, 4
  %v1980 = vshll.u32 %v1278, 16
  %v1982 = vrot.slane %v1980, 5
  %v1983 = vsel %vm1297, %v1978, %v1982
  %v1984 = vshrl.u32 %v1278, 16
  %v1986 = vrot.slane %v1984, 4
  %v1987 = vor.u32 %v1986, %v1982
  %v1988 = vrot.slane %v1987, 4
  %v1990 = vshll.u32 %v1279, 16
  %v1992 = vrot.slane %v1990, 5
  %v1993 = vsel %vm1297, %v1988, %v1992
  %v1995 = vshrl.u32 %v1280, 16
  %v1997 = vrot.slane %v1995, 4
  %v1998 = vshll.u32 %v1280, 16
  %v2000 = vrot.slane %v1998, 5
  %v2001 = vor.u32 %v1997, %v2000
  %v2002 = vrot.slane %v2001, 4
  %v2004 = vshll.u32 %v1281, 16
  %v2006 = vrot.slane %v2004, 5
  %v2007 = vsel %vm1297, %v2002, %v2006
  %v2008 = vshrl.u32 %v1281, 16
  %v2010 = vrot.slane %v2008, 4
  %v2011 = vor.u32 %v2010, %v2006
  %v2012 = vrot.slane %v2011, 4
  %v2014 = vshll.u32 %v1282, 16
  %v2016 = vrot.slane %v2014, 5
  %v2017 = vsel %vm1297, %v2012, %v2016
  %v2019 = vshrl.u32 %v1283, 16
  %v2021 = vrot.slane %v2019, 4
  %v2022 = vshll.u32 %v1283, 16
  %v2024 = vrot.slane %v2022, 5
  %v2025 = vor.u32 %v2021, %v2024
  %v2026 = vrot.slane %v2025, 4
  %v2028 = vshll.u32 %v1284, 16
  %v2030 = vrot.slane %v2028, 5
  %v2031 = vsel %vm1297, %v2026, %v2030
  %v2032 = vshrl.u32 %v1284, 16
  %v2034 = vrot.slane %v2032, 4
  %v2035 = vor.u32 %v2034, %v2030
  %v2036 = vrot.slane %v2035, 4
  %v2038 = vshll.u32 %v1285, 16
  %v2040 = vrot.slane %v2038, 5
  %v2041 = vsel %vm1297, %v2036, %v2040
  %v2043 = vshrl.u32 %v1286, 16
  %v2045 = vrot.slane %v2043, 4
  %v2046 = vshll.u32 %v1286, 16
  %v2048 = vrot.slane %v2046, 5
  %v2049 = vor.u32 %v2045, %v2048
  %v2050 = vrot.slane %v2049, 4
  %v2052 = vshll.u32 %v1287, 16
  %v2054 = vrot.slane %v2052, 5
  %v2055 = vsel %vm1297, %v2050, %v2054
  %v2056 = vshrl.u32 %v1287, 16
  %v2058 = vrot.slane %v2056, 4
  %v2059 = vor.u32 %v2058, %v2054
  %v2060 = vrot.slane %v2059, 4
  %v2062 = vshll.u32 %v1288, 16
  %v2064 = vrot.slane %v2062, 5
  %v2065 = vsel %vm1297, %v2060, %v2064
  %vm2162 = vcmask 1042432
  %vm2163 = vcmask 1046532
  %vm2164 = vmor %vm2162, %vm2163
  %v2165 = vrot.slane %v1187, 5
  %v2166 = vrot.slane %v2165, 4
  %v2167 = vrot.slane %v1188, 5
  %v2168 = vsel %vm2164, %v2166, %v2167
  %v2169 = vrot.slane %v2167, 4
  %v2170 = vrot.slane %v1189, 5
  %v2171 = vsel %vm2164, %v2169, %v2170
  %v2172 = vrot.slane %v1190, 5
  %v2173 = vrot.slane %v2172, 4
  %v2174 = vrot.slane %v1191, 5
  %v2175 = vsel %vm2164, %v2173, %v2174
  %v2176 = vrot.slane %v2174, 4
  %v2177 = vrot.slane %v1192, 5
  %v2178 = vsel %vm2164, %v2176, %v2177
  %v2179 = vrot.slane %v1193, 5
  %v2180 = vrot.slane %v2179, 4
  %v2181 = vrot.slane %v1194, 5
  %v2182 = vsel %vm2164, %v2180, %v2181
  %v2183 = vrot.slane %v2181, 4
  %v2184 = vrot.slane %v1195, 5
  %v2185 = vsel %vm2164, %v2183, %v2184
  %v2186 = vrot.slane %v1196, 5
  %v2187 = vrot.slane %v2186, 4
  %v2188 = vrot.slane %v1197, 5
  %v2189 = vsel %vm2164, %v2187, %v2188
  %v2190 = vrot.slane %v2188, 4
  %v2191 = vrot.slane %v1198, 5
  %v2192 = vsel %vm2164, %v2190, %v2191
  %v2193 = vrot.slane %v1199, 5
  %v2194 = vrot.slane %v2193, 4
  %v2195 = vrot.slane %v1200, 5
  %v2196 = vsel %vm2164, %v2194, %v2195
  %v2197 = vrot.slane %v2195, 4
  %v2198 = vrot.slane %v1201, 5
  %v2199 = vsel %vm2164, %v2197, %v2198
  %v2200 = vrot.slane %v1202, 5
  %v2201 = vrot.slane %v2200, 4
  %v2202 = vrot.slane %v1203, 5
  %v2203 = vsel %vm2164, %v2201, %v2202
  %v2204 = vrot.slane %v2202, 4
  %v2205 = vrot.slane %v1204, 5
  %v2206 = vsel %vm2164, %v2204, %v2205
  %v2207 = vrot.slane %v1205, 5
  %v2208 = vrot.slane %v2207, 4
  %v2209 = vrot.slane %v1206, 5
  %v2210 = vsel %vm2164, %v2208, %v2209
  %v2211 = vrot.slane %v2209, 4
  %v2212 = vrot.slane %v1207, 5
  %v2213 = vsel %vm2164, %v2211, %v2212
  %v2214 = vrot.slane %v1208, 5
  %v2215 = vrot.slane %v2214, 4
  %v2216 = vrot.slane %v1209, 5
  %v2217 = vsel %vm2164, %v2215, %v2216
  %v2218 = vrot.slane %v2216, 4
  %v2219 = vrot.slane %v1210, 5
  %v2220 = vsel %vm2164, %v2218, %v2219
  %v2221 = vrot.slane %v1211, 5
  %v2222 = vrot.slane %v2221, 4
  %v2223 = vrot.slane %v1212, 5
  %v2224 = vsel %vm2164, %v2222, %v2223
  %v2225 = vrot.slane %v2223, 4
  %v2226 = vrot.slane %v1213, 5
  %v2227 = vsel %vm2164, %v2225, %v2226
  %v2228 = vrot.slane %v1214, 5
  %v2229 = vrot.slane %v2228, 4
  %v2230 = vrot.slane %v1215, 5
  %v2231 = vsel %vm2164, %v2229, %v2230
  %v2232 = vrot.slane %v2230, 4
  %v2233 = vrot.slane %v1216, 5
  %v2234 = vsel %vm2164, %v2232, %v2233
  %v2235 = vrot.slane %v1217, 5
  %v2236 = vrot.slane %v2235, 4
  %v2237 = vrot.slane %v1218, 5
  %v2238 = vsel %vm2164, %v2236, %v2237
  %v2239 = vrot.slane %v2237, 4
  %v2240 = vrot.slane %v1219, 5
  %v2241 = vsel %vm2164, %v2239, %v2240
  %v2242 = vrot.slane %v1220, 5
  %v2243 = vrot.slane %v2242, 4
  %v2244 = vrot.slane %v1221, 5
  %v2245 = vsel %vm2164, %v2243, %v2244
  %v2246 = vrot.slane %v2244, 4
  %v2247 = vrot.slane %v1222, 5
  %v2248 = vsel %vm2164, %v2246, %v2247
  %v2249 = vrot.slane %v1223, 5
  %v2250 = vrot.slane %v2249, 4
  %v2251 = vrot.slane %v1224, 5
  %v2252 = vsel %vm2164, %v2250, %v2251
  %v2253 = vrot.slane %v2251, 4
  %v2254 = vrot.slane %v1225, 5
  %v2255 = vsel %vm2164, %v2253, %v2254
  %v2256 = vrot.slane %v1226, 5
  %v2257 = vrot.slane %v2256, 4
  %v2258 = vrot.slane %v1227, 5
  %v2259 = vsel %vm2164, %v2257, %v2258
  %v2260 = vrot.slane %v2258, 4
  %v2261 = vrot.slane %v1228, 5
  %v2262 = vsel %vm2164, %v2260, %v2261
  %v2263 = vrot.slane %v1229, 5
  %v2264 = vrot.slane %v2263, 4
  %v2265 = vrot.slane %v1230, 5
  %v2266 = vsel %vm2164, %v2264, %v2265
  %v2267 = vrot.slane %v2265, 4
  %v2268 = vrot.slane %v1231, 5
  %v2269 = vsel %vm2164, %v2267, %v2268
  %v2270 = vrot.slane %v1232, 5
  %v2271 = vrot.slane %v2270, 4
  %v2272 = vrot.slane %v1233, 5
  %v2273 = vsel %vm2164, %v2271, %v2272
  %v2274 = vrot.slane %v2272, 4
  %v2275 = vrot.slane %v1234, 5
  %v2276 = vsel %vm2164, %v2274, %v2275
  %v2277 = vrot.slane %v1241, 5
  %v2278 = vrot.slane %v2277, 4
  %v2279 = vrot.slane %v1242, 5
  %v2280 = vsel %vm2164, %v2278, %v2279
  %v2281 = vrot.slane %v2279, 4
  %v2282 = vrot.slane %v1243, 5
  %v2283 = vsel %vm2164, %v2281, %v2282
  %v2284 = vrot.slane %v1244, 5
  %v2285 = vrot.slane %v2284, 4
  %v2286 = vrot.slane %v1245, 5
  %v2287 = vsel %vm2164, %v2285, %v2286
  %v2288 = vrot.slane %v2286, 4
  %v2289 = vrot.slane %v1246, 5
  %v2290 = vsel %vm2164, %v2288, %v2289
  %v2291 = vrot.slane %v1247, 5
  %v2292 = vrot.slane %v2291, 4
  %v2293 = vrot.slane %v1248, 5
  %v2294 = vsel %vm2164, %v2292, %v2293
  %v2295 = vrot.slane %v2293, 4
  %v2296 = vrot.slane %v1249, 5
  %v2297 = vsel %vm2164, %v2295, %v2296
  %v2298 = vrot.slane %v1250, 5
  %v2299 = vrot.slane %v2298, 4
  %v2300 = vrot.slane %v1251, 5
  %v2301 = vsel %vm2164, %v2299, %v2300
  %v2302 = vrot.slane %v2300, 4
  %v2303 = vrot.slane %v1252, 5
  %v2304 = vsel %vm2164, %v2302, %v2303
  %v2305 = vrot.slane %v1253, 5
  %v2306 = vrot.slane %v2305, 4
  %v2307 = vrot.slane %v1254, 5
  %v2308 = vsel %vm2164, %v2306, %v2307
  %v2309 = vrot.slane %v2307, 4
  %v2310 = vrot.slane %v1255, 5
  %v2311 = vsel %vm2164, %v2309, %v2310
  %v2312 = vrot.slane %v1256, 5
  %v2313 = vrot.slane %v2312, 4
  %v2314 = vrot.slane %v1257, 5
  %v2315 = vsel %vm2164, %v2313, %v2314
  %v2316 = vrot.slane %v2314, 4
  %v2317 = vrot.slane %v1258, 5
  %v2318 = vsel %vm2164, %v2316, %v2317
  %v2319 = vrot.slane %v1259, 5
  %v2320 = vrot.slane %v2319, 4
  %v2321 = vrot.slane %v1260, 5
  %v2322 = vsel %vm2164, %v2320, %v2321
  %v2323 = vrot.slane %v2321, 4
  %v2324 = vrot.slane %v1261, 5
  %v2325 = vsel %vm2164, %v2323, %v2324
  %v2326 = vrot.slane %v1262, 5
  %v2327 = vrot.slane %v2326, 4
  %v2328 = vrot.slane %v1263, 5
  %v2329 = vsel %vm2164, %v2327, %v2328
  %v2330 = vrot.slane %v2328, 4
  %v2331 = vrot.slane %v1264, 5
  %v2332 = vsel %vm2164, %v2330, %v2331
  %v2333 = vrot.slane %v1265, 5
  %v2334 = vrot.slane %v2333, 4
  %v2335 = vrot.slane %v1266, 5
  %v2336 = vsel %vm2164, %v2334, %v2335
  %v2337 = vrot.slane %v2335, 4
  %v2338 = vrot.slane %v1267, 5
  %v2339 = vsel %vm2164, %v2337, %v2338
  %v2340 = vrot.slane %v1268, 5
  %v2341 = vrot.slane %v2340, 4
  %v2342 = vrot.slane %v1269, 5
  %v2343 = vsel %vm2164, %v2341, %v2342
  %v2344 = vrot.slane %v2342, 4
  %v2345 = vrot.slane %v1270, 5
  %v2346 = vsel %vm2164, %v2344, %v2345
  %v2347 = vrot.slane %v1271, 5
  %v2348 = vrot.slane %v2347, 4
  %v2349 = vrot.slane %v1272, 5
  %v2350 = vsel %vm2164, %v2348, %v2349
  %v2351 = vrot.slane %v2349, 4
  %v2352 = vrot.slane %v1273, 5
  %v2353 = vsel %vm2164, %v2351, %v2352
  %v2354 = vrot.slane %v1274, 5
  %v2355 = vrot.slane %v2354, 4
  %v2356 = vrot.slane %v1275, 5
  %v2357 = vsel %vm2164, %v2355, %v2356
  %v2358 = vrot.slane %v2356, 4
  %v2359 = vrot.slane %v1276, 5
  %v2360 = vsel %vm2164, %v2358, %v2359
  %v2361 = vrot.slane %v1277, 5
  %v2362 = vrot.slane %v2361, 4
  %v2363 = vrot.slane %v1278, 5
  %v2364 = vsel %vm2164, %v2362, %v2363
  %v2365 = vrot.slane %v2363, 4
  %v2366 = vrot.slane %v1279, 5
  %v2367 = vsel %vm2164, %v2365, %v2366
  %v2368 = vrot.slane %v1280, 5
  %v2369 = vrot.slane %v2368, 4
  %v2370 = vrot.slane %v1281, 5
  %v2371 = vsel %vm2164, %v2369, %v2370
  %v2372 = vrot.slane %v2370, 4
  %v2373 = vrot.slane %v1282, 5
  %v2374 = vsel %vm2164, %v2372, %v2373
  %v2375 = vrot.slane %v1283, 5
  %v2376 = vrot.slane %v2375, 4
  %v2377 = vrot.slane %v1284, 5
  %v2378 = vsel %vm2164, %v2376, %v2377
  %v2379 = vrot.slane %v2377, 4
  %v2380 = vrot.slane %v1285, 5
  %v2381 = vsel %vm2164, %v2379, %v2380
  %v2382 = vrot.slane %v1286, 5
  %v2383 = vrot.slane %v2382, 4
  %v2384 = vrot.slane %v1287, 5
  %v2385 = vsel %vm2164, %v2383, %v2384
  %v2386 = vrot.slane %v2384, 4
  %v2387 = vrot.slane %v1288, 5
  %v2388 = vsel %vm2164, %v2386, %v2387
  %v2390 = vshrl.u32 %v1235, 16
  %v2392 = vrot.slane %v2390, 4
  %v2393 = vshll.u32 %v1235, 16
  %v2395 = vrot.slane %v2393, 5
  %v2396 = vor.u32 %v2392, %v2395
  %v2397 = vrot.slane %v2396, 4
  %v2399 = vshll.u32 %v1236, 16
  %v2401 = vrot.slane %v2399, 5
  %v2402 = vsel %vm1297, %v2397, %v2401
  %v2403 = vshrl.u32 %v1236, 16
  %v2405 = vrot.slane %v2403, 4
  %v2406 = vor.u32 %v2405, %v2401
  %v2407 = vrot.slane %v2406, 4
  %v2409 = vshll.u32 %v1237, 16
  %v2411 = vrot.slane %v2409, 5
  %v2412 = vsel %vm1297, %v2407, %v2411
  %v2414 = vshrl.u32 %v1289, 16
  %v2416 = vrot.slane %v2414, 4
  %v2417 = vshll.u32 %v1289, 16
  %v2419 = vrot.slane %v2417, 5
  %v2420 = vor.u32 %v2416, %v2419
  %v2421 = vrot.slane %v2420, 4
  %v2423 = vshll.u32 %v1290, 16
  %v2425 = vrot.slane %v2423, 5
  %v2426 = vsel %vm1297, %v2421, %v2425
  %v2427 = vshrl.u32 %v1290, 16
  %v2429 = vrot.slane %v2427, 4
  %v2430 = vor.u32 %v2429, %v2425
  %v2431 = vrot.slane %v2430, 4
  %v2433 = vshll.u32 %v1291, 16
  %v2435 = vrot.slane %v2433, 5
  %v2436 = vsel %vm1297, %v2431, %v2435
  %v2443 = vrot.slane %v1235, 5
  %v2444 = vrot.slane %v2443, 4
  %v2445 = vrot.slane %v1236, 5
  %v2446 = vsel %vm2164, %v2444, %v2445
  %v2447 = vrot.slane %v2445, 4
  %v2448 = vrot.slane %v1237, 5
  %v2449 = vsel %vm2164, %v2447, %v2448
  %v2450 = vrot.slane %v1289, 5
  %v2451 = vrot.slane %v2450, 4
  %v2452 = vrot.slane %v1290, 5
  %v2453 = vsel %vm2164, %v2451, %v2452
  %v2454 = vrot.slane %v2452, 4
  %v2455 = vrot.slane %v1291, 5
  %v2456 = vsel %vm2164, %v2454, %v2455
  %v2458 = vshrl.u32 %v1238, 16
  %v2460 = vrot.slane %v2458, 4
  %v2461 = vshll.u32 %v1238, 16
  %v2463 = vrot.slane %v2461, 5
  %v2464 = vor.u32 %v2460, %v2463
  %v2465 = vrot.slane %v2464, 4
  %v2467 = vshll.u32 %v1239, 16
  %v2469 = vrot.slane %v2467, 5
  %v2470 = vsel %vm1297, %v2465, %v2469
  %v2471 = vshrl.u32 %v1239, 16
  %v2473 = vrot.slane %v2471, 4
  %v2474 = vor.u32 %v2473, %v2469
  %v2475 = vrot.slane %v2474, 4
  %v2477 = vshll.u32 %v1240, 16
  %v2479 = vrot.slane %v2477, 5
  %v2480 = vsel %vm1297, %v2475, %v2479
  %v2482 = vshrl.u32 %v1292, 16
  %v2484 = vrot.slane %v2482, 4
  %v2485 = vshll.u32 %v1292, 16
  %v2487 = vrot.slane %v2485, 5
  %v2488 = vor.u32 %v2484, %v2487
  %v2489 = vrot.slane %v2488, 4
  %v2491 = vshll.u32 %v1293, 16
  %v2493 = vrot.slane %v2491, 5
  %v2494 = vsel %vm1297, %v2489, %v2493
  %v2495 = vshrl.u32 %v1293, 16
  %v2497 = vrot.slane %v2495, 4
  %v2498 = vor.u32 %v2497, %v2493
  %v2499 = vrot.slane %v2498, 4
  %v2501 = vshll.u32 %v1294, 16
  %v2503 = vrot.slane %v2501, 5
  %v2504 = vsel %vm1297, %v2499, %v2503
  %v2511 = vrot.slane %v1238, 5
  %v2512 = vrot.slane %v2511, 4
  %v2513 = vrot.slane %v1239, 5
  %v2514 = vsel %vm2164, %v2512, %v2513
  %v2515 = vrot.slane %v2513, 4
  %v2516 = vrot.slane %v1240, 5
  %v2517 = vsel %vm2164, %v2515, %v2516
  %v2518 = vrot.slane %v1292, 5
  %v2519 = vrot.slane %v2518, 4
  %v2520 = vrot.slane %v1293, 5
  %v2521 = vsel %vm2164, %v2519, %v2520
  %v2522 = vrot.slane %v2520, 4
  %v2523 = vrot.slane %v1294, 5
  %v2524 = vsel %vm2164, %v2522, %v2523
  %v2525 = vunpack.c.l.b16 %v1187
  %v2526 = vunpack.c.l.b16 %v1188
  %v2527 = vunpack.c.l.b16 %v1190
  %v2528 = vunpack.c.l.b16 %v1191
  %v2529 = vunpack.c.l.b16 %v1193
  %v2530 = vunpack.c.l.b16 %v1194
  %v2531 = vunpack.c.l.b16 %v1196
  %v2532 = vunpack.c.l.b16 %v1197
  %v2533 = vunpack.c.l.b16 %v1199
  %v2534 = vunpack.c.l.b16 %v1200
  %v2535 = vunpack.c.l.b16 %v1202
  %v2536 = vunpack.c.l.b16 %v1203
  %v2537 = vunpack.c.l.b16 %v1205
  %v2538 = vunpack.c.l.b16 %v1206
  %v2539 = vunpack.c.l.b16 %v1208
  %v2540 = vunpack.c.l.b16 %v1209
  %v2541 = vunpack.c.l.b16 %v1211
  %v2542 = vunpack.c.l.b16 %v1212
  %v2543 = vunpack.c.l.b16 %v1214
  %v2544 = vunpack.c.l.b16 %v1215
  %v2545 = vunpack.c.l.b16 %v1217
  %v2546 = vunpack.c.l.b16 %v1218
  %v2547 = vunpack.c.l.b16 %v1220
  %v2548 = vunpack.c.l.b16 %v1221
  %v2549 = vunpack.c.l.b16 %v1223
  %v2550 = vunpack.c.l.b16 %v1224
  %v2551 = vunpack.c.l.b16 %v1226
  %v2552 = vunpack.c.l.b16 %v1227
  %v2553 = vunpack.c.l.b16 %v1229
  %v2554 = vunpack.c.l.b16 %v1230
  %v2555 = vunpack.c.l.b16 %v1232
  %v2556 = vunpack.c.l.b16 %v1233
  %v2557 = vunpack.c.l.b16 %v1241
  %v2558 = vunpack.c.l.b16 %v1242
  %v2559 = vunpack.c.l.b16 %v1244
  %v2560 = vunpack.c.l.b16 %v1245
  %v2561 = vunpack.c.l.b16 %v1247
  %v2562 = vunpack.c.l.b16 %v1248
  %v2563 = vunpack.c.l.b16 %v1250
  %v2564 = vunpack.c.l.b16 %v1251
  %v2565 = vunpack.c.l.b16 %v1253
  %v2566 = vunpack.c.l.b16 %v1254
  %v2567 = vunpack.c.l.b16 %v1256
  %v2568 = vunpack.c.l.b16 %v1257
  %v2569 = vunpack.c.l.b16 %v1259
  %v2570 = vunpack.c.l.b16 %v1260
  %v2571 = vunpack.c.l.b16 %v1262
  %v2572 = vunpack.c.l.b16 %v1263
  %v2573 = vunpack.c.l.b16 %v1265
  %v2574 = vunpack.c.l.b16 %v1266
  %v2575 = vunpack.c.l.b16 %v1268
  %v2576 = vunpack.c.l.b16 %v1269
  %v2577 = vunpack.c.l.b16 %v1271
  %v2578 = vunpack.c.l.b16 %v1272
  %v2579 = vunpack.c.l.b16 %v1274
  %v2580 = vunpack.c.l.b16 %v1275
  %v2581 = vunpack.c.l.b16 %v1277
  %v2582 = vunpack.c.l.b16 %v1278
  %v2583 = vunpack.c.l.b16 %v1280
  %v2584 = vunpack.c.l.b16 %v1281
  %v2585 = vunpack.c.l.b16 %v1283
  %v2586 = vunpack.c.l.b16 %v1284
  %v2587 = vunpack.c.l.b16 %v1286
  %v2588 = vunpack.c.l.b16 %v1287
  %v2589 = vpack.c.b16 %v2526, %v2525
  %v2590 = vpack.c.b16 %v2528, %v2527
  %v2591 = vpack.c.b16 %v2530, %v2529
  %v2592 = vpack.c.b16 %v2532, %v2531
  %v2593 = vpack.c.b16 %v2534, %v2533
  %v2594 = vpack.c.b16 %v2536, %v2535
  %v2595 = vpack.c.b16 %v2538, %v2537
  %v2596 = vpack.c.b16 %v2540, %v2539
  %v2597 = vpack.c.b16 %v2542, %v2541
  %v2598 = vpack.c.b16 %v2544, %v2543
  %v2599 = vpack.c.b16 %v2546, %v2545
  %v2600 = vpack.c.b16 %v2548, %v2547
  %v2601 = vpack.c.b16 %v2550, %v2549
  %v2602 = vpack.c.b16 %v2552, %v2551
  %v2603 = vpack.c.b16 %v2554, %v2553
  %v2604 = vpack.c.b16 %v2556, %v2555
  %v2605 = vpack.c.b16 %v2558, %v2557
  %v2606 = vpack.c.b16 %v2560, %v2559
  %v2607 = vpack.c.b16 %v2562, %v2561
  %v2608 = vpack.c.b16 %v2564, %v2563
  %v2609 = vpack.c.b16 %v2566, %v2565
  %v2610 = vpack.c.b16 %v2568, %v2567
  %v2611 = vpack.c.b16 %v2570, %v2569
  %v2612 = vpack.c.b16 %v2572, %v2571
  %v2613 = vpack.c.b16 %v2574, %v2573
  %v2614 = vpack.c.b16 %v2576, %v2575
  %v2615 = vpack.c.b16 %v2578, %v2577
  %v2616 = vpack.c.b16 %v2580, %v2579
  %v2617 = vpack.c.b16 %v2582, %v2581
  %v2618 = vpack.c.b16 %v2584, %v2583
  %v2619 = vpack.c.b16 %v2586, %v2585
  %v2620 = vpack.c.b16 %v2588, %v2587
  %v2621 = vunpack.c.l.b16 %v1311
  %v2622 = vunpack.c.l.b16 %v1321
  %v2623 = vunpack.c.l.b16 %v1335
  %v2624 = vunpack.c.l.b16 %v1345
  %v2625 = vunpack.c.l.b16 %v1359
  %v2626 = vunpack.c.l.b16 %v1369
  %v2627 = vunpack.c.l.b16 %v1383
  %v2628 = vunpack.c.l.b16 %v1393
  %v2629 = vunpack.c.l.b16 %v1407
  %v2630 = vunpack.c.l.b16 %v1417
  %v2631 = vunpack.c.l.b16 %v1431
  %v2632 = vunpack.c.l.b16 %v1441
  %v2633 = vunpack.c.l.b16 %v1455
  %v2634 = vunpack.c.l.b16 %v1465
  %v2635 = vunpack.c.l.b16 %v1479
  %v2636 = vunpack.c.l.b16 %v1489
  %v2637 = vunpack.c.l.b16 %v1503
  %v2638 = vunpack.c.l.b16 %v1513
  %v2639 = vunpack.c.l.b16 %v1527
  %v2640 = vunpack.c.l.b16 %v1537
  %v2641 = vunpack.c.l.b16 %v1551
  %v2642 = vunpack.c.l.b16 %v1561
  %v2643 = vunpack.c.l.b16 %v1575
  %v2644 = vunpack.c.l.b16 %v1585
  %v2645 = vunpack.c.l.b16 %v1599
  %v2646 = vunpack.c.l.b16 %v1609
  %v2647 = vunpack.c.l.b16 %v1623
  %v2648 = vunpack.c.l.b16 %v1633
  %v2649 = vunpack.c.l.b16 %v1647
  %v2650 = vunpack.c.l.b16 %v1657
  %v2651 = vunpack.c.l.b16 %v1671
  %v2652 = vunpack.c.l.b16 %v1681
  %v2653 = vunpack.c.l.b16 %v1695
  %v2654 = vunpack.c.l.b16 %v1705
  %v2655 = vunpack.c.l.b16 %v1719
  %v2656 = vunpack.c.l.b16 %v1729
  %v2657 = vunpack.c.l.b16 %v1743
  %v2658 = vunpack.c.l.b16 %v1753
  %v2659 = vunpack.c.l.b16 %v1767
  %v2660 = vunpack.c.l.b16 %v1777
  %v2661 = vunpack.c.l.b16 %v1791
  %v2662 = vunpack.c.l.b16 %v1801
  %v2663 = vunpack.c.l.b16 %v1815
  %v2664 = vunpack.c.l.b16 %v1825
  %v2665 = vunpack.c.l.b16 %v1839
  %v2666 = vunpack.c.l.b16 %v1849
  %v2667 = vunpack.c.l.b16 %v1863
  %v2668 = vunpack.c.l.b16 %v1873
  %v2669 = vunpack.c.l.b16 %v1887
  %v2670 = vunpack.c.l.b16 %v1897
  %v2671 = vunpack.c.l.b16 %v1911
  %v2672 = vunpack.c.l.b16 %v1921
  %v2673 = vunpack.c.l.b16 %v1935
  %v2674 = vunpack.c.l.b16 %v1945
  %v2675 = vunpack.c.l.b16 %v1959
  %v2676 = vunpack.c.l.b16 %v1969
  %v2677 = vunpack.c.l.b16 %v1983
  %v2678 = vunpack.c.l.b16 %v1993
  %v2679 = vunpack.c.l.b16 %v2007
  %v2680 = vunpack.c.l.b16 %v2017
  %v2681 = vunpack.c.l.b16 %v2031
  %v2682 = vunpack.c.l.b16 %v2041
  %v2683 = vunpack.c.l.b16 %v2055
  %v2684 = vunpack.c.l.b16 %v2065
  %v2685 = vpack.c.b16 %v2622, %v2621
  %v2686 = vpack.c.b16 %v2624, %v2623
  %v2687 = vpack.c.b16 %v2626, %v2625
  %v2688 = vpack.c.b16 %v2628, %v2627
  %v2689 = vpack.c.b16 %v2630, %v2629
  %v2690 = vpack.c.b16 %v2632, %v2631
  %v2691 = vpack.c.b16 %v2634, %v2633
  %v2692 = vpack.c.b16 %v2636, %v2635
  %v2693 = vpack.c.b16 %v2638, %v2637
  %v2694 = vpack.c.b16 %v2640, %v2639
  %v2695 = vpack.c.b16 %v2642, %v2641
  %v2696 = vpack.c.b16 %v2644, %v2643
  %v2697 = vpack.c.b16 %v2646, %v2645
  %v2698 = vpack.c.b16 %v2648, %v2647
  %v2699 = vpack.c.b16 %v2650, %v2649
  %v2700 = vpack.c.b16 %v2652, %v2651
  %v2701 = vpack.c.b16 %v2654, %v2653
  %v2702 = vpack.c.b16 %v2656, %v2655
  %v2703 = vpack.c.b16 %v2658, %v2657
  %v2704 = vpack.c.b16 %v2660, %v2659
  %v2705 = vpack.c.b16 %v2662, %v2661
  %v2706 = vpack.c.b16 %v2664, %v2663
  %v2707 = vpack.c.b16 %v2666, %v2665
  %v2708 = vpack.c.b16 %v2668, %v2667
  %v2709 = vpack.c.b16 %v2670, %v2669
  %v2710 = vpack.c.b16 %v2672, %v2671
  %v2711 = vpack.c.b16 %v2674, %v2673
  %v2712 = vpack.c.b16 %v2676, %v2675
  %v2713 = vpack.c.b16 %v2678, %v2677
  %v2714 = vpack.c.b16 %v2680, %v2679
  %v2715 = vpack.c.b16 %v2682, %v2681
  %v2716 = vpack.c.b16 %v2684, %v2683
  %2717 = vrot.lane.b32.xlu0 %v2685, 4
  %v2718 = vpop.permute.xlu0 %2717
  %2719 = vrot.lane.b32.xlu0 %v2686, 4
  %v2720 = vpop.permute.xlu0 %2719
  %2721 = vrot.lane.b32.xlu0 %v2687, 4
  %v2722 = vpop.permute.xlu0 %2721
  %2723 = vrot.lane.b32.xlu0 %v2688, 4
  %v2724 = vpop.permute.xlu0 %2723
  %2725 = vrot.lane.b32.xlu0 %v2689, 4
  %v2726 = vpop.permute.xlu0 %2725
  %2727 = vrot.lane.b32.xlu0 %v2690, 4
  %v2728 = vpop.permute.xlu0 %2727
  %2729 = vrot.lane.b32.xlu0 %v2691, 4
  %v2730 = vpop.permute.xlu0 %2729
  %2731 = vrot.lane.b32.xlu0 %v2692, 4
  %v2732 = vpop.permute.xlu0 %2731
  %2733 = vrot.lane.b32.xlu0 %v2693, 4
  %v2734 = vpop.permute.xlu0 %2733
  %2735 = vrot.lane.b32.xlu0 %v2694, 4
  %v2736 = vpop.permute.xlu0 %2735
  %2737 = vrot.lane.b32.xlu0 %v2695, 4
  %v2738 = vpop.permute.xlu0 %2737
  %2739 = vrot.lane.b32.xlu0 %v2696, 4
  %v2740 = vpop.permute.xlu0 %2739
  %2741 = vrot.lane.b32.xlu0 %v2697, 4
  %v2742 = vpop.permute.xlu0 %2741
  %2743 = vrot.lane.b32.xlu0 %v2698, 4
  %v2744 = vpop.permute.xlu0 %2743
  %2745 = vrot.lane.b32.xlu0 %v2699, 4
  %v2746 = vpop.permute.xlu0 %2745
  %2747 = vrot.lane.b32.xlu0 %v2700, 4
  %v2748 = vpop.permute.xlu0 %2747
  %2749 = vrot.lane.b32.xlu0 %v2701, 4
  %v2750 = vpop.permute.xlu0 %2749
  %2751 = vrot.lane.b32.xlu0 %v2702, 4
  %v2752 = vpop.permute.xlu0 %2751
  %2753 = vrot.lane.b32.xlu0 %v2703, 4
  %v2754 = vpop.permute.xlu0 %2753
  %2755 = vrot.lane.b32.xlu0 %v2704, 4
  %v2756 = vpop.permute.xlu0 %2755
  %2757 = vrot.lane.b32.xlu0 %v2705, 4
  %v2758 = vpop.permute.xlu0 %2757
  %2759 = vrot.lane.b32.xlu0 %v2706, 4
  %v2760 = vpop.permute.xlu0 %2759
  %2761 = vrot.lane.b32.xlu0 %v2707, 4
  %v2762 = vpop.permute.xlu0 %2761
  %2763 = vrot.lane.b32.xlu0 %v2708, 4
  %v2764 = vpop.permute.xlu0 %2763
  %2765 = vrot.lane.b32.xlu0 %v2709, 4
  %v2766 = vpop.permute.xlu0 %2765
  %2767 = vrot.lane.b32.xlu0 %v2710, 4
  %v2768 = vpop.permute.xlu0 %2767
  %2769 = vrot.lane.b32.xlu0 %v2711, 4
  %v2770 = vpop.permute.xlu0 %2769
  %2771 = vrot.lane.b32.xlu0 %v2712, 4
  %v2772 = vpop.permute.xlu0 %2771
  %2773 = vrot.lane.b32.xlu0 %v2713, 4
  %v2774 = vpop.permute.xlu0 %2773
  %2775 = vrot.lane.b32.xlu0 %v2714, 4
  %v2776 = vpop.permute.xlu0 %2775
  %2777 = vrot.lane.b32.xlu0 %v2715, 4
  %v2778 = vpop.permute.xlu0 %2777
  %2779 = vrot.lane.b32.xlu0 %v2716, 4
  %v2780 = vpop.permute.xlu0 %2779
  %v2781 = vunpack.c.l.b16 %v2168
  %v2782 = vunpack.c.l.b16 %v2171
  %v2783 = vunpack.c.l.b16 %v2175
  %v2784 = vunpack.c.l.b16 %v2178
  %v2785 = vunpack.c.l.b16 %v2182
  %v2786 = vunpack.c.l.b16 %v2185
  %v2787 = vunpack.c.l.b16 %v2189
  %v2788 = vunpack.c.l.b16 %v2192
  %v2789 = vunpack.c.l.b16 %v2196
  %v2790 = vunpack.c.l.b16 %v2199
  %v2791 = vunpack.c.l.b16 %v2203
  %v2792 = vunpack.c.l.b16 %v2206
  %v2793 = vunpack.c.l.b16 %v2210
  %v2794 = vunpack.c.l.b16 %v2213
  %v2795 = vunpack.c.l.b16 %v2217
  %v2796 = vunpack.c.l.b16 %v2220
  %v2797 = vunpack.c.l.b16 %v2224
  %v2798 = vunpack.c.l.b16 %v2227
  %v2799 = vunpack.c.l.b16 %v2231
  %v2800 = vunpack.c.l.b16 %v2234
  %v2801 = vunpack.c.l.b16 %v2238
  %v2802 = vunpack.c.l.b16 %v2241
  %v2803 = vunpack.c.l.b16 %v2245
  %v2804 = vunpack.c.l.b16 %v2248
  %v2805 = vunpack.c.l.b16 %v2252
  %v2806 = vunpack.c.l.b16 %v2255
  %v2807 = vunpack.c.l.b16 %v2259
  %v2808 = vunpack.c.l.b16 %v2262
  %v2809 = vunpack.c.l.b16 %v2266
  %v2810 = vunpack.c.l.b16 %v2269
  %v2811 = vunpack.c.l.b16 %v2273
  %v2812 = vunpack.c.l.b16 %v2276
  %v2813 = vunpack.c.l.b16 %v2280
  %v2814 = vunpack.c.l.b16 %v2283
  %v2815 = vunpack.c.l.b16 %v2287
  %v2816 = vunpack.c.l.b16 %v2290
  %v2817 = vunpack.c.l.b16 %v2294
  %v2818 = vunpack.c.l.b16 %v2297
  %v2819 = vunpack.c.l.b16 %v2301
  %v2820 = vunpack.c.l.b16 %v2304
  %v2821 = vunpack.c.l.b16 %v2308
  %v2822 = vunpack.c.l.b16 %v2311
  %v2823 = vunpack.c.l.b16 %v2315
  %v2824 = vunpack.c.l.b16 %v2318
  %v2825 = vunpack.c.l.b16 %v2322
  %v2826 = vunpack.c.l.b16 %v2325
  %v2827 = vunpack.c.l.b16 %v2329
  %v2828 = vunpack.c.l.b16 %v2332
  %v2829 = vunpack.c.l.b16 %v2336
  %v2830 = vunpack.c.l.b16 %v2339
  %v2831 = vunpack.c.l.b16 %v2343
  %v2832 = vunpack.c.l.b16 %v2346
  %v2833 = vunpack.c.l.b16 %v2350
  %v2834 = vunpack.c.l.b16 %v2353
  %v2835 = vunpack.c.l.b16 %v2357
  %v2836 = vunpack.c.l.b16 %v2360
  %v2837 = vunpack.c.l.b16 %v2364
  %v2838 = vunpack.c.l.b16 %v2367
  %v2839 = vunpack.c.l.b16 %v2371
  %v2840 = vunpack.c.l.b16 %v2374
  %v2841 = vunpack.c.l.b16 %v2378
  %v2842 = vunpack.c.l.b16 %v2381
  %v2843 = vunpack.c.l.b16 %v2385
  %v2844 = vunpack.c.l.b16 %v2388
  %v2845 = vpack.c.b16 %v2782, %v2781
  %v2846 = vpack.c.b16 %v2784, %v2783
  %v2847 = vpack.c.b16 %v2786, %v2785
  %v2848 = vpack.c.b16 %v2788, %v2787
  %v2849 = vpack.c.b16 %v2790, %v2789
  %v2850 = vpack.c.b16 %v2792, %v2791
  %v2851 = vpack.c.b16 %v2794, %v2793
  %v2852 = vpack.c.b16 %v2796, %v2795
  %v2853 = vpack.c.b16 %v2798, %v2797
  %v2854 = vpack.c.b16 %v2800, %v2799
  %v2855 = vpack.c.b16 %v2802, %v2801
  %v2856 = vpack.c.b16 %v2804, %v2803
  %v2857 = vpack.c.b16 %v2806, %v2805
  %v2858 = vpack.c.b16 %v2808, %v2807
  %v2859 = vpack.c.b16 %v2810, %v2809
  %v2860 = vpack.c.b16 %v2812, %v2811
  %v2861 = vpack.c.b16 %v2814, %v2813
  %v2862 = vpack.c.b16 %v2816, %v2815
  %v2863 = vpack.c.b16 %v2818, %v2817
  %v2864 = vpack.c.b16 %v2820, %v2819
  %v2865 = vpack.c.b16 %v2822, %v2821
  %v2866 = vpack.c.b16 %v2824, %v2823
  %v2867 = vpack.c.b16 %v2826, %v2825
  %v2868 = vpack.c.b16 %v2828, %v2827
  %v2869 = vpack.c.b16 %v2830, %v2829
  %v2870 = vpack.c.b16 %v2832, %v2831
  %v2871 = vpack.c.b16 %v2834, %v2833
  %v2872 = vpack.c.b16 %v2836, %v2835
  %v2873 = vpack.c.b16 %v2838, %v2837
  %v2874 = vpack.c.b16 %v2840, %v2839
  %v2875 = vpack.c.b16 %v2842, %v2841
  %v2876 = vpack.c.b16 %v2844, %v2843
  %2877 = vrot.lane.b32.xlu0 %v2845, 8
  %v2878 = vpop.permute.xlu0 %2877
  %2879 = vrot.lane.b32.xlu0 %v2846, 8
  %v2880 = vpop.permute.xlu0 %2879
  %2881 = vrot.lane.b32.xlu0 %v2847, 8
  %v2882 = vpop.permute.xlu0 %2881
  %2883 = vrot.lane.b32.xlu0 %v2848, 8
  %v2884 = vpop.permute.xlu0 %2883
  %2885 = vrot.lane.b32.xlu0 %v2849, 8
  %v2886 = vpop.permute.xlu0 %2885
  %2887 = vrot.lane.b32.xlu0 %v2850, 8
  %v2888 = vpop.permute.xlu0 %2887
  %2889 = vrot.lane.b32.xlu0 %v2851, 8
  %v2890 = vpop.permute.xlu0 %2889
  %2891 = vrot.lane.b32.xlu0 %v2852, 8
  %v2892 = vpop.permute.xlu0 %2891
  %2893 = vrot.lane.b32.xlu0 %v2853, 8
  %v2894 = vpop.permute.xlu0 %2893
  %2895 = vrot.lane.b32.xlu0 %v2854, 8
  %v2896 = vpop.permute.xlu0 %2895
  %2897 = vrot.lane.b32.xlu0 %v2855, 8
  %v2898 = vpop.permute.xlu0 %2897
  %2899 = vrot.lane.b32.xlu0 %v2856, 8
  %v2900 = vpop.permute.xlu0 %2899
  %2901 = vrot.lane.b32.xlu0 %v2857, 8
  %v2902 = vpop.permute.xlu0 %2901
  %2903 = vrot.lane.b32.xlu0 %v2858, 8
  %v2904 = vpop.permute.xlu0 %2903
  %2905 = vrot.lane.b32.xlu0 %v2859, 8
  %v2906 = vpop.permute.xlu0 %2905
  %2907 = vrot.lane.b32.xlu0 %v2860, 8
  %v2908 = vpop.permute.xlu0 %2907
  %2909 = vrot.lane.b32.xlu0 %v2861, 8
  %v2910 = vpop.permute.xlu0 %2909
  %2911 = vrot.lane.b32.xlu0 %v2862, 8
  %v2912 = vpop.permute.xlu0 %2911
  %2913 = vrot.lane.b32.xlu0 %v2863, 8
  %v2914 = vpop.permute.xlu0 %2913
  %2915 = vrot.lane.b32.xlu0 %v2864, 8
  %v2916 = vpop.permute.xlu0 %2915
  %2917 = vrot.lane.b32.xlu0 %v2865, 8
  %v2918 = vpop.permute.xlu0 %2917
  %2919 = vrot.lane.b32.xlu0 %v2866, 8
  %v2920 = vpop.permute.xlu0 %2919
  %2921 = vrot.lane.b32.xlu0 %v2867, 8
  %v2922 = vpop.permute.xlu0 %2921
  %2923 = vrot.lane.b32.xlu0 %v2868, 8
  %v2924 = vpop.permute.xlu0 %2923
  %2925 = vrot.lane.b32.xlu0 %v2869, 8
  %v2926 = vpop.permute.xlu0 %2925
  %2927 = vrot.lane.b32.xlu0 %v2870, 8
  %v2928 = vpop.permute.xlu0 %2927
  %2929 = vrot.lane.b32.xlu0 %v2871, 8
  %v2930 = vpop.permute.xlu0 %2929
  %2931 = vrot.lane.b32.xlu0 %v2872, 8
  %v2932 = vpop.permute.xlu0 %2931
  %2933 = vrot.lane.b32.xlu0 %v2873, 8
  %v2934 = vpop.permute.xlu0 %2933
  %2935 = vrot.lane.b32.xlu0 %v2874, 8
  %v2936 = vpop.permute.xlu0 %2935
  %2937 = vrot.lane.b32.xlu0 %v2875, 8
  %v2938 = vpop.permute.xlu0 %2937
  %2939 = vrot.lane.b32.xlu0 %v2876, 8
  %v2940 = vpop.permute.xlu0 %2939
  %v2941 = vunpack.c.l.b16 %v1235
  %v2942 = vunpack.c.l.b16 %v1236
  %v2943 = vunpack.c.l.b16 %v1289
  %v2944 = vunpack.c.l.b16 %v1290
  %v2945 = vpack.c.b16 %v2942, %v2941
  %v2946 = vpack.c.b16 %v2944, %v2943
  %2947 = vrot.lane.b32.xlu0 %v2590, 12
  %v2948 = vpop.permute.xlu0 %2947
  %2949 = vrot.lane.b32.xlu0 %v2591, 12
  %v2950 = vpop.permute.xlu0 %2949
  %2951 = vrot.lane.b32.xlu0 %v2592, 12
  %v2952 = vpop.permute.xlu0 %2951
  %2953 = vrot.lane.b32.xlu0 %v2593, 12
  %v2954 = vpop.permute.xlu0 %2953
  %2955 = vrot.lane.b32.xlu0 %v2594, 12
  %v2956 = vpop.permute.xlu0 %2955
  %2957 = vrot.lane.b32.xlu0 %v2595, 12
  %v2958 = vpop.permute.xlu0 %2957
  %2959 = vrot.lane.b32.xlu0 %v2596, 12
  %v2960 = vpop.permute.xlu0 %2959
  %2961 = vrot.lane.b32.xlu0 %v2597, 12
  %v2962 = vpop.permute.xlu0 %2961
  %2963 = vrot.lane.b32.xlu0 %v2598, 12
  %v2964 = vpop.permute.xlu0 %2963
  %2965 = vrot.lane.b32.xlu0 %v2599, 12
  %v2966 = vpop.permute.xlu0 %2965
  %2967 = vrot.lane.b32.xlu0 %v2600, 12
  %v2968 = vpop.permute.xlu0 %2967
  %2969 = vrot.lane.b32.xlu0 %v2601, 12
  %v2970 = vpop.permute.xlu0 %2969
  %2971 = vrot.lane.b32.xlu0 %v2602, 12
  %v2972 = vpop.permute.xlu0 %2971
  %2973 = vrot.lane.b32.xlu0 %v2603, 12
  %v2974 = vpop.permute.xlu0 %2973
  %2975 = vrot.lane.b32.xlu0 %v2604, 12
  %v2976 = vpop.permute.xlu0 %2975
  %2977 = vrot.lane.b32.xlu0 %v2945, 12
  %v2978 = vpop.permute.xlu0 %2977
  %2979 = vrot.lane.b32.xlu0 %v2606, 12
  %v2980 = vpop.permute.xlu0 %2979
  %2981 = vrot.lane.b32.xlu0 %v2607, 12
  %v2982 = vpop.permute.xlu0 %2981
  %2983 = vrot.lane.b32.xlu0 %v2608, 12
  %v2984 = vpop.permute.xlu0 %2983
  %2985 = vrot.lane.b32.xlu0 %v2609, 12
  %v2986 = vpop.permute.xlu0 %2985
  %2987 = vrot.lane.b32.xlu0 %v2610, 12
  %v2988 = vpop.permute.xlu0 %2987
  %2989 = vrot.lane.b32.xlu0 %v2611, 12
  %v2990 = vpop.permute.xlu0 %2989
  %2991 = vrot.lane.b32.xlu0 %v2612, 12
  %v2992 = vpop.permute.xlu0 %2991
  %2993 = vrot.lane.b32.xlu0 %v2613, 12
  %v2994 = vpop.permute.xlu0 %2993
  %2995 = vrot.lane.b32.xlu0 %v2614, 12
  %v2996 = vpop.permute.xlu0 %2995
  %2997 = vrot.lane.b32.xlu0 %v2615, 12
  %v2998 = vpop.permute.xlu0 %2997
  %2999 = vrot.lane.b32.xlu0 %v2616, 12
  %v3000 = vpop.permute.xlu0 %2999
  %3001 = vrot.lane.b32.xlu0 %v2617, 12
  %v3002 = vpop.permute.xlu0 %3001
  %3003 = vrot.lane.b32.xlu0 %v2618, 12
  %v3004 = vpop.permute.xlu0 %3003
  %3005 = vrot.lane.b32.xlu0 %v2619, 12
  %v3006 = vpop.permute.xlu0 %3005
  %3007 = vrot.lane.b32.xlu0 %v2620, 12
  %v3008 = vpop.permute.xlu0 %3007
  %3009 = vrot.lane.b32.xlu0 %v2946, 12
  %v3010 = vpop.permute.xlu0 %3009
  %v3011 = vunpack.c.l.b16 %v2402
  %v3012 = vunpack.c.l.b16 %v2412
  %v3013 = vunpack.c.l.b16 %v2426
  %v3014 = vunpack.c.l.b16 %v2436
  %v3015 = vpack.c.b16 %v3012, %v3011
  %v3016 = vpack.c.b16 %v3014, %v3013
  %3017 = vrot.lane.b32.xlu0 %v2686, 16
  %v3018 = vpop.permute.xlu0 %3017
  %3019 = vrot.lane.b32.xlu0 %v2687, 16
  %v3020 = vpop.permute.xlu0 %3019
  %3021 = vrot.lane.b32.xlu0 %v2688, 16
  %v3022 = vpop.permute.xlu0 %3021
  %3023 = vrot.lane.b32.xlu0 %v2689, 16
  %v3024 = vpop.permute.xlu0 %3023
  %3025 = vrot.lane.b32.xlu0 %v2690, 16
  %v3026 = vpop.permute.xlu0 %3025
  %3027 = vrot.lane.b32.xlu0 %v2691, 16
  %v3028 = vpop.permute.xlu0 %3027
  %3029 = vrot.lane.b32.xlu0 %v2692, 16
  %v3030 = vpop.permute.xlu0 %3029
  %3031 = vrot.lane.b32.xlu0 %v2693, 16
  %v3032 = vpop.permute.xlu0 %3031
  %3033 = vrot.lane.b32.xlu0 %v2694, 16
  %v3034 = vpop.permute.xlu0 %3033
  %3035 = vrot.lane.b32.xlu0 %v2695, 16
  %v3036 = vpop.permute.xlu0 %3035
  %3037 = vrot.lane.b32.xlu0 %v2696, 16
  %v3038 = vpop.permute.xlu0 %3037
  %3039 = vrot.lane.b32.xlu0 %v2697, 16
  %v3040 = vpop.permute.xlu0 %3039
  %3041 = vrot.lane.b32.xlu0 %v2698, 16
  %v3042 = vpop.permute.xlu0 %3041
  %3043 = vrot.lane.b32.xlu0 %v2699, 16
  %v3044 = vpop.permute.xlu0 %3043
  %3045 = vrot.lane.b32.xlu0 %v2700, 16
  %v3046 = vpop.permute.xlu0 %3045
  %3047 = vrot.lane.b32.xlu0 %v3015, 16
  %v3048 = vpop.permute.xlu0 %3047
  %3049 = vrot.lane.b32.xlu0 %v2702, 16
  %v3050 = vpop.permute.xlu0 %3049
  %3051 = vrot.lane.b32.xlu0 %v2703, 16
  %v3052 = vpop.permute.xlu0 %3051
  %3053 = vrot.lane.b32.xlu0 %v2704, 16
  %v3054 = vpop.permute.xlu0 %3053
  %3055 = vrot.lane.b32.xlu0 %v2705, 16
  %v3056 = vpop.permute.xlu0 %3055
  %3057 = vrot.lane.b32.xlu0 %v2706, 16
  %v3058 = vpop.permute.xlu0 %3057
  %3059 = vrot.lane.b32.xlu0 %v2707, 16
  %v3060 = vpop.permute.xlu0 %3059
  %3061 = vrot.lane.b32.xlu0 %v2708, 16
  %v3062 = vpop.permute.xlu0 %3061
  %3063 = vrot.lane.b32.xlu0 %v2709, 16
  %v3064 = vpop.permute.xlu0 %3063
  %3065 = vrot.lane.b32.xlu0 %v2710, 16
  %v3066 = vpop.permute.xlu0 %3065
  %3067 = vrot.lane.b32.xlu0 %v2711, 16
  %v3068 = vpop.permute.xlu0 %3067
  %3069 = vrot.lane.b32.xlu0 %v2712, 16
  %v3070 = vpop.permute.xlu0 %3069
  %3071 = vrot.lane.b32.xlu0 %v2713, 16
  %v3072 = vpop.permute.xlu0 %3071
  %3073 = vrot.lane.b32.xlu0 %v2714, 16
  %v3074 = vpop.permute.xlu0 %3073
  %3075 = vrot.lane.b32.xlu0 %v2715, 16
  %v3076 = vpop.permute.xlu0 %3075
  %3077 = vrot.lane.b32.xlu0 %v2716, 16
  %v3078 = vpop.permute.xlu0 %3077
  %3079 = vrot.lane.b32.xlu0 %v3016, 16
  %v3080 = vpop.permute.xlu0 %3079
  %v3081 = vunpack.c.l.b16 %v2446
  %v3082 = vunpack.c.l.b16 %v2449
  %v3083 = vunpack.c.l.b16 %v2453
  %v3084 = vunpack.c.l.b16 %v2456
  %v3085 = vpack.c.b16 %v3082, %v3081
  %v3086 = vpack.c.b16 %v3084, %v3083
  %3087 = vrot.lane.b32.xlu0 %v2846, 20
  %v3088 = vpop.permute.xlu0 %3087
  %3089 = vrot.lane.b32.xlu0 %v2847, 20
  %v3090 = vpop.permute.xlu0 %3089
  %3091 = vrot.lane.b32.xlu0 %v2848, 20
  %v3092 = vpop.permute.xlu0 %3091
  %3093 = vrot.lane.b32.xlu0 %v2849, 20
  %v3094 = vpop.permute.xlu0 %3093
  %3095 = vrot.lane.b32.xlu0 %v2850, 20
  %v3096 = vpop.permute.xlu0 %3095
  %3097 = vrot.lane.b32.xlu0 %v2851, 20
  %v3098 = vpop.permute.xlu0 %3097
  %3099 = vrot.lane.b32.xlu0 %v2852, 20
  %v3100 = vpop.permute.xlu0 %3099
  %3101 = vrot.lane.b32.xlu0 %v2853, 20
  %v3102 = vpop.permute.xlu0 %3101
  %3103 = vrot.lane.b32.xlu0 %v2854, 20
  %v3104 = vpop.permute.xlu0 %3103
  %3105 = vrot.lane.b32.xlu0 %v2855, 20
  %v3106 = vpop.permute.xlu0 %3105
  %3107 = vrot.lane.b32.xlu0 %v2856, 20
  %v3108 = vpop.permute.xlu0 %3107
  %3109 = vrot.lane.b32.xlu0 %v2857, 20
  %v3110 = vpop.permute.xlu0 %3109
  %3111 = vrot.lane.b32.xlu0 %v2858, 20
  %v3112 = vpop.permute.xlu0 %3111
  %3113 = vrot.lane.b32.xlu0 %v2859, 20
  %v3114 = vpop.permute.xlu0 %3113
  %3115 = vrot.lane.b32.xlu0 %v2860, 20
  %v3116 = vpop.permute.xlu0 %3115
  %3117 = vrot.lane.b32.xlu0 %v3085, 20
  %v3118 = vpop.permute.xlu0 %3117
  %3119 = vrot.lane.b32.xlu0 %v2862, 20
  %v3120 = vpop.permute.xlu0 %3119
  %3121 = vrot.lane.b32.xlu0 %v2863, 20
  %v3122 = vpop.permute.xlu0 %3121
  %3123 = vrot.lane.b32.xlu0 %v2864, 20
  %v3124 = vpop.permute.xlu0 %3123
  %3125 = vrot.lane.b32.xlu0 %v2865, 20
  %v3126 = vpop.permute.xlu0 %3125
  %3127 = vrot.lane.b32.xlu0 %v2866, 20
  %v3128 = vpop.permute.xlu0 %3127
  %3129 = vrot.lane.b32.xlu0 %v2867, 20
  %v3130 = vpop.permute.xlu0 %3129
  %3131 = vrot.lane.b32.xlu0 %v2868, 20
  %v3132 = vpop.permute.xlu0 %3131
  %3133 = vrot.lane.b32.xlu0 %v2869, 20
  %v3134 = vpop.permute.xlu0 %3133
  %3135 = vrot.lane.b32.xlu0 %v2870, 20
  %v3136 = vpop.permute.xlu0 %3135
  %3137 = vrot.lane.b32.xlu0 %v2871, 20
  %v3138 = vpop.permute.xlu0 %3137
  %3139 = vrot.lane.b32.xlu0 %v2872, 20
  %v3140 = vpop.permute.xlu0 %3139
  %3141 = vrot.lane.b32.xlu0 %v2873, 20
  %v3142 = vpop.permute.xlu0 %3141
  %3143 = vrot.lane.b32.xlu0 %v2874, 20
  %v3144 = vpop.permute.xlu0 %3143
  %3145 = vrot.lane.b32.xlu0 %v2875, 20
  %v3146 = vpop.permute.xlu0 %3145
  %3147 = vrot.lane.b32.xlu0 %v2876, 20
  %v3148 = vpop.permute.xlu0 %3147
  %3149 = vrot.lane.b32.xlu0 %v3086, 20
  %v3150 = vpop.permute.xlu0 %3149
  %v3151 = vunpack.c.l.b16 %v1238
  %v3152 = vunpack.c.l.b16 %v1239
  %v3153 = vunpack.c.l.b16 %v1292
  %v3154 = vunpack.c.l.b16 %v1293
  %v3155 = vpack.c.b16 %v3152, %v3151
  %v3156 = vpack.c.b16 %v3154, %v3153
  %3157 = vrot.lane.b32.xlu0 %v2591, 24
  %v3158 = vpop.permute.xlu0 %3157
  %3159 = vrot.lane.b32.xlu0 %v2592, 24
  %v3160 = vpop.permute.xlu0 %3159
  %3161 = vrot.lane.b32.xlu0 %v2593, 24
  %v3162 = vpop.permute.xlu0 %3161
  %3163 = vrot.lane.b32.xlu0 %v2594, 24
  %v3164 = vpop.permute.xlu0 %3163
  %3165 = vrot.lane.b32.xlu0 %v2595, 24
  %v3166 = vpop.permute.xlu0 %3165
  %3167 = vrot.lane.b32.xlu0 %v2596, 24
  %v3168 = vpop.permute.xlu0 %3167
  %3169 = vrot.lane.b32.xlu0 %v2597, 24
  %v3170 = vpop.permute.xlu0 %3169
  %3171 = vrot.lane.b32.xlu0 %v2598, 24
  %v3172 = vpop.permute.xlu0 %3171
  %3173 = vrot.lane.b32.xlu0 %v2599, 24
  %v3174 = vpop.permute.xlu0 %3173
  %3175 = vrot.lane.b32.xlu0 %v2600, 24
  %v3176 = vpop.permute.xlu0 %3175
  %3177 = vrot.lane.b32.xlu0 %v2601, 24
  %v3178 = vpop.permute.xlu0 %3177
  %3179 = vrot.lane.b32.xlu0 %v2602, 24
  %v3180 = vpop.permute.xlu0 %3179
  %3181 = vrot.lane.b32.xlu0 %v2603, 24
  %v3182 = vpop.permute.xlu0 %3181
  %3183 = vrot.lane.b32.xlu0 %v2604, 24
  %v3184 = vpop.permute.xlu0 %3183
  %3185 = vrot.lane.b32.xlu0 %v2945, 24
  %v3186 = vpop.permute.xlu0 %3185
  %3187 = vrot.lane.b32.xlu0 %v3155, 24
  %v3188 = vpop.permute.xlu0 %3187
  %3189 = vrot.lane.b32.xlu0 %v2607, 24
  %v3190 = vpop.permute.xlu0 %3189
  %3191 = vrot.lane.b32.xlu0 %v2608, 24
  %v3192 = vpop.permute.xlu0 %3191
  %3193 = vrot.lane.b32.xlu0 %v2609, 24
  %v3194 = vpop.permute.xlu0 %3193
  %3195 = vrot.lane.b32.xlu0 %v2610, 24
  %v3196 = vpop.permute.xlu0 %3195
  %3197 = vrot.lane.b32.xlu0 %v2611, 24
  %v3198 = vpop.permute.xlu0 %3197
  %3199 = vrot.lane.b32.xlu0 %v2612, 24
  %v3200 = vpop.permute.xlu0 %3199
  %3201 = vrot.lane.b32.xlu0 %v2613, 24
  %v3202 = vpop.permute.xlu0 %3201
  %3203 = vrot.lane.b32.xlu0 %v2614, 24
  %v3204 = vpop.permute.xlu0 %3203
  %3205 = vrot.lane.b32.xlu0 %v2615, 24
  %v3206 = vpop.permute.xlu0 %3205
  %3207 = vrot.lane.b32.xlu0 %v2616, 24
  %v3208 = vpop.permute.xlu0 %3207
  %3209 = vrot.lane.b32.xlu0 %v2617, 24
  %v3210 = vpop.permute.xlu0 %3209
  %3211 = vrot.lane.b32.xlu0 %v2618, 24
  %v3212 = vpop.permute.xlu0 %3211
  %3213 = vrot.lane.b32.xlu0 %v2619, 24
  %v3214 = vpop.permute.xlu0 %3213
  %3215 = vrot.lane.b32.xlu0 %v2620, 24
  %v3216 = vpop.permute.xlu0 %3215
  %3217 = vrot.lane.b32.xlu0 %v2946, 24
  %v3218 = vpop.permute.xlu0 %3217
  %3219 = vrot.lane.b32.xlu0 %v3156, 24
  %v3220 = vpop.permute.xlu0 %3219
  %v3221 = vunpack.c.l.b16 %v2470
  %v3222 = vunpack.c.l.b16 %v2480
  %v3223 = vunpack.c.l.b16 %v2494
  %v3224 = vunpack.c.l.b16 %v2504
  %v3225 = vpack.c.b16 %v3222, %v3221
  %v3226 = vpack.c.b16 %v3224, %v3223
  %3227 = vrot.lane.b32.xlu0 %v2687, 28
  %v3228 = vpop.permute.xlu0 %3227
  %3229 = vrot.lane.b32.xlu0 %v2688, 28
  %v3230 = vpop.permute.xlu0 %3229
  %3231 = vrot.lane.b32.xlu0 %v2689, 28
  %v3232 = vpop.permute.xlu0 %3231
  %3233 = vrot.lane.b32.xlu0 %v2690, 28
  %v3234 = vpop.permute.xlu0 %3233
  %3235 = vrot.lane.b32.xlu0 %v2691, 28
  %v3236 = vpop.permute.xlu0 %3235
  %3237 = vrot.lane.b32.xlu0 %v2692, 28
  %v3238 = vpop.permute.xlu0 %3237
  %3239 = vrot.lane.b32.xlu0 %v2693, 28
  %v3240 = vpop.permute.xlu0 %3239
  %3241 = vrot.lane.b32.xlu0 %v2694, 28
  %v3242 = vpop.permute.xlu0 %3241
  %3243 = vrot.lane.b32.xlu0 %v2695, 28
  %v3244 = vpop.permute.xlu0 %3243
  %3245 = vrot.lane.b32.xlu0 %v2696, 28
  %v3246 = vpop.permute.xlu0 %3245
  %3247 = vrot.lane.b32.xlu0 %v2697, 28
  %v3248 = vpop.permute.xlu0 %3247
  %3249 = vrot.lane.b32.xlu0 %v2698, 28
  %v3250 = vpop.permute.xlu0 %3249
  %3251 = vrot.lane.b32.xlu0 %v2699, 28
  %v3252 = vpop.permute.xlu0 %3251
  %3253 = vrot.lane.b32.xlu0 %v2700, 28
  %v3254 = vpop.permute.xlu0 %3253
  %3255 = vrot.lane.b32.xlu0 %v3015, 28
  %v3256 = vpop.permute.xlu0 %3255
  %3257 = vrot.lane.b32.xlu0 %v3225, 28
  %v3258 = vpop.permute.xlu0 %3257
  %3259 = vrot.lane.b32.xlu0 %v2703, 28
  %v3260 = vpop.permute.xlu0 %3259
  %3261 = vrot.lane.b32.xlu0 %v2704, 28
  %v3262 = vpop.permute.xlu0 %3261
  %3263 = vrot.lane.b32.xlu0 %v2705, 28
  %v3264 = vpop.permute.xlu0 %3263
  %3265 = vrot.lane.b32.xlu0 %v2706, 28
  %v3266 = vpop.permute.xlu0 %3265
  %3267 = vrot.lane.b32.xlu0 %v2707, 28
  %v3268 = vpop.permute.xlu0 %3267
  %3269 = vrot.lane.b32.xlu0 %v2708, 28
  %v3270 = vpop.permute.xlu0 %3269
  %3271 = vrot.lane.b32.xlu0 %v2709, 28
  %v3272 = vpop.permute.xlu0 %3271
  %3273 = vrot.lane.b32.xlu0 %v2710, 28
  %v3274 = vpop.permute.xlu0 %3273
  %3275 = vrot.lane.b32.xlu0 %v2711, 28
  %v3276 = vpop.permute.xlu0 %3275
  %3277 = vrot.lane.b32.xlu0 %v2712, 28
  %v3278 = vpop.permute.xlu0 %3277
  %3279 = vrot.lane.b32.xlu0 %v2713, 28
  %v3280 = vpop.permute.xlu0 %3279
  %3281 = vrot.lane.b32.xlu0 %v2714, 28
  %v3282 = vpop.permute.xlu0 %3281
  %3283 = vrot.lane.b32.xlu0 %v2715, 28
  %v3284 = vpop.permute.xlu0 %3283
  %3285 = vrot.lane.b32.xlu0 %v2716, 28
  %v3286 = vpop.permute.xlu0 %3285
  %3287 = vrot.lane.b32.xlu0 %v3016, 28
  %v3288 = vpop.permute.xlu0 %3287
  %3289 = vrot.lane.b32.xlu0 %v3226, 28
  %v3290 = vpop.permute.xlu0 %3289
  %v3291 = vunpack.c.l.b16 %v2514
  %v3292 = vunpack.c.l.b16 %v2517
  %v3293 = vunpack.c.l.b16 %v2521
  %v3294 = vunpack.c.l.b16 %v2524
  %v3295 = vpack.c.b16 %v3292, %v3291
  %v3296 = vpack.c.b16 %v3294, %v3293
  %3297 = vrot.lane.b32.xlu0 %v2847, 32
  %v3298 = vpop.permute.xlu0 %3297
  %3299 = vrot.lane.b32.xlu0 %v2848, 32
  %v3300 = vpop.permute.xlu0 %3299
  %3301 = vrot.lane.b32.xlu0 %v2849, 32
  %v3302 = vpop.permute.xlu0 %3301
  %3303 = vrot.lane.b32.xlu0 %v2850, 32
  %v3304 = vpop.permute.xlu0 %3303
  %3305 = vrot.lane.b32.xlu0 %v2851, 32
  %v3306 = vpop.permute.xlu0 %3305
  %3307 = vrot.lane.b32.xlu0 %v2852, 32
  %v3308 = vpop.permute.xlu0 %3307
  %3309 = vrot.lane.b32.xlu0 %v2853, 32
  %v3310 = vpop.permute.xlu0 %3309
  %3311 = vrot.lane.b32.xlu0 %v2854, 32
  %v3312 = vpop.permute.xlu0 %3311
  %3313 = vrot.lane.b32.xlu0 %v2855, 32
  %v3314 = vpop.permute.xlu0 %3313
  %3315 = vrot.lane.b32.xlu0 %v2856, 32
  %v3316 = vpop.permute.xlu0 %3315
  %3317 = vrot.lane.b32.xlu0 %v2857, 32
  %v3318 = vpop.permute.xlu0 %3317
  %3319 = vrot.lane.b32.xlu0 %v2858, 32
  %v3320 = vpop.permute.xlu0 %3319
  %3321 = vrot.lane.b32.xlu0 %v2859, 32
  %v3322 = vpop.permute.xlu0 %3321
  %3323 = vrot.lane.b32.xlu0 %v2860, 32
  %v3324 = vpop.permute.xlu0 %3323
  %3325 = vrot.lane.b32.xlu0 %v3085, 32
  %v3326 = vpop.permute.xlu0 %3325
  %3327 = vrot.lane.b32.xlu0 %v3295, 32
  %v3328 = vpop.permute.xlu0 %3327
  %3329 = vrot.lane.b32.xlu0 %v2863, 32
  %v3330 = vpop.permute.xlu0 %3329
  %3331 = vrot.lane.b32.xlu0 %v2864, 32
  %v3332 = vpop.permute.xlu0 %3331
  %3333 = vrot.lane.b32.xlu0 %v2865, 32
  %v3334 = vpop.permute.xlu0 %3333
  %3335 = vrot.lane.b32.xlu0 %v2866, 32
  %v3336 = vpop.permute.xlu0 %3335
  %3337 = vrot.lane.b32.xlu0 %v2867, 32
  %v3338 = vpop.permute.xlu0 %3337
  %3339 = vrot.lane.b32.xlu0 %v2868, 32
  %v3340 = vpop.permute.xlu0 %3339
  %3341 = vrot.lane.b32.xlu0 %v2869, 32
  %v3342 = vpop.permute.xlu0 %3341
  %3343 = vrot.lane.b32.xlu0 %v2870, 32
  %v3344 = vpop.permute.xlu0 %3343
  %3345 = vrot.lane.b32.xlu0 %v2871, 32
  %v3346 = vpop.permute.xlu0 %3345
  %3347 = vrot.lane.b32.xlu0 %v2872, 32
  %v3348 = vpop.permute.xlu0 %3347
  %3349 = vrot.lane.b32.xlu0 %v2873, 32
  %v3350 = vpop.permute.xlu0 %3349
  %3351 = vrot.lane.b32.xlu0 %v2874, 32
  %v3352 = vpop.permute.xlu0 %3351
  %3353 = vrot.lane.b32.xlu0 %v2875, 32
  %v3354 = vpop.permute.xlu0 %3353
  %3355 = vrot.lane.b32.xlu0 %v2876, 32
  %v3356 = vpop.permute.xlu0 %3355
  %3357 = vrot.lane.b32.xlu0 %v3086, 32
  %v3358 = vpop.permute.xlu0 %3357
  %3359 = vrot.lane.b32.xlu0 %v3296, 32
  %v3360 = vpop.permute.xlu0 %3359
  %vm3361 = vcmask 31744
  %v3364 = vsel %vm3361, %v2589, %v2718
  %v3367 = vsel %vm3361, %v2590, %v2720
  %v3370 = vsel %vm3361, %v2591, %v2722
  %v3373 = vsel %vm3361, %v2592, %v2724
  %v3376 = vsel %vm3361, %v2593, %v2726
  %v3379 = vsel %vm3361, %v2594, %v2728
  %v3382 = vsel %vm3361, %v2595, %v2730
  %v3385 = vsel %vm3361, %v2596, %v2732
  %v3388 = vsel %vm3361, %v2597, %v2734
  %v3391 = vsel %vm3361, %v2598, %v2736
  %v3394 = vsel %vm3361, %v2599, %v2738
  %v3397 = vsel %vm3361, %v2600, %v2740
  %v3400 = vsel %vm3361, %v2601, %v2742
  %v3403 = vsel %vm3361, %v2602, %v2744
  %v3406 = vsel %vm3361, %v2603, %v2746
  %v3409 = vsel %vm3361, %v2604, %v2748
  %v3412 = vsel %vm3361, %v2605, %v2750
  %v3415 = vsel %vm3361, %v2606, %v2752
  %v3418 = vsel %vm3361, %v2607, %v2754
  %v3421 = vsel %vm3361, %v2608, %v2756
  %v3424 = vsel %vm3361, %v2609, %v2758
  %v3427 = vsel %vm3361, %v2610, %v2760
  %v3430 = vsel %vm3361, %v2611, %v2762
  %v3433 = vsel %vm3361, %v2612, %v2764
  %v3436 = vsel %vm3361, %v2613, %v2766
  %v3439 = vsel %vm3361, %v2614, %v2768
  %v3442 = vsel %vm3361, %v2615, %v2770
  %v3445 = vsel %vm3361, %v2616, %v2772
  %v3448 = vsel %vm3361, %v2617, %v2774
  %v3451 = vsel %vm3361, %v2618, %v2776
  %v3454 = vsel %vm3361, %v2619, %v2778
  %v3457 = vsel %vm3361, %v2620, %v2780
  %vm3458 = vcmask 64512
  %v3460 = vsel %vm3458, %v3364, %v2878
  %v3462 = vsel %vm3458, %v3367, %v2880
  %v3464 = vsel %vm3458, %v3370, %v2882
  %v3466 = vsel %vm3458, %v3373, %v2884
  %v3468 = vsel %vm3458, %v3376, %v2886
  %v3470 = vsel %vm3458, %v3379, %v2888
  %v3472 = vsel %vm3458, %v3382, %v2890
  %v3474 = vsel %vm3458, %v3385, %v2892
  %v3476 = vsel %vm3458, %v3388, %v2894
  %v3478 = vsel %vm3458, %v3391, %v2896
  %v3480 = vsel %vm3458, %v3394, %v2898
  %v3482 = vsel %vm3458, %v3397, %v2900
  %v3484 = vsel %vm3458, %v3400, %v2902
  %v3486 = vsel %vm3458, %v3403, %v2904
  %v3488 = vsel %vm3458, %v3406, %v2906
  %v3490 = vsel %vm3458, %v3409, %v2908
  %v3492 = vsel %vm3458, %v3412, %v2910
  %v3494 = vsel %vm3458, %v3415, %v2912
  %v3496 = vsel %vm3458, %v3418, %v2914
  %v3498 = vsel %vm3458, %v3421, %v2916
  %v3500 = vsel %vm3458, %v3424, %v2918
  %v3502 = vsel %vm3458, %v3427, %v2920
  %v3504 = vsel %vm3458, %v3430, %v2922
  %v3506 = vsel %vm3458, %v3433, %v2924
  %v3508 = vsel %vm3458, %v3436, %v2926
  %v3510 = vsel %vm3458, %v3439, %v2928
  %v3512 = vsel %vm3458, %v3442, %v2930
  %v3514 = vsel %vm3458, %v3445, %v2932
  %v3516 = vsel %vm3458, %v3448, %v2934
  %v3518 = vsel %vm3458, %v3451, %v2936
  %v3520 = vsel %vm3458, %v3454, %v2938
  %v3522 = vsel %vm3458, %v3457, %v2940
  %vm3523 = vcmask 97280
  %v3525 = vsel %vm3523, %v3460, %v2948
  %v3527 = vsel %vm3523, %v3462, %v2950
  %v3529 = vsel %vm3523, %v3464, %v2952
  %v3531 = vsel %vm3523, %v3466, %v2954
  %v3533 = vsel %vm3523, %v3468, %v2956
  %v3535 = vsel %vm3523, %v3470, %v2958
  %v3537 = vsel %vm3523, %v3472, %v2960
  %v3539 = vsel %vm3523, %v3474, %v2962
  %v3541 = vsel %vm3523, %v3476, %v2964
  %v3543 = vsel %vm3523, %v3478, %v2966
  %v3545 = vsel %vm3523, %v3480, %v2968
  %v3547 = vsel %vm3523, %v3482, %v2970
  %v3549 = vsel %vm3523, %v3484, %v2972
  %v3551 = vsel %vm3523, %v3486, %v2974
  %v3553 = vsel %vm3523, %v3488, %v2976
  %v3555 = vsel %vm3523, %v3490, %v2978
  %v3557 = vsel %vm3523, %v3492, %v2980
  %v3559 = vsel %vm3523, %v3494, %v2982
  %v3561 = vsel %vm3523, %v3496, %v2984
  %v3563 = vsel %vm3523, %v3498, %v2986
  %v3565 = vsel %vm3523, %v3500, %v2988
  %v3567 = vsel %vm3523, %v3502, %v2990
  %v3569 = vsel %vm3523, %v3504, %v2992
  %v3571 = vsel %vm3523, %v3506, %v2994
  %v3573 = vsel %vm3523, %v3508, %v2996
  %v3575 = vsel %vm3523, %v3510, %v2998
  %v3577 = vsel %vm3523, %v3512, %v3000
  %v3579 = vsel %vm3523, %v3514, %v3002
  %v3581 = vsel %vm3523, %v3516, %v3004
  %v3583 = vsel %vm3523, %v3518, %v3006
  %v3585 = vsel %vm3523, %v3520, %v3008
  %v3587 = vsel %vm3523, %v3522, %v3010
  %vm3588 = vcmask 130048
  %v3590 = vsel %vm3588, %v3525, %v3018
  %v3592 = vsel %vm3588, %v3527, %v3020
  %v3594 = vsel %vm3588, %v3529, %v3022
  %v3596 = vsel %vm3588, %v3531, %v3024
  %v3598 = vsel %vm3588, %v3533, %v3026
  %v3600 = vsel %vm3588, %v3535, %v3028
  %v3602 = vsel %vm3588, %v3537, %v3030
  %v3604 = vsel %vm3588, %v3539, %v3032
  %v3606 = vsel %vm3588, %v3541, %v3034
  %v3608 = vsel %vm3588, %v3543, %v3036
  %v3610 = vsel %vm3588, %v3545, %v3038
  %v3612 = vsel %vm3588, %v3547, %v3040
  %v3614 = vsel %vm3588, %v3549, %v3042
  %v3616 = vsel %vm3588, %v3551, %v3044
  %v3618 = vsel %vm3588, %v3553, %v3046
  %v3620 = vsel %vm3588, %v3555, %v3048
  %v3622 = vsel %vm3588, %v3557, %v3050
  %v3624 = vsel %vm3588, %v3559, %v3052
  %v3626 = vsel %vm3588, %v3561, %v3054
  %v3628 = vsel %vm3588, %v3563, %v3056
  %v3630 = vsel %vm3588, %v3565, %v3058
  %v3632 = vsel %vm3588, %v3567, %v3060
  %v3634 = vsel %vm3588, %v3569, %v3062
  %v3636 = vsel %vm3588, %v3571, %v3064
  %v3638 = vsel %vm3588, %v3573, %v3066
  %v3640 = vsel %vm3588, %v3575, %v3068
  %v3642 = vsel %vm3588, %v3577, %v3070
  %v3644 = vsel %vm3588, %v3579, %v3072
  %v3646 = vsel %vm3588, %v3581, %v3074
  %v3648 = vsel %vm3588, %v3583, %v3076
  %v3650 = vsel %vm3588, %v3585, %v3078
  %v3652 = vsel %vm3588, %v3587, %v3080
  %vm3653 = vcmask 162816
  %v3655 = vsel %vm3653, %v3590, %v3088
  %v3657 = vsel %vm3653, %v3592, %v3090
  %v3659 = vsel %vm3653, %v3594, %v3092
  %v3661 = vsel %vm3653, %v3596, %v3094
  %v3663 = vsel %vm3653, %v3598, %v3096
  %v3665 = vsel %vm3653, %v3600, %v3098
  %v3667 = vsel %vm3653, %v3602, %v3100
  %v3669 = vsel %vm3653, %v3604, %v3102
  %v3671 = vsel %vm3653, %v3606, %v3104
  %v3673 = vsel %vm3653, %v3608, %v3106
  %v3675 = vsel %vm3653, %v3610, %v3108
  %v3677 = vsel %vm3653, %v3612, %v3110
  %v3679 = vsel %vm3653, %v3614, %v3112
  %v3681 = vsel %vm3653, %v3616, %v3114
  %v3683 = vsel %vm3653, %v3618, %v3116
  %v3685 = vsel %vm3653, %v3620, %v3118
  %v3687 = vsel %vm3653, %v3622, %v3120
  %v3689 = vsel %vm3653, %v3624, %v3122
  %v3691 = vsel %vm3653, %v3626, %v3124
  %v3693 = vsel %vm3653, %v3628, %v3126
  %v3695 = vsel %vm3653, %v3630, %v3128
  %v3697 = vsel %vm3653, %v3632, %v3130
  %v3699 = vsel %vm3653, %v3634, %v3132
  %v3701 = vsel %vm3653, %v3636, %v3134
  %v3703 = vsel %vm3653, %v3638, %v3136
  %v3705 = vsel %vm3653, %v3640, %v3138
  %v3707 = vsel %vm3653, %v3642, %v3140
  %v3709 = vsel %vm3653, %v3644, %v3142
  %v3711 = vsel %vm3653, %v3646, %v3144
  %v3713 = vsel %vm3653, %v3648, %v3146
  %v3715 = vsel %vm3653, %v3650, %v3148
  %v3717 = vsel %vm3653, %v3652, %v3150
  %vm3718 = vcmask 195584
  %v3720 = vsel %vm3718, %v3655, %v3158
  %v3722 = vsel %vm3718, %v3657, %v3160
  %v3724 = vsel %vm3718, %v3659, %v3162
  %v3726 = vsel %vm3718, %v3661, %v3164
  %v3728 = vsel %vm3718, %v3663, %v3166
  %v3730 = vsel %vm3718, %v3665, %v3168
  %v3732 = vsel %vm3718, %v3667, %v3170
  %v3734 = vsel %vm3718, %v3669, %v3172
  %v3736 = vsel %vm3718, %v3671, %v3174
  %v3738 = vsel %vm3718, %v3673, %v3176
  %v3740 = vsel %vm3718, %v3675, %v3178
  %v3742 = vsel %vm3718, %v3677, %v3180
  %v3744 = vsel %vm3718, %v3679, %v3182
  %v3746 = vsel %vm3718, %v3681, %v3184
  %v3748 = vsel %vm3718, %v3683, %v3186
  %v3750 = vsel %vm3718, %v3685, %v3188
  %v3752 = vsel %vm3718, %v3687, %v3190
  %v3754 = vsel %vm3718, %v3689, %v3192
  %v3756 = vsel %vm3718, %v3691, %v3194
  %v3758 = vsel %vm3718, %v3693, %v3196
  %v3760 = vsel %vm3718, %v3695, %v3198
  %v3762 = vsel %vm3718, %v3697, %v3200
  %v3764 = vsel %vm3718, %v3699, %v3202
  %v3766 = vsel %vm3718, %v3701, %v3204
  %v3768 = vsel %vm3718, %v3703, %v3206
  %v3770 = vsel %vm3718, %v3705, %v3208
  %v3772 = vsel %vm3718, %v3707, %v3210
  %v3774 = vsel %vm3718, %v3709, %v3212
  %v3776 = vsel %vm3718, %v3711, %v3214
  %v3778 = vsel %vm3718, %v3713, %v3216
  %v3780 = vsel %vm3718, %v3715, %v3218
  %v3782 = vsel %vm3718, %v3717, %v3220
  %vm3783 = vcmask 228352
  %v3785 = vsel %vm3783, %v3720, %v3228
  %v3787 = vsel %vm3783, %v3722, %v3230
  %v3789 = vsel %vm3783, %v3724, %v3232
  %v3791 = vsel %vm3783, %v3726, %v3234
  %v3793 = vsel %vm3783, %v3728, %v3236
  %v3795 = vsel %vm3783, %v3730, %v3238
  %v3797 = vsel %vm3783, %v3732, %v3240
  %v3799 = vsel %vm3783, %v3734, %v3242
  %v3801 = vsel %vm3783, %v3736, %v3244
  %v3803 = vsel %vm3783, %v3738, %v3246
  %v3805 = vsel %vm3783, %v3740, %v3248
  %v3807 = vsel %vm3783, %v3742, %v3250
  %v3809 = vsel %vm3783, %v3744, %v3252
  %v3811 = vsel %vm3783, %v3746, %v3254
  %v3813 = vsel %vm3783, %v3748, %v3256
  %v3815 = vsel %vm3783, %v3750, %v3258
  %v3817 = vsel %vm3783, %v3752, %v3260
  %v3819 = vsel %vm3783, %v3754, %v3262
  %v3821 = vsel %vm3783, %v3756, %v3264
  %v3823 = vsel %vm3783, %v3758, %v3266
  %v3825 = vsel %vm3783, %v3760, %v3268
  %v3827 = vsel %vm3783, %v3762, %v3270
  %v3829 = vsel %vm3783, %v3764, %v3272
  %v3831 = vsel %vm3783, %v3766, %v3274
  %v3833 = vsel %vm3783, %v3768, %v3276
  %v3835 = vsel %vm3783, %v3770, %v3278
  %v3837 = vsel %vm3783, %v3772, %v3280
  %v3839 = vsel %vm3783, %v3774, %v3282
  %v3841 = vsel %vm3783, %v3776, %v3284
  %v3843 = vsel %vm3783, %v3778, %v3286
  %v3845 = vsel %vm3783, %v3780, %v3288
  %v3847 = vsel %vm3783, %v3782, %v3290
  %vm3848 = vcmask 261120
  %v3850 = vsel %vm3848, %v3785, %v3298
  %v3852 = vsel %vm3848, %v3787, %v3300
  %v3854 = vsel %vm3848, %v3789, %v3302
  %v3856 = vsel %vm3848, %v3791, %v3304
  %v3858 = vsel %vm3848, %v3793, %v3306
  %v3860 = vsel %vm3848, %v3795, %v3308
  %v3862 = vsel %vm3848, %v3797, %v3310
  %v3864 = vsel %vm3848, %v3799, %v3312
  %v3866 = vsel %vm3848, %v3801, %v3314
  %v3868 = vsel %vm3848, %v3803, %v3316
  %v3870 = vsel %vm3848, %v3805, %v3318
  %v3872 = vsel %vm3848, %v3807, %v3320
  %v3874 = vsel %vm3848, %v3809, %v3322
  %v3876 = vsel %vm3848, %v3811, %v3324
  %v3878 = vsel %vm3848, %v3813, %v3326
  %v3880 = vsel %vm3848, %v3815, %v3328
  %v3882 = vsel %vm3848, %v3817, %v3330
  %v3884 = vsel %vm3848, %v3819, %v3332
  %v3886 = vsel %vm3848, %v3821, %v3334
  %v3888 = vsel %vm3848, %v3823, %v3336
  %v3890 = vsel %vm3848, %v3825, %v3338
  %v3892 = vsel %vm3848, %v3827, %v3340
  %v3894 = vsel %vm3848, %v3829, %v3342
  %v3896 = vsel %vm3848, %v3831, %v3344
  %v3898 = vsel %vm3848, %v3833, %v3346
  %v3900 = vsel %vm3848, %v3835, %v3348
  %v3902 = vsel %vm3848, %v3837, %v3350
  %v3904 = vsel %vm3848, %v3839, %v3352
  %v3906 = vsel %vm3848, %v3841, %v3354
  %v3908 = vsel %vm3848, %v3843, %v3356
  %v3910 = vsel %vm3848, %v3845, %v3358
  %v3912 = vsel %vm3848, %v3847, %v3360
  %v3913 = vld [vmem:[%s1] sm:$0xf]
  %v3914 = vld [vmem:[%s1 + $0x4] sm:$0xf]
  %v3915 = vld [vmem:[%s1 + $0x8] sm:$0xf]
  %v3916 = vld [vmem:[%s1 + $0xc] sm:$0xf]
  %v3917 = vld [vmem:[%s1 + $0x10] sm:$0x3]
  %v3923 = vunpack.c.l.b16 %v3913
  %v3924 = vunpack.c.l.b16 %v3914
  %v3925 = vunpack.c.l.b16 %v3915
  %v3926 = vunpack.c.l.b16 %v3916
  %v3927 = vunpack.c.l.b16 %v3917
  %v3928 = vpack.c.b16 %v3924, %v3923
  %v3929 = vpack.c.b16 %v3926, %v3925
  %v3930 = vpack.c.b16 %v3927, %v3927
  %vm3933 = vcmask 293888
  %v3934 = vsel %vm3933, %v3850, 0
  %v3936 = vsel %vm3933, %v3852, 0
  %v3938 = vsel %vm3933, %v3854, 0
  %v3940 = vsel %vm3933, %v3856, 0
  %v3942 = vsel %vm3933, %v3858, 0
  %v3944 = vsel %vm3933, %v3860, 0
  %v3946 = vsel %vm3933, %v3862, 0
  %v3948 = vsel %vm3933, %v3864, 0
  %v3950 = vsel %vm3933, %v3866, 0
  %v3952 = vsel %vm3933, %v3868, 0
  %v3954 = vsel %vm3933, %v3870, 0
  %v3956 = vsel %vm3933, %v3872, 0
  %v3958 = vsel %vm3933, %v3874, 0
  %v3960 = vsel %vm3933, %v3876, 0
  %v3962 = vsel %vm3933, %v3878, 0
  %v3964 = vsel %vm3933, %v3880, 0
  %v3966 = vsel %vm3933, %v3882, 0
  %v3968 = vsel %vm3933, %v3884, 0
  %v3970 = vsel %vm3933, %v3886, 0
  %v3972 = vsel %vm3933, %v3888, 0
  %v3974 = vsel %vm3933, %v3890, 0
  %v3976 = vsel %vm3933, %v3892, 0
  %v3978 = vsel %vm3933, %v3894, 0
  %v3980 = vsel %vm3933, %v3896, 0
  %v3982 = vsel %vm3933, %v3898, 0
  %v3984 = vsel %vm3933, %v3900, 0
  %v3986 = vsel %vm3933, %v3902, 0
  %v3988 = vsel %vm3933, %v3904, 0
  %v3990 = vsel %vm3933, %v3906, 0
  %v3992 = vsel %vm3933, %v3908, 0
  %v3994 = vsel %vm3933, %v3910, 0
  %v3996 = vsel %vm3933, %v3912, 0
  %vm3998 = vcmask 1041408
  %v4000 = vsel %vm3998, %v3930, 0
  %4002 = vmatprep.subr.bf16.mxu0 0
  %4003 = vmatpush1.bf16.msra.mxu0 %v3928
  %4004 = vmatprep.subr.bf16.mxu0 0
  %4005 = vmatpush1.bf16.msra.mxu0 %v3929
  %4006 = vmatprep.subr.bf16.mxu0 0
  %4007 = vmatpush1.bf16.msra.mxu0 %v4000
  %4008 = vmatprep.subr.bf16.mxu0 0
  %4009 = vmatpush1.bf16.msra.mxu0 0
  %4010 = vmatprep.subr.bf16.mxu0 0
  %4011 = vmatpush1.bf16.msra.mxu0 0
  %4012 = vmatprep.subr.bf16.mxu0 0
  %4013 = vmatpush1.bf16.msra.mxu0 0
  %4014 = vmatprep.subr.bf16.mxu0 0
  %4015 = vmatpush1.bf16.msra.mxu0 0
  %4016 = vmatprep.subr.bf16.mxu0 0
  %4017 = vmatpush1.bf16.msra.mxu0 0
  %4018 = vmatprep.subr.bf16.mxu0 0
  %4019 = vmatpush1.bf16.msra.mxu0 0
  %4020 = vmatprep.subr.bf16.mxu0 0
  %4021 = vmatpush1.bf16.msra.mxu0 0
  %4022 = vmatprep.subr.bf16.mxu0 0
  %4023 = vmatpush1.bf16.msra.mxu0 0
  %4024 = vmatprep.subr.bf16.mxu0 0
  %4025 = vmatpush1.bf16.msra.mxu0 0
  %4026 = vmatprep.subr.bf16.mxu0 0
  %4027 = vmatpush1.bf16.msra.mxu0 0
  %4028 = vmatprep.subr.bf16.mxu0 0
  %4029 = vmatpush1.bf16.msra.mxu0 0
  %4030 = vmatprep.subr.bf16.mxu0 0
  %4031 = vmatpush1.bf16.msra.mxu0 0
  %4032 = vmatprep.subr.bf16.mxu0 0
  %4033 = vmatpush1.bf16.msra.mxu0 0
  %4034 = vmatprep.mubr.bf16.mxu0 0
  %4035 = vmatmul.mubr.bf16.gmra.mrb[0].mxu0 %v3934
  %v4036 = vpop.f32.mrb[0].mxu0
  %v4037 = vadd.f32 0.0, %v4036
  %v4038 = vpop.f32.mrb[0].mxu0
  %v4039 = vpop.f32.mrb[0].mxu0
  %v4040 = vadd.f32 0.0, %v4039
  %v4041 = vpop.f32.mrb[0].mxu0
  %4042 = vmatprep.mubr.bf16.mxu0 0
  %4043 = vmatmul.mubr.bf16.gmra.mrb[0].mxu0 %v3936
  %v4044 = vpop.f32.mrb[0].mxu0
  %v4045 = vadd.f32 0.0, %v4044
  %v4046 = vpop.f32.mrb[0].mxu0
  %v4047 = vpop.f32.mrb[0].mxu0
  %v4048 = vadd.f32 0.0, %v4047
  %v4049 = vpop.f32.mrb[0].mxu0
  %4050 = vmatprep.mubr.bf16.mxu0 0
  %4051 = vmatmul.mubr.bf16.gmra.mrb[0].mxu0 %v3938
  %v4052 = vpop.f32.mrb[0].mxu0
  %v4053 = vadd.f32 0.0, %v4052
  %v4054 = vpop.f32.mrb[0].mxu0
  %v4055 = vpop.f32.mrb[0].mxu0
  %v4056 = vadd.f32 0.0, %v4055
  %v4057 = vpop.f32.mrb[0].mxu0
  %4058 = vmatprep.mubr.bf16.mxu0 0
  %4059 = vmatmul.mubr.bf16.gmra.mrb[0].mxu0 %v3940
  %v4060 = vpop.f32.mrb[0].mxu0
  %v4061 = vadd.f32 0.0, %v4060
  %v4062 = vpop.f32.mrb[0].mxu0
  %v4063 = vpop.f32.mrb[0].mxu0
  %v4064 = vadd.f32 0.0, %v4063
  %v4065 = vpop.f32.mrb[0].mxu0
  %4066 = vmatprep.mubr.bf16.mxu0 0
  %4067 = vmatmul.mubr.bf16.gmra.mrb[0].mxu0 %v3942
  %v4068 = vpop.f32.mrb[0].mxu0
  %v4069 = vadd.f32 0.0, %v4068
  %v4070 = vpop.f32.mrb[0].mxu0
  %v4071 = vpop.f32.mrb[0].mxu0
  %v4072 = vadd.f32 0.0, %v4071
  %v4073 = vpop.f32.mrb[0].mxu0
  %4074 = vmatprep.mubr.bf16.mxu0 0
  %4075 = vmatmul.mubr.bf16.gmra.mrb[0].mxu0 %v3944
  %v4076 = vpop.f32.mrb[0].mxu0
  %v4077 = vadd.f32 0.0, %v4076
  %v4078 = vpop.f32.mrb[0].mxu0
  %v4079 = vpop.f32.mrb[0].mxu0
  %v4080 = vadd.f32 0.0, %v4079
  %v4081 = vpop.f32.mrb[0].mxu0
  %4082 = vmatprep.mubr.bf16.mxu0 0
  %4083 = vmatmul.mubr.bf16.gmra.mrb[0].mxu0 %v3946
  %v4084 = vpop.f32.mrb[0].mxu0
  %v4085 = vadd.f32 0.0, %v4084
  %v4086 = vpop.f32.mrb[0].mxu0
  %v4087 = vpop.f32.mrb[0].mxu0
  %v4088 = vadd.f32 0.0, %v4087
  %v4089 = vpop.f32.mrb[0].mxu0
  %4090 = vmatprep.mubr.bf16.mxu0 0
  %4091 = vmatmul.mubr.bf16.gmra.mrb[0].mxu0 %v3948
  %v4092 = vpop.f32.mrb[0].mxu0
  %v4093 = vadd.f32 0.0, %v4092
  %v4094 = vpop.f32.mrb[0].mxu0
  %v4095 = vpop.f32.mrb[0].mxu0
  %v4096 = vadd.f32 0.0, %v4095
  %v4097 = vpop.f32.mrb[0].mxu0
  %4098 = vmatprep.mubr.bf16.mxu0 0
  %4099 = vmatmul.mubr.bf16.gmra.mrb[0].mxu0 %v3950
  %v4100 = vpop.f32.mrb[0].mxu0
  %v4101 = vadd.f32 0.0, %v4100
  %v4102 = vpop.f32.mrb[0].mxu0
  %v4103 = vpop.f32.mrb[0].mxu0
  %v4104 = vadd.f32 0.0, %v4103
  %v4105 = vpop.f32.mrb[0].mxu0
  %4106 = vmatprep.mubr.bf16.mxu0 0
  %4107 = vmatmul.mubr.bf16.gmra.mrb[0].mxu0 %v3952
  %v4108 = vpop.f32.mrb[0].mxu0
  %v4109 = vadd.f32 0.0, %v4108
  %v4110 = vpop.f32.mrb[0].mxu0
  %v4111 = vpop.f32.mrb[0].mxu0
  %v4112 = vadd.f32 0.0, %v4111
  %v4113 = vpop.f32.mrb[0].mxu0
  %4114 = vmatprep.mubr.bf16.mxu0 0
  %4115 = vmatmul.mubr.bf16.gmra.mrb[0].mxu0 %v3954
  %v4116 = vpop.f32.mrb[0].mxu0
  %v4117 = vadd.f32 0.0, %v4116
  %v4118 = vpop.f32.mrb[0].mxu0
  %v4119 = vpop.f32.mrb[0].mxu0
  %v4120 = vadd.f32 0.0, %v4119
  %v4121 = vpop.f32.mrb[0].mxu0
  %4122 = vmatprep.mubr.bf16.mxu0 0
  %4123 = vmatmul.mubr.bf16.gmra.mrb[0].mxu0 %v3956
  %v4124 = vpop.f32.mrb[0].mxu0
  %v4125 = vadd.f32 0.0, %v4124
  %v4126 = vpop.f32.mrb[0].mxu0
  %v4127 = vpop.f32.mrb[0].mxu0
  %v4128 = vadd.f32 0.0, %v4127
  %v4129 = vpop.f32.mrb[0].mxu0
  %4130 = vmatprep.mubr.bf16.mxu0 0
  %4131 = vmatmul.mubr.bf16.gmra.mrb[0].mxu0 %v3958
  %v4132 = vpop.f32.mrb[0].mxu0
  %v4133 = vadd.f32 0.0, %v4132
  %v4134 = vpop.f32.mrb[0].mxu0
  %v4135 = vpop.f32.mrb[0].mxu0
  %v4136 = vadd.f32 0.0, %v4135
  %v4137 = vpop.f32.mrb[0].mxu0
  %4138 = vmatprep.mubr.bf16.mxu0 0
  %4139 = vmatmul.mubr.bf16.gmra.mrb[0].mxu0 %v3960
  %v4140 = vpop.f32.mrb[0].mxu0
  %v4141 = vadd.f32 0.0, %v4140
  %v4142 = vpop.f32.mrb[0].mxu0
  %v4143 = vpop.f32.mrb[0].mxu0
  %v4144 = vadd.f32 0.0, %v4143
  %v4145 = vpop.f32.mrb[0].mxu0
  %4146 = vmatprep.mubr.bf16.mxu0 0
  %4147 = vmatmul.mubr.bf16.gmra.mrb[0].mxu0 %v3962
  %v4148 = vpop.f32.mrb[0].mxu0
  %v4149 = vadd.f32 0.0, %v4148
  %v4150 = vpop.f32.mrb[0].mxu0
  %v4151 = vpop.f32.mrb[0].mxu0
  %v4152 = vadd.f32 0.0, %v4151
  %v4153 = vpop.f32.mrb[0].mxu0
  %4154 = vmatprep.mubr.bf16.mxu0 0
  %4155 = vmatmul.mubr.bf16.gmra.mrb[0].mxu0 %v3964
  %v4156 = vpop.f32.mrb[0].mxu0
  %v4157 = vadd.f32 0.0, %v4156
  %v4158 = vpop.f32.mrb[0].mxu0
  %v4159 = vpop.f32.mrb[0].mxu0
  %v4160 = vadd.f32 0.0, %v4159
  %v4161 = vpop.f32.mrb[0].mxu0
  %4162 = vmatprep.mubr.bf16.mxu0 0
  %4163 = vmatmul.mubr.bf16.gmra.mrb[0].mxu0 %v3966
  %v4164 = vpop.f32.mrb[0].mxu0
  %v4165 = vadd.f32 0.0, %v4164
  %v4166 = vpop.f32.mrb[0].mxu0
  %v4167 = vpop.f32.mrb[0].mxu0
  %v4168 = vadd.f32 0.0, %v4167
  %v4169 = vpop.f32.mrb[0].mxu0
  %4170 = vmatprep.mubr.bf16.mxu0 0
  %4171 = vmatmul.mubr.bf16.gmra.mrb[0].mxu0 %v3968
  %v4172 = vpop.f32.mrb[0].mxu0
  %v4173 = vadd.f32 0.0, %v4172
  %v4174 = vpop.f32.mrb[0].mxu0
  %v4175 = vpop.f32.mrb[0].mxu0
  %v4176 = vadd.f32 0.0, %v4175
  %v4177 = vpop.f32.mrb[0].mxu0
  %4178 = vmatprep.mubr.bf16.mxu0 0
  %4179 = vmatmul.mubr.bf16.gmra.mrb[0].mxu0 %v3970
  %v4180 = vpop.f32.mrb[0].mxu0
  %v4181 = vadd.f32 0.0, %v4180
  %v4182 = vpop.f32.mrb[0].mxu0
  %v4183 = vpop.f32.mrb[0].mxu0
  %v4184 = vadd.f32 0.0, %v4183
  %v4185 = vpop.f32.mrb[0].mxu0
  %4186 = vmatprep.mubr.bf16.mxu0 0
  %4187 = vmatmul.mubr.bf16.gmra.mrb[0].mxu0 %v3972
  %v4188 = vpop.f32.mrb[0].mxu0
  %v4189 = vadd.f32 0.0, %v4188
  %v4190 = vpop.f32.mrb[0].mxu0
  %v4191 = vpop.f32.mrb[0].mxu0
  %v4192 = vadd.f32 0.0, %v4191
  %v4193 = vpop.f32.mrb[0].mxu0
  %4194 = vmatprep.mubr.bf16.mxu0 0
  %4195 = vmatmul.mubr.bf16.gmra.mrb[0].mxu0 %v3974
  %v4196 = vpop.f32.mrb[0].mxu0
  %v4197 = vadd.f32 0.0, %v4196
  %v4198 = vpop.f32.mrb[0].mxu0
  %v4199 = vpop.f32.mrb[0].mxu0
  %v4200 = vadd.f32 0.0, %v4199
  %v4201 = vpop.f32.mrb[0].mxu0
  %4202 = vmatprep.mubr.bf16.mxu0 0
  %4203 = vmatmul.mubr.bf16.gmra.mrb[0].mxu0 %v3976
  %v4204 = vpop.f32.mrb[0].mxu0
  %v4205 = vadd.f32 0.0, %v4204
  %v4206 = vpop.f32.mrb[0].mxu0
  %v4207 = vpop.f32.mrb[0].mxu0
  %v4208 = vadd.f32 0.0, %v4207
  %v4209 = vpop.f32.mrb[0].mxu0
  %4210 = vmatprep.mubr.bf16.mxu0 0
  %4211 = vmatmul.mubr.bf16.gmra.mrb[0].mxu0 %v3978
  %v4212 = vpop.f32.mrb[0].mxu0
  %v4213 = vadd.f32 0.0, %v4212
  %v4214 = vpop.f32.mrb[0].mxu0
  %v4215 = vpop.f32.mrb[0].mxu0
  %v4216 = vadd.f32 0.0, %v4215
  %v4217 = vpop.f32.mrb[0].mxu0
  %4218 = vmatprep.mubr.bf16.mxu0 0
  %4219 = vmatmul.mubr.bf16.gmra.mrb[0].mxu0 %v3980
  %v4220 = vpop.f32.mrb[0].mxu0
  %v4221 = vadd.f32 0.0, %v4220
  %v4222 = vpop.f32.mrb[0].mxu0
  %v4223 = vpop.f32.mrb[0].mxu0
  %v4224 = vadd.f32 0.0, %v4223
  %v4225 = vpop.f32.mrb[0].mxu0
  %4226 = vmatprep.mubr.bf16.mxu0 0
  %4227 = vmatmul.mubr.bf16.gmra.mrb[0].mxu0 %v3982
  %v4228 = vpop.f32.mrb[0].mxu0
  %v4229 = vadd.f32 0.0, %v4228
  %v4230 = vpop.f32.mrb[0].mxu0
  %v4231 = vpop.f32.mrb[0].mxu0
  %v4232 = vadd.f32 0.0, %v4231
  %v4233 = vpop.f32.mrb[0].mxu0
  %4234 = vmatprep.mubr.bf16.mxu0 0
  %4235 = vmatmul.mubr.bf16.gmra.mrb[0].mxu0 %v3984
  %v4236 = vpop.f32.mrb[0].mxu0
  %v4237 = vadd.f32 0.0, %v4236
  %v4238 = vpop.f32.mrb[0].mxu0
  %v4239 = vpop.f32.mrb[0].mxu0
  %v4240 = vadd.f32 0.0, %v4239
  %v4241 = vpop.f32.mrb[0].mxu0
  %4242 = vmatprep.mubr.bf16.mxu0 0
  %4243 = vmatmul.mubr.bf16.gmra.mrb[0].mxu0 %v3986
  %v4244 = vpop.f32.mrb[0].mxu0
  %v4245 = vadd.f32 0.0, %v4244
  %v4246 = vpop.f32.mrb[0].mxu0
  %v4247 = vpop.f32.mrb[0].mxu0
  %v4248 = vadd.f32 0.0, %v4247
  %v4249 = vpop.f32.mrb[0].mxu0
  %4250 = vmatprep.mubr.bf16.mxu0 0
  %4251 = vmatmul.mubr.bf16.gmra.mrb[0].mxu0 %v3988
  %v4252 = vpop.f32.mrb[0].mxu0
  %v4253 = vadd.f32 0.0, %v4252
  %v4254 = vpop.f32.mrb[0].mxu0
  %v4255 = vpop.f32.mrb[0].mxu0
  %v4256 = vadd.f32 0.0, %v4255
  %v4257 = vpop.f32.mrb[0].mxu0
  %4258 = vmatprep.mubr.bf16.mxu0 0
  %4259 = vmatmul.mubr.bf16.gmra.mrb[0].mxu0 %v3990
  %v4260 = vpop.f32.mrb[0].mxu0
  %v4261 = vadd.f32 0.0, %v4260
  %v4262 = vpop.f32.mrb[0].mxu0
  %v4263 = vpop.f32.mrb[0].mxu0
  %v4264 = vadd.f32 0.0, %v4263
  %v4265 = vpop.f32.mrb[0].mxu0
  %4266 = vmatprep.mubr.bf16.mxu0 0
  %4267 = vmatmul.mubr.bf16.gmra.mrb[0].mxu0 %v3992
  %v4268 = vpop.f32.mrb[0].mxu0
  %v4269 = vadd.f32 0.0, %v4268
  %v4270 = vpop.f32.mrb[0].mxu0
  %v4271 = vpop.f32.mrb[0].mxu0
  %v4272 = vadd.f32 0.0, %v4271
  %v4273 = vpop.f32.mrb[0].mxu0
  %4274 = vmatprep.mubr.bf16.mxu0 0
  %4275 = vmatmul.mubr.bf16.gmra.mrb[0].mxu0 %v3994
  %v4276 = vpop.f32.mrb[0].mxu0
  %v4277 = vadd.f32 0.0, %v4276
  %v4278 = vpop.f32.mrb[0].mxu0
  %v4279 = vpop.f32.mrb[0].mxu0
  %v4280 = vadd.f32 0.0, %v4279
  %v4281 = vpop.f32.mrb[0].mxu0
  %4282 = vmatprep.mubr.bf16.mxu0 0
  %4283 = vmatmul.mubr.bf16.gmra.mrb[0].mxu0 %v3996
  %v4284 = vpop.f32.mrb[0].mxu0
  %v4285 = vadd.f32 0.0, %v4284
  %v4286 = vpop.f32.mrb[0].mxu0
  %v4287 = vpop.f32.mrb[0].mxu0
  %v4288 = vadd.f32 0.0, %v4287
  %v4289 = vpop.f32.mrb[0].mxu0
  %4290 = vdwg.mxu0
  %v4291 = vld [vmem:[%s3] sm:$0x1]
  %v4292 = vld [vmem:[%s3 + $0x1] sm:$0x1]
  %v4293 = vsel %vm3458, %v4037, 0.0
  %v4294 = vsel %vm3458, %v4040, 0.0
  %v4295 = vadd.f32 %v4293, %v4294
  %v4296 = vsel %vm3458, %v4045, 0.0
  %v4297 = vadd.f32 %v4295, %v4296
  %v4298 = vsel %vm3458, %v4048, 0.0
  %v4299 = vadd.f32 %v4297, %v4298
  %v4300 = vsel %vm3458, %v4053, 0.0
  %v4301 = vadd.f32 %v4299, %v4300
  %v4302 = vsel %vm3458, %v4056, 0.0
  %v4303 = vadd.f32 %v4301, %v4302
  %v4304 = vsel %vm3458, %v4061, 0.0
  %v4305 = vadd.f32 %v4303, %v4304
  %v4306 = vsel %vm3458, %v4064, 0.0
  %v4307 = vadd.f32 %v4305, %v4306
  %v4308 = vsel %vm3458, %v4069, 0.0
  %v4309 = vadd.f32 %v4307, %v4308
  %v4310 = vsel %vm3458, %v4072, 0.0
  %v4311 = vadd.f32 %v4309, %v4310
  %v4312 = vsel %vm3458, %v4077, 0.0
  %v4313 = vadd.f32 %v4311, %v4312
  %v4314 = vsel %vm3458, %v4080, 0.0
  %v4315 = vadd.f32 %v4313, %v4314
  %v4316 = vsel %vm3458, %v4085, 0.0
  %v4317 = vadd.f32 %v4315, %v4316
  %v4318 = vsel %vm3458, %v4088, 0.0
  %v4319 = vadd.f32 %v4317, %v4318
  %v4320 = vsel %vm3458, %v4093, 0.0
  %v4321 = vadd.f32 %v4319, %v4320
  %v4322 = vsel %vm3458, %v4096, 0.0
  %v4323 = vadd.f32 %v4321, %v4322
  %v4324 = vsel %vm3458, %v4101, 0.0
  %v4325 = vadd.f32 %v4323, %v4324
  %v4326 = vsel %vm3458, %v4104, 0.0
  %v4327 = vadd.f32 %v4325, %v4326
  %v4328 = vsel %vm3458, %v4109, 0.0
  %v4329 = vadd.f32 %v4327, %v4328
  %v4330 = vsel %vm3458, %v4112, 0.0
  %v4331 = vadd.f32 %v4329, %v4330
  %v4332 = vsel %vm3458, %v4117, 0.0
  %v4333 = vadd.f32 %v4331, %v4332
  %v4334 = vsel %vm3458, %v4120, 0.0
  %v4335 = vadd.f32 %v4333, %v4334
  %v4336 = vsel %vm3458, %v4125, 0.0
  %v4337 = vadd.f32 %v4335, %v4336
  %v4338 = vsel %vm3458, %v4128, 0.0
  %v4339 = vadd.f32 %v4337, %v4338
  %v4340 = vsel %vm3458, %v4133, 0.0
  %v4341 = vadd.f32 %v4339, %v4340
  %v4342 = vsel %vm3458, %v4136, 0.0
  %v4343 = vadd.f32 %v4341, %v4342
  %v4344 = vsel %vm3458, %v4141, 0.0
  %v4345 = vadd.f32 %v4343, %v4344
  %v4346 = vsel %vm3458, %v4144, 0.0
  %v4347 = vadd.f32 %v4345, %v4346
  %v4348 = vsel %vm3458, %v4149, 0.0
  %v4349 = vadd.f32 %v4347, %v4348
  %v4350 = vsel %vm3458, %v4152, 0.0
  %v4351 = vadd.f32 %v4349, %v4350
  %v4352 = vsel %vm3458, %v4157, 0.0
  %v4353 = vadd.f32 %v4351, %v4352
  %v4354 = vsel %vm3458, %v4160, 0.0
  %v4355 = vadd.f32 %v4353, %v4354
  %v4356 = vsel %vm3458, %v4165, 0.0
  %v4357 = vadd.f32 %v4355, %v4356
  %v4358 = vsel %vm3458, %v4168, 0.0
  %v4359 = vadd.f32 %v4357, %v4358
  %v4360 = vsel %vm3458, %v4173, 0.0
  %v4361 = vadd.f32 %v4359, %v4360
  %v4362 = vsel %vm3458, %v4176, 0.0
  %v4363 = vadd.f32 %v4361, %v4362
  %v4364 = vsel %vm3458, %v4181, 0.0
  %v4365 = vadd.f32 %v4363, %v4364
  %v4366 = vsel %vm3458, %v4184, 0.0
  %v4367 = vadd.f32 %v4365, %v4366
  %v4368 = vsel %vm3458, %v4189, 0.0
  %v4369 = vadd.f32 %v4367, %v4368
  %v4370 = vsel %vm3458, %v4192, 0.0
  %v4371 = vadd.f32 %v4369, %v4370
  %v4372 = vsel %vm3458, %v4197, 0.0
  %v4373 = vadd.f32 %v4371, %v4372
  %v4374 = vsel %vm3458, %v4200, 0.0
  %v4375 = vadd.f32 %v4373, %v4374
  %v4376 = vsel %vm3458, %v4205, 0.0
  %v4377 = vadd.f32 %v4375, %v4376
  %v4378 = vsel %vm3458, %v4208, 0.0
  %v4379 = vadd.f32 %v4377, %v4378
  %v4380 = vsel %vm3458, %v4213, 0.0
  %v4381 = vadd.f32 %v4379, %v4380
  %v4382 = vsel %vm3458, %v4216, 0.0
  %v4383 = vadd.f32 %v4381, %v4382
  %v4384 = vsel %vm3458, %v4221, 0.0
  %v4385 = vadd.f32 %v4383, %v4384
  %v4386 = vsel %vm3458, %v4224, 0.0
  %v4387 = vadd.f32 %v4385, %v4386
  %v4388 = vsel %vm3458, %v4229, 0.0
  %v4389 = vadd.f32 %v4387, %v4388
  %v4390 = vsel %vm3458, %v4232, 0.0
  %v4391 = vadd.f32 %v4389, %v4390
  %v4392 = vsel %vm3458, %v4237, 0.0
  %v4393 = vadd.f32 %v4391, %v4392
  %v4394 = vsel %vm3458, %v4240, 0.0
  %v4395 = vadd.f32 %v4393, %v4394
  %v4396 = vsel %vm3458, %v4245, 0.0
  %v4397 = vadd.f32 %v4395, %v4396
  %v4398 = vsel %vm3458, %v4248, 0.0
  %v4399 = vadd.f32 %v4397, %v4398
  %v4400 = vsel %vm3458, %v4253, 0.0
  %v4401 = vadd.f32 %v4399, %v4400
  %v4402 = vsel %vm3458, %v4256, 0.0
  %v4403 = vadd.f32 %v4401, %v4402
  %v4404 = vsel %vm3458, %v4261, 0.0
  %v4405 = vadd.f32 %v4403, %v4404
  %v4406 = vsel %vm3458, %v4264, 0.0
  %v4407 = vadd.f32 %v4405, %v4406
  %v4408 = vsel %vm3458, %v4269, 0.0
  %v4409 = vadd.f32 %v4407, %v4408
  %v4410 = vsel %vm3458, %v4272, 0.0
  %v4411 = vadd.f32 %v4409, %v4410
  %v4412 = vsel %vm3458, %v4277, 0.0
  %v4413 = vadd.f32 %v4411, %v4412
  %v4414 = vsel %vm3458, %v4280, 0.0
  %v4415 = vadd.f32 %v4413, %v4414
  %v4416 = vsel %vm3458, %v4285, 0.0
  %v4417 = vadd.f32 %v4415, %v4416
  %v4418 = vsel %vm3458, %v4288, 0.0
  %v4419 = vadd.f32 %v4417, %v4418
  %v4420 = vrot.slane %v4419, 4
  %v4421 = vadd.f32 %v4419, %v4420
  %v4422 = vrot.slane %v4421, 2
  %v4423 = vadd.f32 %v4421, %v4422
  %v4424 = vrot.slane %v4423, 1
  %v4425 = vadd.f32 %v4423, %v4424
  %v4426 = vmul.f32 %v4425, 0.001953125
  %v4427 = vmul.f32 %v4037, %v4037
  %v4428 = vmul.f32 %v4040, %v4040
  %v4429 = vmul.f32 %v4045, %v4045
  %v4430 = vmul.f32 %v4048, %v4048
  %v4431 = vmul.f32 %v4053, %v4053
  %v4432 = vmul.f32 %v4056, %v4056
  %v4433 = vmul.f32 %v4061, %v4061
  %v4434 = vmul.f32 %v4064, %v4064
  %v4435 = vmul.f32 %v4069, %v4069
  %v4436 = vmul.f32 %v4072, %v4072
  %v4437 = vmul.f32 %v4077, %v4077
  %v4438 = vmul.f32 %v4080, %v4080
  %v4439 = vmul.f32 %v4085, %v4085
  %v4440 = vmul.f32 %v4088, %v4088
  %v4441 = vmul.f32 %v4093, %v4093
  %v4442 = vmul.f32 %v4096, %v4096
  %v4443 = vmul.f32 %v4101, %v4101
  %v4444 = vmul.f32 %v4104, %v4104
  %v4445 = vmul.f32 %v4109, %v4109
  %v4446 = vmul.f32 %v4112, %v4112
  %v4447 = vmul.f32 %v4117, %v4117
  %v4448 = vmul.f32 %v4120, %v4120
  %v4449 = vmul.f32 %v4125, %v4125
  %v4450 = vmul.f32 %v4128, %v4128
  %v4451 = vmul.f32 %v4133, %v4133
  %v4452 = vmul.f32 %v4136, %v4136
  %v4453 = vmul.f32 %v4141, %v4141
  %v4454 = vmul.f32 %v4144, %v4144
  %v4455 = vmul.f32 %v4149, %v4149
  %v4456 = vmul.f32 %v4152, %v4152
  %v4457 = vmul.f32 %v4157, %v4157
  %v4458 = vmul.f32 %v4160, %v4160
  %v4459 = vmul.f32 %v4165, %v4165
  %v4460 = vmul.f32 %v4168, %v4168
  %v4461 = vmul.f32 %v4173, %v4173
  %v4462 = vmul.f32 %v4176, %v4176
  %v4463 = vmul.f32 %v4181, %v4181
  %v4464 = vmul.f32 %v4184, %v4184
  %v4465 = vmul.f32 %v4189, %v4189
  %v4466 = vmul.f32 %v4192, %v4192
  %v4467 = vmul.f32 %v4197, %v4197
  %v4468 = vmul.f32 %v4200, %v4200
  %v4469 = vmul.f32 %v4205, %v4205
  %v4470 = vmul.f32 %v4208, %v4208
  %v4471 = vmul.f32 %v4213, %v4213
  %v4472 = vmul.f32 %v4216, %v4216
  %v4473 = vmul.f32 %v4221, %v4221
  %v4474 = vmul.f32 %v4224, %v4224
  %v4475 = vmul.f32 %v4229, %v4229
  %v4476 = vmul.f32 %v4232, %v4232
  %v4477 = vmul.f32 %v4237, %v4237
  %v4478 = vmul.f32 %v4240, %v4240
  %v4479 = vmul.f32 %v4245, %v4245
  %v4480 = vmul.f32 %v4248, %v4248
  %v4481 = vmul.f32 %v4253, %v4253
  %v4482 = vmul.f32 %v4256, %v4256
  %v4483 = vmul.f32 %v4261, %v4261
  %v4484 = vmul.f32 %v4264, %v4264
  %v4485 = vmul.f32 %v4269, %v4269
  %v4486 = vmul.f32 %v4272, %v4272
  %v4487 = vmul.f32 %v4277, %v4277
  %v4488 = vmul.f32 %v4280, %v4280
  %v4489 = vmul.f32 %v4285, %v4285
  %v4490 = vmul.f32 %v4288, %v4288
  %v4491 = vsel %vm3458, %v4427, 0.0
  %v4492 = vsel %vm3458, %v4428, 0.0
  %v4493 = vadd.f32 %v4491, %v4492
  %v4494 = vsel %vm3458, %v4429, 0.0
  %v4495 = vadd.f32 %v4493, %v4494
  %v4496 = vsel %vm3458, %v4430, 0.0
  %v4497 = vadd.f32 %v4495, %v4496
  %v4498 = vsel %vm3458, %v4431, 0.0
  %v4499 = vadd.f32 %v4497, %v4498
  %v4500 = vsel %vm3458, %v4432, 0.0
  %v4501 = vadd.f32 %v4499, %v4500
  %v4502 = vsel %vm3458, %v4433, 0.0
  %v4503 = vadd.f32 %v4501, %v4502
  %v4504 = vsel %vm3458, %v4434, 0.0
  %v4505 = vadd.f32 %v4503, %v4504
  %v4506 = vsel %vm3458, %v4435, 0.0
  %v4507 = vadd.f32 %v4505, %v4506
  %v4508 = vsel %vm3458, %v4436, 0.0
  %v4509 = vadd.f32 %v4507, %v4508
  %v4510 = vsel %vm3458, %v4437, 0.0
  %v4511 = vadd.f32 %v4509, %v4510
  %v4512 = vsel %vm3458, %v4438, 0.0
  %v4513 = vadd.f32 %v4511, %v4512
  %v4514 = vsel %vm3458, %v4439, 0.0
  %v4515 = vadd.f32 %v4513, %v4514
  %v4516 = vsel %vm3458, %v4440, 0.0
  %v4517 = vadd.f32 %v4515, %v4516
  %v4518 = vsel %vm3458, %v4441, 0.0
  %v4519 = vadd.f32 %v4517, %v4518
  %v4520 = vsel %vm3458, %v4442, 0.0
  %v4521 = vadd.f32 %v4519, %v4520
  %v4522 = vsel %vm3458, %v4443, 0.0
  %v4523 = vadd.f32 %v4521, %v4522
  %v4524 = vsel %vm3458, %v4444, 0.0
  %v4525 = vadd.f32 %v4523, %v4524
  %v4526 = vsel %vm3458, %v4445, 0.0
  %v4527 = vadd.f32 %v4525, %v4526
  %v4528 = vsel %vm3458, %v4446, 0.0
  %v4529 = vadd.f32 %v4527, %v4528
  %v4530 = vsel %vm3458, %v4447, 0.0
  %v4531 = vadd.f32 %v4529, %v4530
  %v4532 = vsel %vm3458, %v4448, 0.0
  %v4533 = vadd.f32 %v4531, %v4532
  %v4534 = vsel %vm3458, %v4449, 0.0
  %v4535 = vadd.f32 %v4533, %v4534
  %v4536 = vsel %vm3458, %v4450, 0.0
  %v4537 = vadd.f32 %v4535, %v4536
  %v4538 = vsel %vm3458, %v4451, 0.0
  %v4539 = vadd.f32 %v4537, %v4538
  %v4540 = vsel %vm3458, %v4452, 0.0
  %v4541 = vadd.f32 %v4539, %v4540
  %v4542 = vsel %vm3458, %v4453, 0.0
  %v4543 = vadd.f32 %v4541, %v4542
  %v4544 = vsel %vm3458, %v4454, 0.0
  %v4545 = vadd.f32 %v4543, %v4544
  %v4546 = vsel %vm3458, %v4455, 0.0
  %v4547 = vadd.f32 %v4545, %v4546
  %v4548 = vsel %vm3458, %v4456, 0.0
  %v4549 = vadd.f32 %v4547, %v4548
  %v4550 = vsel %vm3458, %v4457, 0.0
  %v4551 = vadd.f32 %v4549, %v4550
  %v4552 = vsel %vm3458, %v4458, 0.0
  %v4553 = vadd.f32 %v4551, %v4552
  %v4554 = vsel %vm3458, %v4459, 0.0
  %v4555 = vadd.f32 %v4553, %v4554
  %v4556 = vsel %vm3458, %v4460, 0.0
  %v4557 = vadd.f32 %v4555, %v4556
  %v4558 = vsel %vm3458, %v4461, 0.0
  %v4559 = vadd.f32 %v4557, %v4558
  %v4560 = vsel %vm3458, %v4462, 0.0
  %v4561 = vadd.f32 %v4559, %v4560
  %v4562 = vsel %vm3458, %v4463, 0.0
  %v4563 = vadd.f32 %v4561, %v4562
  %v4564 = vsel %vm3458, %v4464, 0.0
  %v4565 = vadd.f32 %v4563, %v4564
  %v4566 = vsel %vm3458, %v4465, 0.0
  %v4567 = vadd.f32 %v4565, %v4566
  %v4568 = vsel %vm3458, %v4466, 0.0
  %v4569 = vadd.f32 %v4567, %v4568
  %v4570 = vsel %vm3458, %v4467, 0.0
  %v4571 = vadd.f32 %v4569, %v4570
  %v4572 = vsel %vm3458, %v4468, 0.0
  %v4573 = vadd.f32 %v4571, %v4572
  %v4574 = vsel %vm3458, %v4469, 0.0
  %v4575 = vadd.f32 %v4573, %v4574
  %v4576 = vsel %vm3458, %v4470, 0.0
  %v4577 = vadd.f32 %v4575, %v4576
  %v4578 = vsel %vm3458, %v4471, 0.0
  %v4579 = vadd.f32 %v4577, %v4578
  %v4580 = vsel %vm3458, %v4472, 0.0
  %v4581 = vadd.f32 %v4579, %v4580
  %v4582 = vsel %vm3458, %v4473, 0.0
  %v4583 = vadd.f32 %v4581, %v4582
  %v4584 = vsel %vm3458, %v4474, 0.0
  %v4585 = vadd.f32 %v4583, %v4584
  %v4586 = vsel %vm3458, %v4475, 0.0
  %v4587 = vadd.f32 %v4585, %v4586
  %v4588 = vsel %vm3458, %v4476, 0.0
  %v4589 = vadd.f32 %v4587, %v4588
  %v4590 = vsel %vm3458, %v4477, 0.0
  %v4591 = vadd.f32 %v4589, %v4590
  %v4592 = vsel %vm3458, %v4478, 0.0
  %v4593 = vadd.f32 %v4591, %v4592
  %v4594 = vsel %vm3458, %v4479, 0.0
  %v4595 = vadd.f32 %v4593, %v4594
  %v4596 = vsel %vm3458, %v4480, 0.0
  %v4597 = vadd.f32 %v4595, %v4596
  %v4598 = vsel %vm3458, %v4481, 0.0
  %v4599 = vadd.f32 %v4597, %v4598
  %v4600 = vsel %vm3458, %v4482, 0.0
  %v4601 = vadd.f32 %v4599, %v4600
  %v4602 = vsel %vm3458, %v4483, 0.0
  %v4603 = vadd.f32 %v4601, %v4602
  %v4604 = vsel %vm3458, %v4484, 0.0
  %v4605 = vadd.f32 %v4603, %v4604
  %v4606 = vsel %vm3458, %v4485, 0.0
  %v4607 = vadd.f32 %v4605, %v4606
  %v4608 = vsel %vm3458, %v4486, 0.0
  %v4609 = vadd.f32 %v4607, %v4608
  %v4610 = vsel %vm3458, %v4487, 0.0
  %v4611 = vadd.f32 %v4609, %v4610
  %v4612 = vsel %vm3458, %v4488, 0.0
  %v4613 = vadd.f32 %v4611, %v4612
  %v4614 = vsel %vm3458, %v4489, 0.0
  %v4615 = vadd.f32 %v4613, %v4614
  %v4616 = vsel %vm3458, %v4490, 0.0
  %v4617 = vadd.f32 %v4615, %v4616
  %v4618 = vrot.slane %v4617, 4
  %v4619 = vadd.f32 %v4617, %v4618
  %v4620 = vrot.slane %v4619, 2
  %v4621 = vadd.f32 %v4619, %v4620
  %v4622 = vrot.slane %v4621, 1
  %v4623 = vadd.f32 %v4621, %v4622
  %v4624 = vmul.f32 %v4623, 0.001953125
  %v4625 = vmul.f32 %v4426, %v4426
  %v4626 = vsub.f32 %v4624, %v4625
  %v4627 = vmax.f32 %v4626, 0.0
  %v4628 = vadd.f32 %v4627, 1e-05
  %v4629 = vrsqrt.pop %v4628
  %v4630 = vmul.f32 %v4291, %v4629
  %v4631 = vmul.f32 %v4426, %v4630
  %v4632 = vsub.f32 %v4292, %v4631
  %v4633 = vlaneseq
  %v4634 = vshrl.u32 %v4633, 7
  %v4635 = vsub.s32 0, %v4634
  %v4636 = vrot.slane %v4630, %v4635
  %v4637 = vmul.f32 %v4037, %v4636
  %v4638 = vmul.f32 %v4040, %v4636
  %v4639 = vmul.f32 %v4045, %v4636
  %v4640 = vmul.f32 %v4048, %v4636
  %v4641 = vmul.f32 %v4053, %v4636
  %v4642 = vmul.f32 %v4056, %v4636
  %v4643 = vmul.f32 %v4061, %v4636
  %v4644 = vmul.f32 %v4064, %v4636
  %v4645 = vmul.f32 %v4069, %v4636
  %v4646 = vmul.f32 %v4072, %v4636
  %v4647 = vmul.f32 %v4077, %v4636
  %v4648 = vmul.f32 %v4080, %v4636
  %v4649 = vmul.f32 %v4085, %v4636
  %v4650 = vmul.f32 %v4088, %v4636
  %v4651 = vmul.f32 %v4093, %v4636
  %v4652 = vmul.f32 %v4096, %v4636
  %v4653 = vmul.f32 %v4101, %v4636
  %v4654 = vmul.f32 %v4104, %v4636
  %v4655 = vmul.f32 %v4109, %v4636
  %v4656 = vmul.f32 %v4112, %v4636
  %v4657 = vmul.f32 %v4117, %v4636
  %v4658 = vmul.f32 %v4120, %v4636
  %v4659 = vmul.f32 %v4125, %v4636
  %v4660 = vmul.f32 %v4128, %v4636
  %v4661 = vmul.f32 %v4133, %v4636
  %v4662 = vmul.f32 %v4136, %v4636
  %v4663 = vmul.f32 %v4141, %v4636
  %v4664 = vmul.f32 %v4144, %v4636
  %v4665 = vmul.f32 %v4149, %v4636
  %v4666 = vmul.f32 %v4152, %v4636
  %v4667 = vmul.f32 %v4157, %v4636
  %v4668 = vmul.f32 %v4160, %v4636
  %v4669 = vmul.f32 %v4165, %v4636
  %v4670 = vmul.f32 %v4168, %v4636
  %v4671 = vmul.f32 %v4173, %v4636
  %v4672 = vmul.f32 %v4176, %v4636
  %v4673 = vmul.f32 %v4181, %v4636
  %v4674 = vmul.f32 %v4184, %v4636
  %v4675 = vmul.f32 %v4189, %v4636
  %v4676 = vmul.f32 %v4192, %v4636
  %v4677 = vmul.f32 %v4197, %v4636
  %v4678 = vmul.f32 %v4200, %v4636
  %v4679 = vmul.f32 %v4205, %v4636
  %v4680 = vmul.f32 %v4208, %v4636
  %v4681 = vmul.f32 %v4213, %v4636
  %v4682 = vmul.f32 %v4216, %v4636
  %v4683 = vmul.f32 %v4221, %v4636
  %v4684 = vmul.f32 %v4224, %v4636
  %v4685 = vmul.f32 %v4229, %v4636
  %v4686 = vmul.f32 %v4232, %v4636
  %v4687 = vmul.f32 %v4237, %v4636
  %v4688 = vmul.f32 %v4240, %v4636
  %v4689 = vmul.f32 %v4245, %v4636
  %v4690 = vmul.f32 %v4248, %v4636
  %v4691 = vmul.f32 %v4253, %v4636
  %v4692 = vmul.f32 %v4256, %v4636
  %v4693 = vmul.f32 %v4261, %v4636
  %v4694 = vmul.f32 %v4264, %v4636
  %v4695 = vmul.f32 %v4269, %v4636
  %v4696 = vmul.f32 %v4272, %v4636
  %v4697 = vmul.f32 %v4277, %v4636
  %v4698 = vmul.f32 %v4280, %v4636
  %v4699 = vmul.f32 %v4285, %v4636
  %v4700 = vmul.f32 %v4288, %v4636
  %v4701 = vlaneseq
  %v4702 = vshrl.u32 %v4701, 7
  %v4703 = vsub.s32 0, %v4702
  %v4704 = vrot.slane %v4632, %v4703
  %v4705 = vadd.f32 %v4637, %v4704
  %v4706 = vadd.f32 %v4638, %v4704
  %v4707 = vadd.f32 %v4639, %v4704
  %v4708 = vadd.f32 %v4640, %v4704
  %v4709 = vadd.f32 %v4641, %v4704
  %v4710 = vadd.f32 %v4642, %v4704
  %v4711 = vadd.f32 %v4643, %v4704
  %v4712 = vadd.f32 %v4644, %v4704
  %v4713 = vadd.f32 %v4645, %v4704
  %v4714 = vadd.f32 %v4646, %v4704
  %v4715 = vadd.f32 %v4647, %v4704
  %v4716 = vadd.f32 %v4648, %v4704
  %v4717 = vadd.f32 %v4649, %v4704
  %v4718 = vadd.f32 %v4650, %v4704
  %v4719 = vadd.f32 %v4651, %v4704
  %v4720 = vadd.f32 %v4652, %v4704
  %v4721 = vadd.f32 %v4653, %v4704
  %v4722 = vadd.f32 %v4654, %v4704
  %v4723 = vadd.f32 %v4655, %v4704
  %v4724 = vadd.f32 %v4656, %v4704
  %v4725 = vadd.f32 %v4657, %v4704
  %v4726 = vadd.f32 %v4658, %v4704
  %v4727 = vadd.f32 %v4659, %v4704
  %v4728 = vadd.f32 %v4660, %v4704
  %v4729 = vadd.f32 %v4661, %v4704
  %v4730 = vadd.f32 %v4662, %v4704
  %v4731 = vadd.f32 %v4663, %v4704
  %v4732 = vadd.f32 %v4664, %v4704
  %v4733 = vadd.f32 %v4665, %v4704
  %v4734 = vadd.f32 %v4666, %v4704
  %v4735 = vadd.f32 %v4667, %v4704
  %v4736 = vadd.f32 %v4668, %v4704
  %v4737 = vadd.f32 %v4669, %v4704
  %v4738 = vadd.f32 %v4670, %v4704
  %v4739 = vadd.f32 %v4671, %v4704
  %v4740 = vadd.f32 %v4672, %v4704
  %v4741 = vadd.f32 %v4673, %v4704
  %v4742 = vadd.f32 %v4674, %v4704
  %v4743 = vadd.f32 %v4675, %v4704
  %v4744 = vadd.f32 %v4676, %v4704
  %v4745 = vadd.f32 %v4677, %v4704
  %v4746 = vadd.f32 %v4678, %v4704
  %v4747 = vadd.f32 %v4679, %v4704
  %v4748 = vadd.f32 %v4680, %v4704
  %v4749 = vadd.f32 %v4681, %v4704
  %v4750 = vadd.f32 %v4682, %v4704
  %v4751 = vadd.f32 %v4683, %v4704
  %v4752 = vadd.f32 %v4684, %v4704
  %v4753 = vadd.f32 %v4685, %v4704
  %v4754 = vadd.f32 %v4686, %v4704
  %v4755 = vadd.f32 %v4687, %v4704
  %v4756 = vadd.f32 %v4688, %v4704
  %v4757 = vadd.f32 %v4689, %v4704
  %v4758 = vadd.f32 %v4690, %v4704
  %v4759 = vadd.f32 %v4691, %v4704
  %v4760 = vadd.f32 %v4692, %v4704
  %v4761 = vadd.f32 %v4693, %v4704
  %v4762 = vadd.f32 %v4694, %v4704
  %v4763 = vadd.f32 %v4695, %v4704
  %v4764 = vadd.f32 %v4696, %v4704
  %v4765 = vadd.f32 %v4697, %v4704
  %v4766 = vadd.f32 %v4698, %v4704
  %v4767 = vadd.f32 %v4699, %v4704
  %v4768 = vadd.f32 %v4700, %v4704
  %v4769 = vmax.f32 %v4705, 0.0
  %v4770 = vmax.f32 %v4706, 0.0
  %v4771 = vmax.f32 %v4707, 0.0
  %v4772 = vmax.f32 %v4708, 0.0
  %v4773 = vmax.f32 %v4709, 0.0
  %v4774 = vmax.f32 %v4710, 0.0
  %v4775 = vmax.f32 %v4711, 0.0
  %v4776 = vmax.f32 %v4712, 0.0
  %v4777 = vmax.f32 %v4713, 0.0
  %v4778 = vmax.f32 %v4714, 0.0
  %v4779 = vmax.f32 %v4715, 0.0
  %v4780 = vmax.f32 %v4716, 0.0
  %v4781 = vmax.f32 %v4717, 0.0
  %v4782 = vmax.f32 %v4718, 0.0
  %v4783 = vmax.f32 %v4719, 0.0
  %v4784 = vmax.f32 %v4720, 0.0
  %v4785 = vmax.f32 %v4721, 0.0
  %v4786 = vmax.f32 %v4722, 0.0
  %v4787 = vmax.f32 %v4723, 0.0
  %v4788 = vmax.f32 %v4724, 0.0
  %v4789 = vmax.f32 %v4725, 0.0
  %v4790 = vmax.f32 %v4726, 0.0
  %v4791 = vmax.f32 %v4727, 0.0
  %v4792 = vmax.f32 %v4728, 0.0
  %v4793 = vmax.f32 %v4729, 0.0
  %v4794 = vmax.f32 %v4730, 0.0
  %v4795 = vmax.f32 %v4731, 0.0
  %v4796 = vmax.f32 %v4732, 0.0
  %v4797 = vmax.f32 %v4733, 0.0
  %v4798 = vmax.f32 %v4734, 0.0
  %v4799 = vmax.f32 %v4735, 0.0
  %v4800 = vmax.f32 %v4736, 0.0
  %v4801 = vmax.f32 %v4737, 0.0
  %v4802 = vmax.f32 %v4738, 0.0
  %v4803 = vmax.f32 %v4739, 0.0
  %v4804 = vmax.f32 %v4740, 0.0
  %v4805 = vmax.f32 %v4741, 0.0
  %v4806 = vmax.f32 %v4742, 0.0
  %v4807 = vmax.f32 %v4743, 0.0
  %v4808 = vmax.f32 %v4744, 0.0
  %v4809 = vmax.f32 %v4745, 0.0
  %v4810 = vmax.f32 %v4746, 0.0
  %v4811 = vmax.f32 %v4747, 0.0
  %v4812 = vmax.f32 %v4748, 0.0
  %v4813 = vmax.f32 %v4749, 0.0
  %v4814 = vmax.f32 %v4750, 0.0
  %v4815 = vmax.f32 %v4751, 0.0
  %v4816 = vmax.f32 %v4752, 0.0
  %v4817 = vmax.f32 %v4753, 0.0
  %v4818 = vmax.f32 %v4754, 0.0
  %v4819 = vmax.f32 %v4755, 0.0
  %v4820 = vmax.f32 %v4756, 0.0
  %v4821 = vmax.f32 %v4757, 0.0
  %v4822 = vmax.f32 %v4758, 0.0
  %v4823 = vmax.f32 %v4759, 0.0
  %v4824 = vmax.f32 %v4760, 0.0
  %v4825 = vmax.f32 %v4761, 0.0
  %v4826 = vmax.f32 %v4762, 0.0
  %v4827 = vmax.f32 %v4763, 0.0
  %v4828 = vmax.f32 %v4764, 0.0
  %v4829 = vmax.f32 %v4765, 0.0
  %v4830 = vmax.f32 %v4766, 0.0
  %v4831 = vmax.f32 %v4767, 0.0
  %v4832 = vmax.f32 %v4768, 0.0
  %v4833 = vpack.c.bf16 %v4770, %v4769
  %v4834 = vpack.c.bf16 %v4772, %v4771
  %v4835 = vpack.c.bf16 %v4774, %v4773
  %v4836 = vpack.c.bf16 %v4776, %v4775
  %v4837 = vpack.c.bf16 %v4778, %v4777
  %v4838 = vpack.c.bf16 %v4780, %v4779
  %v4839 = vpack.c.bf16 %v4782, %v4781
  %v4840 = vpack.c.bf16 %v4784, %v4783
  %v4841 = vpack.c.bf16 %v4786, %v4785
  %v4842 = vpack.c.bf16 %v4788, %v4787
  %v4843 = vpack.c.bf16 %v4790, %v4789
  %v4844 = vpack.c.bf16 %v4792, %v4791
  %v4845 = vpack.c.bf16 %v4794, %v4793
  %v4846 = vpack.c.bf16 %v4796, %v4795
  %v4847 = vpack.c.bf16 %v4798, %v4797
  %v4848 = vpack.c.bf16 %v4800, %v4799
  %v4849 = vpack.c.bf16 %v4802, %v4801
  %v4850 = vpack.c.bf16 %v4804, %v4803
  %v4851 = vpack.c.bf16 %v4806, %v4805
  %v4852 = vpack.c.bf16 %v4808, %v4807
  %v4853 = vpack.c.bf16 %v4810, %v4809
  %v4854 = vpack.c.bf16 %v4812, %v4811
  %v4855 = vpack.c.bf16 %v4814, %v4813
  %v4856 = vpack.c.bf16 %v4816, %v4815
  %v4857 = vpack.c.bf16 %v4818, %v4817
  %v4858 = vpack.c.bf16 %v4820, %v4819
  %v4859 = vpack.c.bf16 %v4822, %v4821
  %v4860 = vpack.c.bf16 %v4824, %v4823
  %v4861 = vpack.c.bf16 %v4826, %v4825
  %v4862 = vpack.c.bf16 %v4828, %v4827
  %v4863 = vpack.c.bf16 %v4830, %v4829
  %v4864 = vpack.c.bf16 %v4832, %v4831
  %vm4865 = vcmask 60416
  %4866 = vst.msk [vmem:[#allocation3] sm:$0xf] %vm4865, 0
  %4867 = vst.msk [vmem:[#allocation3 + $0x4] sm:$0xf] %vm4865, 0
  %vm4868 = vcmask 57344
  %4869 = vst.msk [vmem:[#allocation3 + $0x8] sm:$0x1] %vm4868, 0
  %4870 = vst.msk [vmem:[#allocation3 + $0xd8] sm:$0xf] %vm4865, 0
  %4871 = vst.msk [vmem:[#allocation3 + $0xdc] sm:$0xf] %vm4865, 0
  %4872 = vst.msk [vmem:[#allocation3 + $0xe0] sm:$0x1] %vm4868, 0
  %s4873 = scalar_lea.vmem [#allocation3], 204
  %4874 = vst.msk [vmem:[%s4873] sm:$0xf] %vm4865, 0
  %4875 = vst.msk [vmem:[%s4873 + $0x4] sm:$0xf] %vm4865, 0
  %4876 = vst.msk [vmem:[%s4873 + $0x8] sm:$0x1] %vm4868, 0
  %4877 = vst.msk [vmem:[%s4873 + $0xd8] sm:$0xf] %vm4865, 0
  %4878 = vst.msk [vmem:[%s4873 + $0xdc] sm:$0xf] %vm4865, 0
  %4879 = vst.msk [vmem:[%s4873 + $0xe0] sm:$0x1] %vm4868, 0
  %vm4880 = vcmask 57344
  %vm4881 = vmand %vm4880, %vm34
  %v4882 = vld [vmem:[#allocation3] sm:$0x1]
  %v4883 = vsel %vm4881, 0, %v4882
  %4884 = vst [vmem:[#allocation3] sm:$0x1] %v4883
  %v4885 = vld [vmem:[#allocation3 + $0xc] sm:$0x1]
  %v4886 = vsel %vm4881, 0, %v4885
  %4887 = vst [vmem:[#allocation3 + $0xc] sm:$0x1] %v4886
  %v4888 = vld [vmem:[#allocation3 + $0x18] sm:$0x1]
  %v4889 = vsel %vm4881, 0, %v4888
  %4890 = vst [vmem:[#allocation3 + $0x18] sm:$0x1] %v4889
  %v4891 = vld [vmem:[#allocation3 + $0x24] sm:$0x1]
  %v4892 = vsel %vm4881, 0, %v4891
  %4893 = vst [vmem:[#allocation3 + $0x24] sm:$0x1] %v4892
  %v4894 = vld [vmem:[#allocation3 + $0x30] sm:$0x1]
  %v4895 = vsel %vm4881, 0, %v4894
  %4896 = vst [vmem:[#allocation3 + $0x30] sm:$0x1] %v4895
  %v4897 = vld [vmem:[#allocation3 + $0x3c] sm:$0x1]
  %v4898 = vsel %vm4881, 0, %v4897
  %4899 = vst [vmem:[#allocation3 + $0x3c] sm:$0x1] %v4898
  %v4900 = vld [vmem:[#allocation3 + $0x48] sm:$0x1]
  %v4901 = vsel %vm4881, 0, %v4900
  %4902 = vst [vmem:[#allocation3 + $0x48] sm:$0x1] %v4901
  %v4903 = vld [vmem:[#allocation3 + $0x54] sm:$0x1]
  %v4904 = vsel %vm4881, 0, %v4903
  %4905 = vst [vmem:[#allocation3 + $0x54] sm:$0x1] %v4904
  %v4906 = vld [vmem:[#allocation3 + $0x60] sm:$0x1]
  %v4907 = vsel %vm4881, 0, %v4906
  %4908 = vst [vmem:[#allocation3 + $0x60] sm:$0x1] %v4907
  %v4909 = vld [vmem:[#allocation3 + $0x6c] sm:$0x1]
  %v4910 = vsel %vm4881, 0, %v4909
  %4911 = vst [vmem:[#allocation3 + $0x6c] sm:$0x1] %v4910
  %v4912 = vld [vmem:[#allocation3 + $0x78] sm:$0x1]
  %v4913 = vsel %vm4881, 0, %v4912
  %4914 = vst [vmem:[#allocation3 + $0x78] sm:$0x1] %v4913
  %v4915 = vld [vmem:[#allocation3 + $0x84] sm:$0x1]
  %v4916 = vsel %vm4881, 0, %v4915
  %4917 = vst [vmem:[#allocation3 + $0x84] sm:$0x1] %v4916
  %v4918 = vld [vmem:[#allocation3 + $0x90] sm:$0x1]
  %v4919 = vsel %vm4881, 0, %v4918
  %4920 = vst [vmem:[#allocation3 + $0x90] sm:$0x1] %v4919
  %v4921 = vld [vmem:[#allocation3 + $0x9c] sm:$0x1]
  %v4922 = vsel %vm4881, 0, %v4921
  %4923 = vst [vmem:[#allocation3 + $0x9c] sm:$0x1] %v4922
  %v4924 = vld [vmem:[#allocation3 + $0xa8] sm:$0x1]
  %v4925 = vsel %vm4881, 0, %v4924
  %4926 = vst [vmem:[#allocation3 + $0xa8] sm:$0x1] %v4925
  %v4927 = vld [vmem:[#allocation3 + $0xb4] sm:$0x1]
  %v4928 = vsel %vm4881, 0, %v4927
  %4929 = vst [vmem:[#allocation3 + $0xb4] sm:$0x1] %v4928
  %v4930 = vld [vmem:[#allocation3 + $0xc0] sm:$0x1]
  %v4931 = vsel %vm4881, 0, %v4930
  %4932 = vst [vmem:[#allocation3 + $0xc0] sm:$0x1] %v4931
  %v4933 = vld [vmem:[#allocation3 + $0xcc] sm:$0x1]
  %v4934 = vsel %vm4881, 0, %v4933
  %4935 = vst [vmem:[#allocation3 + $0xcc] sm:$0x1] %v4934
  %v4936 = vld [vmem:[#allocation3 + $0xd8] sm:$0x1]
  %v4937 = vsel %vm4881, 0, %v4936
  %4938 = vst [vmem:[#allocation3 + $0xd8] sm:$0x1] %v4937
  %v4939 = vld [vmem:[#allocation3 + $0xe4] sm:$0x1]
  %v4940 = vsel %vm4881, 0, %v4939
  %4941 = vst [vmem:[#allocation3 + $0xe4] sm:$0x1] %v4940
  %v4942 = vld [vmem:[#allocation3 + $0xf0] sm:$0x1]
  %v4943 = vsel %vm4881, 0, %v4942
  %4944 = vst [vmem:[#allocation3 + $0xf0] sm:$0x1] %v4943
  %v4945 = vld [vmem:[#allocation3 + $0xfc] sm:$0x1]
  %v4946 = vsel %vm4881, 0, %v4945
  %4947 = vst [vmem:[#allocation3 + $0xfc] sm:$0x1] %v4946
  %v4948 = vld [vmem:[#allocation3 + $0x108] sm:$0x1]
  %v4949 = vsel %vm4881, 0, %v4948
  %4950 = vst [vmem:[#allocation3 + $0x108] sm:$0x1] %v4949
  %v4951 = vld [vmem:[#allocation3 + $0x114] sm:$0x1]
  %v4952 = vsel %vm4881, 0, %v4951
  %4953 = vst [vmem:[#allocation3 + $0x114] sm:$0x1] %v4952
  %v4954 = vld [vmem:[#allocation3 + $0x120] sm:$0x1]
  %v4955 = vsel %vm4881, 0, %v4954
  %4956 = vst [vmem:[#allocation3 + $0x120] sm:$0x1] %v4955
  %v4957 = vld [vmem:[#allocation3 + $0x12c] sm:$0x1]
  %v4958 = vsel %vm4881, 0, %v4957
  %4959 = vst [vmem:[#allocation3 + $0x12c] sm:$0x1] %v4958
  %v4960 = vld [vmem:[#allocation3 + $0x138] sm:$0x1]
  %v4961 = vsel %vm4881, 0, %v4960
  %4962 = vst [vmem:[#allocation3 + $0x138] sm:$0x1] %v4961
  %v4963 = vld [vmem:[#allocation3 + $0x144] sm:$0x1]
  %v4964 = vsel %vm4881, 0, %v4963
  %4965 = vst [vmem:[#allocation3 + $0x144] sm:$0x1] %v4964
  %v4966 = vld [vmem:[#allocation3 + $0x150] sm:$0x1]
  %v4967 = vsel %vm4881, 0, %v4966
  %4968 = vst [vmem:[#allocation3 + $0x150] sm:$0x1] %v4967
  %v4969 = vld [vmem:[#allocation3 + $0x15c] sm:$0x1]
  %v4970 = vsel %vm4881, 0, %v4969
  %4971 = vst [vmem:[#allocation3 + $0x15c] sm:$0x1] %v4970
  %v4972 = vld [vmem:[#allocation3 + $0x168] sm:$0x1]
  %v4973 = vsel %vm4881, 0, %v4972
  %4974 = vst [vmem:[#allocation3 + $0x168] sm:$0x1] %v4973
  %v4975 = vld [vmem:[#allocation3 + $0x174] sm:$0x1]
  %v4976 = vsel %vm4881, 0, %v4975
  %4977 = vst [vmem:[#allocation3 + $0x174] sm:$0x1] %v4976
  %v4978 = vld [vmem:[#allocation3 + $0x180] sm:$0x1]
  %v4979 = vsel %vm4881, 0, %v4978
  %4980 = vst [vmem:[#allocation3 + $0x180] sm:$0x1] %v4979
  %v4981 = vld [vmem:[#allocation3 + $0x18c] sm:$0x1]
  %v4982 = vsel %vm4881, 0, %v4981
  %4983 = vst [vmem:[#allocation3 + $0x18c] sm:$0x1] %v4982
  %v4984 = vld [vmem:[#allocation3 + $0x198] sm:$0x1]
  %v4985 = vsel %vm4881, 0, %v4984
  %4986 = vst [vmem:[#allocation3 + $0x198] sm:$0x1] %v4985
  %v4987 = vld [vmem:[#allocation3 + $0x1a4] sm:$0x1]
  %v4988 = vsel %vm4881, 0, %v4987
  %4989 = vst [vmem:[#allocation3 + $0x1a4] sm:$0x1] %v4988
  %vm4990 = vmand %vm4880, %vm144
  %v4991 = vld [vmem:[#allocation3 + $0x8] sm:$0x1]
  %v4992 = vsel %vm4990, 0, %v4991
  %4993 = vst [vmem:[#allocation3 + $0x8] sm:$0x1] %v4992
  %v4994 = vld [vmem:[#allocation3 + $0x14] sm:$0x1]
  %v4995 = vsel %vm4990, 0, %v4994
  %4996 = vst [vmem:[#allocation3 + $0x14] sm:$0x1] %v4995
  %v4997 = vld [vmem:[#allocation3 + $0x20] sm:$0x1]
  %v4998 = vsel %vm4990, 0, %v4997
  %4999 = vst [vmem:[#allocation3 + $0x20] sm:$0x1] %v4998
  %v5000 = vld [vmem:[#allocation3 + $0x2c] sm:$0x1]
  %v5001 = vsel %vm4990, 0, %v5000
  %5002 = vst [vmem:[#allocation3 + $0x2c] sm:$0x1] %v5001
  %v5003 = vld [vmem:[#allocation3 + $0x38] sm:$0x1]
  %v5004 = vsel %vm4990, 0, %v5003
  %5005 = vst [vmem:[#allocation3 + $0x38] sm:$0x1] %v5004
  %v5006 = vld [vmem:[#allocation3 + $0x44] sm:$0x1]
  %v5007 = vsel %vm4990, 0, %v5006
  %5008 = vst [vmem:[#allocation3 + $0x44] sm:$0x1] %v5007
  %v5009 = vld [vmem:[#allocation3 + $0x50] sm:$0x1]
  %v5010 = vsel %vm4990, 0, %v5009
  %5011 = vst [vmem:[#allocation3 + $0x50] sm:$0x1] %v5010
  %v5012 = vld [vmem:[#allocation3 + $0x5c] sm:$0x1]
  %v5013 = vsel %vm4990, 0, %v5012
  %5014 = vst [vmem:[#allocation3 + $0x5c] sm:$0x1] %v5013
  %v5015 = vld [vmem:[#allocation3 + $0x68] sm:$0x1]
  %v5016 = vsel %vm4990, 0, %v5015
  %5017 = vst [vmem:[#allocation3 + $0x68] sm:$0x1] %v5016
  %v5018 = vld [vmem:[#allocation3 + $0x74] sm:$0x1]
  %v5019 = vsel %vm4990, 0, %v5018
  %5020 = vst [vmem:[#allocation3 + $0x74] sm:$0x1] %v5019
  %v5021 = vld [vmem:[#allocation3 + $0x80] sm:$0x1]
  %v5022 = vsel %vm4990, 0, %v5021
  %5023 = vst [vmem:[#allocation3 + $0x80] sm:$0x1] %v5022
  %v5024 = vld [vmem:[#allocation3 + $0x8c] sm:$0x1]
  %v5025 = vsel %vm4990, 0, %v5024
  %5026 = vst [vmem:[#allocation3 + $0x8c] sm:$0x1] %v5025
  %v5027 = vld [vmem:[#allocation3 + $0x98] sm:$0x1]
  %v5028 = vsel %vm4990, 0, %v5027
  %5029 = vst [vmem:[#allocation3 + $0x98] sm:$0x1] %v5028
  %v5030 = vld [vmem:[#allocation3 + $0xa4] sm:$0x1]
  %v5031 = vsel %vm4990, 0, %v5030
  %5032 = vst [vmem:[#allocation3 + $0xa4] sm:$0x1] %v5031
  %v5033 = vld [vmem:[#allocation3 + $0xb0] sm:$0x1]
  %v5034 = vsel %vm4990, 0, %v5033
  %5035 = vst [vmem:[#allocation3 + $0xb0] sm:$0x1] %v5034
  %v5036 = vld [vmem:[#allocation3 + $0xbc] sm:$0x1]
  %v5037 = vsel %vm4990, 0, %v5036
  %5038 = vst [vmem:[#allocation3 + $0xbc] sm:$0x1] %v5037
  %v5039 = vld [vmem:[#allocation3 + $0xc8] sm:$0x1]
  %v5040 = vsel %vm4990, 0, %v5039
  %5041 = vst [vmem:[#allocation3 + $0xc8] sm:$0x1] %v5040
  %v5042 = vld [vmem:[#allocation3 + $0xd4] sm:$0x1]
  %v5043 = vsel %vm4990, 0, %v5042
  %5044 = vst [vmem:[#allocation3 + $0xd4] sm:$0x1] %v5043
  %v5045 = vld [vmem:[#allocation3 + $0xe0] sm:$0x1]
  %v5046 = vsel %vm4990, 0, %v5045
  %5047 = vst [vmem:[#allocation3 + $0xe0] sm:$0x1] %v5046
  %v5048 = vld [vmem:[#allocation3 + $0xec] sm:$0x1]
  %v5049 = vsel %vm4990, 0, %v5048
  %5050 = vst [vmem:[#allocation3 + $0xec] sm:$0x1] %v5049
  %v5051 = vld [vmem:[#allocation3 + $0xf8] sm:$0x1]
  %v5052 = vsel %vm4990, 0, %v5051
  %5053 = vst [vmem:[#allocation3 + $0xf8] sm:$0x1] %v5052
  %v5054 = vld [vmem:[#allocation3 + $0x104] sm:$0x1]
  %v5055 = vsel %vm4990, 0, %v5054
  %5056 = vst [vmem:[#allocation3 + $0x104] sm:$0x1] %v5055
  %v5057 = vld [vmem:[#allocation3 + $0x110] sm:$0x1]
  %v5058 = vsel %vm4990, 0, %v5057
  %5059 = vst [vmem:[#allocation3 + $0x110] sm:$0x1] %v5058
  %v5060 = vld [vmem:[#allocation3 + $0x11c] sm:$0x1]
  %v5061 = vsel %vm4990, 0, %v5060
  %5062 = vst [vmem:[#allocation3 + $0x11c] sm:$0x1] %v5061
  %v5063 = vld [vmem:[#allocation3 + $0x128] sm:$0x1]
  %v5064 = vsel %vm4990, 0, %v5063
  %5065 = vst [vmem:[#allocation3 + $0x128] sm:$0x1] %v5064
  %v5066 = vld [vmem:[#allocation3 + $0x134] sm:$0x1]
  %v5067 = vsel %vm4990, 0, %v5066
  %5068 = vst [vmem:[#allocation3 + $0x134] sm:$0x1] %v5067
  %v5069 = vld [vmem:[#allocation3 + $0x140] sm:$0x1]
  %v5070 = vsel %vm4990, 0, %v5069
  %5071 = vst [vmem:[#allocation3 + $0x140] sm:$0x1] %v5070
  %v5072 = vld [vmem:[#allocation3 + $0x14c] sm:$0x1]
  %v5073 = vsel %vm4990, 0, %v5072
  %5074 = vst [vmem:[#allocation3 + $0x14c] sm:$0x1] %v5073
  %v5075 = vld [vmem:[#allocation3 + $0x158] sm:$0x1]
  %v5076 = vsel %vm4990, 0, %v5075
  %5077 = vst [vmem:[#allocation3 + $0x158] sm:$0x1] %v5076
  %v5078 = vld [vmem:[#allocation3 + $0x164] sm:$0x1]
  %v5079 = vsel %vm4990, 0, %v5078
  %5080 = vst [vmem:[#allocation3 + $0x164] sm:$0x1] %v5079
  %v5081 = vld [vmem:[#allocation3 + $0x170] sm:$0x1]
  %v5082 = vsel %vm4990, 0, %v5081
  %5083 = vst [vmem:[#allocation3 + $0x170] sm:$0x1] %v5082
  %v5084 = vld [vmem:[#allocation3 + $0x17c] sm:$0x1]
  %v5085 = vsel %vm4990, 0, %v5084
  %5086 = vst [vmem:[#allocation3 + $0x17c] sm:$0x1] %v5085
  %v5087 = vld [vmem:[#allocation3 + $0x188] sm:$0x1]
  %v5088 = vsel %vm4990, 0, %v5087
  %5089 = vst [vmem:[#allocation3 + $0x188] sm:$0x1] %v5088
  %v5090 = vld [vmem:[#allocation3 + $0x194] sm:$0x1]
  %v5091 = vsel %vm4990, 0, %v5090
  %5092 = vst [vmem:[#allocation3 + $0x194] sm:$0x1] %v5091
  %v5093 = vld [vmem:[#allocation3 + $0x1a0] sm:$0x1]
  %v5094 = vsel %vm4990, 0, %v5093
  %5095 = vst [vmem:[#allocation3 + $0x1a0] sm:$0x1] %v5094
  %v5096 = vld [vmem:[#allocation3 + $0x1ac] sm:$0x1]
  %v5097 = vsel %vm4990, 0, %v5096
  %5098 = vst [vmem:[#allocation3 + $0x1ac] sm:$0x1] %v5097
  %v5131 = vunpack.c.l.b16 %v4833
  %v5132 = vunpack.c.h.b16 %v4833
  %v5133 = vunpack.c.l.b16 %v4834
  %v5134 = vunpack.c.h.b16 %v4834
  %v5135 = vunpack.c.l.b16 %v4835
  %v5136 = vunpack.c.h.b16 %v4835
  %v5137 = vunpack.c.l.b16 %v4836
  %v5138 = vunpack.c.h.b16 %v4836
  %v5139 = vunpack.c.l.b16 %v4837
  %v5140 = vunpack.c.h.b16 %v4837
  %v5141 = vunpack.c.l.b16 %v4838
  %v5142 = vunpack.c.h.b16 %v4838
  %v5143 = vunpack.c.l.b16 %v4839
  %v5144 = vunpack.c.h.b16 %v4839
  %v5145 = vunpack.c.l.b16 %v4840
  %v5146 = vunpack.c.h.b16 %v4840
  %v5147 = vunpack.c.l.b16 %v4841
  %v5148 = vunpack.c.h.b16 %v4841
  %v5149 = vunpack.c.l.b16 %v4842
  %v5150 = vunpack.c.h.b16 %v4842
  %v5151 = vunpack.c.l.b16 %v4843
  %v5152 = vunpack.c.h.b16 %v4843
  %v5153 = vunpack.c.l.b16 %v4844
  %v5154 = vunpack.c.h.b16 %v4844
  %v5155 = vunpack.c.l.b16 %v4845
  %v5156 = vunpack.c.h.b16 %v4845
  %v5157 = vunpack.c.l.b16 %v4846
  %v5158 = vunpack.c.h.b16 %v4846
  %v5159 = vunpack.c.l.b16 %v4847
  %v5160 = vunpack.c.h.b16 %v4847
  %v5161 = vunpack.c.l.b16 %v4848
  %v5162 = vunpack.c.h.b16 %v4848
  %v5163 = vunpack.c.l.b16 %v4849
  %v5164 = vunpack.c.h.b16 %v4849
  %v5165 = vunpack.c.l.b16 %v4850
  %v5166 = vunpack.c.h.b16 %v4850
  %v5167 = vunpack.c.l.b16 %v4851
  %v5168 = vunpack.c.h.b16 %v4851
  %v5169 = vunpack.c.l.b16 %v4852
  %v5170 = vunpack.c.h.b16 %v4852
  %v5171 = vunpack.c.l.b16 %v4853
  %v5172 = vunpack.c.h.b16 %v4853
  %v5173 = vunpack.c.l.b16 %v4854
  %v5174 = vunpack.c.h.b16 %v4854
  %v5175 = vunpack.c.l.b16 %v4855
  %v5176 = vunpack.c.h.b16 %v4855
  %v5177 = vunpack.c.l.b16 %v4856
  %v5178 = vunpack.c.h.b16 %v4856
  %v5179 = vunpack.c.l.b16 %v4857
  %v5180 = vunpack.c.h.b16 %v4857
  %v5181 = vunpack.c.l.b16 %v4858
  %v5182 = vunpack.c.h.b16 %v4858
  %v5183 = vunpack.c.l.b16 %v4859
  %v5184 = vunpack.c.h.b16 %v4859
  %v5185 = vunpack.c.l.b16 %v4860
  %v5186 = vunpack.c.h.b16 %v4860
  %v5187 = vunpack.c.l.b16 %v4861
  %v5188 = vunpack.c.h.b16 %v4861
  %v5189 = vunpack.c.l.b16 %v4862
  %v5190 = vunpack.c.h.b16 %v4862
  %v5191 = vunpack.c.l.b16 %v4863
  %v5192 = vunpack.c.h.b16 %v4863
  %v5193 = vunpack.c.l.b16 %v4864
  %v5194 = vunpack.c.h.b16 %v4864
  %v5195 = vpack.c.b16 %v5131, %v5131
  %v5196 = vpack.c.b16 %v5132, %v5132
  %v5197 = vpack.c.b16 %v5133, %v5133
  %v5198 = vpack.c.b16 %v5134, %v5134
  %v5199 = vpack.c.b16 %v5135, %v5135
  %v5200 = vpack.c.b16 %v5136, %v5136
  %v5201 = vpack.c.b16 %v5137, %v5137
  %v5202 = vpack.c.b16 %v5138, %v5138
  %v5203 = vpack.c.b16 %v5139, %v5139
  %v5204 = vpack.c.b16 %v5140, %v5140
  %v5205 = vpack.c.b16 %v5141, %v5141
  %v5206 = vpack.c.b16 %v5142, %v5142
  %v5207 = vpack.c.b16 %v5143, %v5143
  %v5208 = vpack.c.b16 %v5144, %v5144
  %v5209 = vpack.c.b16 %v5145, %v5145
  %v5210 = vpack.c.b16 %v5146, %v5146
  %v5211 = vpack.c.b16 %v5147, %v5147
  %v5212 = vpack.c.b16 %v5148, %v5148
  %v5213 = vpack.c.b16 %v5149, %v5149
  %v5214 = vpack.c.b16 %v5150, %v5150
  %v5215 = vpack.c.b16 %v5151, %v5151
  %v5216 = vpack.c.b16 %v5152, %v5152
  %v5217 = vpack.c.b16 %v5153, %v5153
  %v5218 = vpack.c.b16 %v5154, %v5154
  %v5219 = vpack.c.b16 %v5155, %v5155
  %v5220 = vpack.c.b16 %v5156, %v5156
  %v5221 = vpack.c.b16 %v5157, %v5157
  %v5222 = vpack.c.b16 %v5158, %v5158
  %v5223 = vpack.c.b16 %v5159, %v5159
  %v5224 = vpack.c.b16 %v5160, %v5160
  %v5225 = vpack.c.b16 %v5161, %v5161
  %v5226 = vpack.c.b16 %v5162, %v5162
  %v5227 = vpack.c.b16 %v5163, %v5163
  %v5228 = vpack.c.b16 %v5164, %v5164
  %v5229 = vpack.c.b16 %v5165, %v5165
  %v5230 = vpack.c.b16 %v5166, %v5166
  %v5231 = vpack.c.b16 %v5167, %v5167
  %v5232 = vpack.c.b16 %v5168, %v5168
  %v5233 = vpack.c.b16 %v5169, %v5169
  %v5234 = vpack.c.b16 %v5170, %v5170
  %v5235 = vpack.c.b16 %v5171, %v5171
  %v5236 = vpack.c.b16 %v5172, %v5172
  %v5237 = vpack.c.b16 %v5173, %v5173
  %v5238 = vpack.c.b16 %v5174, %v5174
  %v5239 = vpack.c.b16 %v5175, %v5175
  %v5240 = vpack.c.b16 %v5176, %v5176
  %v5241 = vpack.c.b16 %v5177, %v5177
  %v5242 = vpack.c.b16 %v5178, %v5178
  %v5243 = vpack.c.b16 %v5179, %v5179
  %v5244 = vpack.c.b16 %v5180, %v5180
  %v5245 = vpack.c.b16 %v5181, %v5181
  %v5246 = vpack.c.b16 %v5182, %v5182
  %v5247 = vpack.c.b16 %v5183, %v5183
  %v5248 = vpack.c.b16 %v5184, %v5184
  %v5249 = vpack.c.b16 %v5185, %v5185
  %v5250 = vpack.c.b16 %v5186, %v5186
  %v5251 = vpack.c.b16 %v5187, %v5187
  %v5252 = vpack.c.b16 %v5188, %v5188
  %v5253 = vpack.c.b16 %v5189, %v5189
  %v5254 = vpack.c.b16 %v5190, %v5190
  %v5255 = vpack.c.b16 %v5191, %v5191
  %v5256 = vpack.c.b16 %v5192, %v5192
  %v5257 = vpack.c.b16 %v5193, %v5193
  %v5258 = vpack.c.b16 %v5194, %v5194
  %v5260 = vshrl.u32 %v5195, 16
  %v5262 = vrot.slane %v5260, 7
  %v5263 = vshll.u32 %v5195, 16
  %v5265 = vor.u32 %v5262, %v5263
  %v5266 = vrot.slane %v5262, 4
  %v5268 = vshrl.u32 %v5196, 16
  %v5270 = vrot.slane %v5268, 7
  %v5271 = vshll.u32 %v5196, 16
  %v5273 = vor.u32 %v5270, %v5271
  %v5274 = vsel %vm319, %v5266, %v5273
  %v5275 = vrot.slane %v5270, 4
  %v5277 = vshrl.u32 %v5197, 16
  %v5279 = vrot.slane %v5277, 7
  %v5280 = vshll.u32 %v5197, 16
  %v5282 = vor.u32 %v5279, %v5280
  %v5283 = vrot.slane %v5279, 4
  %v5285 = vshrl.u32 %v5198, 16
  %v5287 = vrot.slane %v5285, 7
  %v5288 = vshll.u32 %v5198, 16
  %v5290 = vor.u32 %v5287, %v5288
  %v5291 = vsel %vm319, %v5283, %v5290
  %v5292 = vrot.slane %v5287, 4
  %v5294 = vshrl.u32 %v5199, 16
  %v5296 = vrot.slane %v5294, 7
  %v5297 = vshll.u32 %v5199, 16
  %v5299 = vor.u32 %v5296, %v5297
  %v5300 = vrot.slane %v5296, 4
  %v5302 = vshrl.u32 %v5200, 16
  %v5304 = vrot.slane %v5302, 7
  %v5305 = vshll.u32 %v5200, 16
  %v5307 = vor.u32 %v5304, %v5305
  %v5308 = vsel %vm319, %v5300, %v5307
  %v5309 = vrot.slane %v5304, 4
  %v5311 = vshrl.u32 %v5201, 16
  %v5313 = vrot.slane %v5311, 7
  %v5314 = vshll.u32 %v5201, 16
  %v5316 = vor.u32 %v5313, %v5314
  %v5317 = vrot.slane %v5313, 4
  %v5319 = vshrl.u32 %v5202, 16
  %v5321 = vrot.slane %v5319, 7
  %v5322 = vshll.u32 %v5202, 16
  %v5324 = vor.u32 %v5321, %v5322
  %v5325 = vsel %vm319, %v5317, %v5324
  %v5326 = vrot.slane %v5321, 4
  %v5328 = vshrl.u32 %v5203, 16
  %v5330 = vrot.slane %v5328, 7
  %v5331 = vshll.u32 %v5203, 16
  %v5333 = vor.u32 %v5330, %v5331
  %v5334 = vrot.slane %v5330, 4
  %v5336 = vshrl.u32 %v5204, 16
  %v5338 = vrot.slane %v5336, 7
  %v5339 = vshll.u32 %v5204, 16
  %v5341 = vor.u32 %v5338, %v5339
  %v5342 = vsel %vm319, %v5334, %v5341
  %v5343 = vrot.slane %v5338, 4
  %v5345 = vshrl.u32 %v5205, 16
  %v5347 = vrot.slane %v5345, 7
  %v5348 = vshll.u32 %v5205, 16
  %v5350 = vor.u32 %v5347, %v5348
  %v5351 = vrot.slane %v5347, 4
  %v5353 = vshrl.u32 %v5206, 16
  %v5355 = vrot.slane %v5353, 7
  %v5356 = vshll.u32 %v5206, 16
  %v5358 = vor.u32 %v5355, %v5356
  %v5359 = vsel %vm319, %v5351, %v5358
  %v5360 = vrot.slane %v5355, 4
  %v5362 = vshrl.u32 %v5207, 16
  %v5364 = vrot.slane %v5362, 7
  %v5365 = vshll.u32 %v5207, 16
  %v5367 = vor.u32 %v5364, %v5365
  %v5368 = vrot.slane %v5364, 4
  %v5370 = vshrl.u32 %v5208, 16
  %v5372 = vrot.slane %v5370, 7
  %v5373 = vshll.u32 %v5208, 16
  %v5375 = vor.u32 %v5372, %v5373
  %v5376 = vsel %vm319, %v5368, %v5375
  %v5377 = vrot.slane %v5372, 4
  %v5379 = vshrl.u32 %v5209, 16
  %v5381 = vrot.slane %v5379, 7
  %v5382 = vshll.u32 %v5209, 16
  %v5384 = vor.u32 %v5381, %v5382
  %v5385 = vrot.slane %v5381, 4
  %v5387 = vshrl.u32 %v5210, 16
  %v5389 = vrot.slane %v5387, 7
  %v5390 = vshll.u32 %v5210, 16
  %v5392 = vor.u32 %v5389, %v5390
  %v5393 = vsel %vm319, %v5385, %v5392
  %v5394 = vrot.slane %v5389, 4
  %v5396 = vshrl.u32 %v5211, 16
  %v5398 = vrot.slane %v5396, 7
  %v5399 = vshll.u32 %v5211, 16
  %v5401 = vor.u32 %v5398, %v5399
  %v5402 = vrot.slane %v5398, 4
  %v5404 = vshrl.u32 %v5212, 16
  %v5406 = vrot.slane %v5404, 7
  %v5407 = vshll.u32 %v5212, 16
  %v5409 = vor.u32 %v5406, %v5407
  %v5410 = vsel %vm319, %v5402, %v5409
  %v5411 = vrot.slane %v5406, 4
  %v5413 = vshrl.u32 %v5213, 16
  %v5415 = vrot.slane %v5413, 7
  %v5416 = vshll.u32 %v5213, 16
  %v5418 = vor.u32 %v5415, %v5416
  %v5419 = vrot.slane %v5415, 4
  %v5421 = vshrl.u32 %v5214, 16
  %v5423 = vrot.slane %v5421, 7
  %v5424 = vshll.u32 %v5214, 16
  %v5426 = vor.u32 %v5423, %v5424
  %v5427 = vsel %vm319, %v5419, %v5426
  %v5428 = vrot.slane %v5423, 4
  %v5430 = vshrl.u32 %v5215, 16
  %v5432 = vrot.slane %v5430, 7
  %v5433 = vshll.u32 %v5215, 16
  %v5435 = vor.u32 %v5432, %v5433
  %v5436 = vrot.slane %v5432, 4
  %v5438 = vshrl.u32 %v5216, 16
  %v5440 = vrot.slane %v5438, 7
  %v5441 = vshll.u32 %v5216, 16
  %v5443 = vor.u32 %v5440, %v5441
  %v5444 = vsel %vm319, %v5436, %v5443
  %v5445 = vrot.slane %v5440, 4
  %v5447 = vshrl.u32 %v5217, 16
  %v5449 = vrot.slane %v5447, 7
  %v5450 = vshll.u32 %v5217, 16
  %v5452 = vor.u32 %v5449, %v5450
  %v5453 = vrot.slane %v5449, 4
  %v5455 = vshrl.u32 %v5218, 16
  %v5457 = vrot.slane %v5455, 7
  %v5458 = vshll.u32 %v5218, 16
  %v5460 = vor.u32 %v5457, %v5458
  %v5461 = vsel %vm319, %v5453, %v5460
  %v5462 = vrot.slane %v5457, 4
  %v5464 = vshrl.u32 %v5219, 16
  %v5466 = vrot.slane %v5464, 7
  %v5467 = vshll.u32 %v5219, 16
  %v5469 = vor.u32 %v5466, %v5467
  %v5470 = vrot.slane %v5466, 4
  %v5472 = vshrl.u32 %v5220, 16
  %v5474 = vrot.slane %v5472, 7
  %v5475 = vshll.u32 %v5220, 16
  %v5477 = vor.u32 %v5474, %v5475
  %v5478 = vsel %vm319, %v5470, %v5477
  %v5479 = vrot.slane %v5474, 4
  %v5481 = vshrl.u32 %v5221, 16
  %v5483 = vrot.slane %v5481, 7
  %v5484 = vshll.u32 %v5221, 16
  %v5486 = vor.u32 %v5483, %v5484
  %v5487 = vrot.slane %v5483, 4
  %v5489 = vshrl.u32 %v5222, 16
  %v5491 = vrot.slane %v5489, 7
  %v5492 = vshll.u32 %v5222, 16
  %v5494 = vor.u32 %v5491, %v5492
  %v5495 = vsel %vm319, %v5487, %v5494
  %v5496 = vrot.slane %v5491, 4
  %v5498 = vshrl.u32 %v5223, 16
  %v5500 = vrot.slane %v5498, 7
  %v5501 = vshll.u32 %v5223, 16
  %v5503 = vor.u32 %v5500, %v5501
  %v5504 = vrot.slane %v5500, 4
  %v5506 = vshrl.u32 %v5224, 16
  %v5508 = vrot.slane %v5506, 7
  %v5509 = vshll.u32 %v5224, 16
  %v5511 = vor.u32 %v5508, %v5509
  %v5512 = vsel %vm319, %v5504, %v5511
  %v5513 = vrot.slane %v5508, 4
  %v5515 = vshrl.u32 %v5225, 16
  %v5517 = vrot.slane %v5515, 7
  %v5518 = vshll.u32 %v5225, 16
  %v5520 = vor.u32 %v5517, %v5518
  %v5521 = vrot.slane %v5517, 4
  %v5523 = vshrl.u32 %v5226, 16
  %v5525 = vrot.slane %v5523, 7
  %v5526 = vshll.u32 %v5226, 16
  %v5528 = vor.u32 %v5525, %v5526
  %v5529 = vsel %vm319, %v5521, %v5528
  %v5530 = vrot.slane %v5525, 4
  %v5532 = vshrl.u32 %v5227, 16
  %v5534 = vrot.slane %v5532, 7
  %v5535 = vshll.u32 %v5227, 16
  %v5537 = vor.u32 %v5534, %v5535
  %v5538 = vrot.slane %v5534, 4
  %v5540 = vshrl.u32 %v5228, 16
  %v5542 = vrot.slane %v5540, 7
  %v5543 = vshll.u32 %v5228, 16
  %v5545 = vor.u32 %v5542, %v5543
  %v5546 = vsel %vm319, %v5538, %v5545
  %v5547 = vrot.slane %v5542, 4
  %v5549 = vshrl.u32 %v5229, 16
  %v5551 = vrot.slane %v5549, 7
  %v5552 = vshll.u32 %v5229, 16
  %v5554 = vor.u32 %v5551, %v5552
  %v5555 = vrot.slane %v5551, 4
  %v5557 = vshrl.u32 %v5230, 16
  %v5559 = vrot.slane %v5557, 7
  %v5560 = vshll.u32 %v5230, 16
  %v5562 = vor.u32 %v5559, %v5560
  %v5563 = vsel %vm319, %v5555, %v5562
  %v5564 = vrot.slane %v5559, 4
  %v5566 = vshrl.u32 %v5231, 16
  %v5568 = vrot.slane %v5566, 7
  %v5569 = vshll.u32 %v5231, 16
  %v5571 = vor.u32 %v5568, %v5569
  %v5572 = vrot.slane %v5568, 4
  %v5574 = vshrl.u32 %v5232, 16
  %v5576 = vrot.slane %v5574, 7
  %v5577 = vshll.u32 %v5232, 16
  %v5579 = vor.u32 %v5576, %v5577
  %v5580 = vsel %vm319, %v5572, %v5579
  %v5581 = vrot.slane %v5576, 4
  %v5583 = vshrl.u32 %v5233, 16
  %v5585 = vrot.slane %v5583, 7
  %v5586 = vshll.u32 %v5233, 16
  %v5588 = vor.u32 %v5585, %v5586
  %v5589 = vrot.slane %v5585, 4
  %v5591 = vshrl.u32 %v5234, 16
  %v5593 = vrot.slane %v5591, 7
  %v5594 = vshll.u32 %v5234, 16
  %v5596 = vor.u32 %v5593, %v5594
  %v5597 = vsel %vm319, %v5589, %v5596
  %v5598 = vrot.slane %v5593, 4
  %v5600 = vshrl.u32 %v5235, 16
  %v5602 = vrot.slane %v5600, 7
  %v5603 = vshll.u32 %v5235, 16
  %v5605 = vor.u32 %v5602, %v5603
  %v5606 = vrot.slane %v5602, 4
  %v5608 = vshrl.u32 %v5236, 16
  %v5610 = vrot.slane %v5608, 7
  %v5611 = vshll.u32 %v5236, 16
  %v5613 = vor.u32 %v5610, %v5611
  %v5614 = vsel %vm319, %v5606, %v5613
  %v5615 = vrot.slane %v5610, 4
  %v5617 = vshrl.u32 %v5237, 16
  %v5619 = vrot.slane %v5617, 7
  %v5620 = vshll.u32 %v5237, 16
  %v5622 = vor.u32 %v5619, %v5620
  %v5623 = vrot.slane %v5619, 4
  %v5625 = vshrl.u32 %v5238, 16
  %v5627 = vrot.slane %v5625, 7
  %v5628 = vshll.u32 %v5238, 16
  %v5630 = vor.u32 %v5627, %v5628
  %v5631 = vsel %vm319, %v5623, %v5630
  %v5632 = vrot.slane %v5627, 4
  %v5634 = vshrl.u32 %v5239, 16
  %v5636 = vrot.slane %v5634, 7
  %v5637 = vshll.u32 %v5239, 16
  %v5639 = vor.u32 %v5636, %v5637
  %v5640 = vrot.slane %v5636, 4
  %v5642 = vshrl.u32 %v5240, 16
  %v5644 = vrot.slane %v5642, 7
  %v5645 = vshll.u32 %v5240, 16
  %v5647 = vor.u32 %v5644, %v5645
  %v5648 = vsel %vm319, %v5640, %v5647
  %v5649 = vrot.slane %v5644, 4
  %v5651 = vshrl.u32 %v5241, 16
  %v5653 = vrot.slane %v5651, 7
  %v5654 = vshll.u32 %v5241, 16
  %v5656 = vor.u32 %v5653, %v5654
  %v5657 = vrot.slane %v5653, 4
  %v5659 = vshrl.u32 %v5242, 16
  %v5661 = vrot.slane %v5659, 7
  %v5662 = vshll.u32 %v5242, 16
  %v5664 = vor.u32 %v5661, %v5662
  %v5665 = vsel %vm319, %v5657, %v5664
  %v5666 = vrot.slane %v5661, 4
  %v5668 = vshrl.u32 %v5243, 16
  %v5670 = vrot.slane %v5668, 7
  %v5671 = vshll.u32 %v5243, 16
  %v5673 = vor.u32 %v5670, %v5671
  %v5674 = vrot.slane %v5670, 4
  %v5676 = vshrl.u32 %v5244, 16
  %v5678 = vrot.slane %v5676, 7
  %v5679 = vshll.u32 %v5244, 16
  %v5681 = vor.u32 %v5678, %v5679
  %v5682 = vsel %vm319, %v5674, %v5681
  %v5683 = vrot.slane %v5678, 4
  %v5685 = vshrl.u32 %v5245, 16
  %v5687 = vrot.slane %v5685, 7
  %v5688 = vshll.u32 %v5245, 16
  %v5690 = vor.u32 %v5687, %v5688
  %v5691 = vrot.slane %v5687, 4
  %v5693 = vshrl.u32 %v5246, 16
  %v5695 = vrot.slane %v5693, 7
  %v5696 = vshll.u32 %v5246, 16
  %v5698 = vor.u32 %v5695, %v5696
  %v5699 = vsel %vm319, %v5691, %v5698
  %v5700 = vrot.slane %v5695, 4
  %v5702 = vshrl.u32 %v5247, 16
  %v5704 = vrot.slane %v5702, 7
  %v5705 = vshll.u32 %v5247, 16
  %v5707 = vor.u32 %v5704, %v5705
  %v5708 = vrot.slane %v5704, 4
  %v5710 = vshrl.u32 %v5248, 16
  %v5712 = vrot.slane %v5710, 7
  %v5713 = vshll.u32 %v5248, 16
  %v5715 = vor.u32 %v5712, %v5713
  %v5716 = vsel %vm319, %v5708, %v5715
  %v5717 = vrot.slane %v5712, 4
  %v5719 = vshrl.u32 %v5249, 16
  %v5721 = vrot.slane %v5719, 7
  %v5722 = vshll.u32 %v5249, 16
  %v5724 = vor.u32 %v5721, %v5722
  %v5725 = vrot.slane %v5721, 4
  %v5727 = vshrl.u32 %v5250, 16
  %v5729 = vrot.slane %v5727, 7
  %v5730 = vshll.u32 %v5250, 16
  %v5732 = vor.u32 %v5729, %v5730
  %v5733 = vsel %vm319, %v5725, %v5732
  %v5734 = vrot.slane %v5729, 4
  %v5736 = vshrl.u32 %v5251, 16
  %v5738 = vrot.slane %v5736, 7
  %v5739 = vshll.u32 %v5251, 16
  %v5741 = vor.u32 %v5738, %v5739
  %v5742 = vrot.slane %v5738, 4
  %v5744 = vshrl.u32 %v5252, 16
  %v5746 = vrot.slane %v5744, 7
  %v5747 = vshll.u32 %v5252, 16
  %v5749 = vor.u32 %v5746, %v5747
  %v5750 = vsel %vm319, %v5742, %v5749
  %v5751 = vrot.slane %v5746, 4
  %v5753 = vshrl.u32 %v5253, 16
  %v5755 = vrot.slane %v5753, 7
  %v5756 = vshll.u32 %v5253, 16
  %v5758 = vor.u32 %v5755, %v5756
  %v5759 = vrot.slane %v5755, 4
  %v5761 = vshrl.u32 %v5254, 16
  %v5763 = vrot.slane %v5761, 7
  %v5764 = vshll.u32 %v5254, 16
  %v5766 = vor.u32 %v5763, %v5764
  %v5767 = vsel %vm319, %v5759, %v5766
  %v5768 = vrot.slane %v5763, 4
  %v5770 = vshrl.u32 %v5255, 16
  %v5772 = vrot.slane %v5770, 7
  %v5773 = vshll.u32 %v5255, 16
  %v5775 = vor.u32 %v5772, %v5773
  %v5776 = vrot.slane %v5772, 4
  %v5778 = vshrl.u32 %v5256, 16
  %v5780 = vrot.slane %v5778, 7
  %v5781 = vshll.u32 %v5256, 16
  %v5783 = vor.u32 %v5780, %v5781
  %v5784 = vsel %vm319, %v5776, %v5783
  %v5785 = vrot.slane %v5780, 4
  %v5787 = vshrl.u32 %v5257, 16
  %v5789 = vrot.slane %v5787, 7
  %v5790 = vshll.u32 %v5257, 16
  %v5792 = vor.u32 %v5789, %v5790
  %v5793 = vrot.slane %v5789, 4
  %v5795 = vshrl.u32 %v5258, 16
  %v5797 = vrot.slane %v5795, 7
  %v5798 = vshll.u32 %v5258, 16
  %v5800 = vor.u32 %v5797, %v5798
  %v5801 = vsel %vm319, %v5793, %v5800
  %v5802 = vrot.slane %v5797, 4
  %s5899 = scalar_lea.vmem [#allocation3], 12
  %vm5900 = vcmask 60416
  %vm5901 = vmand %vm5900, %vm144
  %v5902 = vld [vmem:[%s5899] sm:$0xf]
  %v5903 = vsel %vm5901, %v5265, %v5902
  %5904 = vst [vmem:[%s5899] sm:$0xf] %v5903
  %5905 = vst.msk [vmem:[%s5899 + $0x4] sm:$0xf] %vm4865, %v5274
  %v5906 = vld [vmem:[%s5899 + $0x8] sm:$0x1]
  %v5907 = vsel %vm4881, %v5275, %v5906
  %5908 = vst [vmem:[%s5899 + $0x8] sm:$0x1] %v5907
  %v5909 = vld [vmem:[%s5899 + $0xc] sm:$0xf]
  %v5910 = vsel %vm5901, %v5282, %v5909
  %5911 = vst [vmem:[%s5899 + $0xc] sm:$0xf] %v5910
  %5912 = vst.msk [vmem:[%s5899 + $0x10] sm:$0xf] %vm4865, %v5291
  %v5913 = vld [vmem:[%s5899 + $0x14] sm:$0x1]
  %v5914 = vsel %vm4881, %v5292, %v5913
  %5915 = vst [vmem:[%s5899 + $0x14] sm:$0x1] %v5914
  %v5916 = vld [vmem:[%s5899 + $0x18] sm:$0xf]
  %v5917 = vsel %vm5901, %v5299, %v5916
  %5918 = vst [vmem:[%s5899 + $0x18] sm:$0xf] %v5917
  %5919 = vst.msk [vmem:[%s5899 + $0x1c] sm:$0xf] %vm4865, %v5308
  %v5920 = vld [vmem:[%s5899 + $0x20] sm:$0x1]
  %v5921 = vsel %vm4881, %v5309, %v5920
  %5922 = vst [vmem:[%s5899 + $0x20] sm:$0x1] %v5921
  %v5923 = vld [vmem:[%s5899 + $0x24] sm:$0xf]
  %v5924 = vsel %vm5901, %v5316, %v5923
  %5925 = vst [vmem:[%s5899 + $0x24] sm:$0xf] %v5924
  %5926 = vst.msk [vmem:[%s5899 + $0x28] sm:$0xf] %vm4865, %v5325
  %v5927 = vld [vmem:[%s5899 + $0x2c] sm:$0x1]
  %v5928 = vsel %vm4881, %v5326, %v5927
  %5929 = vst [vmem:[%s5899 + $0x2c] sm:$0x1] %v5928
  %v5930 = vld [vmem:[%s5899 + $0x30] sm:$0xf]
  %v5931 = vsel %vm5901, %v5333, %v5930
  %5932 = vst [vmem:[%s5899 + $0x30] sm:$0xf] %v5931
  %5933 = vst.msk [vmem:[%s5899 + $0x34] sm:$0xf] %vm4865, %v5342
  %v5934 = vld [vmem:[%s5899 + $0x38] sm:$0x1]
  %v5935 = vsel %vm4881, %v5343, %v5934
  %5936 = vst [vmem:[%s5899 + $0x38] sm:$0x1] %v5935
  %v5937 = vld [vmem:[%s5899 + $0x3c] sm:$0xf]
  %v5938 = vsel %vm5901, %v5350, %v5937
  %5939 = vst [vmem:[%s5899 + $0x3c] sm:$0xf] %v5938
  %5940 = vst.msk [vmem:[%s5899 + $0x40] sm:$0xf] %vm4865, %v5359
  %v5941 = vld [vmem:[%s5899 + $0x44] sm:$0x1]
  %v5942 = vsel %vm4881, %v5360, %v5941
  %5943 = vst [vmem:[%s5899 + $0x44] sm:$0x1] %v5942
  %v5944 = vld [vmem:[%s5899 + $0x48] sm:$0xf]
  %v5945 = vsel %vm5901, %v5367, %v5944
  %5946 = vst [vmem:[%s5899 + $0x48] sm:$0xf] %v5945
  %5947 = vst.msk [vmem:[%s5899 + $0x4c] sm:$0xf] %vm4865, %v5376
  %v5948 = vld [vmem:[%s5899 + $0x50] sm:$0x1]
  %v5949 = vsel %vm4881, %v5377, %v5948
  %5950 = vst [vmem:[%s5899 + $0x50] sm:$0x1] %v5949
  %v5951 = vld [vmem:[%s5899 + $0x54] sm:$0xf]
  %v5952 = vsel %vm5901, %v5384, %v5951
  %5953 = vst [vmem:[%s5899 + $0x54] sm:$0xf] %v5952
  %5954 = vst.msk [vmem:[%s5899 + $0x58] sm:$0xf] %vm4865, %v5393
  %v5955 = vld [vmem:[%s5899 + $0x5c] sm:$0x1]
  %v5956 = vsel %vm4881, %v5394, %v5955
  %5957 = vst [vmem:[%s5899 + $0x5c] sm:$0x1] %v5956
  %v5958 = vld [vmem:[%s5899 + $0x60] sm:$0xf]
  %v5959 = vsel %vm5901, %v5401, %v5958
  %5960 = vst [vmem:[%s5899 + $0x60] sm:$0xf] %v5959
  %5961 = vst.msk [vmem:[%s5899 + $0x64] sm:$0xf] %vm4865, %v5410
  %v5962 = vld [vmem:[%s5899 + $0x68] sm:$0x1]
  %v5963 = vsel %vm4881, %v5411, %v5962
  %5964 = vst [vmem:[%s5899 + $0x68] sm:$0x1] %v5963
  %v5965 = vld [vmem:[%s5899 + $0x6c] sm:$0xf]
  %v5966 = vsel %vm5901, %v5418, %v5965
  %5967 = vst [vmem:[%s5899 + $0x6c] sm:$0xf] %v5966
  %5968 = vst.msk [vmem:[%s5899 + $0x70] sm:$0xf] %vm4865, %v5427
  %v5969 = vld [vmem:[%s5899 + $0x74] sm:$0x1]
  %v5970 = vsel %vm4881, %v5428, %v5969
  %5971 = vst [vmem:[%s5899 + $0x74] sm:$0x1] %v5970
  %v5972 = vld [vmem:[%s5899 + $0x78] sm:$0xf]
  %v5973 = vsel %vm5901, %v5435, %v5972
  %5974 = vst [vmem:[%s5899 + $0x78] sm:$0xf] %v5973
  %5975 = vst.msk [vmem:[%s5899 + $0x7c] sm:$0xf] %vm4865, %v5444
  %v5976 = vld [vmem:[%s5899 + $0x80] sm:$0x1]
  %v5977 = vsel %vm4881, %v5445, %v5976
  %5978 = vst [vmem:[%s5899 + $0x80] sm:$0x1] %v5977
  %v5979 = vld [vmem:[%s5899 + $0x84] sm:$0xf]
  %v5980 = vsel %vm5901, %v5452, %v5979
  %5981 = vst [vmem:[%s5899 + $0x84] sm:$0xf] %v5980
  %5982 = vst.msk [vmem:[%s5899 + $0x88] sm:$0xf] %vm4865, %v5461
  %v5983 = vld [vmem:[%s5899 + $0x8c] sm:$0x1]
  %v5984 = vsel %vm4881, %v5462, %v5983
  %5985 = vst [vmem:[%s5899 + $0x8c] sm:$0x1] %v5984
  %v5986 = vld [vmem:[%s5899 + $0x90] sm:$0xf]
  %v5987 = vsel %vm5901, %v5469, %v5986
  %5988 = vst [vmem:[%s5899 + $0x90] sm:$0xf] %v5987
  %5989 = vst.msk [vmem:[%s5899 + $0x94] sm:$0xf] %vm4865, %v5478
  %v5990 = vld [vmem:[%s5899 + $0x98] sm:$0x1]
  %v5991 = vsel %vm4881, %v5479, %v5990
  %5992 = vst [vmem:[%s5899 + $0x98] sm:$0x1] %v5991
  %v5993 = vld [vmem:[%s5899 + $0x9c] sm:$0xf]
  %v5994 = vsel %vm5901, %v5486, %v5993
  %5995 = vst [vmem:[%s5899 + $0x9c] sm:$0xf] %v5994
  %5996 = vst.msk [vmem:[%s5899 + $0xa0] sm:$0xf] %vm4865, %v5495
  %v5997 = vld [vmem:[%s5899 + $0xa4] sm:$0x1]
  %v5998 = vsel %vm4881, %v5496, %v5997
  %5999 = vst [vmem:[%s5899 + $0xa4] sm:$0x1] %v5998
  %v6000 = vld [vmem:[%s5899 + $0xa8] sm:$0xf]
  %v6001 = vsel %vm5901, %v5503, %v6000
  %6002 = vst [vmem:[%s5899 + $0xa8] sm:$0xf] %v6001
  %6003 = vst.msk [vmem:[%s5899 + $0xac] sm:$0xf] %vm4865, %v5512
  %v6004 = vld [vmem:[%s5899 + $0xb0] sm:$0x1]
  %v6005 = vsel %vm4881, %v5513, %v6004
  %6006 = vst [vmem:[%s5899 + $0xb0] sm:$0x1] %v6005
  %v6007 = vld [vmem:[%s5899 + $0xb4] sm:$0xf]
  %v6008 = vsel %vm5901, %v5520, %v6007
  %6009 = vst [vmem:[%s5899 + $0xb4] sm:$0xf] %v6008
  %6010 = vst.msk [vmem:[%s5899 + $0xb8] sm:$0xf] %vm4865, %v5529
  %v6011 = vld [vmem:[%s5899 + $0xbc] sm:$0x1]
  %v6012 = vsel %vm4881, %v5530, %v6011
  %6013 = vst [vmem:[%s5899 + $0xbc] sm:$0x1] %v6012
  %v6014 = vld [vmem:[%s5899 + $0xd8] sm:$0xf]
  %v6015 = vsel %vm5901, %v5537, %v6014
  %6016 = vst [vmem:[%s5899 + $0xd8] sm:$0xf] %v6015
  %6017 = vst.msk [vmem:[%s5899 + $0xdc] sm:$0xf] %vm4865, %v5546
  %v6018 = vld [vmem:[%s5899 + $0xe0] sm:$0x1]
  %v6019 = vsel %vm4881, %v5547, %v6018
  %6020 = vst [vmem:[%s5899 + $0xe0] sm:$0x1] %v6019
  %v6021 = vld [vmem:[%s5899 + $0xe4] sm:$0xf]
  %v6022 = vsel %vm5901, %v5554, %v6021
  %6023 = vst [vmem:[%s5899 + $0xe4] sm:$0xf] %v6022
  %6024 = vst.msk [vmem:[%s5899 + $0xe8] sm:$0xf] %vm4865, %v5563
  %v6025 = vld [vmem:[%s5899 + $0xec] sm:$0x1]
  %v6026 = vsel %vm4881, %v5564, %v6025
  %6027 = vst [vmem:[%s5899 + $0xec] sm:$0x1] %v6026
  %v6028 = vld [vmem:[%s5899 + $0xf0] sm:$0xf]
  %v6029 = vsel %vm5901, %v5571, %v6028
  %6030 = vst [vmem:[%s5899 + $0xf0] sm:$0xf] %v6029
  %6031 = vst.msk [vmem:[%s5899 + $0xf4] sm:$0xf] %vm4865, %v5580
  %v6032 = vld [vmem:[%s5899 + $0xf8] sm:$0x1]
  %v6033 = vsel %vm4881, %v5581, %v6032
  %6034 = vst [vmem:[%s5899 + $0xf8] sm:$0x1] %v6033
  %v6035 = vld [vmem:[%s5899 + $0xfc] sm:$0xf]
  %v6036 = vsel %vm5901, %v5588, %v6035
  %6037 = vst [vmem:[%s5899 + $0xfc] sm:$0xf] %v6036
  %6038 = vst.msk [vmem:[%s5899 + $0x100] sm:$0xf] %vm4865, %v5597
  %v6039 = vld [vmem:[%s5899 + $0x104] sm:$0x1]
  %v6040 = vsel %vm4881, %v5598, %v6039
  %6041 = vst [vmem:[%s5899 + $0x104] sm:$0x1] %v6040
  %v6042 = vld [vmem:[%s5899 + $0x108] sm:$0xf]
  %v6043 = vsel %vm5901, %v5605, %v6042
  %6044 = vst [vmem:[%s5899 + $0x108] sm:$0xf] %v6043
  %6045 = vst.msk [vmem:[%s5899 + $0x10c] sm:$0xf] %vm4865, %v5614
  %v6046 = vld [vmem:[%s5899 + $0x110] sm:$0x1]
  %v6047 = vsel %vm4881, %v5615, %v6046
  %6048 = vst [vmem:[%s5899 + $0x110] sm:$0x1] %v6047
  %v6049 = vld [vmem:[%s5899 + $0x114] sm:$0xf]
  %v6050 = vsel %vm5901, %v5622, %v6049
  %6051 = vst [vmem:[%s5899 + $0x114] sm:$0xf] %v6050
  %6052 = vst.msk [vmem:[%s5899 + $0x118] sm:$0xf] %vm4865, %v5631
  %v6053 = vld [vmem:[%s5899 + $0x11c] sm:$0x1]
  %v6054 = vsel %vm4881, %v5632, %v6053
  %6055 = vst [vmem:[%s5899 + $0x11c] sm:$0x1] %v6054
  %v6056 = vld [vmem:[%s5899 + $0x120] sm:$0xf]
  %v6057 = vsel %vm5901, %v5639, %v6056
  %6058 = vst [vmem:[%s5899 + $0x120] sm:$0xf] %v6057
  %6059 = vst.msk [vmem:[%s5899 + $0x124] sm:$0xf] %vm4865, %v5648
  %v6060 = vld [vmem:[%s5899 + $0x128] sm:$0x1]
  %v6061 = vsel %vm4881, %v5649, %v6060
  %6062 = vst [vmem:[%s5899 + $0x128] sm:$0x1] %v6061
  %v6063 = vld [vmem:[%s5899 + $0x12c] sm:$0xf]
  %v6064 = vsel %vm5901, %v5656, %v6063
  %6065 = vst [vmem:[%s5899 + $0x12c] sm:$0xf] %v6064
  %6066 = vst.msk [vmem:[%s5899 + $0x130] sm:$0xf] %vm4865, %v5665
  %v6067 = vld [vmem:[%s5899 + $0x134] sm:$0x1]
  %v6068 = vsel %vm4881, %v5666, %v6067
  %6069 = vst [vmem:[%s5899 + $0x134] sm:$0x1] %v6068
  %v6070 = vld [vmem:[%s5899 + $0x138] sm:$0xf]
  %v6071 = vsel %vm5901, %v5673, %v6070
  %6072 = vst [vmem:[%s5899 + $0x138] sm:$0xf] %v6071
  %6073 = vst.msk [vmem:[%s5899 + $0x13c] sm:$0xf] %vm4865, %v5682
  %v6074 = vld [vmem:[%s5899 + $0x140] sm:$0x1]
  %v6075 = vsel %vm4881, %v5683, %v6074
  %6076 = vst [vmem:[%s5899 + $0x140] sm:$0x1] %v6075
  %v6077 = vld [vmem:[%s5899 + $0x144] sm:$0xf]
  %v6078 = vsel %vm5901, %v5690, %v6077
  %6079 = vst [vmem:[%s5899 + $0x144] sm:$0xf] %v6078
  %6080 = vst.msk [vmem:[%s5899 + $0x148] sm:$0xf] %vm4865, %v5699
  %v6081 = vld [vmem:[%s5899 + $0x14c] sm:$0x1]
  %v6082 = vsel %vm4881, %v5700, %v6081
  %6083 = vst [vmem:[%s5899 + $0x14c] sm:$0x1] %v6082
  %v6084 = vld [vmem:[%s5899 + $0x150] sm:$0xf]
  %v6085 = vsel %vm5901, %v5707, %v6084
  %6086 = vst [vmem:[%s5899 + $0x150] sm:$0xf] %v6085
  %6087 = vst.msk [vmem:[%s5899 + $0x154] sm:$0xf] %vm4865, %v5716
  %v6088 = vld [vmem:[%s5899 + $0x158] sm:$0x1]
  %v6089 = vsel %vm4881, %v5717, %v6088
  %6090 = vst [vmem:[%s5899 + $0x158] sm:$0x1] %v6089
  %v6091 = vld [vmem:[%s5899 + $0x15c] sm:$0xf]
  %v6092 = vsel %vm5901, %v5724, %v6091
  %6093 = vst [vmem:[%s5899 + $0x15c] sm:$0xf] %v6092
  %6094 = vst.msk [vmem:[%s5899 + $0x160] sm:$0xf] %vm4865, %v5733
  %v6095 = vld [vmem:[%s5899 + $0x164] sm:$0x1]
  %v6096 = vsel %vm4881, %v5734, %v6095
  %6097 = vst [vmem:[%s5899 + $0x164] sm:$0x1] %v6096
  %v6098 = vld [vmem:[%s5899 + $0x168] sm:$0xf]
  %v6099 = vsel %vm5901, %v5741, %v6098
  %6100 = vst [vmem:[%s5899 + $0x168] sm:$0xf] %v6099
  %6101 = vst.msk [vmem:[%s5899 + $0x16c] sm:$0xf] %vm4865, %v5750
  %v6102 = vld [vmem:[%s5899 + $0x170] sm:$0x1]
  %v6103 = vsel %vm4881, %v5751, %v6102
  %6104 = vst [vmem:[%s5899 + $0x170] sm:$0x1] %v6103
  %v6105 = vld [vmem:[%s5899 + $0x174] sm:$0xf]
  %v6106 = vsel %vm5901, %v5758, %v6105
  %6107 = vst [vmem:[%s5899 + $0x174] sm:$0xf] %v6106
  %6108 = vst.msk [vmem:[%s5899 + $0x178] sm:$0xf] %vm4865, %v5767
  %v6109 = vld [vmem:[%s5899 + $0x17c] sm:$0x1]
  %v6110 = vsel %vm4881, %v5768, %v6109
  %6111 = vst [vmem:[%s5899 + $0x17c] sm:$0x1] %v6110
  %v6112 = vld [vmem:[%s5899 + $0x180] sm:$0xf]
  %v6113 = vsel %vm5901, %v5775, %v6112
  %6114 = vst [vmem:[%s5899 + $0x180] sm:$0xf] %v6113
  %6115 = vst.msk [vmem:[%s5899 + $0x184] sm:$0xf] %vm4865, %v5784
  %v6116 = vld [vmem:[%s5899 + $0x188] sm:$0x1]
  %v6117 = vsel %vm4881, %v5785, %v6116
  %6118 = vst [vmem:[%s5899 + $0x188] sm:$0x1] %v6117
  %v6119 = vld [vmem:[%s5899 + $0x18c] sm:$0xf]
  %v6120 = vsel %vm5901, %v5792, %v6119
  %6121 = vst [vmem:[%s5899 + $0x18c] sm:$0xf] %v6120
  %6122 = vst.msk [vmem:[%s5899 + $0x190] sm:$0xf] %vm4865, %v5801
  %v6123 = vld [vmem:[%s5899 + $0x194] sm:$0x1]
  %v6124 = vsel %vm4881, %v5802, %v6123
  %6125 = vst [vmem:[%s5899 + $0x194] sm:$0x1] %v6124
  %v6126 = vld [vmem:[#allocation3] sm:$0xf]
  %v6127 = vld [vmem:[#allocation3 + $0x4] sm:$0xf]
  %v6128 = vld [vmem:[#allocation3 + $0x8] sm:$0x1]
  %v6129 = vld [vmem:[#allocation3 + $0xc] sm:$0xf]
  %v6130 = vld [vmem:[#allocation3 + $0x10] sm:$0xf]
  %v6131 = vld [vmem:[#allocation3 + $0x14] sm:$0x1]
  %v6132 = vld [vmem:[#allocation3 + $0x18] sm:$0xf]
  %v6133 = vld [vmem:[#allocation3 + $0x1c] sm:$0xf]
  %v6134 = vld [vmem:[#allocation3 + $0x20] sm:$0x1]
  %v6135 = vld [vmem:[#allocation3 + $0x24] sm:$0xf]
  %v6136 = vld [vmem:[#allocation3 + $0x28] sm:$0xf]
  %v6137 = vld [vmem:[#allocation3 + $0x2c] sm:$0x1]
  %v6138 = vld [vmem:[#allocation3 + $0x30] sm:$0xf]
  %v6139 = vld [vmem:[#allocation3 + $0x34] sm:$0xf]
  %v6140 = vld [vmem:[#allocation3 + $0x38] sm:$0x1]
  %v6141 = vld [vmem:[#allocation3 + $0x3c] sm:$0xf]
  %v6142 = vld [vmem:[#allocation3 + $0x40] sm:$0xf]
  %v6143 = vld [vmem:[#allocation3 + $0x44] sm:$0x1]
  %v6144 = vld [vmem:[#allocation3 + $0x48] sm:$0xf]
  %v6145 = vld [vmem:[#allocation3 + $0x4c] sm:$0xf]
  %v6146 = vld [vmem:[#allocation3 + $0x50] sm:$0x1]
  %v6147 = vld [vmem:[#allocation3 + $0x54] sm:$0xf]
  %v6148 = vld [vmem:[#allocation3 + $0x58] sm:$0xf]
  %v6149 = vld [vmem:[#allocation3 + $0x5c] sm:$0x1]
  %v6150 = vld [vmem:[#allocation3 + $0x60] sm:$0xf]
  %v6151 = vld [vmem:[#allocation3 + $0x64] sm:$0xf]
  %v6152 = vld [vmem:[#allocation3 + $0x68] sm:$0x1]
  %v6153 = vld [vmem:[#allocation3 + $0x6c] sm:$0xf]
  %v6154 = vld [vmem:[#allocation3 + $0x70] sm:$0xf]
  %v6155 = vld [vmem:[#allocation3 + $0x74] sm:$0x1]
  %v6156 = vld [vmem:[#allocation3 + $0x78] sm:$0xf]
  %v6157 = vld [vmem:[#allocation3 + $0x7c] sm:$0xf]
  %v6158 = vld [vmem:[#allocation3 + $0x80] sm:$0x1]
  %v6159 = vld [vmem:[#allocation3 + $0x84] sm:$0xf]
  %v6160 = vld [vmem:[#allocation3 + $0x88] sm:$0xf]
  %v6161 = vld [vmem:[#allocation3 + $0x8c] sm:$0x1]
  %v6162 = vld [vmem:[#allocation3 + $0x90] sm:$0xf]
  %v6163 = vld [vmem:[#allocation3 + $0x94] sm:$0xf]
  %v6164 = vld [vmem:[#allocation3 + $0x98] sm:$0x1]
  %v6165 = vld [vmem:[#allocation3 + $0x9c] sm:$0xf]
  %v6166 = vld [vmem:[#allocation3 + $0xa0] sm:$0xf]
  %v6167 = vld [vmem:[#allocation3 + $0xa4] sm:$0x1]
  %v6168 = vld [vmem:[#allocation3 + $0xa8] sm:$0xf]
  %v6169 = vld [vmem:[#allocation3 + $0xac] sm:$0xf]
  %v6170 = vld [vmem:[#allocation3 + $0xb0] sm:$0x1]
  %v6171 = vld [vmem:[#allocation3 + $0xb4] sm:$0xf]
  %v6172 = vld [vmem:[#allocation3 + $0xb8] sm:$0xf]
  %v6173 = vld [vmem:[#allocation3 + $0xbc] sm:$0x1]
  %v6174 = vld [vmem:[#allocation3 + $0xc0] sm:$0xf]
  %v6175 = vld [vmem:[#allocation3 + $0xc4] sm:$0xf]
  %v6176 = vld [vmem:[#allocation3 + $0xc8] sm:$0x1]
  %v6177 = vld [vmem:[#allocation3 + $0xcc] sm:$0xf]
  %v6178 = vld [vmem:[#allocation3 + $0xd0] sm:$0xf]
  %v6179 = vld [vmem:[#allocation3 + $0xd4] sm:$0x1]
  %v6180 = vld [vmem:[#allocation3 + $0xd8] sm:$0xf]
  %v6181 = vld [vmem:[#allocation3 + $0xdc] sm:$0xf]
  %v6182 = vld [vmem:[#allocation3 + $0xe0] sm:$0x1]
  %v6183 = vld [vmem:[#allocation3 + $0xe4] sm:$0xf]
  %v6184 = vld [vmem:[#allocation3 + $0xe8] sm:$0xf]
  %v6185 = vld [vmem:[#allocation3 + $0xec] sm:$0x1]
  %v6186 = vld [vmem:[#allocation3 + $0xf0] sm:$0xf]
  %v6187 = vld [vmem:[#allocation3 + $0xf4] sm:$0xf]
  %v6188 = vld [vmem:[#allocation3 + $0xf8] sm:$0x1]
  %v6189 = vld [vmem:[#allocation3 + $0xfc] sm:$0xf]
  %v6190 = vld [vmem:[#allocation3 + $0x100] sm:$0xf]
  %v6191 = vld [vmem:[#allocation3 + $0x104] sm:$0x1]
  %v6192 = vld [vmem:[#allocation3 + $0x108] sm:$0xf]
  %v6193 = vld [vmem:[#allocation3 + $0x10c] sm:$0xf]
  %v6194 = vld [vmem:[#allocation3 + $0x110] sm:$0x1]
  %v6195 = vld [vmem:[#allocation3 + $0x114] sm:$0xf]
  %v6196 = vld [vmem:[#allocation3 + $0x118] sm:$0xf]
  %v6197 = vld [vmem:[#allocation3 + $0x11c] sm:$0x1]
  %v6198 = vld [vmem:[#allocation3 + $0x120] sm:$0xf]
  %v6199 = vld [vmem:[#allocation3 + $0x124] sm:$0xf]
  %v6200 = vld [vmem:[#allocation3 + $0x128] sm:$0x1]
  %v6201 = vld [vmem:[#allocation3 + $0x12c] sm:$0xf]
  %v6202 = vld [vmem:[#allocation3 + $0x130] sm:$0xf]
  %v6203 = vld [vmem:[#allocation3 + $0x134] sm:$0x1]
  %v6204 = vld [vmem:[#allocation3 + $0x138] sm:$0xf]
  %v6205 = vld [vmem:[#allocation3 + $0x13c] sm:$0xf]
  %v6206 = vld [vmem:[#allocation3 + $0x140] sm:$0x1]
  %v6207 = vld [vmem:[#allocation3 + $0x144] sm:$0xf]
  %v6208 = vld [vmem:[#allocation3 + $0x148] sm:$0xf]
  %v6209 = vld [vmem:[#allocation3 + $0x14c] sm:$0x1]
  %v6210 = vld [vmem:[#allocation3 + $0x150] sm:$0xf]
  %v6211 = vld [vmem:[#allocation3 + $0x154] sm:$0xf]
  %v6212 = vld [vmem:[#allocation3 + $0x158] sm:$0x1]
  %v6213 = vld [vmem:[#allocation3 + $0x15c] sm:$0xf]
  %v6214 = vld [vmem:[#allocation3 + $0x160] sm:$0xf]
  %v6215 = vld [vmem:[#allocation3 + $0x164] sm:$0x1]
  %v6216 = vld [vmem:[#allocation3 + $0x168] sm:$0xf]
  %v6217 = vld [vmem:[#allocation3 + $0x16c] sm:$0xf]
  %v6218 = vld [vmem:[#allocation3 + $0x170] sm:$0x1]
  %v6219 = vld [vmem:[#allocation3 + $0x174] sm:$0xf]
  %v6220 = vld [vmem:[#allocation3 + $0x178] sm:$0xf]
  %v6221 = vld [vmem:[#allocation3 + $0x17c] sm:$0x1]
  %v6222 = vld [vmem:[#allocation3 + $0x180] sm:$0xf]
  %v6223 = vld [vmem:[#allocation3 + $0x184] sm:$0xf]
  %v6224 = vld [vmem:[#allocation3 + $0x188] sm:$0x1]
  %v6225 = vld [vmem:[#allocation3 + $0x18c] sm:$0xf]
  %v6226 = vld [vmem:[#allocation3 + $0x190] sm:$0xf]
  %v6227 = vld [vmem:[#allocation3 + $0x194] sm:$0x1]
  %v6228 = vld [vmem:[#allocation3 + $0x198] sm:$0xf]
  %v6229 = vld [vmem:[#allocation3 + $0x19c] sm:$0xf]
  %v6230 = vld [vmem:[#allocation3 + $0x1a0] sm:$0x1]
  %v6231 = vld [vmem:[#allocation3 + $0x1a4] sm:$0xf]
  %v6232 = vld [vmem:[#allocation3 + $0x1a8] sm:$0xf]
  %v6233 = vld [vmem:[#allocation3 + $0x1ac] sm:$0x1]
  %v6235 = vshrl.u32 %v6126, 16
  %v6237 = vrot.slane %v6235, 4
  %v6238 = vshll.u32 %v6126, 16
  %v6240 = vrot.slane %v6238, 5
  %v6241 = vor.u32 %v6237, %v6240
  %v6242 = vrot.slane %v6241, 4
  %v6244 = vshll.u32 %v6127, 16
  %v6246 = vrot.slane %v6244, 5
  %v6247 = vsel %vm1297, %v6242, %v6246
  %v6248 = vshrl.u32 %v6127, 16
  %v6250 = vrot.slane %v6248, 4
  %v6251 = vor.u32 %v6250, %v6246
  %v6252 = vrot.slane %v6251, 4
  %v6254 = vshll.u32 %v6128, 16
  %v6256 = vrot.slane %v6254, 5
  %v6257 = vsel %vm1297, %v6252, %v6256
  %v6259 = vshrl.u32 %v6129, 16
  %v6261 = vrot.slane %v6259, 4
  %v6262 = vshll.u32 %v6129, 16
  %v6264 = vrot.slane %v6262, 5
  %v6265 = vor.u32 %v6261, %v6264
  %v6266 = vrot.slane %v6265, 4
  %v6268 = vshll.u32 %v6130, 16
  %v6270 = vrot.slane %v6268, 5
  %v6271 = vsel %vm1297, %v6266, %v6270
  %v6272 = vshrl.u32 %v6130, 16
  %v6274 = vrot.slane %v6272, 4
  %v6275 = vor.u32 %v6274, %v6270
  %v6276 = vrot.slane %v6275, 4
  %v6278 = vshll.u32 %v6131, 16
  %v6280 = vrot.slane %v6278, 5
  %v6281 = vsel %vm1297, %v6276, %v6280
  %v6283 = vshrl.u32 %v6132, 16
  %v6285 = vrot.slane %v6283, 4
  %v6286 = vshll.u32 %v6132, 16
  %v6288 = vrot.slane %v6286, 5
  %v6289 = vor.u32 %v6285, %v6288
  %v6290 = vrot.slane %v6289, 4
  %v6292 = vshll.u32 %v6133, 16
  %v6294 = vrot.slane %v6292, 5
  %v6295 = vsel %vm1297, %v6290, %v6294
  %v6296 = vshrl.u32 %v6133, 16
  %v6298 = vrot.slane %v6296, 4
  %v6299 = vor.u32 %v6298, %v6294
  %v6300 = vrot.slane %v6299, 4
  %v6302 = vshll.u32 %v6134, 16
  %v6304 = vrot.slane %v6302, 5
  %v6305 = vsel %vm1297, %v6300, %v6304
  %v6307 = vshrl.u32 %v6135, 16
  %v6309 = vrot.slane %v6307, 4
  %v6310 = vshll.u32 %v6135, 16
  %v6312 = vrot.slane %v6310, 5
  %v6313 = vor.u32 %v6309, %v6312
  %v6314 = vrot.slane %v6313, 4
  %v6316 = vshll.u32 %v6136, 16
  %v6318 = vrot.slane %v6316, 5
  %v6319 = vsel %vm1297, %v6314, %v6318
  %v6320 = vshrl.u32 %v6136, 16
  %v6322 = vrot.slane %v6320, 4
  %v6323 = vor.u32 %v6322, %v6318
  %v6324 = vrot.slane %v6323, 4
  %v6326 = vshll.u32 %v6137, 16
  %v6328 = vrot.slane %v6326, 5
  %v6329 = vsel %vm1297, %v6324, %v6328
  %v6331 = vshrl.u32 %v6138, 16
  %v6333 = vrot.slane %v6331, 4
  %v6334 = vshll.u32 %v6138, 16
  %v6336 = vrot.slane %v6334, 5
  %v6337 = vor.u32 %v6333, %v6336
  %v6338 = vrot.slane %v6337, 4
  %v6340 = vshll.u32 %v6139, 16
  %v6342 = vrot.slane %v6340, 5
  %v6343 = vsel %vm1297, %v6338, %v6342
  %v6344 = vshrl.u32 %v6139, 16
  %v6346 = vrot.slane %v6344, 4
  %v6347 = vor.u32 %v6346, %v6342
  %v6348 = vrot.slane %v6347, 4
  %v6350 = vshll.u32 %v6140, 16
  %v6352 = vrot.slane %v6350, 5
  %v6353 = vsel %vm1297, %v6348, %v6352
  %v6355 = vshrl.u32 %v6141, 16
  %v6357 = vrot.slane %v6355, 4
  %v6358 = vshll.u32 %v6141, 16
  %v6360 = vrot.slane %v6358, 5
  %v6361 = vor.u32 %v6357, %v6360
  %v6362 = vrot.slane %v6361, 4
  %v6364 = vshll.u32 %v6142, 16
  %v6366 = vrot.slane %v6364, 5
  %v6367 = vsel %vm1297, %v6362, %v6366
  %v6368 = vshrl.u32 %v6142, 16
  %v6370 = vrot.slane %v6368, 4
  %v6371 = vor.u32 %v6370, %v6366
  %v6372 = vrot.slane %v6371, 4
  %v6374 = vshll.u32 %v6143, 16
  %v6376 = vrot.slane %v6374, 5
  %v6377 = vsel %vm1297, %v6372, %v6376
  %v6379 = vshrl.u32 %v6144, 16
  %v6381 = vrot.slane %v6379, 4
  %v6382 = vshll.u32 %v6144, 16
  %v6384 = vrot.slane %v6382, 5
  %v6385 = vor.u32 %v6381, %v6384
  %v6386 = vrot.slane %v6385, 4
  %v6388 = vshll.u32 %v6145, 16
  %v6390 = vrot.slane %v6388, 5
  %v6391 = vsel %vm1297, %v6386, %v6390
  %v6392 = vshrl.u32 %v6145, 16
  %v6394 = vrot.slane %v6392, 4
  %v6395 = vor.u32 %v6394, %v6390
  %v6396 = vrot.slane %v6395, 4
  %v6398 = vshll.u32 %v6146, 16
  %v6400 = vrot.slane %v6398, 5
  %v6401 = vsel %vm1297, %v6396, %v6400
  %v6403 = vshrl.u32 %v6147, 16
  %v6405 = vrot.slane %v6403, 4
  %v6406 = vshll.u32 %v6147, 16
  %v6408 = vrot.slane %v6406, 5
  %v6409 = vor.u32 %v6405, %v6408
  %v6410 = vrot.slane %v6409, 4
  %v6412 = vshll.u32 %v6148, 16
  %v6414 = vrot.slane %v6412, 5
  %v6415 = vsel %vm1297, %v6410, %v6414
  %v6416 = vshrl.u32 %v6148, 16
  %v6418 = vrot.slane %v6416, 4
  %v6419 = vor.u32 %v6418, %v6414
  %v6420 = vrot.slane %v6419, 4
  %v6422 = vshll.u32 %v6149, 16
  %v6424 = vrot.slane %v6422, 5
  %v6425 = vsel %vm1297, %v6420, %v6424
  %v6427 = vshrl.u32 %v6150, 16
  %v6429 = vrot.slane %v6427, 4
  %v6430 = vshll.u32 %v6150, 16
  %v6432 = vrot.slane %v6430, 5
  %v6433 = vor.u32 %v6429, %v6432
  %v6434 = vrot.slane %v6433, 4
  %v6436 = vshll.u32 %v6151, 16
  %v6438 = vrot.slane %v6436, 5
  %v6439 = vsel %vm1297, %v6434, %v6438
  %v6440 = vshrl.u32 %v6151, 16
  %v6442 = vrot.slane %v6440, 4
  %v6443 = vor.u32 %v6442, %v6438
  %v6444 = vrot.slane %v6443, 4
  %v6446 = vshll.u32 %v6152, 16
  %v6448 = vrot.slane %v6446, 5
  %v6449 = vsel %vm1297, %v6444, %v6448
  %v6451 = vshrl.u32 %v6153, 16
  %v6453 = vrot.slane %v6451, 4
  %v6454 = vshll.u32 %v6153, 16
  %v6456 = vrot.slane %v6454, 5
  %v6457 = vor.u32 %v6453, %v6456
  %v6458 = vrot.slane %v6457, 4
  %v6460 = vshll.u32 %v6154, 16
  %v6462 = vrot.slane %v6460, 5
  %v6463 = vsel %vm1297, %v6458, %v6462
  %v6464 = vshrl.u32 %v6154, 16
  %v6466 = vrot.slane %v6464, 4
  %v6467 = vor.u32 %v6466, %v6462
  %v6468 = vrot.slane %v6467, 4
  %v6470 = vshll.u32 %v6155, 16
  %v6472 = vrot.slane %v6470, 5
  %v6473 = vsel %vm1297, %v6468, %v6472
  %v6475 = vshrl.u32 %v6156, 16
  %v6477 = vrot.slane %v6475, 4
  %v6478 = vshll.u32 %v6156, 16
  %v6480 = vrot.slane %v6478, 5
  %v6481 = vor.u32 %v6477, %v6480
  %v6482 = vrot.slane %v6481, 4
  %v6484 = vshll.u32 %v6157, 16
  %v6486 = vrot.slane %v6484, 5
  %v6487 = vsel %vm1297, %v6482, %v6486
  %v6488 = vshrl.u32 %v6157, 16
  %v6490 = vrot.slane %v6488, 4
  %v6491 = vor.u32 %v6490, %v6486
  %v6492 = vrot.slane %v6491, 4
  %v6494 = vshll.u32 %v6158, 16
  %v6496 = vrot.slane %v6494, 5
  %v6497 = vsel %vm1297, %v6492, %v6496
  %v6499 = vshrl.u32 %v6159, 16
  %v6501 = vrot.slane %v6499, 4
  %v6502 = vshll.u32 %v6159, 16
  %v6504 = vrot.slane %v6502, 5
  %v6505 = vor.u32 %v6501, %v6504
  %v6506 = vrot.slane %v6505, 4
  %v6508 = vshll.u32 %v6160, 16
  %v6510 = vrot.slane %v6508, 5
  %v6511 = vsel %vm1297, %v6506, %v6510
  %v6512 = vshrl.u32 %v6160, 16
  %v6514 = vrot.slane %v6512, 4
  %v6515 = vor.u32 %v6514, %v6510
  %v6516 = vrot.slane %v6515, 4
  %v6518 = vshll.u32 %v6161, 16
  %v6520 = vrot.slane %v6518, 5
  %v6521 = vsel %vm1297, %v6516, %v6520
  %v6523 = vshrl.u32 %v6162, 16
  %v6525 = vrot.slane %v6523, 4
  %v6526 = vshll.u32 %v6162, 16
  %v6528 = vrot.slane %v6526, 5
  %v6529 = vor.u32 %v6525, %v6528
  %v6530 = vrot.slane %v6529, 4
  %v6532 = vshll.u32 %v6163, 16
  %v6534 = vrot.slane %v6532, 5
  %v6535 = vsel %vm1297, %v6530, %v6534
  %v6536 = vshrl.u32 %v6163, 16
  %v6538 = vrot.slane %v6536, 4
  %v6539 = vor.u32 %v6538, %v6534
  %v6540 = vrot.slane %v6539, 4
  %v6542 = vshll.u32 %v6164, 16
  %v6544 = vrot.slane %v6542, 5
  %v6545 = vsel %vm1297, %v6540, %v6544
  %v6547 = vshrl.u32 %v6165, 16
  %v6549 = vrot.slane %v6547, 4
  %v6550 = vshll.u32 %v6165, 16
  %v6552 = vrot.slane %v6550, 5
  %v6553 = vor.u32 %v6549, %v6552
  %v6554 = vrot.slane %v6553, 4
  %v6556 = vshll.u32 %v6166, 16
  %v6558 = vrot.slane %v6556, 5
  %v6559 = vsel %vm1297, %v6554, %v6558
  %v6560 = vshrl.u32 %v6166, 16
  %v6562 = vrot.slane %v6560, 4
  %v6563 = vor.u32 %v6562, %v6558
  %v6564 = vrot.slane %v6563, 4
  %v6566 = vshll.u32 %v6167, 16
  %v6568 = vrot.slane %v6566, 5
  %v6569 = vsel %vm1297, %v6564, %v6568
  %v6571 = vshrl.u32 %v6168, 16
  %v6573 = vrot.slane %v6571, 4
  %v6574 = vshll.u32 %v6168, 16
  %v6576 = vrot.slane %v6574, 5
  %v6577 = vor.u32 %v6573, %v6576
  %v6578 = vrot.slane %v6577, 4
  %v6580 = vshll.u32 %v6169, 16
  %v6582 = vrot.slane %v6580, 5
  %v6583 = vsel %vm1297, %v6578, %v6582
  %v6584 = vshrl.u32 %v6169, 16
  %v6586 = vrot.slane %v6584, 4
  %v6587 = vor.u32 %v6586, %v6582
  %v6588 = vrot.slane %v6587, 4
  %v6590 = vshll.u32 %v6170, 16
  %v6592 = vrot.slane %v6590, 5
  %v6593 = vsel %vm1297, %v6588, %v6592
  %v6595 = vshrl.u32 %v6171, 16
  %v6597 = vrot.slane %v6595, 4
  %v6598 = vshll.u32 %v6171, 16
  %v6600 = vrot.slane %v6598, 5
  %v6601 = vor.u32 %v6597, %v6600
  %v6602 = vrot.slane %v6601, 4
  %v6604 = vshll.u32 %v6172, 16
  %v6606 = vrot.slane %v6604, 5
  %v6607 = vsel %vm1297, %v6602, %v6606
  %v6608 = vshrl.u32 %v6172, 16
  %v6610 = vrot.slane %v6608, 4
  %v6611 = vor.u32 %v6610, %v6606
  %v6612 = vrot.slane %v6611, 4
  %v6614 = vshll.u32 %v6173, 16
  %v6616 = vrot.slane %v6614, 5
  %v6617 = vsel %vm1297, %v6612, %v6616
  %v6619 = vshrl.u32 %v6180, 16
  %v6621 = vrot.slane %v6619, 4
  %v6622 = vshll.u32 %v6180, 16
  %v6624 = vrot.slane %v6622, 5
  %v6625 = vor.u32 %v6621, %v6624
  %v6626 = vrot.slane %v6625, 4
  %v6628 = vshll.u32 %v6181, 16
  %v6630 = vrot.slane %v6628, 5
  %v6631 = vsel %vm1297, %v6626, %v6630
  %v6632 = vshrl.u32 %v6181, 16
  %v6634 = vrot.slane %v6632, 4
  %v6635 = vor.u32 %v6634, %v6630
  %v6636 = vrot.slane %v6635, 4
  %v6638 = vshll.u32 %v6182, 16
  %v6640 = vrot.slane %v6638, 5
  %v6641 = vsel %vm1297, %v6636, %v6640
  %v6643 = vshrl.u32 %v6183, 16
  %v6645 = vrot.slane %v6643, 4
  %v6646 = vshll.u32 %v6183, 16
  %v6648 = vrot.slane %v6646, 5
  %v6649 = vor.u32 %v6645, %v6648
  %v6650 = vrot.slane %v6649, 4
  %v6652 = vshll.u32 %v6184, 16
  %v6654 = vrot.slane %v6652, 5
  %v6655 = vsel %vm1297, %v6650, %v6654
  %v6656 = vshrl.u32 %v6184, 16
  %v6658 = vrot.slane %v6656, 4
  %v6659 = vor.u32 %v6658, %v6654
  %v6660 = vrot.slane %v6659, 4
  %v6662 = vshll.u32 %v6185, 16
  %v6664 = vrot.slane %v6662, 5
  %v6665 = vsel %vm1297, %v6660, %v6664
  %v6667 = vshrl.u32 %v6186, 16
  %v6669 = vrot.slane %v6667, 4
  %v6670 = vshll.u32 %v6186, 16
  %v6672 = vrot.slane %v6670, 5
  %v6673 = vor.u32 %v6669, %v6672
  %v6674 = vrot.slane %v6673, 4
  %v6676 = vshll.u32 %v6187, 16
  %v6678 = vrot.slane %v6676, 5
  %v6679 = vsel %vm1297, %v6674, %v6678
  %v6680 = vshrl.u32 %v6187, 16
  %v6682 = vrot.slane %v6680, 4
  %v6683 = vor.u32 %v6682, %v6678
  %v6684 = vrot.slane %v6683, 4
  %v6686 = vshll.u32 %v6188, 16
  %v6688 = vrot.slane %v6686, 5
  %v6689 = vsel %vm1297, %v6684, %v6688
  %v6691 = vshrl.u32 %v6189, 16
  %v6693 = vrot.slane %v6691, 4
  %v6694 = vshll.u32 %v6189, 16
  %v6696 = vrot.slane %v6694, 5
  %v6697 = vor.u32 %v6693, %v6696
  %v6698 = vrot.slane %v6697, 4
  %v6700 = vshll.u32 %v6190, 16
  %v6702 = vrot.slane %v6700, 5
  %v6703 = vsel %vm1297, %v6698, %v6702
  %v6704 = vshrl.u32 %v6190, 16
  %v6706 = vrot.slane %v6704, 4
  %v6707 = vor.u32 %v6706, %v6702
  %v6708 = vrot.slane %v6707, 4
  %v6710 = vshll.u32 %v6191, 16
  %v6712 = vrot.slane %v6710, 5
  %v6713 = vsel %vm1297, %v6708, %v6712
  %v6715 = vshrl.u32 %v6192, 16
  %v6717 = vrot.slane %v6715, 4
  %v6718 = vshll.u32 %v6192, 16
  %v6720 = vrot.slane %v6718, 5
  %v6721 = vor.u32 %v6717, %v6720
  %v6722 = vrot.slane %v6721, 4
  %v6724 = vshll.u32 %v6193, 16
  %v6726 = vrot.slane %v6724, 5
  %v6727 = vsel %vm1297, %v6722, %v6726
  %v6728 = vshrl.u32 %v6193, 16
  %v6730 = vrot.slane %v6728, 4
  %v6731 = vor.u32 %v6730, %v6726
  %v6732 = vrot.slane %v6731, 4
  %v6734 = vshll.u32 %v6194, 16
  %v6736 = vrot.slane %v6734, 5
  %v6737 = vsel %vm1297, %v6732, %v6736
  %v6739 = vshrl.u32 %v6195, 16
  %v6741 = vrot.slane %v6739, 4
  %v6742 = vshll.u32 %v6195, 16
  %v6744 = vrot.slane %v6742, 5
  %v6745 = vor.u32 %v6741, %v6744
  %v6746 = vrot.slane %v6745, 4
  %v6748 = vshll.u32 %v6196, 16
  %v6750 = vrot.slane %v6748, 5
  %v6751 = vsel %vm1297, %v6746, %v6750
  %v6752 = vshrl.u32 %v6196, 16
  %v6754 = vrot.slane %v6752, 4
  %v6755 = vor.u32 %v6754, %v6750
  %v6756 = vrot.slane %v6755, 4
  %v6758 = vshll.u32 %v6197, 16
  %v6760 = vrot.slane %v6758, 5
  %v6761 = vsel %vm1297, %v6756, %v6760
  %v6763 = vshrl.u32 %v6198, 16
  %v6765 = vrot.slane %v6763, 4
  %v6766 = vshll.u32 %v6198, 16
  %v6768 = vrot.slane %v6766, 5
  %v6769 = vor.u32 %v6765, %v6768
  %v6770 = vrot.slane %v6769, 4
  %v6772 = vshll.u32 %v6199, 16
  %v6774 = vrot.slane %v6772, 5
  %v6775 = vsel %vm1297, %v6770, %v6774
  %v6776 = vshrl.u32 %v6199, 16
  %v6778 = vrot.slane %v6776, 4
  %v6779 = vor.u32 %v6778, %v6774
  %v6780 = vrot.slane %v6779, 4
  %v6782 = vshll.u32 %v6200, 16
  %v6784 = vrot.slane %v6782, 5
  %v6785 = vsel %vm1297, %v6780, %v6784
  %v6787 = vshrl.u32 %v6201, 16
  %v6789 = vrot.slane %v6787, 4
  %v6790 = vshll.u32 %v6201, 16
  %v6792 = vrot.slane %v6790, 5
  %v6793 = vor.u32 %v6789, %v6792
  %v6794 = vrot.slane %v6793, 4
  %v6796 = vshll.u32 %v6202, 16
  %v6798 = vrot.slane %v6796, 5
  %v6799 = vsel %vm1297, %v6794, %v6798
  %v6800 = vshrl.u32 %v6202, 16
  %v6802 = vrot.slane %v6800, 4
  %v6803 = vor.u32 %v6802, %v6798
  %v6804 = vrot.slane %v6803, 4
  %v6806 = vshll.u32 %v6203, 16
  %v6808 = vrot.slane %v6806, 5
  %v6809 = vsel %vm1297, %v6804, %v6808
  %v6811 = vshrl.u32 %v6204, 16
  %v6813 = vrot.slane %v6811, 4
  %v6814 = vshll.u32 %v6204, 16
  %v6816 = vrot.slane %v6814, 5
  %v6817 = vor.u32 %v6813, %v6816
  %v6818 = vrot.slane %v6817, 4
  %v6820 = vshll.u32 %v6205, 16
  %v6822 = vrot.slane %v6820, 5
  %v6823 = vsel %vm1297, %v6818, %v6822
  %v6824 = vshrl.u32 %v6205, 16
  %v6826 = vrot.slane %v6824, 4
  %v6827 = vor.u32 %v6826, %v6822
  %v6828 = vrot.slane %v6827, 4
  %v6830 = vshll.u32 %v6206, 16
  %v6832 = vrot.slane %v6830, 5
  %v6833 = vsel %vm1297, %v6828, %v6832
  %v6835 = vshrl.u32 %v6207, 16
  %v6837 = vrot.slane %v6835, 4
  %v6838 = vshll.u32 %v6207, 16
  %v6840 = vrot.slane %v6838, 5
  %v6841 = vor.u32 %v6837, %v6840
  %v6842 = vrot.slane %v6841, 4
  %v6844 = vshll.u32 %v6208, 16
  %v6846 = vrot.slane %v6844, 5
  %v6847 = vsel %vm1297, %v6842, %v6846
  %v6848 = vshrl.u32 %v6208, 16
  %v6850 = vrot.slane %v6848, 4
  %v6851 = vor.u32 %v6850, %v6846
  %v6852 = vrot.slane %v6851, 4
  %v6854 = vshll.u32 %v6209, 16
  %v6856 = vrot.slane %v6854, 5
  %v6857 = vsel %vm1297, %v6852, %v6856
  %v6859 = vshrl.u32 %v6210, 16
  %v6861 = vrot.slane %v6859, 4
  %v6862 = vshll.u32 %v6210, 16
  %v6864 = vrot.slane %v6862, 5
  %v6865 = vor.u32 %v6861, %v6864
  %v6866 = vrot.slane %v6865, 4
  %v6868 = vshll.u32 %v6211, 16
  %v6870 = vrot.slane %v6868, 5
  %v6871 = vsel %vm1297, %v6866, %v6870
  %v6872 = vshrl.u32 %v6211, 16
  %v6874 = vrot.slane %v6872, 4
  %v6875 = vor.u32 %v6874, %v6870
  %v6876 = vrot.slane %v6875, 4
  %v6878 = vshll.u32 %v6212, 16
  %v6880 = vrot.slane %v6878, 5
  %v6881 = vsel %vm1297, %v6876, %v6880
  %v6883 = vshrl.u32 %v6213, 16
  %v6885 = vrot.slane %v6883, 4
  %v6886 = vshll.u32 %v6213, 16
  %v6888 = vrot.slane %v6886, 5
  %v6889 = vor.u32 %v6885, %v6888
  %v6890 = vrot.slane %v6889, 4
  %v6892 = vshll.u32 %v6214, 16
  %v6894 = vrot.slane %v6892, 5
  %v6895 = vsel %vm1297, %v6890, %v6894
  %v6896 = vshrl.u32 %v6214, 16
  %v6898 = vrot.slane %v6896, 4
  %v6899 = vor.u32 %v6898, %v6894
  %v6900 = vrot.slane %v6899, 4
  %v6902 = vshll.u32 %v6215, 16
  %v6904 = vrot.slane %v6902, 5
  %v6905 = vsel %vm1297, %v6900, %v6904
  %v6907 = vshrl.u32 %v6216, 16
  %v6909 = vrot.slane %v6907, 4
  %v6910 = vshll.u32 %v6216, 16
  %v6912 = vrot.slane %v6910, 5
  %v6913 = vor.u32 %v6909, %v6912
  %v6914 = vrot.slane %v6913, 4
  %v6916 = vshll.u32 %v6217, 16
  %v6918 = vrot.slane %v6916, 5
  %v6919 = vsel %vm1297, %v6914, %v6918
  %v6920 = vshrl.u32 %v6217, 16
  %v6922 = vrot.slane %v6920, 4
  %v6923 = vor.u32 %v6922, %v6918
  %v6924 = vrot.slane %v6923, 4
  %v6926 = vshll.u32 %v6218, 16
  %v6928 = vrot.slane %v6926, 5
  %v6929 = vsel %vm1297, %v6924, %v6928
  %v6931 = vshrl.u32 %v6219, 16
  %v6933 = vrot.slane %v6931, 4
  %v6934 = vshll.u32 %v6219, 16
  %v6936 = vrot.slane %v6934, 5
  %v6937 = vor.u32 %v6933, %v6936
  %v6938 = vrot.slane %v6937, 4
  %v6940 = vshll.u32 %v6220, 16
  %v6942 = vrot.slane %v6940, 5
  %v6943 = vsel %vm1297, %v6938, %v6942
  %v6944 = vshrl.u32 %v6220, 16
  %v6946 = vrot.slane %v6944, 4
  %v6947 = vor.u32 %v6946, %v6942
  %v6948 = vrot.slane %v6947, 4
  %v6950 = vshll.u32 %v6221, 16
  %v6952 = vrot.slane %v6950, 5
  %v6953 = vsel %vm1297, %v6948, %v6952
  %v6955 = vshrl.u32 %v6222, 16
  %v6957 = vrot.slane %v6955, 4
  %v6958 = vshll.u32 %v6222, 16
  %v6960 = vrot.slane %v6958, 5
  %v6961 = vor.u32 %v6957, %v6960
  %v6962 = vrot.slane %v6961, 4
  %v6964 = vshll.u32 %v6223, 16
  %v6966 = vrot.slane %v6964, 5
  %v6967 = vsel %vm1297, %v6962, %v6966
  %v6968 = vshrl.u32 %v6223, 16
  %v6970 = vrot.slane %v6968, 4
  %v6971 = vor.u32 %v6970, %v6966
  %v6972 = vrot.slane %v6971, 4
  %v6974 = vshll.u32 %v6224, 16
  %v6976 = vrot.slane %v6974, 5
  %v6977 = vsel %vm1297, %v6972, %v6976
  %v6979 = vshrl.u32 %v6225, 16
  %v6981 = vrot.slane %v6979, 4
  %v6982 = vshll.u32 %v6225, 16
  %v6984 = vrot.slane %v6982, 5
  %v6985 = vor.u32 %v6981, %v6984
  %v6986 = vrot.slane %v6985, 4
  %v6988 = vshll.u32 %v6226, 16
  %v6990 = vrot.slane %v6988, 5
  %v6991 = vsel %vm1297, %v6986, %v6990
  %v6992 = vshrl.u32 %v6226, 16
  %v6994 = vrot.slane %v6992, 4
  %v6995 = vor.u32 %v6994, %v6990
  %v6996 = vrot.slane %v6995, 4
  %v6998 = vshll.u32 %v6227, 16
  %v7000 = vrot.slane %v6998, 5
  %v7001 = vsel %vm1297, %v6996, %v7000
  %v7098 = vrot.slane %v6126, 5
  %v7099 = vrot.slane %v7098, 4
  %v7100 = vrot.slane %v6127, 5
  %v7101 = vsel %vm2164, %v7099, %v7100
  %v7102 = vrot.slane %v7100, 4
  %v7103 = vrot.slane %v6128, 5
  %v7104 = vsel %vm2164, %v7102, %v7103
  %v7105 = vrot.slane %v6129, 5
  %v7106 = vrot.slane %v7105, 4
  %v7107 = vrot.slane %v6130, 5
  %v7108 = vsel %vm2164, %v7106, %v7107
  %v7109 = vrot.slane %v7107, 4
  %v7110 = vrot.slane %v6131, 5
  %v7111 = vsel %vm2164, %v7109, %v7110
  %v7112 = vrot.slane %v6132, 5
  %v7113 = vrot.slane %v7112, 4
  %v7114 = vrot.slane %v6133, 5
  %v7115 = vsel %vm2164, %v7113, %v7114
  %v7116 = vrot.slane %v7114, 4
  %v7117 = vrot.slane %v6134, 5
  %v7118 = vsel %vm2164, %v7116, %v7117
  %v7119 = vrot.slane %v6135, 5
  %v7120 = vrot.slane %v7119, 4
  %v7121 = vrot.slane %v6136, 5
  %v7122 = vsel %vm2164, %v7120, %v7121
  %v7123 = vrot.slane %v7121, 4
  %v7124 = vrot.slane %v6137, 5
  %v7125 = vsel %vm2164, %v7123, %v7124
  %v7126 = vrot.slane %v6138, 5
  %v7127 = vrot.slane %v7126, 4
  %v7128 = vrot.slane %v6139, 5
  %v7129 = vsel %vm2164, %v7127, %v7128
  %v7130 = vrot.slane %v7128, 4
  %v7131 = vrot.slane %v6140, 5
  %v7132 = vsel %vm2164, %v7130, %v7131
  %v7133 = vrot.slane %v6141, 5
  %v7134 = vrot.slane %v7133, 4
  %v7135 = vrot.slane %v6142, 5
  %v7136 = vsel %vm2164, %v7134, %v7135
  %v7137 = vrot.slane %v7135, 4
  %v7138 = vrot.slane %v6143, 5
  %v7139 = vsel %vm2164, %v7137, %v7138
  %v7140 = vrot.slane %v6144, 5
  %v7141 = vrot.slane %v7140, 4
  %v7142 = vrot.slane %v6145, 5
  %v7143 = vsel %vm2164, %v7141, %v7142
  %v7144 = vrot.slane %v7142, 4
  %v7145 = vrot.slane %v6146, 5
  %v7146 = vsel %vm2164, %v7144, %v7145
  %v7147 = vrot.slane %v6147, 5
  %v7148 = vrot.slane %v7147, 4
  %v7149 = vrot.slane %v6148, 5
  %v7150 = vsel %vm2164, %v7148, %v7149
  %v7151 = vrot.slane %v7149, 4
  %v7152 = vrot.slane %v6149, 5
  %v7153 = vsel %vm2164, %v7151, %v7152
  %v7154 = vrot.slane %v6150, 5
  %v7155 = vrot.slane %v7154, 4
  %v7156 = vrot.slane %v6151, 5
  %v7157 = vsel %vm2164, %v7155, %v7156
  %v7158 = vrot.slane %v7156, 4
  %v7159 = vrot.slane %v6152, 5
  %v7160 = vsel %vm2164, %v7158, %v7159
  %v7161 = vrot.slane %v6153, 5
  %v7162 = vrot.slane %v7161, 4
  %v7163 = vrot.slane %v6154, 5
  %v7164 = vsel %vm2164, %v7162, %v7163
  %v7165 = vrot.slane %v7163, 4
  %v7166 = vrot.slane %v6155, 5
  %v7167 = vsel %vm2164, %v7165, %v7166
  %v7168 = vrot.slane %v6156, 5
  %v7169 = vrot.slane %v7168, 4
  %v7170 = vrot.slane %v6157, 5
  %v7171 = vsel %vm2164, %v7169, %v7170
  %v7172 = vrot.slane %v7170, 4
  %v7173 = vrot.slane %v6158, 5
  %v7174 = vsel %vm2164, %v7172, %v7173
  %v7175 = vrot.slane %v6159, 5
  %v7176 = vrot.slane %v7175, 4
  %v7177 = vrot.slane %v6160, 5
  %v7178 = vsel %vm2164, %v7176, %v7177
  %v7179 = vrot.slane %v7177, 4
  %v7180 = vrot.slane %v6161, 5
  %v7181 = vsel %vm2164, %v7179, %v7180
  %v7182 = vrot.slane %v6162, 5
  %v7183 = vrot.slane %v7182, 4
  %v7184 = vrot.slane %v6163, 5
  %v7185 = vsel %vm2164, %v7183, %v7184
  %v7186 = vrot.slane %v7184, 4
  %v7187 = vrot.slane %v6164, 5
  %v7188 = vsel %vm2164, %v7186, %v7187
  %v7189 = vrot.slane %v6165, 5
  %v7190 = vrot.slane %v7189, 4
  %v7191 = vrot.slane %v6166, 5
  %v7192 = vsel %vm2164, %v7190, %v7191
  %v7193 = vrot.slane %v7191, 4
  %v7194 = vrot.slane %v6167, 5
  %v7195 = vsel %vm2164, %v7193, %v7194
  %v7196 = vrot.slane %v6168, 5
  %v7197 = vrot.slane %v7196, 4
  %v7198 = vrot.slane %v6169, 5
  %v7199 = vsel %vm2164, %v7197, %v7198
  %v7200 = vrot.slane %v7198, 4
  %v7201 = vrot.slane %v6170, 5
  %v7202 = vsel %vm2164, %v7200, %v7201
  %v7203 = vrot.slane %v6171, 5
  %v7204 = vrot.slane %v7203, 4
  %v7205 = vrot.slane %v6172, 5
  %v7206 = vsel %vm2164, %v7204, %v7205
  %v7207 = vrot.slane %v7205, 4
  %v7208 = vrot.slane %v6173, 5
  %v7209 = vsel %vm2164, %v7207, %v7208
  %v7210 = vrot.slane %v6180, 5
  %v7211 = vrot.slane %v7210, 4
  %v7212 = vrot.slane %v6181, 5
  %v7213 = vsel %vm2164, %v7211, %v7212
  %v7214 = vrot.slane %v7212, 4
  %v7215 = vrot.slane %v6182, 5
  %v7216 = vsel %vm2164, %v7214, %v7215
  %v7217 = vrot.slane %v6183, 5
  %v7218 = vrot.slane %v7217, 4
  %v7219 = vrot.slane %v6184, 5
  %v7220 = vsel %vm2164, %v7218, %v7219
  %v7221 = vrot.slane %v7219, 4
  %v7222 = vrot.slane %v6185, 5
  %v7223 = vsel %vm2164, %v7221, %v7222
  %v7224 = vrot.slane %v6186, 5
  %v7225 = vrot.slane %v7224, 4
  %v7226 = vrot.slane %v6187, 5
  %v7227 = vsel %vm2164, %v7225, %v7226
  %v7228 = vrot.slane %v7226, 4
  %v7229 = vrot.slane %v6188, 5
  %v7230 = vsel %vm2164, %v7228, %v7229
  %v7231 = vrot.slane %v6189, 5
  %v7232 = vrot.slane %v7231, 4
  %v7233 = vrot.slane %v6190, 5
  %v7234 = vsel %vm2164, %v7232, %v7233
  %v7235 = vrot.slane %v7233, 4
  %v7236 = vrot.slane %v6191, 5
  %v7237 = vsel %vm2164, %v7235, %v7236
  %v7238 = vrot.slane %v6192, 5
  %v7239 = vrot.slane %v7238, 4
  %v7240 = vrot.slane %v6193, 5
  %v7241 = vsel %vm2164, %v7239, %v7240
  %v7242 = vrot.slane %v7240, 4
  %v7243 = vrot.slane %v6194, 5
  %v7244 = vsel %vm2164, %v7242, %v7243
  %v7245 = vrot.slane %v6195, 5
  %v7246 = vrot.slane %v7245, 4
  %v7247 = vrot.slane %v6196, 5
  %v7248 = vsel %vm2164, %v7246, %v7247
  %v7249 = vrot.slane %v7247, 4
  %v7250 = vrot.slane %v6197, 5
  %v7251 = vsel %vm2164, %v7249, %v7250
  %v7252 = vrot.slane %v6198, 5
  %v7253 = vrot.slane %v7252, 4
  %v7254 = vrot.slane %v6199, 5
  %v7255 = vsel %vm2164, %v7253, %v7254
  %v7256 = vrot.slane %v7254, 4
  %v7257 = vrot.slane %v6200, 5
  %v7258 = vsel %vm2164, %v7256, %v7257
  %v7259 = vrot.slane %v6201, 5
  %v7260 = vrot.slane %v7259, 4
  %v7261 = vrot.slane %v6202, 5
  %v7262 = vsel %vm2164, %v7260, %v7261
  %v7263 = vrot.slane %v7261, 4
  %v7264 = vrot.slane %v6203, 5
  %v7265 = vsel %vm2164, %v7263, %v7264
  %v7266 = vrot.slane %v6204, 5
  %v7267 = vrot.slane %v7266, 4
  %v7268 = vrot.slane %v6205, 5
  %v7269 = vsel %vm2164, %v7267, %v7268
  %v7270 = vrot.slane %v7268, 4
  %v7271 = vrot.slane %v6206, 5
  %v7272 = vsel %vm2164, %v7270, %v7271
  %v7273 = vrot.slane %v6207, 5
  %v7274 = vrot.slane %v7273, 4
  %v7275 = vrot.slane %v6208, 5
  %v7276 = vsel %vm2164, %v7274, %v7275
  %v7277 = vrot.slane %v7275, 4
  %v7278 = vrot.slane %v6209, 5
  %v7279 = vsel %vm2164, %v7277, %v7278
  %v7280 = vrot.slane %v6210, 5
  %v7281 = vrot.slane %v7280, 4
  %v7282 = vrot.slane %v6211, 5
  %v7283 = vsel %vm2164, %v7281, %v7282
  %v7284 = vrot.slane %v7282, 4
  %v7285 = vrot.slane %v6212, 5
  %v7286 = vsel %vm2164, %v7284, %v7285
  %v7287 = vrot.slane %v6213, 5
  %v7288 = vrot.slane %v7287, 4
  %v7289 = vrot.slane %v6214, 5
  %v7290 = vsel %vm2164, %v7288, %v7289
  %v7291 = vrot.slane %v7289, 4
  %v7292 = vrot.slane %v6215, 5
  %v7293 = vsel %vm2164, %v7291, %v7292
  %v7294 = vrot.slane %v6216, 5
  %v7295 = vrot.slane %v7294, 4
  %v7296 = vrot.slane %v6217, 5
  %v7297 = vsel %vm2164, %v7295, %v7296
  %v7298 = vrot.slane %v7296, 4
  %v7299 = vrot.slane %v6218, 5
  %v7300 = vsel %vm2164, %v7298, %v7299
  %v7301 = vrot.slane %v6219, 5
  %v7302 = vrot.slane %v7301, 4
  %v7303 = vrot.slane %v6220, 5
  %v7304 = vsel %vm2164, %v7302, %v7303
  %v7305 = vrot.slane %v7303, 4
  %v7306 = vrot.slane %v6221, 5
  %v7307 = vsel %vm2164, %v7305, %v7306
  %v7308 = vrot.slane %v6222, 5
  %v7309 = vrot.slane %v7308, 4
  %v7310 = vrot.slane %v6223, 5
  %v7311 = vsel %vm2164, %v7309, %v7310
  %v7312 = vrot.slane %v7310, 4
  %v7313 = vrot.slane %v6224, 5
  %v7314 = vsel %vm2164, %v7312, %v7313
  %v7315 = vrot.slane %v6225, 5
  %v7316 = vrot.slane %v7315, 4
  %v7317 = vrot.slane %v6226, 5
  %v7318 = vsel %vm2164, %v7316, %v7317
  %v7319 = vrot.slane %v7317, 4
  %v7320 = vrot.slane %v6227, 5
  %v7321 = vsel %vm2164, %v7319, %v7320
  %v7323 = vshrl.u32 %v6174, 16
  %v7325 = vrot.slane %v7323, 4
  %v7326 = vshll.u32 %v6174, 16
  %v7328 = vrot.slane %v7326, 5
  %v7329 = vor.u32 %v7325, %v7328
  %v7330 = vrot.slane %v7329, 4
  %v7332 = vshll.u32 %v6175, 16
  %v7334 = vrot.slane %v7332, 5
  %v7335 = vsel %vm1297, %v7330, %v7334
  %v7336 = vshrl.u32 %v6175, 16
  %v7338 = vrot.slane %v7336, 4
  %v7339 = vor.u32 %v7338, %v7334
  %v7340 = vrot.slane %v7339, 4
  %v7342 = vshll.u32 %v6176, 16
  %v7344 = vrot.slane %v7342, 5
  %v7345 = vsel %vm1297, %v7340, %v7344
  %v7347 = vshrl.u32 %v6228, 16
  %v7349 = vrot.slane %v7347, 4
  %v7350 = vshll.u32 %v6228, 16
  %v7352 = vrot.slane %v7350, 5
  %v7353 = vor.u32 %v7349, %v7352
  %v7354 = vrot.slane %v7353, 4
  %v7356 = vshll.u32 %v6229, 16
  %v7358 = vrot.slane %v7356, 5
  %v7359 = vsel %vm1297, %v7354, %v7358
  %v7360 = vshrl.u32 %v6229, 16
  %v7362 = vrot.slane %v7360, 4
  %v7363 = vor.u32 %v7362, %v7358
  %v7364 = vrot.slane %v7363, 4
  %v7366 = vshll.u32 %v6230, 16
  %v7368 = vrot.slane %v7366, 5
  %v7369 = vsel %vm1297, %v7364, %v7368
  %v7376 = vrot.slane %v6174, 5
  %v7377 = vrot.slane %v7376, 4
  %v7378 = vrot.slane %v6175, 5
  %v7379 = vsel %vm2164, %v7377, %v7378
  %v7380 = vrot.slane %v7378, 4
  %v7381 = vrot.slane %v6176, 5
  %v7382 = vsel %vm2164, %v7380, %v7381
  %v7383 = vrot.slane %v6228, 5
  %v7384 = vrot.slane %v7383, 4
  %v7385 = vrot.slane %v6229, 5
  %v7386 = vsel %vm2164, %v7384, %v7385
  %v7387 = vrot.slane %v7385, 4
  %v7388 = vrot.slane %v6230, 5
  %v7389 = vsel %vm2164, %v7387, %v7388
  %v7391 = vshrl.u32 %v6177, 16
  %v7393 = vrot.slane %v7391, 4
  %v7394 = vshll.u32 %v6177, 16
  %v7396 = vrot.slane %v7394, 5
  %v7397 = vor.u32 %v7393, %v7396
  %v7398 = vrot.slane %v7397, 4
  %v7400 = vshll.u32 %v6178, 16
  %v7402 = vrot.slane %v7400, 5
  %v7403 = vsel %vm1297, %v7398, %v7402
  %v7404 = vshrl.u32 %v6178, 16
  %v7406 = vrot.slane %v7404, 4
  %v7407 = vor.u32 %v7406, %v7402
  %v7408 = vrot.slane %v7407, 4
  %v7410 = vshll.u32 %v6179, 16
  %v7412 = vrot.slane %v7410, 5
  %v7413 = vsel %vm1297, %v7408, %v7412
  %v7415 = vshrl.u32 %v6231, 16
  %v7417 = vrot.slane %v7415, 4
  %v7418 = vshll.u32 %v6231, 16
  %v7420 = vrot.slane %v7418, 5
  %v7421 = vor.u32 %v7417, %v7420
  %v7422 = vrot.slane %v7421, 4
  %v7424 = vshll.u32 %v6232, 16
  %v7426 = vrot.slane %v7424, 5
  %v7427 = vsel %vm1297, %v7422, %v7426
  %v7428 = vshrl.u32 %v6232, 16
  %v7430 = vrot.slane %v7428, 4
  %v7431 = vor.u32 %v7430, %v7426
  %v7432 = vrot.slane %v7431, 4
  %v7434 = vshll.u32 %v6233, 16
  %v7436 = vrot.slane %v7434, 5
  %v7437 = vsel %vm1297, %v7432, %v7436
  %v7444 = vrot.slane %v6177, 5
  %v7445 = vrot.slane %v7444, 4
  %v7446 = vrot.slane %v6178, 5
  %v7447 = vsel %vm2164, %v7445, %v7446
  %v7448 = vrot.slane %v7446, 4
  %v7449 = vrot.slane %v6179, 5
  %v7450 = vsel %vm2164, %v7448, %v7449
  %v7451 = vrot.slane %v6231, 5
  %v7452 = vrot.slane %v7451, 4
  %v7453 = vrot.slane %v6232, 5
  %v7454 = vsel %vm2164, %v7452, %v7453
  %v7455 = vrot.slane %v7453, 4
  %v7456 = vrot.slane %v6233, 5
  %v7457 = vsel %vm2164, %v7455, %v7456
  %v7458 = vunpack.c.l.b16 %v6126
  %v7459 = vunpack.c.l.b16 %v6127
  %v7460 = vunpack.c.l.b16 %v6129
  %v7461 = vunpack.c.l.b16 %v6130
  %v7462 = vunpack.c.l.b16 %v6132
  %v7463 = vunpack.c.l.b16 %v6133
  %v7464 = vunpack.c.l.b16 %v6135
  %v7465 = vunpack.c.l.b16 %v6136
  %v7466 = vunpack.c.l.b16 %v6138
  %v7467 = vunpack.c.l.b16 %v6139
  %v7468 = vunpack.c.l.b16 %v6141
  %v7469 = vunpack.c.l.b16 %v6142
  %v7470 = vunpack.c.l.b16 %v6144
  %v7471 = vunpack.c.l.b16 %v6145
  %v7472 = vunpack.c.l.b16 %v6147
  %v7473 = vunpack.c.l.b16 %v6148
  %v7474 = vunpack.c.l.b16 %v6150
  %v7475 = vunpack.c.l.b16 %v6151
  %v7476 = vunpack.c.l.b16 %v6153
  %v7477 = vunpack.c.l.b16 %v6154
  %v7478 = vunpack.c.l.b16 %v6156
  %v7479 = vunpack.c.l.b16 %v6157
  %v7480 = vunpack.c.l.b16 %v6159
  %v7481 = vunpack.c.l.b16 %v6160
  %v7482 = vunpack.c.l.b16 %v6162
  %v7483 = vunpack.c.l.b16 %v6163
  %v7484 = vunpack.c.l.b16 %v6165
  %v7485 = vunpack.c.l.b16 %v6166
  %v7486 = vunpack.c.l.b16 %v6168
  %v7487 = vunpack.c.l.b16 %v6169
  %v7488 = vunpack.c.l.b16 %v6171
  %v7489 = vunpack.c.l.b16 %v6172
  %v7490 = vunpack.c.l.b16 %v6180
  %v7491 = vunpack.c.l.b16 %v6181
  %v7492 = vunpack.c.l.b16 %v6183
  %v7493 = vunpack.c.l.b16 %v6184
  %v7494 = vunpack.c.l.b16 %v6186
  %v7495 = vunpack.c.l.b16 %v6187
  %v7496 = vunpack.c.l.b16 %v6189
  %v7497 = vunpack.c.l.b16 %v6190
  %v7498 = vunpack.c.l.b16 %v6192
  %v7499 = vunpack.c.l.b16 %v6193
  %v7500 = vunpack.c.l.b16 %v6195
  %v7501 = vunpack.c.l.b16 %v6196
  %v7502 = vunpack.c.l.b16 %v6198
  %v7503 = vunpack.c.l.b16 %v6199
  %v7504 = vunpack.c.l.b16 %v6201
  %v7505 = vunpack.c.l.b16 %v6202
  %v7506 = vunpack.c.l.b16 %v6204
  %v7507 = vunpack.c.l.b16 %v6205
  %v7508 = vunpack.c.l.b16 %v6207
  %v7509 = vunpack.c.l.b16 %v6208
  %v7510 = vunpack.c.l.b16 %v6210
  %v7511 = vunpack.c.l.b16 %v6211
  %v7512 = vunpack.c.l.b16 %v6213
  %v7513 = vunpack.c.l.b16 %v6214
  %v7514 = vunpack.c.l.b16 %v6216
  %v7515 = vunpack.c.l.b16 %v6217
  %v7516 = vunpack.c.l.b16 %v6219
  %v7517 = vunpack.c.l.b16 %v6220
  %v7518 = vunpack.c.l.b16 %v6222
  %v7519 = vunpack.c.l.b16 %v6223
  %v7520 = vunpack.c.l.b16 %v6225
  %v7521 = vunpack.c.l.b16 %v6226
  %v7522 = vpack.c.b16 %v7459, %v7458
  %v7523 = vpack.c.b16 %v7461, %v7460
  %v7524 = vpack.c.b16 %v7463, %v7462
  %v7525 = vpack.c.b16 %v7465, %v7464
  %v7526 = vpack.c.b16 %v7467, %v7466
  %v7527 = vpack.c.b16 %v7469, %v7468
  %v7528 = vpack.c.b16 %v7471, %v7470
  %v7529 = vpack.c.b16 %v7473, %v7472
  %v7530 = vpack.c.b16 %v7475, %v7474
  %v7531 = vpack.c.b16 %v7477, %v7476
  %v7532 = vpack.c.b16 %v7479, %v7478
  %v7533 = vpack.c.b16 %v7481, %v7480
  %v7534 = vpack.c.b16 %v7483, %v7482
  %v7535 = vpack.c.b16 %v7485, %v7484
  %v7536 = vpack.c.b16 %v7487, %v7486
  %v7537 = vpack.c.b16 %v7489, %v7488
  %v7538 = vpack.c.b16 %v7491, %v7490
  %v7539 = vpack.c.b16 %v7493, %v7492
  %v7540 = vpack.c.b16 %v7495, %v7494
  %v7541 = vpack.c.b16 %v7497, %v7496
  %v7542 = vpack.c.b16 %v7499, %v7498
  %v7543 = vpack.c.b16 %v7501, %v7500
  %v7544 = vpack.c.b16 %v7503, %v7502
  %v7545 = vpack.c.b16 %v7505, %v7504
  %v7546 = vpack.c.b16 %v7507, %v7506
  %v7547 = vpack.c.b16 %v7509, %v7508
  %v7548 = vpack.c.b16 %v7511, %v7510
  %v7549 = vpack.c.b16 %v7513, %v7512
  %v7550 = vpack.c.b16 %v7515, %v7514
  %v7551 = vpack.c.b16 %v7517, %v7516
  %v7552 = vpack.c.b16 %v7519, %v7518
  %v7553 = vpack.c.b16 %v7521, %v7520
  %v7554 = vunpack.c.l.b16 %v6247
  %v7555 = vunpack.c.l.b16 %v6257
  %v7556 = vunpack.c.l.b16 %v6271
  %v7557 = vunpack.c.l.b16 %v6281
  %v7558 = vunpack.c.l.b16 %v6295
  %v7559 = vunpack.c.l.b16 %v6305
  %v7560 = vunpack.c.l.b16 %v6319
  %v7561 = vunpack.c.l.b16 %v6329
  %v7562 = vunpack.c.l.b16 %v6343
  %v7563 = vunpack.c.l.b16 %v6353
  %v7564 = vunpack.c.l.b16 %v6367
  %v7565 = vunpack.c.l.b16 %v6377
  %v7566 = vunpack.c.l.b16 %v6391
  %v7567 = vunpack.c.l.b16 %v6401
  %v7568 = vunpack.c.l.b16 %v6415
  %v7569 = vunpack.c.l.b16 %v6425
  %v7570 = vunpack.c.l.b16 %v6439
  %v7571 = vunpack.c.l.b16 %v6449
  %v7572 = vunpack.c.l.b16 %v6463
  %v7573 = vunpack.c.l.b16 %v6473
  %v7574 = vunpack.c.l.b16 %v6487
  %v7575 = vunpack.c.l.b16 %v6497
  %v7576 = vunpack.c.l.b16 %v6511
  %v7577 = vunpack.c.l.b16 %v6521
  %v7578 = vunpack.c.l.b16 %v6535
  %v7579 = vunpack.c.l.b16 %v6545
  %v7580 = vunpack.c.l.b16 %v6559
  %v7581 = vunpack.c.l.b16 %v6569
  %v7582 = vunpack.c.l.b16 %v6583
  %v7583 = vunpack.c.l.b16 %v6593
  %v7584 = vunpack.c.l.b16 %v6607
  %v7585 = vunpack.c.l.b16 %v6617
  %v7586 = vunpack.c.l.b16 %v6631
  %v7587 = vunpack.c.l.b16 %v6641
  %v7588 = vunpack.c.l.b16 %v6655
  %v7589 = vunpack.c.l.b16 %v6665
  %v7590 = vunpack.c.l.b16 %v6679
  %v7591 = vunpack.c.l.b16 %v6689
  %v7592 = vunpack.c.l.b16 %v6703
  %v7593 = vunpack.c.l.b16 %v6713
  %v7594 = vunpack.c.l.b16 %v6727
  %v7595 = vunpack.c.l.b16 %v6737
  %v7596 = vunpack.c.l.b16 %v6751
  %v7597 = vunpack.c.l.b16 %v6761
  %v7598 = vunpack.c.l.b16 %v6775
  %v7599 = vunpack.c.l.b16 %v6785
  %v7600 = vunpack.c.l.b16 %v6799
  %v7601 = vunpack.c.l.b16 %v6809
  %v7602 = vunpack.c.l.b16 %v6823
  %v7603 = vunpack.c.l.b16 %v6833
  %v7604 = vunpack.c.l.b16 %v6847
  %v7605 = vunpack.c.l.b16 %v6857
  %v7606 = vunpack.c.l.b16 %v6871
  %v7607 = vunpack.c.l.b16 %v6881
  %v7608 = vunpack.c.l.b16 %v6895
  %v7609 = vunpack.c.l.b16 %v6905
  %v7610 = vunpack.c.l.b16 %v6919
  %v7611 = vunpack.c.l.b16 %v6929
  %v7612 = vunpack.c.l.b16 %v6943
  %v7613 = vunpack.c.l.b16 %v6953
  %v7614 = vunpack.c.l.b16 %v6967
  %v7615 = vunpack.c.l.b16 %v6977
  %v7616 = vunpack.c.l.b16 %v6991
  %v7617 = vunpack.c.l.b16 %v7001
  %v7618 = vpack.c.b16 %v7555, %v7554
  %v7619 = vpack.c.b16 %v7557, %v7556
  %v7620 = vpack.c.b16 %v7559, %v7558
  %v7621 = vpack.c.b16 %v7561, %v7560
  %v7622 = vpack.c.b16 %v7563, %v7562
  %v7623 = vpack.c.b16 %v7565, %v7564
  %v7624 = vpack.c.b16 %v7567, %v7566
  %v7625 = vpack.c.b16 %v7569, %v7568
  %v7626 = vpack.c.b16 %v7571, %v7570
  %v7627 = vpack.c.b16 %v7573, %v7572
  %v7628 = vpack.c.b16 %v7575, %v7574
  %v7629 = vpack.c.b16 %v7577, %v7576
  %v7630 = vpack.c.b16 %v7579, %v7578
  %v7631 = vpack.c.b16 %v7581, %v7580
  %v7632 = vpack.c.b16 %v7583, %v7582
  %v7633 = vpack.c.b16 %v7585, %v7584
  %v7634 = vpack.c.b16 %v7587, %v7586
  %v7635 = vpack.c.b16 %v7589, %v7588
  %v7636 = vpack.c.b16 %v7591, %v7590
  %v7637 = vpack.c.b16 %v7593, %v7592
  %v7638 = vpack.c.b16 %v7595, %v7594
  %v7639 = vpack.c.b16 %v7597, %v7596
  %v7640 = vpack.c.b16 %v7599, %v7598
  %v7641 = vpack.c.b16 %v7601, %v7600
  %v7642 = vpack.c.b16 %v7603, %v7602
  %v7643 = vpack.c.b16 %v7605, %v7604
  %v7644 = vpack.c.b16 %v7607, %v7606
  %v7645 = vpack.c.b16 %v7609, %v7608
  %v7646 = vpack.c.b16 %v7611, %v7610
  %v7647 = vpack.c.b16 %v7613, %v7612
  %v7648 = vpack.c.b16 %v7615, %v7614
  %v7649 = vpack.c.b16 %v7617, %v7616
  %7650 = vrot.lane.b32.xlu0 %v7618, 8
  %v7651 = vpop.permute.xlu0 %7650
  %7652 = vrot.lane.b32.xlu0 %v7619, 8
  %v7653 = vpop.permute.xlu0 %7652
  %7654 = vrot.lane.b32.xlu0 %v7620, 8
  %v7655 = vpop.permute.xlu0 %7654
  %7656 = vrot.lane.b32.xlu0 %v7621, 8
  %v7657 = vpop.permute.xlu0 %7656
  %7658 = vrot.lane.b32.xlu0 %v7622, 8
  %v7659 = vpop.permute.xlu0 %7658
  %7660 = vrot.lane.b32.xlu0 %v7623, 8
  %v7661 = vpop.permute.xlu0 %7660
  %7662 = vrot.lane.b32.xlu0 %v7624, 8
  %v7663 = vpop.permute.xlu0 %7662
  %7664 = vrot.lane.b32.xlu0 %v7625, 8
  %v7665 = vpop.permute.xlu0 %7664
  %7666 = vrot.lane.b32.xlu0 %v7626, 8
  %v7667 = vpop.permute.xlu0 %7666
  %7668 = vrot.lane.b32.xlu0 %v7627, 8
  %v7669 = vpop.permute.xlu0 %7668
  %7670 = vrot.lane.b32.xlu0 %v7628, 8
  %v7671 = vpop.permute.xlu0 %7670
  %7672 = vrot.lane.b32.xlu0 %v7629, 8
  %v7673 = vpop.permute.xlu0 %7672
  %7674 = vrot.lane.b32.xlu0 %v7630, 8
  %v7675 = vpop.permute.xlu0 %7674
  %7676 = vrot.lane.b32.xlu0 %v7631, 8
  %v7677 = vpop.permute.xlu0 %7676
  %7678 = vrot.lane.b32.xlu0 %v7632, 8
  %v7679 = vpop.permute.xlu0 %7678
  %7680 = vrot.lane.b32.xlu0 %v7633, 8
  %v7681 = vpop.permute.xlu0 %7680
  %7682 = vrot.lane.b32.xlu0 %v7634, 8
  %v7683 = vpop.permute.xlu0 %7682
  %7684 = vrot.lane.b32.xlu0 %v7635, 8
  %v7685 = vpop.permute.xlu0 %7684
  %7686 = vrot.lane.b32.xlu0 %v7636, 8
  %v7687 = vpop.permute.xlu0 %7686
  %7688 = vrot.lane.b32.xlu0 %v7637, 8
  %v7689 = vpop.permute.xlu0 %7688
  %7690 = vrot.lane.b32.xlu0 %v7638, 8
  %v7691 = vpop.permute.xlu0 %7690
  %7692 = vrot.lane.b32.xlu0 %v7639, 8
  %v7693 = vpop.permute.xlu0 %7692
  %7694 = vrot.lane.b32.xlu0 %v7640, 8
  %v7695 = vpop.permute.xlu0 %7694
  %7696 = vrot.lane.b32.xlu0 %v7641, 8
  %v7697 = vpop.permute.xlu0 %7696
  %7698 = vrot.lane.b32.xlu0 %v7642, 8
  %v7699 = vpop.permute.xlu0 %7698
  %7700 = vrot.lane.b32.xlu0 %v7643, 8
  %v7701 = vpop.permute.xlu0 %7700
  %7702 = vrot.lane.b32.xlu0 %v7644, 8
  %v7703 = vpop.permute.xlu0 %7702
  %7704 = vrot.lane.b32.xlu0 %v7645, 8
  %v7705 = vpop.permute.xlu0 %7704
  %7706 = vrot.lane.b32.xlu0 %v7646, 8
  %v7707 = vpop.permute.xlu0 %7706
  %7708 = vrot.lane.b32.xlu0 %v7647, 8
  %v7709 = vpop.permute.xlu0 %7708
  %7710 = vrot.lane.b32.xlu0 %v7648, 8
  %v7711 = vpop.permute.xlu0 %7710
  %7712 = vrot.lane.b32.xlu0 %v7649, 8
  %v7713 = vpop.permute.xlu0 %7712
  %v7714 = vunpack.c.l.b16 %v7101
  %v7715 = vunpack.c.l.b16 %v7104
  %v7716 = vunpack.c.l.b16 %v7108
  %v7717 = vunpack.c.l.b16 %v7111
  %v7718 = vunpack.c.l.b16 %v7115
  %v7719 = vunpack.c.l.b16 %v7118
  %v7720 = vunpack.c.l.b16 %v7122
  %v7721 = vunpack.c.l.b16 %v7125
  %v7722 = vunpack.c.l.b16 %v7129
  %v7723 = vunpack.c.l.b16 %v7132
  %v7724 = vunpack.c.l.b16 %v7136
  %v7725 = vunpack.c.l.b16 %v7139
  %v7726 = vunpack.c.l.b16 %v7143
  %v7727 = vunpack.c.l.b16 %v7146
  %v7728 = vunpack.c.l.b16 %v7150
  %v7729 = vunpack.c.l.b16 %v7153
  %v7730 = vunpack.c.l.b16 %v7157
  %v7731 = vunpack.c.l.b16 %v7160
  %v7732 = vunpack.c.l.b16 %v7164
  %v7733 = vunpack.c.l.b16 %v7167
  %v7734 = vunpack.c.l.b16 %v7171
  %v7735 = vunpack.c.l.b16 %v7174
  %v7736 = vunpack.c.l.b16 %v7178
  %v7737 = vunpack.c.l.b16 %v7181
  %v7738 = vunpack.c.l.b16 %v7185
  %v7739 = vunpack.c.l.b16 %v7188
  %v7740 = vunpack.c.l.b16 %v7192
  %v7741 = vunpack.c.l.b16 %v7195
  %v7742 = vunpack.c.l.b16 %v7199
  %v7743 = vunpack.c.l.b16 %v7202
  %v7744 = vunpack.c.l.b16 %v7206
  %v7745 = vunpack.c.l.b16 %v7209
  %v7746 = vunpack.c.l.b16 %v7213
  %v7747 = vunpack.c.l.b16 %v7216
  %v7748 = vunpack.c.l.b16 %v7220
  %v7749 = vunpack.c.l.b16 %v7223
  %v7750 = vunpack.c.l.b16 %v7227
  %v7751 = vunpack.c.l.b16 %v7230
  %v7752 = vunpack.c.l.b16 %v7234
  %v7753 = vunpack.c.l.b16 %v7237
  %v7754 = vunpack.c.l.b16 %v7241
  %v7755 = vunpack.c.l.b16 %v7244
  %v7756 = vunpack.c.l.b16 %v7248
  %v7757 = vunpack.c.l.b16 %v7251
  %v7758 = vunpack.c.l.b16 %v7255
  %v7759 = vunpack.c.l.b16 %v7258
  %v7760 = vunpack.c.l.b16 %v7262
  %v7761 = vunpack.c.l.b16 %v7265
  %v7762 = vunpack.c.l.b16 %v7269
  %v7763 = vunpack.c.l.b16 %v7272
  %v7764 = vunpack.c.l.b16 %v7276
  %v7765 = vunpack.c.l.b16 %v7279
  %v7766 = vunpack.c.l.b16 %v7283
  %v7767 = vunpack.c.l.b16 %v7286
  %v7768 = vunpack.c.l.b16 %v7290
  %v7769 = vunpack.c.l.b16 %v7293
  %v7770 = vunpack.c.l.b16 %v7297
  %v7771 = vunpack.c.l.b16 %v7300
  %v7772 = vunpack.c.l.b16 %v7304
  %v7773 = vunpack.c.l.b16 %v7307
  %v7774 = vunpack.c.l.b16 %v7311
  %v7775 = vunpack.c.l.b16 %v7314
  %v7776 = vunpack.c.l.b16 %v7318
  %v7777 = vunpack.c.l.b16 %v7321
  %v7778 = vpack.c.b16 %v7715, %v7714
  %v7779 = vpack.c.b16 %v7717, %v7716
  %v7780 = vpack.c.b16 %v7719, %v7718
  %v7781 = vpack.c.b16 %v7721, %v7720
  %v7782 = vpack.c.b16 %v7723, %v7722
  %v7783 = vpack.c.b16 %v7725, %v7724
  %v7784 = vpack.c.b16 %v7727, %v7726
  %v7785 = vpack.c.b16 %v7729, %v7728
  %v7786 = vpack.c.b16 %v7731, %v7730
  %v7787 = vpack.c.b16 %v7733, %v7732
  %v7788 = vpack.c.b16 %v7735, %v7734
  %v7789 = vpack.c.b16 %v7737, %v7736
  %v7790 = vpack.c.b16 %v7739, %v7738
  %v7791 = vpack.c.b16 %v7741, %v7740
  %v7792 = vpack.c.b16 %v7743, %v7742
  %v7793 = vpack.c.b16 %v7745, %v7744
  %v7794 = vpack.c.b16 %v7747, %v7746
  %v7795 = vpack.c.b16 %v7749, %v7748
  %v7796 = vpack.c.b16 %v7751, %v7750
  %v7797 = vpack.c.b16 %v7753, %v7752
  %v7798 = vpack.c.b16 %v7755, %v7754
  %v7799 = vpack.c.b16 %v7757, %v7756
  %v7800 = vpack.c.b16 %v7759, %v7758
  %v7801 = vpack.c.b16 %v7761, %v7760
  %v7802 = vpack.c.b16 %v7763, %v7762
  %v7803 = vpack.c.b16 %v7765, %v7764
  %v7804 = vpack.c.b16 %v7767, %v7766
  %v7805 = vpack.c.b16 %v7769, %v7768
  %v7806 = vpack.c.b16 %v7771, %v7770
  %v7807 = vpack.c.b16 %v7773, %v7772
  %v7808 = vpack.c.b16 %v7775, %v7774
  %v7809 = vpack.c.b16 %v7777, %v7776
  %7810 = vrot.lane.b32.xlu0 %v7778, 16
  %v7811 = vpop.permute.xlu0 %7810
  %7812 = vrot.lane.b32.xlu0 %v7779, 16
  %v7813 = vpop.permute.xlu0 %7812
  %7814 = vrot.lane.b32.xlu0 %v7780, 16
  %v7815 = vpop.permute.xlu0 %7814
  %7816 = vrot.lane.b32.xlu0 %v7781, 16
  %v7817 = vpop.permute.xlu0 %7816
  %7818 = vrot.lane.b32.xlu0 %v7782, 16
  %v7819 = vpop.permute.xlu0 %7818
  %7820 = vrot.lane.b32.xlu0 %v7783, 16
  %v7821 = vpop.permute.xlu0 %7820
  %7822 = vrot.lane.b32.xlu0 %v7784, 16
  %v7823 = vpop.permute.xlu0 %7822
  %7824 = vrot.lane.b32.xlu0 %v7785, 16
  %v7825 = vpop.permute.xlu0 %7824
  %7826 = vrot.lane.b32.xlu0 %v7786, 16
  %v7827 = vpop.permute.xlu0 %7826
  %7828 = vrot.lane.b32.xlu0 %v7787, 16
  %v7829 = vpop.permute.xlu0 %7828
  %7830 = vrot.lane.b32.xlu0 %v7788, 16
  %v7831 = vpop.permute.xlu0 %7830
  %7832 = vrot.lane.b32.xlu0 %v7789, 16
  %v7833 = vpop.permute.xlu0 %7832
  %7834 = vrot.lane.b32.xlu0 %v7790, 16
  %v7835 = vpop.permute.xlu0 %7834
  %7836 = vrot.lane.b32.xlu0 %v7791, 16
  %v7837 = vpop.permute.xlu0 %7836
  %7838 = vrot.lane.b32.xlu0 %v7792, 16
  %v7839 = vpop.permute.xlu0 %7838
  %7840 = vrot.lane.b32.xlu0 %v7793, 16
  %v7841 = vpop.permute.xlu0 %7840
  %7842 = vrot.lane.b32.xlu0 %v7794, 16
  %v7843 = vpop.permute.xlu0 %7842
  %7844 = vrot.lane.b32.xlu0 %v7795, 16
  %v7845 = vpop.permute.xlu0 %7844
  %7846 = vrot.lane.b32.xlu0 %v7796, 16
  %v7847 = vpop.permute.xlu0 %7846
  %7848 = vrot.lane.b32.xlu0 %v7797, 16
  %v7849 = vpop.permute.xlu0 %7848
  %7850 = vrot.lane.b32.xlu0 %v7798, 16
  %v7851 = vpop.permute.xlu0 %7850
  %7852 = vrot.lane.b32.xlu0 %v7799, 16
  %v7853 = vpop.permute.xlu0 %7852
  %7854 = vrot.lane.b32.xlu0 %v7800, 16
  %v7855 = vpop.permute.xlu0 %7854
  %7856 = vrot.lane.b32.xlu0 %v7801, 16
  %v7857 = vpop.permute.xlu0 %7856
  %7858 = vrot.lane.b32.xlu0 %v7802, 16
  %v7859 = vpop.permute.xlu0 %7858
  %7860 = vrot.lane.b32.xlu0 %v7803, 16
  %v7861 = vpop.permute.xlu0 %7860
  %7862 = vrot.lane.b32.xlu0 %v7804, 16
  %v7863 = vpop.permute.xlu0 %7862
  %7864 = vrot.lane.b32.xlu0 %v7805, 16
  %v7865 = vpop.permute.xlu0 %7864
  %7866 = vrot.lane.b32.xlu0 %v7806, 16
  %v7867 = vpop.permute.xlu0 %7866
  %7868 = vrot.lane.b32.xlu0 %v7807, 16
  %v7869 = vpop.permute.xlu0 %7868
  %7870 = vrot.lane.b32.xlu0 %v7808, 16
  %v7871 = vpop.permute.xlu0 %7870
  %7872 = vrot.lane.b32.xlu0 %v7809, 16
  %v7873 = vpop.permute.xlu0 %7872
  %v7874 = vunpack.c.l.b16 %v6174
  %v7875 = vunpack.c.l.b16 %v6175
  %v7876 = vunpack.c.l.b16 %v6228
  %v7877 = vunpack.c.l.b16 %v6229
  %v7878 = vpack.c.b16 %v7875, %v7874
  %v7879 = vpack.c.b16 %v7877, %v7876
  %7880 = vrot.lane.b32.xlu0 %v7523, 24
  %v7881 = vpop.permute.xlu0 %7880
  %7882 = vrot.lane.b32.xlu0 %v7524, 24
  %v7883 = vpop.permute.xlu0 %7882
  %7884 = vrot.lane.b32.xlu0 %v7525, 24
  %v7885 = vpop.permute.xlu0 %7884
  %7886 = vrot.lane.b32.xlu0 %v7526, 24
  %v7887 = vpop.permute.xlu0 %7886
  %7888 = vrot.lane.b32.xlu0 %v7527, 24
  %v7889 = vpop.permute.xlu0 %7888
  %7890 = vrot.lane.b32.xlu0 %v7528, 24
  %v7891 = vpop.permute.xlu0 %7890
  %7892 = vrot.lane.b32.xlu0 %v7529, 24
  %v7893 = vpop.permute.xlu0 %7892
  %7894 = vrot.lane.b32.xlu0 %v7530, 24
  %v7895 = vpop.permute.xlu0 %7894
  %7896 = vrot.lane.b32.xlu0 %v7531, 24
  %v7897 = vpop.permute.xlu0 %7896
  %7898 = vrot.lane.b32.xlu0 %v7532, 24
  %v7899 = vpop.permute.xlu0 %7898
  %7900 = vrot.lane.b32.xlu0 %v7533, 24
  %v7901 = vpop.permute.xlu0 %7900
  %7902 = vrot.lane.b32.xlu0 %v7534, 24
  %v7903 = vpop.permute.xlu0 %7902
  %7904 = vrot.lane.b32.xlu0 %v7535, 24
  %v7905 = vpop.permute.xlu0 %7904
  %7906 = vrot.lane.b32.xlu0 %v7536, 24
  %v7907 = vpop.permute.xlu0 %7906
  %7908 = vrot.lane.b32.xlu0 %v7537, 24
  %v7909 = vpop.permute.xlu0 %7908
  %7910 = vrot.lane.b32.xlu0 %v7878, 24
  %v7911 = vpop.permute.xlu0 %7910
  %7912 = vrot.lane.b32.xlu0 %v7539, 24
  %v7913 = vpop.permute.xlu0 %7912
  %7914 = vrot.lane.b32.xlu0 %v7540, 24
  %v7915 = vpop.permute.xlu0 %7914
  %7916 = vrot.lane.b32.xlu0 %v7541, 24
  %v7917 = vpop.permute.xlu0 %7916
  %7918 = vrot.lane.b32.xlu0 %v7542, 24
  %v7919 = vpop.permute.xlu0 %7918
  %7920 = vrot.lane.b32.xlu0 %v7543, 24
  %v7921 = vpop.permute.xlu0 %7920
  %7922 = vrot.lane.b32.xlu0 %v7544, 24
  %v7923 = vpop.permute.xlu0 %7922
  %7924 = vrot.lane.b32.xlu0 %v7545, 24
  %v7925 = vpop.permute.xlu0 %7924
  %7926 = vrot.lane.b32.xlu0 %v7546, 24
  %v7927 = vpop.permute.xlu0 %7926
  %7928 = vrot.lane.b32.xlu0 %v7547, 24
  %v7929 = vpop.permute.xlu0 %7928
  %7930 = vrot.lane.b32.xlu0 %v7548, 24
  %v7931 = vpop.permute.xlu0 %7930
  %7932 = vrot.lane.b32.xlu0 %v7549, 24
  %v7933 = vpop.permute.xlu0 %7932
  %7934 = vrot.lane.b32.xlu0 %v7550, 24
  %v7935 = vpop.permute.xlu0 %7934
  %7936 = vrot.lane.b32.xlu0 %v7551, 24
  %v7937 = vpop.permute.xlu0 %7936
  %7938 = vrot.lane.b32.xlu0 %v7552, 24
  %v7939 = vpop.permute.xlu0 %7938
  %7940 = vrot.lane.b32.xlu0 %v7553, 24
  %v7941 = vpop.permute.xlu0 %7940
  %7942 = vrot.lane.b32.xlu0 %v7879, 24
  %v7943 = vpop.permute.xlu0 %7942
  %v7944 = vunpack.c.l.b16 %v7335
  %v7945 = vunpack.c.l.b16 %v7345
  %v7946 = vunpack.c.l.b16 %v7359
  %v7947 = vunpack.c.l.b16 %v7369
  %v7948 = vpack.c.b16 %v7945, %v7944
  %v7949 = vpack.c.b16 %v7947, %v7946
  %7950 = vrot.lane.b32.xlu0 %v7619, 32
  %v7951 = vpop.permute.xlu0 %7950
  %7952 = vrot.lane.b32.xlu0 %v7620, 32
  %v7953 = vpop.permute.xlu0 %7952
  %7954 = vrot.lane.b32.xlu0 %v7621, 32
  %v7955 = vpop.permute.xlu0 %7954
  %7956 = vrot.lane.b32.xlu0 %v7622, 32
  %v7957 = vpop.permute.xlu0 %7956
  %7958 = vrot.lane.b32.xlu0 %v7623, 32
  %v7959 = vpop.permute.xlu0 %7958
  %7960 = vrot.lane.b32.xlu0 %v7624, 32
  %v7961 = vpop.permute.xlu0 %7960
  %7962 = vrot.lane.b32.xlu0 %v7625, 32
  %v7963 = vpop.permute.xlu0 %7962
  %7964 = vrot.lane.b32.xlu0 %v7626, 32
  %v7965 = vpop.permute.xlu0 %7964
  %7966 = vrot.lane.b32.xlu0 %v7627, 32
  %v7967 = vpop.permute.xlu0 %7966
  %7968 = vrot.lane.b32.xlu0 %v7628, 32
  %v7969 = vpop.permute.xlu0 %7968
  %7970 = vrot.lane.b32.xlu0 %v7629, 32
  %v7971 = vpop.permute.xlu0 %7970
  %7972 = vrot.lane.b32.xlu0 %v7630, 32
  %v7973 = vpop.permute.xlu0 %7972
  %7974 = vrot.lane.b32.xlu0 %v7631, 32
  %v7975 = vpop.permute.xlu0 %7974
  %7976 = vrot.lane.b32.xlu0 %v7632, 32
  %v7977 = vpop.permute.xlu0 %7976
  %7978 = vrot.lane.b32.xlu0 %v7633, 32
  %v7979 = vpop.permute.xlu0 %7978
  %7980 = vrot.lane.b32.xlu0 %v7948, 32
  %v7981 = vpop.permute.xlu0 %7980
  %7982 = vrot.lane.b32.xlu0 %v7635, 32
  %v7983 = vpop.permute.xlu0 %7982
  %7984 = vrot.lane.b32.xlu0 %v7636, 32
  %v7985 = vpop.permute.xlu0 %7984
  %7986 = vrot.lane.b32.xlu0 %v7637, 32
  %v7987 = vpop.permute.xlu0 %7986
  %7988 = vrot.lane.b32.xlu0 %v7638, 32
  %v7989 = vpop.permute.xlu0 %7988
  %7990 = vrot.lane.b32.xlu0 %v7639, 32
  %v7991 = vpop.permute.xlu0 %7990
  %7992 = vrot.lane.b32.xlu0 %v7640, 32
  %v7993 = vpop.permute.xlu0 %7992
  %7994 = vrot.lane.b32.xlu0 %v7641, 32
  %v7995 = vpop.permute.xlu0 %7994
  %7996 = vrot.lane.b32.xlu0 %v7642, 32
  %v7997 = vpop.permute.xlu0 %7996
  %7998 = vrot.lane.b32.xlu0 %v7643, 32
  %v7999 = vpop.permute.xlu0 %7998
  %8000 = vrot.lane.b32.xlu0 %v7644, 32
  %v8001 = vpop.permute.xlu0 %8000
  %8002 = vrot.lane.b32.xlu0 %v7645, 32
  %v8003 = vpop.permute.xlu0 %8002
  %8004 = vrot.lane.b32.xlu0 %v7646, 32
  %v8005 = vpop.permute.xlu0 %8004
  %8006 = vrot.lane.b32.xlu0 %v7647, 32
  %v8007 = vpop.permute.xlu0 %8006
  %8008 = vrot.lane.b32.xlu0 %v7648, 32
  %v8009 = vpop.permute.xlu0 %8008
  %8010 = vrot.lane.b32.xlu0 %v7649, 32
  %v8011 = vpop.permute.xlu0 %8010
  %8012 = vrot.lane.b32.xlu0 %v7949, 32
  %v8013 = vpop.permute.xlu0 %8012
  %v8014 = vunpack.c.l.b16 %v7379
  %v8015 = vunpack.c.l.b16 %v7382
  %v8016 = vunpack.c.l.b16 %v7386
  %v8017 = vunpack.c.l.b16 %v7389
  %v8018 = vpack.c.b16 %v8015, %v8014
  %v8019 = vpack.c.b16 %v8017, %v8016
  %8020 = vrot.lane.b32.xlu0 %v7779, 40
  %v8021 = vpop.permute.xlu0 %8020
  %8022 = vrot.lane.b32.xlu0 %v7780, 40
  %v8023 = vpop.permute.xlu0 %8022
  %8024 = vrot.lane.b32.xlu0 %v7781, 40
  %v8025 = vpop.permute.xlu0 %8024
  %8026 = vrot.lane.b32.xlu0 %v7782, 40
  %v8027 = vpop.permute.xlu0 %8026
  %8028 = vrot.lane.b32.xlu0 %v7783, 40
  %v8029 = vpop.permute.xlu0 %8028
  %8030 = vrot.lane.b32.xlu0 %v7784, 40
  %v8031 = vpop.permute.xlu0 %8030
  %8032 = vrot.lane.b32.xlu0 %v7785, 40
  %v8033 = vpop.permute.xlu0 %8032
  %8034 = vrot.lane.b32.xlu0 %v7786, 40
  %v8035 = vpop.permute.xlu0 %8034
  %8036 = vrot.lane.b32.xlu0 %v7787, 40
  %v8037 = vpop.permute.xlu0 %8036
  %8038 = vrot.lane.b32.xlu0 %v7788, 40
  %v8039 = vpop.permute.xlu0 %8038
  %8040 = vrot.lane.b32.xlu0 %v7789, 40
  %v8041 = vpop.permute.xlu0 %8040
  %8042 = vrot.lane.b32.xlu0 %v7790, 40
  %v8043 = vpop.permute.xlu0 %8042
  %8044 = vrot.lane.b32.xlu0 %v7791, 40
  %v8045 = vpop.permute.xlu0 %8044
  %8046 = vrot.lane.b32.xlu0 %v7792, 40
  %v8047 = vpop.permute.xlu0 %8046
  %8048 = vrot.lane.b32.xlu0 %v7793, 40
  %v8049 = vpop.permute.xlu0 %8048
  %8050 = vrot.lane.b32.xlu0 %v8018, 40
  %v8051 = vpop.permute.xlu0 %8050
  %8052 = vrot.lane.b32.xlu0 %v7795, 40
  %v8053 = vpop.permute.xlu0 %8052
  %8054 = vrot.lane.b32.xlu0 %v7796, 40
  %v8055 = vpop.permute.xlu0 %8054
  %8056 = vrot.lane.b32.xlu0 %v7797, 40
  %v8057 = vpop.permute.xlu0 %8056
  %8058 = vrot.lane.b32.xlu0 %v7798, 40
  %v8059 = vpop.permute.xlu0 %8058
  %8060 = vrot.lane.b32.xlu0 %v7799, 40
  %v8061 = vpop.permute.xlu0 %8060
  %8062 = vrot.lane.b32.xlu0 %v7800, 40
  %v8063 = vpop.permute.xlu0 %8062
  %8064 = vrot.lane.b32.xlu0 %v7801, 40
  %v8065 = vpop.permute.xlu0 %8064
  %8066 = vrot.lane.b32.xlu0 %v7802, 40
  %v8067 = vpop.permute.xlu0 %8066
  %8068 = vrot.lane.b32.xlu0 %v7803, 40
  %v8069 = vpop.permute.xlu0 %8068
  %8070 = vrot.lane.b32.xlu0 %v7804, 40
  %v8071 = vpop.permute.xlu0 %8070
  %8072 = vrot.lane.b32.xlu0 %v7805, 40
  %v8073 = vpop.permute.xlu0 %8072
  %8074 = vrot.lane.b32.xlu0 %v7806, 40
  %v8075 = vpop.permute.xlu0 %8074
  %8076 = vrot.lane.b32.xlu0 %v7807, 40
  %v8077 = vpop.permute.xlu0 %8076
  %8078 = vrot.lane.b32.xlu0 %v7808, 40
  %v8079 = vpop.permute.xlu0 %8078
  %8080 = vrot.lane.b32.xlu0 %v7809, 40
  %v8081 = vpop.permute.xlu0 %8080
  %8082 = vrot.lane.b32.xlu0 %v8019, 40
  %v8083 = vpop.permute.xlu0 %8082
  %v8084 = vunpack.c.l.b16 %v6177
  %v8085 = vunpack.c.l.b16 %v6178
  %v8086 = vunpack.c.l.b16 %v6231
  %v8087 = vunpack.c.l.b16 %v6232
  %v8088 = vpack.c.b16 %v8085, %v8084
  %v8089 = vpack.c.b16 %v8087, %v8086
  %8090 = vrot.lane.b32.xlu0 %v7524, 48
  %v8091 = vpop.permute.xlu0 %8090
  %8092 = vrot.lane.b32.xlu0 %v7525, 48
  %v8093 = vpop.permute.xlu0 %8092
  %8094 = vrot.lane.b32.xlu0 %v7526, 48
  %v8095 = vpop.permute.xlu0 %8094
  %8096 = vrot.lane.b32.xlu0 %v7527, 48
  %v8097 = vpop.permute.xlu0 %8096
  %8098 = vrot.lane.b32.xlu0 %v7528, 48
  %v8099 = vpop.permute.xlu0 %8098
  %8100 = vrot.lane.b32.xlu0 %v7529, 48
  %v8101 = vpop.permute.xlu0 %8100
  %8102 = vrot.lane.b32.xlu0 %v7530, 48
  %v8103 = vpop.permute.xlu0 %8102
  %8104 = vrot.lane.b32.xlu0 %v7531, 48
  %v8105 = vpop.permute.xlu0 %8104
  %8106 = vrot.lane.b32.xlu0 %v7532, 48
  %v8107 = vpop.permute.xlu0 %8106
  %8108 = vrot.lane.b32.xlu0 %v7533, 48
  %v8109 = vpop.permute.xlu0 %8108
  %8110 = vrot.lane.b32.xlu0 %v7534, 48
  %v8111 = vpop.permute.xlu0 %8110
  %8112 = vrot.lane.b32.xlu0 %v7535, 48
  %v8113 = vpop.permute.xlu0 %8112
  %8114 = vrot.lane.b32.xlu0 %v7536, 48
  %v8115 = vpop.permute.xlu0 %8114
  %8116 = vrot.lane.b32.xlu0 %v7537, 48
  %v8117 = vpop.permute.xlu0 %8116
  %8118 = vrot.lane.b32.xlu0 %v7878, 48
  %v8119 = vpop.permute.xlu0 %8118
  %8120 = vrot.lane.b32.xlu0 %v8088, 48
  %v8121 = vpop.permute.xlu0 %8120
  %8122 = vrot.lane.b32.xlu0 %v7540, 48
  %v8123 = vpop.permute.xlu0 %8122
  %8124 = vrot.lane.b32.xlu0 %v7541, 48
  %v8125 = vpop.permute.xlu0 %8124
  %8126 = vrot.lane.b32.xlu0 %v7542, 48
  %v8127 = vpop.permute.xlu0 %8126
  %8128 = vrot.lane.b32.xlu0 %v7543, 48
  %v8129 = vpop.permute.xlu0 %8128
  %8130 = vrot.lane.b32.xlu0 %v7544, 48
  %v8131 = vpop.permute.xlu0 %8130
  %8132 = vrot.lane.b32.xlu0 %v7545, 48
  %v8133 = vpop.permute.xlu0 %8132
  %8134 = vrot.lane.b32.xlu0 %v7546, 48
  %v8135 = vpop.permute.xlu0 %8134
  %8136 = vrot.lane.b32.xlu0 %v7547, 48
  %v8137 = vpop.permute.xlu0 %8136
  %8138 = vrot.lane.b32.xlu0 %v7548, 48
  %v8139 = vpop.permute.xlu0 %8138
  %8140 = vrot.lane.b32.xlu0 %v7549, 48
  %v8141 = vpop.permute.xlu0 %8140
  %8142 = vrot.lane.b32.xlu0 %v7550, 48
  %v8143 = vpop.permute.xlu0 %8142
  %8144 = vrot.lane.b32.xlu0 %v7551, 48
  %v8145 = vpop.permute.xlu0 %8144
  %8146 = vrot.lane.b32.xlu0 %v7552, 48
  %v8147 = vpop.permute.xlu0 %8146
  %8148 = vrot.lane.b32.xlu0 %v7553, 48
  %v8149 = vpop.permute.xlu0 %8148
  %8150 = vrot.lane.b32.xlu0 %v7879, 48
  %v8151 = vpop.permute.xlu0 %8150
  %8152 = vrot.lane.b32.xlu0 %v8089, 48
  %v8153 = vpop.permute.xlu0 %8152
  %v8154 = vunpack.c.l.b16 %v7403
  %v8155 = vunpack.c.l.b16 %v7413
  %v8156 = vunpack.c.l.b16 %v7427
  %v8157 = vunpack.c.l.b16 %v7437
  %v8158 = vpack.c.b16 %v8155, %v8154
  %v8159 = vpack.c.b16 %v8157, %v8156
  %8160 = vrot.lane.b32.xlu0 %v7620, 56
  %v8161 = vpop.permute.xlu0 %8160
  %8162 = vrot.lane.b32.xlu0 %v7621, 56
  %v8163 = vpop.permute.xlu0 %8162
  %8164 = vrot.lane.b32.xlu0 %v7622, 56
  %v8165 = vpop.permute.xlu0 %8164
  %8166 = vrot.lane.b32.xlu0 %v7623, 56
  %v8167 = vpop.permute.xlu0 %8166
  %8168 = vrot.lane.b32.xlu0 %v7624, 56
  %v8169 = vpop.permute.xlu0 %8168
  %8170 = vrot.lane.b32.xlu0 %v7625, 56
  %v8171 = vpop.permute.xlu0 %8170
  %8172 = vrot.lane.b32.xlu0 %v7626, 56
  %v8173 = vpop.permute.xlu0 %8172
  %8174 = vrot.lane.b32.xlu0 %v7627, 56
  %v8175 = vpop.permute.xlu0 %8174
  %8176 = vrot.lane.b32.xlu0 %v7628, 56
  %v8177 = vpop.permute.xlu0 %8176
  %8178 = vrot.lane.b32.xlu0 %v7629, 56
  %v8179 = vpop.permute.xlu0 %8178
  %8180 = vrot.lane.b32.xlu0 %v7630, 56
  %v8181 = vpop.permute.xlu0 %8180
  %8182 = vrot.lane.b32.xlu0 %v7631, 56
  %v8183 = vpop.permute.xlu0 %8182
  %8184 = vrot.lane.b32.xlu0 %v7632, 56
  %v8185 = vpop.permute.xlu0 %8184
  %8186 = vrot.lane.b32.xlu0 %v7633, 56
  %v8187 = vpop.permute.xlu0 %8186
  %8188 = vrot.lane.b32.xlu0 %v7948, 56
  %v8189 = vpop.permute.xlu0 %8188
  %8190 = vrot.lane.b32.xlu0 %v8158, 56
  %v8191 = vpop.permute.xlu0 %8190
  %8192 = vrot.lane.b32.xlu0 %v7636, 56
  %v8193 = vpop.permute.xlu0 %8192
  %8194 = vrot.lane.b32.xlu0 %v7637, 56
  %v8195 = vpop.permute.xlu0 %8194
  %8196 = vrot.lane.b32.xlu0 %v7638, 56
  %v8197 = vpop.permute.xlu0 %8196
  %8198 = vrot.lane.b32.xlu0 %v7639, 56
  %v8199 = vpop.permute.xlu0 %8198
  %8200 = vrot.lane.b32.xlu0 %v7640, 56
  %v8201 = vpop.permute.xlu0 %8200
  %8202 = vrot.lane.b32.xlu0 %v7641, 56
  %v8203 = vpop.permute.xlu0 %8202
  %8204 = vrot.lane.b32.xlu0 %v7642, 56
  %v8205 = vpop.permute.xlu0 %8204
  %8206 = vrot.lane.b32.xlu0 %v7643, 56
  %v8207 = vpop.permute.xlu0 %8206
  %8208 = vrot.lane.b32.xlu0 %v7644, 56
  %v8209 = vpop.permute.xlu0 %8208
  %8210 = vrot.lane.b32.xlu0 %v7645, 56
  %v8211 = vpop.permute.xlu0 %8210
  %8212 = vrot.lane.b32.xlu0 %v7646, 56
  %v8213 = vpop.permute.xlu0 %8212
  %8214 = vrot.lane.b32.xlu0 %v7647, 56
  %v8215 = vpop.permute.xlu0 %8214
  %8216 = vrot.lane.b32.xlu0 %v7648, 56
  %v8217 = vpop.permute.xlu0 %8216
  %8218 = vrot.lane.b32.xlu0 %v7649, 56
  %v8219 = vpop.permute.xlu0 %8218
  %8220 = vrot.lane.b32.xlu0 %v7949, 56
  %v8221 = vpop.permute.xlu0 %8220
  %8222 = vrot.lane.b32.xlu0 %v8159, 56
  %v8223 = vpop.permute.xlu0 %8222
  %v8224 = vunpack.c.l.b16 %v7447
  %v8225 = vunpack.c.l.b16 %v7450
  %v8226 = vunpack.c.l.b16 %v7454
  %v8227 = vunpack.c.l.b16 %v7457
  %v8228 = vpack.c.b16 %v8225, %v8224
  %v8229 = vpack.c.b16 %v8227, %v8226
  %8230 = vrot.lane.b32.xlu0 %v7780, 64
  %v8231 = vpop.permute.xlu0 %8230
  %8232 = vrot.lane.b32.xlu0 %v7781, 64
  %v8233 = vpop.permute.xlu0 %8232
  %8234 = vrot.lane.b32.xlu0 %v7782, 64
  %v8235 = vpop.permute.xlu0 %8234
  %8236 = vrot.lane.b32.xlu0 %v7783, 64
  %v8237 = vpop.permute.xlu0 %8236
  %8238 = vrot.lane.b32.xlu0 %v7784, 64
  %v8239 = vpop.permute.xlu0 %8238
  %8240 = vrot.lane.b32.xlu0 %v7785, 64
  %v8241 = vpop.permute.xlu0 %8240
  %8242 = vrot.lane.b32.xlu0 %v7786, 64
  %v8243 = vpop.permute.xlu0 %8242
  %8244 = vrot.lane.b32.xlu0 %v7787, 64
  %v8245 = vpop.permute.xlu0 %8244
  %8246 = vrot.lane.b32.xlu0 %v7788, 64
  %v8247 = vpop.permute.xlu0 %8246
  %8248 = vrot.lane.b32.xlu0 %v7789, 64
  %v8249 = vpop.permute.xlu0 %8248
  %8250 = vrot.lane.b32.xlu0 %v7790, 64
  %v8251 = vpop.permute.xlu0 %8250
  %8252 = vrot.lane.b32.xlu0 %v7791, 64
  %v8253 = vpop.permute.xlu0 %8252
  %8254 = vrot.lane.b32.xlu0 %v7792, 64
  %v8255 = vpop.permute.xlu0 %8254
  %8256 = vrot.lane.b32.xlu0 %v7793, 64
  %v8257 = vpop.permute.xlu0 %8256
  %8258 = vrot.lane.b32.xlu0 %v8018, 64
  %v8259 = vpop.permute.xlu0 %8258
  %8260 = vrot.lane.b32.xlu0 %v8228, 64
  %v8261 = vpop.permute.xlu0 %8260
  %8262 = vrot.lane.b32.xlu0 %v7796, 64
  %v8263 = vpop.permute.xlu0 %8262
  %8264 = vrot.lane.b32.xlu0 %v7797, 64
  %v8265 = vpop.permute.xlu0 %8264
  %8266 = vrot.lane.b32.xlu0 %v7798, 64
  %v8267 = vpop.permute.xlu0 %8266
  %8268 = vrot.lane.b32.xlu0 %v7799, 64
  %v8269 = vpop.permute.xlu0 %8268
  %8270 = vrot.lane.b32.xlu0 %v7800, 64
  %v8271 = vpop.permute.xlu0 %8270
  %8272 = vrot.lane.b32.xlu0 %v7801, 64
  %v8273 = vpop.permute.xlu0 %8272
  %8274 = vrot.lane.b32.xlu0 %v7802, 64
  %v8275 = vpop.permute.xlu0 %8274
  %8276 = vrot.lane.b32.xlu0 %v7803, 64
  %v8277 = vpop.permute.xlu0 %8276
  %8278 = vrot.lane.b32.xlu0 %v7804, 64
  %v8279 = vpop.permute.xlu0 %8278
  %8280 = vrot.lane.b32.xlu0 %v7805, 64
  %v8281 = vpop.permute.xlu0 %8280
  %8282 = vrot.lane.b32.xlu0 %v7806, 64
  %v8283 = vpop.permute.xlu0 %8282
  %8284 = vrot.lane.b32.xlu0 %v7807, 64
  %v8285 = vpop.permute.xlu0 %8284
  %8286 = vrot.lane.b32.xlu0 %v7808, 64
  %v8287 = vpop.permute.xlu0 %8286
  %8288 = vrot.lane.b32.xlu0 %v7809, 64
  %v8289 = vpop.permute.xlu0 %8288
  %8290 = vrot.lane.b32.xlu0 %v8019, 64
  %v8291 = vpop.permute.xlu0 %8290
  %8292 = vrot.lane.b32.xlu0 %v8229, 64
  %v8293 = vpop.permute.xlu0 %8292
  %v8296 = vsel %vm3458, %v7522, %v7651
  %v8299 = vsel %vm3458, %v7523, %v7653
  %v8302 = vsel %vm3458, %v7524, %v7655
  %v8305 = vsel %vm3458, %v7525, %v7657
  %v8308 = vsel %vm3458, %v7526, %v7659
  %v8311 = vsel %vm3458, %v7527, %v7661
  %v8314 = vsel %vm3458, %v7528, %v7663
  %v8317 = vsel %vm3458, %v7529, %v7665
  %v8320 = vsel %vm3458, %v7530, %v7667
  %v8323 = vsel %vm3458, %v7531, %v7669
  %v8326 = vsel %vm3458, %v7532, %v7671
  %v8329 = vsel %vm3458, %v7533, %v7673
  %v8332 = vsel %vm3458, %v7534, %v7675
  %v8335 = vsel %vm3458, %v7535, %v7677
  %v8338 = vsel %vm3458, %v7536, %v7679
  %v8341 = vsel %vm3458, %v7537, %v7681
  %v8344 = vsel %vm3458, %v7538, %v7683
  %v8347 = vsel %vm3458, %v7539, %v7685
  %v8350 = vsel %vm3458, %v7540, %v7687
  %v8353 = vsel %vm3458, %v7541, %v7689
  %v8356 = vsel %vm3458, %v7542, %v7691
  %v8359 = vsel %vm3458, %v7543, %v7693
  %v8362 = vsel %vm3458, %v7544, %v7695
  %v8365 = vsel %vm3458, %v7545, %v7697
  %v8368 = vsel %vm3458, %v7546, %v7699
  %v8371 = vsel %vm3458, %v7547, %v7701
  %v8374 = vsel %vm3458, %v7548, %v7703
  %v8377 = vsel %vm3458, %v7549, %v7705
  %v8380 = vsel %vm3458, %v7550, %v7707
  %v8383 = vsel %vm3458, %v7551, %v7709
  %v8386 = vsel %vm3458, %v7552, %v7711
  %v8389 = vsel %vm3458, %v7553, %v7713
  %v8391 = vsel %vm3588, %v8296, %v7811
  %v8393 = vsel %vm3588, %v8299, %v7813
  %v8395 = vsel %vm3588, %v8302, %v7815
  %v8397 = vsel %vm3588, %v8305, %v7817
  %v8399 = vsel %vm3588, %v8308, %v7819
  %v8401 = vsel %vm3588, %v8311, %v7821
  %v8403 = vsel %vm3588, %v8314, %v7823
  %v8405 = vsel %vm3588, %v8317, %v7825
  %v8407 = vsel %vm3588, %v8320, %v7827
  %v8409 = vsel %vm3588, %v8323, %v7829
  %v8411 = vsel %vm3588, %v8326, %v7831
  %v8413 = vsel %vm3588, %v8329, %v7833
  %v8415 = vsel %vm3588, %v8332, %v7835
  %v8417 = vsel %vm3588, %v8335, %v7837
  %v8419 = vsel %vm3588, %v8338, %v7839
  %v8421 = vsel %vm3588, %v8341, %v7841
  %v8423 = vsel %vm3588, %v8344, %v7843
  %v8425 = vsel %vm3588, %v8347, %v7845
  %v8427 = vsel %vm3588, %v8350, %v7847
  %v8429 = vsel %vm3588, %v8353, %v7849
  %v8431 = vsel %vm3588, %v8356, %v7851
  %v8433 = vsel %vm3588, %v8359, %v7853
  %v8435 = vsel %vm3588, %v8362, %v7855
  %v8437 = vsel %vm3588, %v8365, %v7857
  %v8439 = vsel %vm3588, %v8368, %v7859
  %v8441 = vsel %vm3588, %v8371, %v7861
  %v8443 = vsel %vm3588, %v8374, %v7863
  %v8445 = vsel %vm3588, %v8377, %v7865
  %v8447 = vsel %vm3588, %v8380, %v7867
  %v8449 = vsel %vm3588, %v8383, %v7869
  %v8451 = vsel %vm3588, %v8386, %v7871
  %v8453 = vsel %vm3588, %v8389, %v7873
  %v8455 = vsel %vm3718, %v8391, %v7881
  %v8457 = vsel %vm3718, %v8393, %v7883
  %v8459 = vsel %vm3718, %v8395, %v7885
  %v8461 = vsel %vm3718, %v8397, %v7887
  %v8463 = vsel %vm3718, %v8399, %v7889
  %v8465 = vsel %vm3718, %v8401, %v7891
  %v8467 = vsel %vm3718, %v8403, %v7893
  %v8469 = vsel %vm3718, %v8405, %v7895
  %v8471 = vsel %vm3718, %v8407, %v7897
  %v8473 = vsel %vm3718, %v8409, %v7899
  %v8475 = vsel %vm3718, %v8411, %v7901
  %v8477 = vsel %vm3718, %v8413, %v7903
  %v8479 = vsel %vm3718, %v8415, %v7905
  %v8481 = vsel %vm3718, %v8417, %v7907
  %v8483 = vsel %vm3718, %v8419, %v7909
  %v8485 = vsel %vm3718, %v8421, %v7911
  %v8487 = vsel %vm3718, %v8423, %v7913
  %v8489 = vsel %vm3718, %v8425, %v7915
  %v8491 = vsel %vm3718, %v8427, %v7917
  %v8493 = vsel %vm3718, %v8429, %v7919
  %v8495 = vsel %vm3718, %v8431, %v7921
  %v8497 = vsel %vm3718, %v8433, %v7923
  %v8499 = vsel %vm3718, %v8435, %v7925
  %v8501 = vsel %vm3718, %v8437, %v7927
  %v8503 = vsel %vm3718, %v8439, %v7929
  %v8505 = vsel %vm3718, %v8441, %v7931
  %v8507 = vsel %vm3718, %v8443, %v7933
  %v8509 = vsel %vm3718, %v8445, %v7935
  %v8511 = vsel %vm3718, %v8447, %v7937
  %v8513 = vsel %vm3718, %v8449, %v7939
  %v8515 = vsel %vm3718, %v8451, %v7941
  %v8517 = vsel %vm3718, %v8453, %v7943
  %v8519 = vsel %vm3848, %v8455, %v7951
  %v8521 = vsel %vm3848, %v8457, %v7953
  %v8523 = vsel %vm3848, %v8459, %v7955
  %v8525 = vsel %vm3848, %v8461, %v7957
  %v8527 = vsel %vm3848, %v8463, %v7959
  %v8529 = vsel %vm3848, %v8465, %v7961
  %v8531 = vsel %vm3848, %v8467, %v7963
  %v8533 = vsel %vm3848, %v8469, %v7965
  %v8535 = vsel %vm3848, %v8471, %v7967
  %v8537 = vsel %vm3848, %v8473, %v7969
  %v8539 = vsel %vm3848, %v8475, %v7971
  %v8541 = vsel %vm3848, %v8477, %v7973
  %v8543 = vsel %vm3848, %v8479, %v7975
  %v8545 = vsel %vm3848, %v8481, %v7977
  %v8547 = vsel %vm3848, %v8483, %v7979
  %v8549 = vsel %vm3848, %v8485, %v7981
  %v8551 = vsel %vm3848, %v8487, %v7983
  %v8553 = vsel %vm3848, %v8489, %v7985
  %v8555 = vsel %vm3848, %v8491, %v7987
  %v8557 = vsel %vm3848, %v8493, %v7989
  %v8559 = vsel %vm3848, %v8495, %v7991
  %v8561 = vsel %vm3848, %v8497, %v7993
  %v8563 = vsel %vm3848, %v8499, %v7995
  %v8565 = vsel %vm3848, %v8501, %v7997
  %v8567 = vsel %vm3848, %v8503, %v7999
  %v8569 = vsel %vm3848, %v8505, %v8001
  %v8571 = vsel %vm3848, %v8507, %v8003
  %v8573 = vsel %vm3848, %v8509, %v8005
  %v8575 = vsel %vm3848, %v8511, %v8007
  %v8577 = vsel %vm3848, %v8513, %v8009
  %v8579 = vsel %vm3848, %v8515, %v8011
  %v8581 = vsel %vm3848, %v8517, %v8013
  %vm8582 = vcmask 326656
  %v8584 = vsel %vm8582, %v8519, %v8021
  %v8586 = vsel %vm8582, %v8521, %v8023
  %v8588 = vsel %vm8582, %v8523, %v8025
  %v8590 = vsel %vm8582, %v8525, %v8027
  %v8592 = vsel %vm8582, %v8527, %v8029
  %v8594 = vsel %vm8582, %v8529, %v8031
  %v8596 = vsel %vm8582, %v8531, %v8033
  %v8598 = vsel %vm8582, %v8533, %v8035
  %v8600 = vsel %vm8582, %v8535, %v8037
  %v8602 = vsel %vm8582, %v8537, %v8039
  %v8604 = vsel %vm8582, %v8539, %v8041
  %v8606 = vsel %vm8582, %v8541, %v8043
  %v8608 = vsel %vm8582, %v8543, %v8045
  %v8610 = vsel %vm8582, %v8545, %v8047
  %v8612 = vsel %vm8582, %v8547, %v8049
  %v8614 = vsel %vm8582, %v8549, %v8051
  %v8616 = vsel %vm8582, %v8551, %v8053
  %v8618 = vsel %vm8582, %v8553, %v8055
  %v8620 = vsel %vm8582, %v8555, %v8057
  %v8622 = vsel %vm8582, %v8557, %v8059
  %v8624 = vsel %vm8582, %v8559, %v8061
  %v8626 = vsel %vm8582, %v8561, %v8063
  %v8628 = vsel %vm8582, %v8563, %v8065
  %v8630 = vsel %vm8582, %v8565, %v8067
  %v8632 = vsel %vm8582, %v8567, %v8069
  %v8634 = vsel %vm8582, %v8569, %v8071
  %v8636 = vsel %vm8582, %v8571, %v8073
  %v8638 = vsel %vm8582, %v8573, %v8075
  %v8640 = vsel %vm8582, %v8575, %v8077
  %v8642 = vsel %vm8582, %v8577, %v8079
  %v8644 = vsel %vm8582, %v8579, %v8081
  %v8646 = vsel %vm8582, %v8581, %v8083
  %vm8647 = vcmask 392192
  %v8649 = vsel %vm8647, %v8584, %v8091
  %v8651 = vsel %vm8647, %v8586, %v8093
  %v8653 = vsel %vm8647, %v8588, %v8095
  %v8655 = vsel %vm8647, %v8590, %v8097
  %v8657 = vsel %vm8647, %v8592, %v8099
  %v8659 = vsel %vm8647, %v8594, %v8101
  %v8661 = vsel %vm8647, %v8596, %v8103
  %v8663 = vsel %vm8647, %v8598, %v8105
  %v8665 = vsel %vm8647, %v8600, %v8107
  %v8667 = vsel %vm8647, %v8602, %v8109
  %v8669 = vsel %vm8647, %v8604, %v8111
  %v8671 = vsel %vm8647, %v8606, %v8113
  %v8673 = vsel %vm8647, %v8608, %v8115
  %v8675 = vsel %vm8647, %v8610, %v8117
  %v8677 = vsel %vm8647, %v8612, %v8119
  %v8679 = vsel %vm8647, %v8614, %v8121
  %v8681 = vsel %vm8647, %v8616, %v8123
  %v8683 = vsel %vm8647, %v8618, %v8125
  %v8685 = vsel %vm8647, %v8620, %v8127
  %v8687 = vsel %vm8647, %v8622, %v8129
  %v8689 = vsel %vm8647, %v8624, %v8131
  %v8691 = vsel %vm8647, %v8626, %v8133
  %v8693 = vsel %vm8647, %v8628, %v8135
  %v8695 = vsel %vm8647, %v8630, %v8137
  %v8697 = vsel %vm8647, %v8632, %v8139
  %v8699 = vsel %vm8647, %v8634, %v8141
  %v8701 = vsel %vm8647, %v8636, %v8143
  %v8703 = vsel %vm8647, %v8638, %v8145
  %v8705 = vsel %vm8647, %v8640, %v8147
  %v8707 = vsel %vm8647, %v8642, %v8149
  %v8709 = vsel %vm8647, %v8644, %v8151
  %v8711 = vsel %vm8647, %v8646, %v8153
  %vm8712 = vcmask 457728
  %v8714 = vsel %vm8712, %v8649, %v8161
  %v8716 = vsel %vm8712, %v8651, %v8163
  %v8718 = vsel %vm8712, %v8653, %v8165
  %v8720 = vsel %vm8712, %v8655, %v8167
  %v8722 = vsel %vm8712, %v8657, %v8169
  %v8724 = vsel %vm8712, %v8659, %v8171
  %v8726 = vsel %vm8712, %v8661, %v8173
  %v8728 = vsel %vm8712, %v8663, %v8175
  %v8730 = vsel %vm8712, %v8665, %v8177
  %v8732 = vsel %vm8712, %v8667, %v8179
  %v8734 = vsel %vm8712, %v8669, %v8181
  %v8736 = vsel %vm8712, %v8671, %v8183
  %v8738 = vsel %vm8712, %v8673, %v8185
  %v8740 = vsel %vm8712, %v8675, %v8187
  %v8742 = vsel %vm8712, %v8677, %v8189
  %v8744 = vsel %vm8712, %v8679, %v8191
  %v8746 = vsel %vm8712, %v8681, %v8193
  %v8748 = vsel %vm8712, %v8683, %v8195
  %v8750 = vsel %vm8712, %v8685, %v8197
  %v8752 = vsel %vm8712, %v8687, %v8199
  %v8754 = vsel %vm8712, %v8689, %v8201
  %v8756 = vsel %vm8712, %v8691, %v8203
  %v8758 = vsel %vm8712, %v8693, %v8205
  %v8760 = vsel %vm8712, %v8695, %v8207
  %v8762 = vsel %vm8712, %v8697, %v8209
  %v8764 = vsel %vm8712, %v8699, %v8211
  %v8766 = vsel %vm8712, %v8701, %v8213
  %v8768 = vsel %vm8712, %v8703, %v8215
  %v8770 = vsel %vm8712, %v8705, %v8217
  %v8772 = vsel %vm8712, %v8707, %v8219
  %v8774 = vsel %vm8712, %v8709, %v8221
  %v8776 = vsel %vm8712, %v8711, %v8223
  %vm8777 = vcmask 523264
  %v8779 = vsel %vm8777, %v8714, %v8231
  %v8781 = vsel %vm8777, %v8716, %v8233
  %v8783 = vsel %vm8777, %v8718, %v8235
  %v8785 = vsel %vm8777, %v8720, %v8237
  %v8787 = vsel %vm8777, %v8722, %v8239
  %v8789 = vsel %vm8777, %v8724, %v8241
  %v8791 = vsel %vm8777, %v8726, %v8243
  %v8793 = vsel %vm8777, %v8728, %v8245
  %v8795 = vsel %vm8777, %v8730, %v8247
  %v8797 = vsel %vm8777, %v8732, %v8249
  %v8799 = vsel %vm8777, %v8734, %v8251
  %v8801 = vsel %vm8777, %v8736, %v8253
  %v8803 = vsel %vm8777, %v8738, %v8255
  %v8805 = vsel %vm8777, %v8740, %v8257
  %v8807 = vsel %vm8777, %v8742, %v8259
  %v8809 = vsel %vm8777, %v8744, %v8261
  %v8811 = vsel %vm8777, %v8746, %v8263
  %v8813 = vsel %vm8777, %v8748, %v8265
  %v8815 = vsel %vm8777, %v8750, %v8267
  %v8817 = vsel %vm8777, %v8752, %v8269
  %v8819 = vsel %vm8777, %v8754, %v8271
  %v8821 = vsel %vm8777, %v8756, %v8273
  %v8823 = vsel %vm8777, %v8758, %v8275
  %v8825 = vsel %vm8777, %v8760, %v8277
  %v8827 = vsel %vm8777, %v8762, %v8279
  %v8829 = vsel %vm8777, %v8764, %v8281
  %v8831 = vsel %vm8777, %v8766, %v8283
  %v8833 = vsel %vm8777, %v8768, %v8285
  %v8835 = vsel %vm8777, %v8770, %v8287
  %v8837 = vsel %vm8777, %v8772, %v8289
  %v8839 = vsel %vm8777, %v8774, %v8291
  %v8841 = vsel %vm8777, %v8776, %v8293
  %v8842 = vld [vmem:[%s2] sm:$0xf]
  %v8843 = vld [vmem:[%s2 + $0x4] sm:$0xf]
  %v8844 = vld [vmem:[%s2 + $0x8] sm:$0xf]
  %v8845 = vld [vmem:[%s2 + $0xc] sm:$0xf]
  %v8846 = vld [vmem:[%s2 + $0x10] sm:$0xf]
  %v8847 = vld [vmem:[%s2 + $0x14] sm:$0xf]
  %v8848 = vld [vmem:[%s2 + $0x18] sm:$0xf]
  %v8849 = vld [vmem:[%s2 + $0x1c] sm:$0xf]
  %v8850 = vld [vmem:[%s2 + $0x20] sm:$0xf]
  %v8860 = vunpack.c.l.b16 %v8842
  %v8861 = vunpack.c.l.b16 %v8843
  %v8862 = vunpack.c.l.b16 %v8844
  %v8863 = vunpack.c.l.b16 %v8845
  %v8864 = vunpack.c.l.b16 %v8846
  %v8865 = vunpack.c.l.b16 %v8847
  %v8866 = vunpack.c.l.b16 %v8848
  %v8867 = vunpack.c.l.b16 %v8849
  %v8868 = vunpack.c.l.b16 %v8850
  %v8869 = vpack.c.b16 %v8861, %v8860
  %v8870 = vpack.c.b16 %v8863, %v8862
  %v8871 = vpack.c.b16 %v8865, %v8864
  %v8872 = vpack.c.b16 %v8867, %v8866
  %v8873 = vpack.c.b16 %v8868, %v8868
  %vm8878 = vcmask 588800
  %v8879 = vsel %vm8878, %v8779, 0
  %v8881 = vsel %vm8878, %v8781, 0
  %v8883 = vsel %vm8878, %v8783, 0
  %v8885 = vsel %vm8878, %v8785, 0
  %v8887 = vsel %vm8878, %v8787, 0
  %v8889 = vsel %vm8878, %v8789, 0
  %v8891 = vsel %vm8878, %v8791, 0
  %v8893 = vsel %vm8878, %v8793, 0
  %v8895 = vsel %vm8878, %v8795, 0
  %v8897 = vsel %vm8878, %v8797, 0
  %v8899 = vsel %vm8878, %v8799, 0
  %v8901 = vsel %vm8878, %v8801, 0
  %v8903 = vsel %vm8878, %v8803, 0
  %v8905 = vsel %vm8878, %v8805, 0
  %v8907 = vsel %vm8878, %v8807, 0
  %v8909 = vsel %vm8878, %v8809, 0
  %v8911 = vsel %vm8878, %v8811, 0
  %v8913 = vsel %vm8878, %v8813, 0
  %v8915 = vsel %vm8878, %v8815, 0
  %v8917 = vsel %vm8878, %v8817, 0
  %v8919 = vsel %vm8878, %v8819, 0
  %v8921 = vsel %vm8878, %v8821, 0
  %v8923 = vsel %vm8878, %v8823, 0
  %v8925 = vsel %vm8878, %v8825, 0
  %v8927 = vsel %vm8878, %v8827, 0
  %v8929 = vsel %vm8878, %v8829, 0
  %v8931 = vsel %vm8878, %v8831, 0
  %v8933 = vsel %vm8878, %v8833, 0
  %v8935 = vsel %vm8878, %v8835, 0
  %v8937 = vsel %vm8878, %v8837, 0
  %v8939 = vsel %vm8878, %v8839, 0
  %v8941 = vsel %vm8878, %v8841, 0
  %vm8943 = vcmask 1043456
  %v8945 = vsel %vm8943, %v8873, 0
  %8947 = vmatprep.subr.bf16.mxu0 0
  %8948 = vmatpush1.bf16.msra.mxu0 %v8869
  %8949 = vmatprep.subr.bf16.mxu0 0
  %8950 = vmatpush1.bf16.msra.mxu0 %v8870
  %8951 = vmatprep.subr.bf16.mxu0 0
  %8952 = vmatpush1.bf16.msra.mxu0 %v8871
  %8953 = vmatprep.subr.bf16.mxu0 0
  %8954 = vmatpush1.bf16.msra.mxu0 %v8872
  %8955 = vmatprep.subr.bf16.mxu0 0
  %8956 = vmatpush1.bf16.msra.mxu0 %v8945
  %8957 = vmatprep.subr.bf16.mxu0 0
  %8958 = vmatpush1.bf16.msra.mxu0 0
  %8959 = vmatprep.subr.bf16.mxu0 0
  %8960 = vmatpush1.bf16.msra.mxu0 0
  %8961 = vmatprep.subr.bf16.mxu0 0
  %8962 = vmatpush1.bf16.msra.mxu0 0
  %8963 = vmatprep.subr.bf16.mxu0 0
  %8964 = vmatpush1.bf16.msra.mxu0 0
  %8965 = vmatprep.subr.bf16.mxu0 0
  %8966 = vmatpush1.bf16.msra.mxu0 0
  %8967 = vmatprep.subr.bf16.mxu0 0
  %8968 = vmatpush1.bf16.msra.mxu0 0
  %8969 = vmatprep.subr.bf16.mxu0 0
  %8970 = vmatpush1.bf16.msra.mxu0 0
  %8971 = vmatprep.subr.bf16.mxu0 0
  %8972 = vmatpush1.bf16.msra.mxu0 0
  %8973 = vmatprep.subr.bf16.mxu0 0
  %8974 = vmatpush1.bf16.msra.mxu0 0
  %8975 = vmatprep.subr.bf16.mxu0 0
  %8976 = vmatpush1.bf16.msra.mxu0 0
  %8977 = vmatprep.subr.bf16.mxu0 0
  %8978 = vmatpush1.bf16.msra.mxu0 0
  %8979 = vmatprep.mubr.bf16.mxu0 0
  %8980 = vmatmul.mubr.bf16.gmra.mrb[0].mxu0 %v8879
  %v8981 = vpop.f32.mrb[0].mxu0
  %v8982 = vadd.f32 0.0, %v8981
  %v8983 = vpop.f32.mrb[0].mxu0
  %v8984 = vpop.f32.mrb[0].mxu0
  %v8985 = vadd.f32 0.0, %v8984
  %v8986 = vpop.f32.mrb[0].mxu0
  %8987 = vmatprep.mubr.bf16.mxu0 0
  %8988 = vmatmul.mubr.bf16.gmra.mrb[0].mxu0 %v8881
  %v8989 = vpop.f32.mrb[0].mxu0
  %v8990 = vadd.f32 0.0, %v8989
  %v8991 = vpop.f32.mrb[0].mxu0
  %v8992 = vpop.f32.mrb[0].mxu0
  %v8993 = vadd.f32 0.0, %v8992
  %v8994 = vpop.f32.mrb[0].mxu0
  %8995 = vmatprep.mubr.bf16.mxu0 0
  %8996 = vmatmul.mubr.bf16.gmra.mrb[0].mxu0 %v8883
  %v8997 = vpop.f32.mrb[0].mxu0
  %v8998 = vadd.f32 0.0, %v8997
  %v8999 = vpop.f32.mrb[0].mxu0
  %v9000 = vpop.f32.mrb[0].mxu0
  %v9001 = vadd.f32 0.0, %v9000
  %v9002 = vpop.f32.mrb[0].mxu0
  %9003 = vmatprep.mubr.bf16.mxu0 0
  %9004 = vmatmul.mubr.bf16.gmra.mrb[0].mxu0 %v8885
  %v9005 = vpop.f32.mrb[0].mxu0
  %v9006 = vadd.f32 0.0, %v9005
  %v9007 = vpop.f32.mrb[0].mxu0
  %v9008 = vpop.f32.mrb[0].mxu0
  %v9009 = vadd.f32 0.0, %v9008
  %v9010 = vpop.f32.mrb[0].mxu0
  %9011 = vmatprep.mubr.bf16.mxu0 0
  %9012 = vmatmul.mubr.bf16.gmra.mrb[0].mxu0 %v8887
  %v9013 = vpop.f32.mrb[0].mxu0
  %v9014 = vadd.f32 0.0, %v9013
  %v9015 = vpop.f32.mrb[0].mxu0
  %v9016 = vpop.f32.mrb[0].mxu0
  %v9017 = vadd.f32 0.0, %v9016
  %v9018 = vpop.f32.mrb[0].mxu0
  %9019 = vmatprep.mubr.bf16.mxu0 0
  %9020 = vmatmul.mubr.bf16.gmra.mrb[0].mxu0 %v8889
  %v9021 = vpop.f32.mrb[0].mxu0
  %v9022 = vadd.f32 0.0, %v9021
  %v9023 = vpop.f32.mrb[0].mxu0
  %v9024 = vpop.f32.mrb[0].mxu0
  %v9025 = vadd.f32 0.0, %v9024
  %v9026 = vpop.f32.mrb[0].mxu0
  %9027 = vmatprep.mubr.bf16.mxu0 0
  %9028 = vmatmul.mubr.bf16.gmra.mrb[0].mxu0 %v8891
  %v9029 = vpop.f32.mrb[0].mxu0
  %v9030 = vadd.f32 0.0, %v9029
  %v9031 = vpop.f32.mrb[0].mxu0
  %v9032 = vpop.f32.mrb[0].mxu0
  %v9033 = vadd.f32 0.0, %v9032
  %v9034 = vpop.f32.mrb[0].mxu0
  %9035 = vmatprep.mubr.bf16.mxu0 0
  %9036 = vmatmul.mubr.bf16.gmra.mrb[0].mxu0 %v8893
  %v9037 = vpop.f32.mrb[0].mxu0
  %v9038 = vadd.f32 0.0, %v9037
  %v9039 = vpop.f32.mrb[0].mxu0
  %v9040 = vpop.f32.mrb[0].mxu0
  %v9041 = vadd.f32 0.0, %v9040
  %v9042 = vpop.f32.mrb[0].mxu0
  %9043 = vmatprep.mubr.bf16.mxu0 0
  %9044 = vmatmul.mubr.bf16.gmra.mrb[0].mxu0 %v8895
  %v9045 = vpop.f32.mrb[0].mxu0
  %v9046 = vadd.f32 0.0, %v9045
  %v9047 = vpop.f32.mrb[0].mxu0
  %v9048 = vpop.f32.mrb[0].mxu0
  %v9049 = vadd.f32 0.0, %v9048
  %v9050 = vpop.f32.mrb[0].mxu0
  %9051 = vmatprep.mubr.bf16.mxu0 0
  %9052 = vmatmul.mubr.bf16.gmra.mrb[0].mxu0 %v8897
  %v9053 = vpop.f32.mrb[0].mxu0
  %v9054 = vadd.f32 0.0, %v9053
  %v9055 = vpop.f32.mrb[0].mxu0
  %v9056 = vpop.f32.mrb[0].mxu0
  %v9057 = vadd.f32 0.0, %v9056
  %v9058 = vpop.f32.mrb[0].mxu0
  %9059 = vmatprep.mubr.bf16.mxu0 0
  %9060 = vmatmul.mubr.bf16.gmra.mrb[0].mxu0 %v8899
  %v9061 = vpop.f32.mrb[0].mxu0
  %v9062 = vadd.f32 0.0, %v9061
  %v9063 = vpop.f32.mrb[0].mxu0
  %v9064 = vpop.f32.mrb[0].mxu0
  %v9065 = vadd.f32 0.0, %v9064
  %v9066 = vpop.f32.mrb[0].mxu0
  %9067 = vmatprep.mubr.bf16.mxu0 0
  %9068 = vmatmul.mubr.bf16.gmra.mrb[0].mxu0 %v8901
  %v9069 = vpop.f32.mrb[0].mxu0
  %v9070 = vadd.f32 0.0, %v9069
  %v9071 = vpop.f32.mrb[0].mxu0
  %v9072 = vpop.f32.mrb[0].mxu0
  %v9073 = vadd.f32 0.0, %v9072
  %v9074 = vpop.f32.mrb[0].mxu0
  %9075 = vmatprep.mubr.bf16.mxu0 0
  %9076 = vmatmul.mubr.bf16.gmra.mrb[0].mxu0 %v8903
  %v9077 = vpop.f32.mrb[0].mxu0
  %v9078 = vadd.f32 0.0, %v9077
  %v9079 = vpop.f32.mrb[0].mxu0
  %v9080 = vpop.f32.mrb[0].mxu0
  %v9081 = vadd.f32 0.0, %v9080
  %v9082 = vpop.f32.mrb[0].mxu0
  %9083 = vmatprep.mubr.bf16.mxu0 0
  %9084 = vmatmul.mubr.bf16.gmra.mrb[0].mxu0 %v8905
  %v9085 = vpop.f32.mrb[0].mxu0
  %v9086 = vadd.f32 0.0, %v9085
  %v9087 = vpop.f32.mrb[0].mxu0
  %v9088 = vpop.f32.mrb[0].mxu0
  %v9089 = vadd.f32 0.0, %v9088
  %v9090 = vpop.f32.mrb[0].mxu0
  %9091 = vmatprep.mubr.bf16.mxu0 0
  %9092 = vmatmul.mubr.bf16.gmra.mrb[0].mxu0 %v8907
  %v9093 = vpop.f32.mrb[0].mxu0
  %v9094 = vadd.f32 0.0, %v9093
  %v9095 = vpop.f32.mrb[0].mxu0
  %v9096 = vpop.f32.mrb[0].mxu0
  %v9097 = vadd.f32 0.0, %v9096
  %v9098 = vpop.f32.mrb[0].mxu0
  %9099 = vmatprep.mubr.bf16.mxu0 0
  %9100 = vmatmul.mubr.bf16.gmra.mrb[0].mxu0 %v8909
  %v9101 = vpop.f32.mrb[0].mxu0
  %v9102 = vadd.f32 0.0, %v9101
  %v9103 = vpop.f32.mrb[0].mxu0
  %v9104 = vpop.f32.mrb[0].mxu0
  %v9105 = vadd.f32 0.0, %v9104
  %v9106 = vpop.f32.mrb[0].mxu0
  %9107 = vmatprep.mubr.bf16.mxu0 0
  %9108 = vmatmul.mubr.bf16.gmra.mrb[0].mxu0 %v8911
  %v9109 = vpop.f32.mrb[0].mxu0
  %v9110 = vadd.f32 0.0, %v9109
  %v9111 = vpop.f32.mrb[0].mxu0
  %v9112 = vpop.f32.mrb[0].mxu0
  %v9113 = vadd.f32 0.0, %v9112
  %v9114 = vpop.f32.mrb[0].mxu0
  %9115 = vmatprep.mubr.bf16.mxu0 0
  %9116 = vmatmul.mubr.bf16.gmra.mrb[0].mxu0 %v8913
  %v9117 = vpop.f32.mrb[0].mxu0
  %v9118 = vadd.f32 0.0, %v9117
  %v9119 = vpop.f32.mrb[0].mxu0
  %v9120 = vpop.f32.mrb[0].mxu0
  %v9121 = vadd.f32 0.0, %v9120
  %v9122 = vpop.f32.mrb[0].mxu0
  %9123 = vmatprep.mubr.bf16.mxu0 0
  %9124 = vmatmul.mubr.bf16.gmra.mrb[0].mxu0 %v8915
  %v9125 = vpop.f32.mrb[0].mxu0
  %v9126 = vadd.f32 0.0, %v9125
  %v9127 = vpop.f32.mrb[0].mxu0
  %v9128 = vpop.f32.mrb[0].mxu0
  %v9129 = vadd.f32 0.0, %v9128
  %v9130 = vpop.f32.mrb[0].mxu0
  %9131 = vmatprep.mubr.bf16.mxu0 0
  %9132 = vmatmul.mubr.bf16.gmra.mrb[0].mxu0 %v8917
  %v9133 = vpop.f32.mrb[0].mxu0
  %v9134 = vadd.f32 0.0, %v9133
  %v9135 = vpop.f32.mrb[0].mxu0
  %v9136 = vpop.f32.mrb[0].mxu0
  %v9137 = vadd.f32 0.0, %v9136
  %v9138 = vpop.f32.mrb[0].mxu0
  %9139 = vmatprep.mubr.bf16.mxu0 0
  %9140 = vmatmul.mubr.bf16.gmra.mrb[0].mxu0 %v8919
  %v9141 = vpop.f32.mrb[0].mxu0
  %v9142 = vadd.f32 0.0, %v9141
  %v9143 = vpop.f32.mrb[0].mxu0
  %v9144 = vpop.f32.mrb[0].mxu0
  %v9145 = vadd.f32 0.0, %v9144
  %v9146 = vpop.f32.mrb[0].mxu0
  %9147 = vmatprep.mubr.bf16.mxu0 0
  %9148 = vmatmul.mubr.bf16.gmra.mrb[0].mxu0 %v8921
  %v9149 = vpop.f32.mrb[0].mxu0
  %v9150 = vadd.f32 0.0, %v9149
  %v9151 = vpop.f32.mrb[0].mxu0
  %v9152 = vpop.f32.mrb[0].mxu0
  %v9153 = vadd.f32 0.0, %v9152
  %v9154 = vpop.f32.mrb[0].mxu0
  %9155 = vmatprep.mubr.bf16.mxu0 0
  %9156 = vmatmul.mubr.bf16.gmra.mrb[0].mxu0 %v8923
  %v9157 = vpop.f32.mrb[0].mxu0
  %v9158 = vadd.f32 0.0, %v9157
  %v9159 = vpop.f32.mrb[0].mxu0
  %v9160 = vpop.f32.mrb[0].mxu0
  %v9161 = vadd.f32 0.0, %v9160
  %v9162 = vpop.f32.mrb[0].mxu0
  %9163 = vmatprep.mubr.bf16.mxu0 0
  %9164 = vmatmul.mubr.bf16.gmra.mrb[0].mxu0 %v8925
  %v9165 = vpop.f32.mrb[0].mxu0
  %v9166 = vadd.f32 0.0, %v9165
  %v9167 = vpop.f32.mrb[0].mxu0
  %v9168 = vpop.f32.mrb[0].mxu0
  %v9169 = vadd.f32 0.0, %v9168
  %v9170 = vpop.f32.mrb[0].mxu0
  %9171 = vmatprep.mubr.bf16.mxu0 0
  %9172 = vmatmul.mubr.bf16.gmra.mrb[0].mxu0 %v8927
  %v9173 = vpop.f32.mrb[0].mxu0
  %v9174 = vadd.f32 0.0, %v9173
  %v9175 = vpop.f32.mrb[0].mxu0
  %v9176 = vpop.f32.mrb[0].mxu0
  %v9177 = vadd.f32 0.0, %v9176
  %v9178 = vpop.f32.mrb[0].mxu0
  %9179 = vmatprep.mubr.bf16.mxu0 0
  %9180 = vmatmul.mubr.bf16.gmra.mrb[0].mxu0 %v8929
  %v9181 = vpop.f32.mrb[0].mxu0
  %v9182 = vadd.f32 0.0, %v9181
  %v9183 = vpop.f32.mrb[0].mxu0
  %v9184 = vpop.f32.mrb[0].mxu0
  %v9185 = vadd.f32 0.0, %v9184
  %v9186 = vpop.f32.mrb[0].mxu0
  %9187 = vmatprep.mubr.bf16.mxu0 0
  %9188 = vmatmul.mubr.bf16.gmra.mrb[0].mxu0 %v8931
  %v9189 = vpop.f32.mrb[0].mxu0
  %v9190 = vadd.f32 0.0, %v9189
  %v9191 = vpop.f32.mrb[0].mxu0
  %v9192 = vpop.f32.mrb[0].mxu0
  %v9193 = vadd.f32 0.0, %v9192
  %v9194 = vpop.f32.mrb[0].mxu0
  %9195 = vmatprep.mubr.bf16.mxu0 0
  %9196 = vmatmul.mubr.bf16.gmra.mrb[0].mxu0 %v8933
  %v9197 = vpop.f32.mrb[0].mxu0
  %v9198 = vadd.f32 0.0, %v9197
  %v9199 = vpop.f32.mrb[0].mxu0
  %v9200 = vpop.f32.mrb[0].mxu0
  %v9201 = vadd.f32 0.0, %v9200
  %v9202 = vpop.f32.mrb[0].mxu0
  %9203 = vmatprep.mubr.bf16.mxu0 0
  %9204 = vmatmul.mubr.bf16.gmra.mrb[0].mxu0 %v8935
  %v9205 = vpop.f32.mrb[0].mxu0
  %v9206 = vadd.f32 0.0, %v9205
  %v9207 = vpop.f32.mrb[0].mxu0
  %v9208 = vpop.f32.mrb[0].mxu0
  %v9209 = vadd.f32 0.0, %v9208
  %v9210 = vpop.f32.mrb[0].mxu0
  %9211 = vmatprep.mubr.bf16.mxu0 0
  %9212 = vmatmul.mubr.bf16.gmra.mrb[0].mxu0 %v8937
  %v9213 = vpop.f32.mrb[0].mxu0
  %v9214 = vadd.f32 0.0, %v9213
  %v9215 = vpop.f32.mrb[0].mxu0
  %v9216 = vpop.f32.mrb[0].mxu0
  %v9217 = vadd.f32 0.0, %v9216
  %v9218 = vpop.f32.mrb[0].mxu0
  %9219 = vmatprep.mubr.bf16.mxu0 0
  %9220 = vmatmul.mubr.bf16.gmra.mrb[0].mxu0 %v8939
  %v9221 = vpop.f32.mrb[0].mxu0
  %v9222 = vadd.f32 0.0, %v9221
  %v9223 = vpop.f32.mrb[0].mxu0
  %v9224 = vpop.f32.mrb[0].mxu0
  %v9225 = vadd.f32 0.0, %v9224
  %v9226 = vpop.f32.mrb[0].mxu0
  %9227 = vmatprep.mubr.bf16.mxu0 0
  %9228 = vmatmul.mubr.bf16.gmra.mrb[0].mxu0 %v8941
  %v9229 = vpop.f32.mrb[0].mxu0
  %v9230 = vadd.f32 0.0, %v9229
  %v9231 = vpop.f32.mrb[0].mxu0
  %v9232 = vpop.f32.mrb[0].mxu0
  %v9233 = vadd.f32 0.0, %v9232
  %v9234 = vpop.f32.mrb[0].mxu0
  %9235 = vdwg.mxu0
  %v9236 = vld [vmem:[%s3 + $0x2] sm:$0x1]
  %v9237 = vld [vmem:[%s3 + $0x3] sm:$0x1]
  %v9238 = vsel %vm3458, %v8982, 0.0
  %v9239 = vsel %vm3458, %v8985, 0.0
  %v9240 = vadd.f32 %v9238, %v9239
  %v9241 = vsel %vm3458, %v8990, 0.0
  %v9242 = vadd.f32 %v9240, %v9241
  %v9243 = vsel %vm3458, %v8993, 0.0
  %v9244 = vadd.f32 %v9242, %v9243
  %v9245 = vsel %vm3458, %v8998, 0.0
  %v9246 = vadd.f32 %v9244, %v9245
  %v9247 = vsel %vm3458, %v9001, 0.0
  %v9248 = vadd.f32 %v9246, %v9247
  %v9249 = vsel %vm3458, %v9006, 0.0
  %v9250 = vadd.f32 %v9248, %v9249
  %v9251 = vsel %vm3458, %v9009, 0.0
  %v9252 = vadd.f32 %v9250, %v9251
  %v9253 = vsel %vm3458, %v9014, 0.0
  %v9254 = vadd.f32 %v9252, %v9253
  %v9255 = vsel %vm3458, %v9017, 0.0
  %v9256 = vadd.f32 %v9254, %v9255
  %v9257 = vsel %vm3458, %v9022, 0.0
  %v9258 = vadd.f32 %v9256, %v9257
  %v9259 = vsel %vm3458, %v9025, 0.0
  %v9260 = vadd.f32 %v9258, %v9259
  %v9261 = vsel %vm3458, %v9030, 0.0
  %v9262 = vadd.f32 %v9260, %v9261
  %v9263 = vsel %vm3458, %v9033, 0.0
  %v9264 = vadd.f32 %v9262, %v9263
  %v9265 = vsel %vm3458, %v9038, 0.0
  %v9266 = vadd.f32 %v9264, %v9265
  %v9267 = vsel %vm3458, %v9041, 0.0
  %v9268 = vadd.f32 %v9266, %v9267
  %v9269 = vsel %vm3458, %v9046, 0.0
  %v9270 = vadd.f32 %v9268, %v9269
  %v9271 = vsel %vm3458, %v9049, 0.0
  %v9272 = vadd.f32 %v9270, %v9271
  %v9273 = vsel %vm3458, %v9054, 0.0
  %v9274 = vadd.f32 %v9272, %v9273
  %v9275 = vsel %vm3458, %v9057, 0.0
  %v9276 = vadd.f32 %v9274, %v9275
  %v9277 = vsel %vm3458, %v9062, 0.0
  %v9278 = vadd.f32 %v9276, %v9277
  %v9279 = vsel %vm3458, %v9065, 0.0
  %v9280 = vadd.f32 %v9278, %v9279
  %v9281 = vsel %vm3458, %v9070, 0.0
  %v9282 = vadd.f32 %v9280, %v9281
  %v9283 = vsel %vm3458, %v9073, 0.0
  %v9284 = vadd.f32 %v9282, %v9283
  %v9285 = vsel %vm3458, %v9078, 0.0
  %v9286 = vadd.f32 %v9284, %v9285
  %v9287 = vsel %vm3458, %v9081, 0.0
  %v9288 = vadd.f32 %v9286, %v9287
  %v9289 = vsel %vm3458, %v9086, 0.0
  %v9290 = vadd.f32 %v9288, %v9289
  %v9291 = vsel %vm3458, %v9089, 0.0
  %v9292 = vadd.f32 %v9290, %v9291
  %v9293 = vsel %vm3458, %v9094, 0.0
  %v9294 = vadd.f32 %v9292, %v9293
  %v9295 = vsel %vm3458, %v9097, 0.0
  %v9296 = vadd.f32 %v9294, %v9295
  %v9297 = vsel %vm3458, %v9102, 0.0
  %v9298 = vadd.f32 %v9296, %v9297
  %v9299 = vsel %vm3458, %v9105, 0.0
  %v9300 = vadd.f32 %v9298, %v9299
  %v9301 = vsel %vm3458, %v9110, 0.0
  %v9302 = vadd.f32 %v9300, %v9301
  %v9303 = vsel %vm3458, %v9113, 0.0
  %v9304 = vadd.f32 %v9302, %v9303
  %v9305 = vsel %vm3458, %v9118, 0.0
  %v9306 = vadd.f32 %v9304, %v9305
  %v9307 = vsel %vm3458, %v9121, 0.0
  %v9308 = vadd.f32 %v9306, %v9307
  %v9309 = vsel %vm3458, %v9126, 0.0
  %v9310 = vadd.f32 %v9308, %v9309
  %v9311 = vsel %vm3458, %v9129, 0.0
  %v9312 = vadd.f32 %v9310, %v9311
  %v9313 = vsel %vm3458, %v9134, 0.0
  %v9314 = vadd.f32 %v9312, %v9313
  %v9315 = vsel %vm3458, %v9137, 0.0
  %v9316 = vadd.f32 %v9314, %v9315
  %v9317 = vsel %vm3458, %v9142, 0.0
  %v9318 = vadd.f32 %v9316, %v9317
  %v9319 = vsel %vm3458, %v9145, 0.0
  %v9320 = vadd.f32 %v9318, %v9319
  %v9321 = vsel %vm3458, %v9150, 0.0
  %v9322 = vadd.f32 %v9320, %v9321
  %v9323 = vsel %vm3458, %v9153, 0.0
  %v9324 = vadd.f32 %v9322, %v9323
  %v9325 = vsel %vm3458, %v9158, 0.0
  %v9326 = vadd.f32 %v9324, %v9325
  %v9327 = vsel %vm3458, %v9161, 0.0
  %v9328 = vadd.f32 %v9326, %v9327
  %v9329 = vsel %vm3458, %v9166, 0.0
  %v9330 = vadd.f32 %v9328, %v9329
  %v9331 = vsel %vm3458, %v9169, 0.0
  %v9332 = vadd.f32 %v9330, %v9331
  %v9333 = vsel %vm3458, %v9174, 0.0
  %v9334 = vadd.f32 %v9332, %v9333
  %v9335 = vsel %vm3458, %v9177, 0.0
  %v9336 = vadd.f32 %v9334, %v9335
  %v9337 = vsel %vm3458, %v9182, 0.0
  %v9338 = vadd.f32 %v9336, %v9337
  %v9339 = vsel %vm3458, %v9185, 0.0
  %v9340 = vadd.f32 %v9338, %v9339
  %v9341 = vsel %vm3458, %v9190, 0.0
  %v9342 = vadd.f32 %v9340, %v9341
  %v9343 = vsel %vm3458, %v9193, 0.0
  %v9344 = vadd.f32 %v9342, %v9343
  %v9345 = vsel %vm3458, %v9198, 0.0
  %v9346 = vadd.f32 %v9344, %v9345
  %v9347 = vsel %vm3458, %v9201, 0.0
  %v9348 = vadd.f32 %v9346, %v9347
  %v9349 = vsel %vm3458, %v9206, 0.0
  %v9350 = vadd.f32 %v9348, %v9349
  %v9351 = vsel %vm3458, %v9209, 0.0
  %v9352 = vadd.f32 %v9350, %v9351
  %v9353 = vsel %vm3458, %v9214, 0.0
  %v9354 = vadd.f32 %v9352, %v9353
  %v9355 = vsel %vm3458, %v9217, 0.0
  %v9356 = vadd.f32 %v9354, %v9355
  %v9357 = vsel %vm3458, %v9222, 0.0
  %v9358 = vadd.f32 %v9356, %v9357
  %v9359 = vsel %vm3458, %v9225, 0.0
  %v9360 = vadd.f32 %v9358, %v9359
  %v9361 = vsel %vm3458, %v9230, 0.0
  %v9362 = vadd.f32 %v9360, %v9361
  %v9363 = vsel %vm3458, %v9233, 0.0
  %v9364 = vadd.f32 %v9362, %v9363
  %v9365 = vrot.slane %v9364, 4
  %v9366 = vadd.f32 %v9364, %v9365
  %v9367 = vrot.slane %v9366, 2
  %v9368 = vadd.f32 %v9366, %v9367
  %v9369 = vrot.slane %v9368, 1
  %v9370 = vadd.f32 %v9368, %v9369
  %v9371 = vmul.f32 %v9370, 0.001953125
  %v9372 = vmul.f32 %v8982, %v8982
  %v9373 = vmul.f32 %v8985, %v8985
  %v9374 = vmul.f32 %v8990, %v8990
  %v9375 = vmul.f32 %v8993, %v8993
  %v9376 = vmul.f32 %v8998, %v8998
  %v9377 = vmul.f32 %v9001, %v9001
  %v9378 = vmul.f32 %v9006, %v9006
  %v9379 = vmul.f32 %v9009, %v9009
  %v9380 = vmul.f32 %v9014, %v9014
  %v9381 = vmul.f32 %v9017, %v9017
  %v9382 = vmul.f32 %v9022, %v9022
  %v9383 = vmul.f32 %v9025, %v9025
  %v9384 = vmul.f32 %v9030, %v9030
  %v9385 = vmul.f32 %v9033, %v9033
  %v9386 = vmul.f32 %v9038, %v9038
  %v9387 = vmul.f32 %v9041, %v9041
  %v9388 = vmul.f32 %v9046, %v9046
  %v9389 = vmul.f32 %v9049, %v9049
  %v9390 = vmul.f32 %v9054, %v9054
  %v9391 = vmul.f32 %v9057, %v9057
  %v9392 = vmul.f32 %v9062, %v9062
  %v9393 = vmul.f32 %v9065, %v9065
  %v9394 = vmul.f32 %v9070, %v9070
  %v9395 = vmul.f32 %v9073, %v9073
  %v9396 = vmul.f32 %v9078, %v9078
  %v9397 = vmul.f32 %v9081, %v9081
  %v9398 = vmul.f32 %v9086, %v9086
  %v9399 = vmul.f32 %v9089, %v9089
  %v9400 = vmul.f32 %v9094, %v9094
  %v9401 = vmul.f32 %v9097, %v9097
  %v9402 = vmul.f32 %v9102, %v9102
  %v9403 = vmul.f32 %v9105, %v9105
  %v9404 = vmul.f32 %v9110, %v9110
  %v9405 = vmul.f32 %v9113, %v9113
  %v9406 = vmul.f32 %v9118, %v9118
  %v9407 = vmul.f32 %v9121, %v9121
  %v9408 = vmul.f32 %v9126, %v9126
  %v9409 = vmul.f32 %v9129, %v9129
  %v9410 = vmul.f32 %v9134, %v9134
  %v9411 = vmul.f32 %v9137, %v9137
  %v9412 = vmul.f32 %v9142, %v9142
  %v9413 = vmul.f32 %v9145, %v9145
  %v9414 = vmul.f32 %v9150, %v9150
  %v9415 = vmul.f32 %v9153, %v9153
  %v9416 = vmul.f32 %v9158, %v9158
  %v9417 = vmul.f32 %v9161, %v9161
  %v9418 = vmul.f32 %v9166, %v9166
  %v9419 = vmul.f32 %v9169, %v9169
  %v9420 = vmul.f32 %v9174, %v9174
  %v9421 = vmul.f32 %v9177, %v9177
  %v9422 = vmul.f32 %v9182, %v9182
  %v9423 = vmul.f32 %v9185, %v9185
  %v9424 = vmul.f32 %v9190, %v9190
  %v9425 = vmul.f32 %v9193, %v9193
  %v9426 = vmul.f32 %v9198, %v9198
  %v9427 = vmul.f32 %v9201, %v9201
  %v9428 = vmul.f32 %v9206, %v9206
  %v9429 = vmul.f32 %v9209, %v9209
  %v9430 = vmul.f32 %v9214, %v9214
  %v9431 = vmul.f32 %v9217, %v9217
  %v9432 = vmul.f32 %v9222, %v9222
  %v9433 = vmul.f32 %v9225, %v9225
  %v9434 = vmul.f32 %v9230, %v9230
  %v9435 = vmul.f32 %v9233, %v9233
  %v9436 = vsel %vm3458, %v9372, 0.0
  %v9437 = vsel %vm3458, %v9373, 0.0
  %v9438 = vadd.f32 %v9436, %v9437
  %v9439 = vsel %vm3458, %v9374, 0.0
  %v9440 = vadd.f32 %v9438, %v9439
  %v9441 = vsel %vm3458, %v9375, 0.0
  %v9442 = vadd.f32 %v9440, %v9441
  %v9443 = vsel %vm3458, %v9376, 0.0
  %v9444 = vadd.f32 %v9442, %v9443
  %v9445 = vsel %vm3458, %v9377, 0.0
  %v9446 = vadd.f32 %v9444, %v9445
  %v9447 = vsel %vm3458, %v9378, 0.0
  %v9448 = vadd.f32 %v9446, %v9447
  %v9449 = vsel %vm3458, %v9379, 0.0
  %v9450 = vadd.f32 %v9448, %v9449
  %v9451 = vsel %vm3458, %v9380, 0.0
  %v9452 = vadd.f32 %v9450, %v9451
  %v9453 = vsel %vm3458, %v9381, 0.0
  %v9454 = vadd.f32 %v9452, %v9453
  %v9455 = vsel %vm3458, %v9382, 0.0
  %v9456 = vadd.f32 %v9454, %v9455
  %v9457 = vsel %vm3458, %v9383, 0.0
  %v9458 = vadd.f32 %v9456, %v9457
  %v9459 = vsel %vm3458, %v9384, 0.0
  %v9460 = vadd.f32 %v9458, %v9459
  %v9461 = vsel %vm3458, %v9385, 0.0
  %v9462 = vadd.f32 %v9460, %v9461
  %v9463 = vsel %vm3458, %v9386, 0.0
  %v9464 = vadd.f32 %v9462, %v9463
  %v9465 = vsel %vm3458, %v9387, 0.0
  %v9466 = vadd.f32 %v9464, %v9465
  %v9467 = vsel %vm3458, %v9388, 0.0
  %v9468 = vadd.f32 %v9466, %v9467
  %v9469 = vsel %vm3458, %v9389, 0.0
  %v9470 = vadd.f32 %v9468, %v9469
  %v9471 = vsel %vm3458, %v9390, 0.0
  %v9472 = vadd.f32 %v9470, %v9471
  %v9473 = vsel %vm3458, %v9391, 0.0
  %v9474 = vadd.f32 %v9472, %v9473
  %v9475 = vsel %vm3458, %v9392, 0.0
  %v9476 = vadd.f32 %v9474, %v9475
  %v9477 = vsel %vm3458, %v9393, 0.0
  %v9478 = vadd.f32 %v9476, %v9477
  %v9479 = vsel %vm3458, %v9394, 0.0
  %v9480 = vadd.f32 %v9478, %v9479
  %v9481 = vsel %vm3458, %v9395, 0.0
  %v9482 = vadd.f32 %v9480, %v9481
  %v9483 = vsel %vm3458, %v9396, 0.0
  %v9484 = vadd.f32 %v9482, %v9483
  %v9485 = vsel %vm3458, %v9397, 0.0
  %v9486 = vadd.f32 %v9484, %v9485
  %v9487 = vsel %vm3458, %v9398, 0.0
  %v9488 = vadd.f32 %v9486, %v9487
  %v9489 = vsel %vm3458, %v9399, 0.0
  %v9490 = vadd.f32 %v9488, %v9489
  %v9491 = vsel %vm3458, %v9400, 0.0
  %v9492 = vadd.f32 %v9490, %v9491
  %v9493 = vsel %vm3458, %v9401, 0.0
  %v9494 = vadd.f32 %v9492, %v9493
  %v9495 = vsel %vm3458, %v9402, 0.0
  %v9496 = vadd.f32 %v9494, %v9495
  %v9497 = vsel %vm3458, %v9403, 0.0
  %v9498 = vadd.f32 %v9496, %v9497
  %v9499 = vsel %vm3458, %v9404, 0.0
  %v9500 = vadd.f32 %v9498, %v9499
  %v9501 = vsel %vm3458, %v9405, 0.0
  %v9502 = vadd.f32 %v9500, %v9501
  %v9503 = vsel %vm3458, %v9406, 0.0
  %v9504 = vadd.f32 %v9502, %v9503
  %v9505 = vsel %vm3458, %v9407, 0.0
  %v9506 = vadd.f32 %v9504, %v9505
  %v9507 = vsel %vm3458, %v9408, 0.0
  %v9508 = vadd.f32 %v9506, %v9507
  %v9509 = vsel %vm3458, %v9409, 0.0
  %v9510 = vadd.f32 %v9508, %v9509
  %v9511 = vsel %vm3458, %v9410, 0.0
  %v9512 = vadd.f32 %v9510, %v9511
  %v9513 = vsel %vm3458, %v9411, 0.0
  %v9514 = vadd.f32 %v9512, %v9513
  %v9515 = vsel %vm3458, %v9412, 0.0
  %v9516 = vadd.f32 %v9514, %v9515
  %v9517 = vsel %vm3458, %v9413, 0.0
  %v9518 = vadd.f32 %v9516, %v9517
  %v9519 = vsel %vm3458, %v9414, 0.0
  %v9520 = vadd.f32 %v9518, %v9519
  %v9521 = vsel %vm3458, %v9415, 0.0
  %v9522 = vadd.f32 %v9520, %v9521
  %v9523 = vsel %vm3458, %v9416, 0.0
  %v9524 = vadd.f32 %v9522, %v9523
  %v9525 = vsel %vm3458, %v9417, 0.0
  %v9526 = vadd.f32 %v9524, %v9525
  %v9527 = vsel %vm3458, %v9418, 0.0
  %v9528 = vadd.f32 %v9526, %v9527
  %v9529 = vsel %vm3458, %v9419, 0.0
  %v9530 = vadd.f32 %v9528, %v9529
  %v9531 = vsel %vm3458, %v9420, 0.0
  %v9532 = vadd.f32 %v9530, %v9531
  %v9533 = vsel %vm3458, %v9421, 0.0
  %v9534 = vadd.f32 %v9532, %v9533
  %v9535 = vsel %vm3458, %v9422, 0.0
  %v9536 = vadd.f32 %v9534, %v9535
  %v9537 = vsel %vm3458, %v9423, 0.0
  %v9538 = vadd.f32 %v9536, %v9537
  %v9539 = vsel %vm3458, %v9424, 0.0
  %v9540 = vadd.f32 %v9538, %v9539
  %v9541 = vsel %vm3458, %v9425, 0.0
  %v9542 = vadd.f32 %v9540, %v9541
  %v9543 = vsel %vm3458, %v9426, 0.0
  %v9544 = vadd.f32 %v9542, %v9543
  %v9545 = vsel %vm3458, %v9427, 0.0
  %v9546 = vadd.f32 %v9544, %v9545
  %v9547 = vsel %vm3458, %v9428, 0.0
  %v9548 = vadd.f32 %v9546, %v9547
  %v9549 = vsel %vm3458, %v9429, 0.0
  %v9550 = vadd.f32 %v9548, %v9549
  %v9551 = vsel %vm3458, %v9430, 0.0
  %v9552 = vadd.f32 %v9550, %v9551
  %v9553 = vsel %vm3458, %v9431, 0.0
  %v9554 = vadd.f32 %v9552, %v9553
  %v9555 = vsel %vm3458, %v9432, 0.0
  %v9556 = vadd.f32 %v9554, %v9555
  %v9557 = vsel %vm3458, %v9433, 0.0
  %v9558 = vadd.f32 %v9556, %v9557
  %v9559 = vsel %vm3458, %v9434, 0.0
  %v9560 = vadd.f32 %v9558, %v9559
  %v9561 = vsel %vm3458, %v9435, 0.0
  %v9562 = vadd.f32 %v9560, %v9561
  %v9563 = vrot.slane %v9562, 4
  %v9564 = vadd.f32 %v9562, %v9563
  %v9565 = vrot.slane %v9564, 2
  %v9566 = vadd.f32 %v9564, %v9565
  %v9567 = vrot.slane %v9566, 1
  %v9568 = vadd.f32 %v9566, %v9567
  %v9569 = vmul.f32 %v9568, 0.001953125
  %v9570 = vmul.f32 %v9371, %v9371
  %v9571 = vsub.f32 %v9569, %v9570
  %v9572 = vmax.f32 %v9571, 0.0
  %v9573 = vadd.f32 %v9572, 1e-05
  %v9574 = vrsqrt.pop %v9573
  %v9575 = vmul.f32 %v9236, %v9574
  %v9576 = vmul.f32 %v9371, %v9575
  %v9577 = vsub.f32 %v9237, %v9576
  %v9578 = vlaneseq
  %v9579 = vshrl.u32 %v9578, 7
  %v9580 = vsub.s32 0, %v9579
  %v9581 = vrot.slane %v9575, %v9580
  %v9582 = vmul.f32 %v8982, %v9581
  %v9583 = vmul.f32 %v8985, %v9581
  %v9584 = vmul.f32 %v8990, %v9581
  %v9585 = vmul.f32 %v8993, %v9581
  %v9586 = vmul.f32 %v8998, %v9581
  %v9587 = vmul.f32 %v9001, %v9581
  %v9588 = vmul.f32 %v9006, %v9581
  %v9589 = vmul.f32 %v9009, %v9581
  %v9590 = vmul.f32 %v9014, %v9581
  %v9591 = vmul.f32 %v9017, %v9581
  %v9592 = vmul.f32 %v9022, %v9581
  %v9593 = vmul.f32 %v9025, %v9581
  %v9594 = vmul.f32 %v9030, %v9581
  %v9595 = vmul.f32 %v9033, %v9581
  %v9596 = vmul.f32 %v9038, %v9581
  %v9597 = vmul.f32 %v9041, %v9581
  %v9598 = vmul.f32 %v9046, %v9581
  %v9599 = vmul.f32 %v9049, %v9581
  %v9600 = vmul.f32 %v9054, %v9581
  %v9601 = vmul.f32 %v9057, %v9581
  %v9602 = vmul.f32 %v9062, %v9581
  %v9603 = vmul.f32 %v9065, %v9581
  %v9604 = vmul.f32 %v9070, %v9581
  %v9605 = vmul.f32 %v9073, %v9581
  %v9606 = vmul.f32 %v9078, %v9581
  %v9607 = vmul.f32 %v9081, %v9581
  %v9608 = vmul.f32 %v9086, %v9581
  %v9609 = vmul.f32 %v9089, %v9581
  %v9610 = vmul.f32 %v9094, %v9581
  %v9611 = vmul.f32 %v9097, %v9581
  %v9612 = vmul.f32 %v9102, %v9581
  %v9613 = vmul.f32 %v9105, %v9581
  %v9614 = vmul.f32 %v9110, %v9581
  %v9615 = vmul.f32 %v9113, %v9581
  %v9616 = vmul.f32 %v9118, %v9581
  %v9617 = vmul.f32 %v9121, %v9581
  %v9618 = vmul.f32 %v9126, %v9581
  %v9619 = vmul.f32 %v9129, %v9581
  %v9620 = vmul.f32 %v9134, %v9581
  %v9621 = vmul.f32 %v9137, %v9581
  %v9622 = vmul.f32 %v9142, %v9581
  %v9623 = vmul.f32 %v9145, %v9581
  %v9624 = vmul.f32 %v9150, %v9581
  %v9625 = vmul.f32 %v9153, %v9581
  %v9626 = vmul.f32 %v9158, %v9581
  %v9627 = vmul.f32 %v9161, %v9581
  %v9628 = vmul.f32 %v9166, %v9581
  %v9629 = vmul.f32 %v9169, %v9581
  %v9630 = vmul.f32 %v9174, %v9581
  %v9631 = vmul.f32 %v9177, %v9581
  %v9632 = vmul.f32 %v9182, %v9581
  %v9633 = vmul.f32 %v9185, %v9581
  %v9634 = vmul.f32 %v9190, %v9581
  %v9635 = vmul.f32 %v9193, %v9581
  %v9636 = vmul.f32 %v9198, %v9581
  %v9637 = vmul.f32 %v9201, %v9581
  %v9638 = vmul.f32 %v9206, %v9581
  %v9639 = vmul.f32 %v9209, %v9581
  %v9640 = vmul.f32 %v9214, %v9581
  %v9641 = vmul.f32 %v9217, %v9581
  %v9642 = vmul.f32 %v9222, %v9581
  %v9643 = vmul.f32 %v9225, %v9581
  %v9644 = vmul.f32 %v9230, %v9581
  %v9645 = vmul.f32 %v9233, %v9581
  %v9646 = vlaneseq
  %v9647 = vshrl.u32 %v9646, 7
  %v9648 = vsub.s32 0, %v9647
  %v9649 = vrot.slane %v9577, %v9648
  %v9650 = vadd.f32 %v9582, %v9649
  %v9651 = vadd.f32 %v9583, %v9649
  %v9652 = vadd.f32 %v9584, %v9649
  %v9653 = vadd.f32 %v9585, %v9649
  %v9654 = vadd.f32 %v9586, %v9649
  %v9655 = vadd.f32 %v9587, %v9649
  %v9656 = vadd.f32 %v9588, %v9649
  %v9657 = vadd.f32 %v9589, %v9649
  %v9658 = vadd.f32 %v9590, %v9649
  %v9659 = vadd.f32 %v9591, %v9649
  %v9660 = vadd.f32 %v9592, %v9649
  %v9661 = vadd.f32 %v9593, %v9649
  %v9662 = vadd.f32 %v9594, %v9649
  %v9663 = vadd.f32 %v9595, %v9649
  %v9664 = vadd.f32 %v9596, %v9649
  %v9665 = vadd.f32 %v9597, %v9649
  %v9666 = vadd.f32 %v9598, %v9649
  %v9667 = vadd.f32 %v9599, %v9649
  %v9668 = vadd.f32 %v9600, %v9649
  %v9669 = vadd.f32 %v9601, %v9649
  %v9670 = vadd.f32 %v9602, %v9649
  %v9671 = vadd.f32 %v9603, %v9649
  %v9672 = vadd.f32 %v9604, %v9649
  %v9673 = vadd.f32 %v9605, %v9649
  %v9674 = vadd.f32 %v9606, %v9649
  %v9675 = vadd.f32 %v9607, %v9649
  %v9676 = vadd.f32 %v9608, %v9649
  %v9677 = vadd.f32 %v9609, %v9649
  %v9678 = vadd.f32 %v9610, %v9649
  %v9679 = vadd.f32 %v9611, %v9649
  %v9680 = vadd.f32 %v9612, %v9649
  %v9681 = vadd.f32 %v9613, %v9649
  %v9682 = vadd.f32 %v9614, %v9649
  %v9683 = vadd.f32 %v9615, %v9649
  %v9684 = vadd.f32 %v9616, %v9649
  %v9685 = vadd.f32 %v9617, %v9649
  %v9686 = vadd.f32 %v9618, %v9649
  %v9687 = vadd.f32 %v9619, %v9649
  %v9688 = vadd.f32 %v9620, %v9649
  %v9689 = vadd.f32 %v9621, %v9649
  %v9690 = vadd.f32 %v9622, %v9649
  %v9691 = vadd.f32 %v9623, %v9649
  %v9692 = vadd.f32 %v9624, %v9649
  %v9693 = vadd.f32 %v9625, %v9649
  %v9694 = vadd.f32 %v9626, %v9649
  %v9695 = vadd.f32 %v9627, %v9649
  %v9696 = vadd.f32 %v9628, %v9649
  %v9697 = vadd.f32 %v9629, %v9649
  %v9698 = vadd.f32 %v9630, %v9649
  %v9699 = vadd.f32 %v9631, %v9649
  %v9700 = vadd.f32 %v9632, %v9649
  %v9701 = vadd.f32 %v9633, %v9649
  %v9702 = vadd.f32 %v9634, %v9649
  %v9703 = vadd.f32 %v9635, %v9649
  %v9704 = vadd.f32 %v9636, %v9649
  %v9705 = vadd.f32 %v9637, %v9649
  %v9706 = vadd.f32 %v9638, %v9649
  %v9707 = vadd.f32 %v9639, %v9649
  %v9708 = vadd.f32 %v9640, %v9649
  %v9709 = vadd.f32 %v9641, %v9649
  %v9710 = vadd.f32 %v9642, %v9649
  %v9711 = vadd.f32 %v9643, %v9649
  %v9712 = vadd.f32 %v9644, %v9649
  %v9713 = vadd.f32 %v9645, %v9649
  %v9714 = vmax.f32 %v9650, 0.0
  %v9715 = vmax.f32 %v9651, 0.0
  %v9716 = vmax.f32 %v9652, 0.0
  %v9717 = vmax.f32 %v9653, 0.0
  %v9718 = vmax.f32 %v9654, 0.0
  %v9719 = vmax.f32 %v9655, 0.0
  %v9720 = vmax.f32 %v9656, 0.0
  %v9721 = vmax.f32 %v9657, 0.0
  %v9722 = vmax.f32 %v9658, 0.0
  %v9723 = vmax.f32 %v9659, 0.0
  %v9724 = vmax.f32 %v9660, 0.0
  %v9725 = vmax.f32 %v9661, 0.0
  %v9726 = vmax.f32 %v9662, 0.0
  %v9727 = vmax.f32 %v9663, 0.0
  %v9728 = vmax.f32 %v9664, 0.0
  %v9729 = vmax.f32 %v9665, 0.0
  %v9730 = vmax.f32 %v9666, 0.0
  %v9731 = vmax.f32 %v9667, 0.0
  %v9732 = vmax.f32 %v9668, 0.0
  %v9733 = vmax.f32 %v9669, 0.0
  %v9734 = vmax.f32 %v9670, 0.0
  %v9735 = vmax.f32 %v9671, 0.0
  %v9736 = vmax.f32 %v9672, 0.0
  %v9737 = vmax.f32 %v9673, 0.0
  %v9738 = vmax.f32 %v9674, 0.0
  %v9739 = vmax.f32 %v9675, 0.0
  %v9740 = vmax.f32 %v9676, 0.0
  %v9741 = vmax.f32 %v9677, 0.0
  %v9742 = vmax.f32 %v9678, 0.0
  %v9743 = vmax.f32 %v9679, 0.0
  %v9744 = vmax.f32 %v9680, 0.0
  %v9745 = vmax.f32 %v9681, 0.0
  %v9746 = vmax.f32 %v9682, 0.0
  %v9747 = vmax.f32 %v9683, 0.0
  %v9748 = vmax.f32 %v9684, 0.0
  %v9749 = vmax.f32 %v9685, 0.0
  %v9750 = vmax.f32 %v9686, 0.0
  %v9751 = vmax.f32 %v9687, 0.0
  %v9752 = vmax.f32 %v9688, 0.0
  %v9753 = vmax.f32 %v9689, 0.0
  %v9754 = vmax.f32 %v9690, 0.0
  %v9755 = vmax.f32 %v9691, 0.0
  %v9756 = vmax.f32 %v9692, 0.0
  %v9757 = vmax.f32 %v9693, 0.0
  %v9758 = vmax.f32 %v9694, 0.0
  %v9759 = vmax.f32 %v9695, 0.0
  %v9760 = vmax.f32 %v9696, 0.0
  %v9761 = vmax.f32 %v9697, 0.0
  %v9762 = vmax.f32 %v9698, 0.0
  %v9763 = vmax.f32 %v9699, 0.0
  %v9764 = vmax.f32 %v9700, 0.0
  %v9765 = vmax.f32 %v9701, 0.0
  %v9766 = vmax.f32 %v9702, 0.0
  %v9767 = vmax.f32 %v9703, 0.0
  %v9768 = vmax.f32 %v9704, 0.0
  %v9769 = vmax.f32 %v9705, 0.0
  %v9770 = vmax.f32 %v9706, 0.0
  %v9771 = vmax.f32 %v9707, 0.0
  %v9772 = vmax.f32 %v9708, 0.0
  %v9773 = vmax.f32 %v9709, 0.0
  %v9774 = vmax.f32 %v9710, 0.0
  %v9775 = vmax.f32 %v9711, 0.0
  %v9776 = vmax.f32 %v9712, 0.0
  %v9777 = vmax.f32 %v9713, 0.0
  %9778 = vst.msk [vmem:[%s4] sm:$0xff] %vm3458, %v9714
  %9779 = vst.msk [vmem:[%s4 + $0x8] sm:$0xff] %vm3458, %v9715
  %9780 = vst.msk [vmem:[%s4 + $0x10] sm:$0xff] %vm3458, %v9716
  %9781 = vst.msk [vmem:[%s4 + $0x18] sm:$0xff] %vm3458, %v9717
  %9782 = vst.msk [vmem:[%s4 + $0x20] sm:$0xff] %vm3458, %v9718
  %9783 = vst.msk [vmem:[%s4 + $0x28] sm:$0xff] %vm3458, %v9719
  %9784 = vst.msk [vmem:[%s4 + $0x30] sm:$0xff] %vm3458, %v9720
  %9785 = vst.msk [vmem:[%s4 + $0x38] sm:$0xff] %vm3458, %v9721
  %9786 = vst.msk [vmem:[%s4 + $0x40] sm:$0xff] %vm3458, %v9722
  %9787 = vst.msk [vmem:[%s4 + $0x48] sm:$0xff] %vm3458, %v9723
  %9788 = vst.msk [vmem:[%s4 + $0x50] sm:$0xff] %vm3458, %v9724
  %9789 = vst.msk [vmem:[%s4 + $0x58] sm:$0xff] %vm3458, %v9725
  %9790 = vst.msk [vmem:[%s4 + $0x60] sm:$0xff] %vm3458, %v9726
  %9791 = vst.msk [vmem:[%s4 + $0x68] sm:$0xff] %vm3458, %v9727
  %9792 = vst.msk [vmem:[%s4 + $0x70] sm:$0xff] %vm3458, %v9728
  %9793 = vst.msk [vmem:[%s4 + $0x78] sm:$0xff] %vm3458, %v9729
  %9794 = vst.msk [vmem:[%s4 + $0x80] sm:$0xff] %vm3458, %v9730
  %9795 = vst.msk [vmem:[%s4 + $0x88] sm:$0xff] %vm3458, %v9731
  %9796 = vst.msk [vmem:[%s4 + $0x90] sm:$0xff] %vm3458, %v9732
  %9797 = vst.msk [vmem:[%s4 + $0x98] sm:$0xff] %vm3458, %v9733
  %9798 = vst.msk [vmem:[%s4 + $0xa0] sm:$0xff] %vm3458, %v9734
  %9799 = vst.msk [vmem:[%s4 + $0xa8] sm:$0xff] %vm3458, %v9735
  %9800 = vst.msk [vmem:[%s4 + $0xb0] sm:$0xff] %vm3458, %v9736
  %9801 = vst.msk [vmem:[%s4 + $0xb8] sm:$0xff] %vm3458, %v9737
  %9802 = vst.msk [vmem:[%s4 + $0xc0] sm:$0xff] %vm3458, %v9738
  %9803 = vst.msk [vmem:[%s4 + $0xc8] sm:$0xff] %vm3458, %v9739
  %9804 = vst.msk [vmem:[%s4 + $0xd0] sm:$0xff] %vm3458, %v9740
  %9805 = vst.msk [vmem:[%s4 + $0xd8] sm:$0xff] %vm3458, %v9741
  %9806 = vst.msk [vmem:[%s4 + $0xe0] sm:$0xff] %vm3458, %v9742
  %9807 = vst.msk [vmem:[%s4 + $0xe8] sm:$0xff] %vm3458, %v9743
  %9808 = vst.msk [vmem:[%s4 + $0xf0] sm:$0xff] %vm3458, %v9744
  %9809 = vst.msk [vmem:[%s4 + $0xf8] sm:$0xff] %vm3458, %v9745
  %9810 = vst.msk [vmem:[%s4 + $0x100] sm:$0xff] %vm3458, %v9746
  %9811 = vst.msk [vmem:[%s4 + $0x108] sm:$0xff] %vm3458, %v9747
  %9812 = vst.msk [vmem:[%s4 + $0x110] sm:$0xff] %vm3458, %v9748
  %9813 = vst.msk [vmem:[%s4 + $0x118] sm:$0xff] %vm3458, %v9749
  %9814 = vst.msk [vmem:[%s4 + $0x120] sm:$0xff] %vm3458, %v9750
  %9815 = vst.msk [vmem:[%s4 + $0x128] sm:$0xff] %vm3458, %v9751
  %9816 = vst.msk [vmem:[%s4 + $0x130] sm:$0xff] %vm3458, %v9752
  %9817 = vst.msk [vmem:[%s4 + $0x138] sm:$0xff] %vm3458, %v9753
  %9818 = vst.msk [vmem:[%s4 + $0x140] sm:$0xff] %vm3458, %v9754
  %9819 = vst.msk [vmem:[%s4 + $0x148] sm:$0xff] %vm3458, %v9755
  %9820 = vst.msk [vmem:[%s4 + $0x150] sm:$0xff] %vm3458, %v9756
  %9821 = vst.msk [vmem:[%s4 + $0x158] sm:$0xff] %vm3458, %v9757
  %9822 = vst.msk [vmem:[%s4 + $0x160] sm:$0xff] %vm3458, %v9758
  %9823 = vst.msk [vmem:[%s4 + $0x168] sm:$0xff] %vm3458, %v9759
  %9824 = vst.msk [vmem:[%s4 + $0x170] sm:$0xff] %vm3458, %v9760
  %9825 = vst.msk [vmem:[%s4 + $0x178] sm:$0xff] %vm3458, %v9761
  %9826 = vst.msk [vmem:[%s4 + $0x180] sm:$0xff] %vm3458, %v9762
  %9827 = vst.msk [vmem:[%s4 + $0x188] sm:$0xff] %vm3458, %v9763
  %9828 = vst.msk [vmem:[%s4 + $0x190] sm:$0xff] %vm3458, %v9764
  %9829 = vst.msk [vmem:[%s4 + $0x198] sm:$0xff] %vm3458, %v9765
  %9830 = vst.msk [vmem:[%s4 + $0x1a0] sm:$0xff] %vm3458, %v9766
  %9831 = vst.msk [vmem:[%s4 + $0x1a8] sm:$0xff] %vm3458, %v9767
  %9832 = vst.msk [vmem:[%s4 + $0x1b0] sm:$0xff] %vm3458, %v9768
  %9833 = vst.msk [vmem:[%s4 + $0x1b8] sm:$0xff] %vm3458, %v9769
  %9834 = vst.msk [vmem:[%s4 + $0x1c0] sm:$0xff] %vm3458, %v9770
  %9835 = vst.msk [vmem:[%s4 + $0x1c8] sm:$0xff] %vm3458, %v9771
  %9836 = vst.msk [vmem:[%s4 + $0x1d0] sm:$0xff] %vm3458, %v9772
  %9837 = vst.msk [vmem:[%s4 + $0x1d8] sm:$0xff] %vm3458, %v9773
  %9838 = vst.msk [vmem:[%s4 + $0x1e0] sm:$0xff] %vm3458, %v9774
  %9839 = vst.msk [vmem:[%s4 + $0x1e8] sm:$0xff] %vm3458, %v9775
  %9840 = vst.msk [vmem:[%s4 + $0x1f0] sm:$0xff] %vm3458, %v9776
  %9841 = vst.msk [vmem:[%s4 + $0x1f8] sm:$0xff] %vm3458, %v9777
  // Predicated region
  $region18: #{double_conv_block.1} parent=0 // pred_check
    _
  $region19: #{double_conv_block.1} parent=0 // pred_check_branch
    %9843 = sbr.rel (0) target = $region21
  $region20: #{double_conv_block.1} parent=0 // pred_region
    _
  $region21: #{double_conv_block.1} parent=0 // pred_fallthru
    _
  // Predicated region
  $region22: #{double_conv_block.1} parent=0 // pred_check
    _
  $region23: #{double_conv_block.1} parent=0 // pred_check_branch
    %9845 = sbr.rel (0) target = $region25
  $region24: #{double_conv_block.1} parent=0 // pred_region
    _
  $region25: #{double_conv_block.1} parent=0 // pred_fallthru
    _

</llo_original>
